<compile_context>
chip_gen: v7x
topology: tpu7x:2x2x1
jax: 0.10.0
libtpu: 0.0.40
codegen_flags: <defaults>
</compile_context>

<pallas_src>
import functools

import jax
import jax.numpy as jnp
from jax.experimental import pallas as pl
from jax.experimental.pallas import tpu as pltpu


def _round_up(n, m):
    return (n + m - 1) // m * m


# ----------------------------------------------------------------------------
# Fused per-layer kernel: both directions (grid=(2,)), projection + recurrence.
# Data layout: x rows are time-major, row = t * Bp + b.
# ----------------------------------------------------------------------------
def _bigru_layer_kernel(x_ref, wih_ref, bih_ref, whh_ref, bhn_ref,
                        out_ref, gi_scr, h_scr, *, T, Bp, Hp):
    d = pl.program_id(0)  # 0 = forward, 1 = backward

    # (1) Batched input projection for this direction, hoisted out of the
    #     recurrence: (T*Bp, Dp) @ (Dp, 3Hp) + folded bias, one MXU matmul.
    gi_scr[...] = (
        jnp.dot(x_ref[...], wih_ref[...], preferred_element_type=jnp.float32)
        + bih_ref[...]
    )

    # (2) Sequential GRU recurrence over time, fully VMEM-resident.
    h_scr[...] = jnp.zeros_like(h_scr)          # h0 = 0

    def step(t, carry):
        # Forward walks t = 0..T-1, backward walks T-1..0.
        tt = t + d * (T - 1 - 2 * t)
        row = pl.multiple_of(tt * Bp, Bp)

        gi_t = gi_scr[pl.ds(row, Bp), :]         # (Bp, 3Hp)
        h_prev = h_scr[...]                      # (Bp, Hp)
        gh = jnp.dot(h_prev, whh_ref[...], preferred_element_type=jnp.float32)

        # Gate order [r, z, n]; each gate occupies a 128-aligned Hp block.
        r = jax.nn.sigmoid(gi_t[:, 0:Hp] + gh[:, 0:Hp])
        z = jax.nn.sigmoid(gi_t[:, Hp:2 * Hp] + gh[:, Hp:2 * Hp])
        n = jnp.tanh(gi_t[:, 2 * Hp:] + r * (gh[:, 2 * Hp:] + bhn_ref[...]))
        h_new = (1.0 - z) * n + z * h_prev

        h_scr[...] = h_new
        out_ref[pl.ds(row, Bp), :] = h_new       # lane-dense (Bp, Hp) store
        return carry

    jax.lax.fori_loop(0, T, step, 0, unroll=True)


def bigru_layer(x2d, wih, bih, whh, bhn, *, T, Bp, Hp):
    """One bidirectional GRU layer.

    x2d: (T*Bp, Dp) time-major input (row = t*Bp + b), zero-padded.
    wih: (2, Dp, 3Hp)  whh: (2, Hp, 3Hp)  bih: (2, 1, 3Hp)  bhn: (2, 1, Hp)
    returns (T*Bp, 2Hp): columns [0:Hp] forward hidden, [Hp:2Hp] backward.
    """
    Dp = x2d.shape[1]
    kernel = functools.partial(_bigru_layer_kernel, T=T, Bp=Bp, Hp=Hp)
    return pl.pallas_call(
        kernel,
        out_shape=jax.ShapeDtypeStruct((T * Bp, 2 * Hp), jnp.float32),
        grid_spec=pltpu.PrefetchScalarGridSpec(
            num_scalar_prefetch=0,
            grid=(2,),  # direction axis
            in_specs=[
                pl.BlockSpec((T * Bp, Dp), lambda d: (0, 0)),
                pl.BlockSpec((None, Dp, 3 * Hp), lambda d: (d, 0, 0)),
                pl.BlockSpec((None, 1, 3 * Hp), lambda d: (d, 0, 0)),
                pl.BlockSpec((None, Hp, 3 * Hp), lambda d: (d, 0, 0)),
                pl.BlockSpec((None, 1, Hp), lambda d: (d, 0, 0)),
            ],
            out_specs=pl.BlockSpec((T * Bp, Hp), lambda d: (0, d)),
            scratch_shapes=[
                pltpu.VMEM((T * Bp, 3 * Hp), jnp.float32),  # GI (projection)
                pltpu.VMEM((Bp, Hp), jnp.float32),          # hidden state
            ],
        ),
        compiler_params=pltpu.CompilerParams(
            dimension_semantics=("parallel",)),
    )(x2d, wih, bih, whh, bhn)


# ----------------------------------------------------------------------------
# Parameter init (PyTorch-layout, uniform(-1/sqrt(H), 1/sqrt(H)))
# ----------------------------------------------------------------------------
def init_params(key, input_size, hidden_size, num_layers, output_size):
    H = hidden_size
    bound = 1.0 / jnp.sqrt(jnp.float32(H))
    params = {"layers": []}
    for layer in range(num_layers):
        d_in = input_size if layer == 0 else 2 * H
        layer_p = {}
        for direction in ("fwd", "bwd"):
            key, k1, k2, k3, k4 = jax.random.split(key, 5)
            layer_p[direction] = {
                "wih": jax.random.uniform(k1, (3 * H, d_in), jnp.float32, -bound, bound),
                "whh": jax.random.uniform(k2, (3 * H, H), jnp.float32, -bound, bound),
                "bih": jax.random.uniform(k3, (3 * H,), jnp.float32, -bound, bound),
                "bhh": jax.random.uniform(k4, (3 * H,), jnp.float32, -bound, bound),
            }
        params["layers"].append(layer_p)
    key, k1, k2 = jax.random.split(key, 3)
    fb = 1.0 / jnp.sqrt(jnp.float32(2 * H))
    params["fc_w"] = jax.random.uniform(k1, (output_size, 2 * H), jnp.float32, -fb, fb)
    params["fc_b"] = jax.random.uniform(k2, (output_size,), jnp.float32, -fb, fb)
    return params


# ----------------------------------------------------------------------------
# Pack / pad parameters into the kernel layout (lane-dense, biases folded).
# ----------------------------------------------------------------------------
def _pad_gate_cols(w, H, Hp):
    """(rows, 3H) -> (rows, 3Hp): gate g's H columns placed at [g*Hp, g*Hp+H)."""
    rows = w.shape[0]
    out = jnp.zeros((rows, 3 * Hp), jnp.float32)
    for g in range(3):
        out = out.at[:, g * Hp:g * Hp + H].set(w[:, g * H:(g + 1) * H])
    return out


def pack_params(params, input_size, hidden_size, output_size):
    H = hidden_size
    Hp = _round_up(H, 128)
    packed = {"layers": []}
    for layer, layer_p in enumerate(params["layers"]):
        d_in_p = _round_up(input_size, 128) if layer == 0 else 2 * Hp
        wih_s, bih_s, whh_s, bhn_s = [], [], [], []
        for direction in ("fwd", "bwd"):
            p = layer_p[direction]
            # Fold r/z hh-biases and the n ih-bias into one projection bias.
            b_proj = jnp.concatenate([p["bih"][:2 * H] + p["bhh"][:2 * H],
                                      p["bih"][2 * H:]])
            b_hn = p["bhh"][2 * H:]

            wih_t = _pad_gate_cols(p["wih"].T, H, Hp)   # (d_in, 3Hp)
            whh_t = _pad_gate_cols(p["whh"].T, H, Hp)   # (H, 3Hp)
            b_proj_p = _pad_gate_cols(b_proj[None, :], H, Hp)  # (1, 3Hp)

            wih_full = jnp.zeros((d_in_p, 3 * Hp), jnp.float32)
            if layer == 0:
                wih_full = wih_full.at[:wih_t.shape[0]].set(wih_t)
            else:
                # Previous layer output: fwd half at cols [0:Hp), bwd at [Hp:2Hp).
                wih_full = wih_full.at[0:H].set(wih_t[0:H])
                wih_full = wih_full.at[Hp:Hp + H].set(wih_t[H:2 * H])
            whh_full = jnp.zeros((Hp, 3 * Hp), jnp.float32).at[:H].set(whh_t)
            b_hn_p = jnp.zeros((1, Hp), jnp.float32).at[:, :H].set(b_hn[None, :])

            wih_s.append(wih_full)
            bih_s.append(b_proj_p)
            whh_s.append(whh_full)
            bhn_s.append(b_hn_p)
        packed["layers"].append({
            "wih": jnp.stack(wih_s),   # (2, d_in_p, 3Hp)
            "bih": jnp.stack(bih_s),   # (2, 1, 3Hp)
            "whh": jnp.stack(whh_s),   # (2, Hp, 3Hp)
            "bhn": jnp.stack(bhn_s),   # (2, 1, Hp)
        })
    # Final Linear weights, rows scattered to the padded 2Hp layout.
    fc_w_t = params["fc_w"].T                       # (2H, O)
    fc_w_p = jnp.zeros((2 * Hp, output_size), jnp.float32)
    fc_w_p = fc_w_p.at[0:H].set(fc_w_t[0:H])
    fc_w_p = fc_w_p.at[Hp:Hp + H].set(fc_w_t[H:2 * H])
    packed["fc_w"] = fc_w_p
    packed["fc_b"] = params["fc_b"]
    return packed


# ----------------------------------------------------------------------------
# Full BiGRU forward (Pallas layers + tiny XLA Linear)
# ----------------------------------------------------------------------------
def bigru_forward(x, packed):
    B, T, D = x.shape
    Bp = _round_up(B, 8)
    Hp = packed["layers"][0]["whh"].shape[1]
    Dp = packed["layers"][0]["wih"].shape[1]

    # (B, T, D) -> time-major (T*Bp, Dp), zero-padded batch and feature dims.
    x_tm = jnp.transpose(x, (1, 0, 2))
    x_tm = jnp.pad(x_tm, ((0, 0), (0, Bp - B), (0, Dp - D)))
    h = x_tm.reshape(T * Bp, Dp)

    for lp in packed["layers"]:
        h = bigru_layer(h, lp["wih"], lp["bih"], lp["whh"], lp["bhn"],
                        T=T, Bp=Bp, Hp=Hp)          # (T*Bp, 2Hp)

    # out[:, -1, :] == rows of the last time step; padded hidden cols are 0 and
    # fc_w rows there are 0, so the padded layout feeds the Linear directly.
    last = h[(T - 1) * Bp:(T - 1) * Bp + B]          # (B, 2Hp)
    # Tiny (B,2H)@(2H,O) left to XLA per perf review (pure launch overhead as a kernel).
    return last @ packed["fc_w"] + packed["fc_b"][None, :]


# ----------------------------------------------------------------------------
# Pure-JAX reference (lax.scan, unpadded PyTorch-layout params)
# ----------------------------------------------------------------------------
def _ref_gru_dir(x, wih, whh, bih, bhh, reverse):
    B, T, D = x.shape
    H = whh.shape[1]
    xs = jnp.flip(x, axis=1) if reverse else x

    def step(h, x_t):
        gi = x_t @ wih.T + bih
        gh = h @ whh.T + bhh
        r = jax.nn.sigmoid(gi[:, :H] + gh[:, :H])
        z = jax.nn.sigmoid(gi[:, H:2 * H] + gh[:, H:2 * H])
        n = jnp.tanh(gi[:, 2 * H:] + r * gh[:, 2 * H:])
        h_new = (1.0 - z) * n + z * h
        return h_new, h_new

    _, outs = jax.lax.scan(step, jnp.zeros((B, H), jnp.float32),
                           jnp.transpose(xs, (1, 0, 2)))
    outs = jnp.transpose(outs, (1, 0, 2))
    return jnp.flip(outs, axis=1) if reverse else outs


def bigru_reference(x, params):
    h = x
    for layer_p in params["layers"]:
        pf, pb = layer_p["fwd"], layer_p["bwd"]
        of = _ref_gru_dir(h, pf["wih"], pf["whh"], pf["bih"], pf["bhh"], False)
        ob = _ref_gru_dir(h, pb["wih"], pb["whh"], pb["bih"], pb["bhh"], True)
        h = jnp.concatenate([of, ob], axis=-1)
    last = h[:, -1, :]
    return last @ params["fc_w"].T + params["fc_b"]


if __name__ == "__main__":
    B, T = 2, 8
    input_size, hidden_size, num_layers, output_size = 16, 32, 2, 4

    key = jax.random.PRNGKey(0)
    key, kx = jax.random.split(key)
    x = jax.random.normal(kx, (B, T, input_size), jnp.float32)

    params = init_params(key, input_size, hidden_size, num_layers, output_size)
    packed = pack_params(params, input_size, hidden_size, output_size)

    forward = jax.jit(bigru_forward)
    out = forward(x, packed)
    out = jax.block_until_ready(out)

    ref = bigru_reference(x, params)
    assert out.shape == (B, output_size)
    assert jnp.allclose(out, ref, atol=1e-4, rtol=1e-4), "mismatch vs reference"

    print("KERNEL_OK")
</pallas_src>

<mosaic_0001>
module attributes {stable_mosaic.version = 11 : i64} {
  func.func @_bigru_layer_kernel(%arg0: i32, %arg1: memref<64x128xf32, #tpu.memory_space<vmem>>, %arg2: memref<1x128x384xf32, #tpu.memory_space<vmem>>, %arg3: memref<1x1x384xf32, #tpu.memory_space<vmem>>, %arg4: memref<1x128x384xf32, #tpu.memory_space<vmem>>, %arg5: memref<1x1x128xf32, #tpu.memory_space<vmem>>, %arg6: memref<64x128xf32, #tpu.memory_space<vmem>>, %arg7: memref<64x384xf32, #tpu.memory_space<vmem>>, %arg8: memref<8x128xf32, #tpu.memory_space<vmem>>) attributes {dimension_semantics = [#tpu.dimension_semantics<parallel>], iteration_bounds = array<i64: 2>, scalar_prefetch = 0 : i64, scratch_operands = 2 : i64, tpu.core_type = #tpu.core_type<tc>, window_params = [{pipeline_mode = #tpu.pipeline_mode<synchronous>, transform_indices = @transform_0, window_bounds = array<i64: 64, 128>}, {transform_indices = @transform_1, window_bounds = array<i64: 1, 128, 384>}, {transform_indices = @transform_2, window_bounds = array<i64: 1, 1, 384>}, {transform_indices = @transform_3, window_bounds = array<i64: 1, 128, 384>}, {transform_indices = @transform_4, window_bounds = array<i64: 1, 1, 128>}, {transform_indices = @transform_5, window_bounds = array<i64: 64, 128>}]} {
    %c0 = arith.constant 0 : index
    %c0_0 = arith.constant 0 : index
    %0 = vector.load %arg1[%c0, %c0_0] : memref<64x128xf32, #tpu.memory_space<vmem>>, vector<64x128xf32>
    %c0_1 = arith.constant 0 : index
    %c0_2 = arith.constant 0 : index
    %c0_3 = arith.constant 0 : index
    %1 = vector.load %arg2[%c0_1, %c0_2, %c0_3] : memref<1x128x384xf32, #tpu.memory_space<vmem>>, vector<1x128x384xf32>
    %2 = vector.shape_cast %1 : vector<1x128x384xf32> to vector<128x384xf32>
    %cst = arith.constant dense<0.000000e+00> : vector<64x384xf32>
    %3 = tpu.matmul %0, %2, %cst {dimension_numbers = #tpu.dot_dimension_numbers<[1], [0], [0], [1], [0, 0, 1, 1], [], []>} : vector<64x128xf32>, vector<128x384xf32>, vector<64x384xf32> -> vector<64x384xf32>
    %c0_4 = arith.constant 0 : index
    %c0_5 = arith.constant 0 : index
    %c0_6 = arith.constant 0 : index
    %4 = vector.load %arg3[%c0_4, %c0_5, %c0_6] : memref<1x1x384xf32, #tpu.memory_space<vmem>>, vector<1x1x384xf32>
    %5 = vector.shape_cast %4 : vector<1x1x384xf32> to vector<1x384xf32>
    %6 = vector.broadcast %5 : vector<1x384xf32> to vector<64x384xf32>
    %7 = arith.addf %3, %6 : vector<64x384xf32>
    %c0_7 = arith.constant 0 : index
    %c0_8 = arith.constant 0 : index
    %8 = vector.load %arg7[%c0_7, %c0_8] : memref<64x384xf32, #tpu.memory_space<vmem>>, vector<64x384xf32>
    tpu.vector_store %arg7[%c0_7, %c0_8], %7 {strides = array<i32>} : memref<64x384xf32, #tpu.memory_space<vmem>>, vector<64x384xf32>,
    %cst_9 = arith.constant 0.000000e+00 : f32
    %9 = vector.broadcast %cst_9 : f32 to vector<8x128xf32>
    %c0_10 = arith.constant 0 : index
    %c0_11 = arith.constant 0 : index
    %10 = vector.load %arg8[%c0_10, %c0_11] : memref<8x128xf32, #tpu.memory_space<vmem>>, vector<8x128xf32>
    tpu.vector_store %arg8[%c0_10, %c0_11], %9 {strides = array<i32>} : memref<8x128xf32, #tpu.memory_space<vmem>>, vector<8x128xf32>,
    %c0_i32 = arith.constant 0 : i32
    %c2_i32 = arith.constant 2 : i32
    %11 = arith.muli %c2_i32, %c0_i32 : i32
    %c7_i32 = arith.constant 7 : i32
    %12 = arith.subi %c7_i32, %11 : i32
    %13 = arith.muli %arg0, %12 : i32
    %14 = arith.addi %c0_i32, %13 : i32
    %c8_i32 = arith.constant 8 : i32
    %15 = arith.muli %14, %c8_i32 : i32
    %16 = tpu.assume_multiple %15, 8 : i32
    %17 = arith.index_cast %16 : i32 to index
    %c0_12 = arith.constant 0 : index
    %18 = vector.load %arg7[%17, %c0_12] : memref<64x384xf32, #tpu.memory_space<vmem>>, vector<8x384xf32>
    %c0_13 = arith.constant 0 : index
    %c0_14 = arith.constant 0 : index
    %19 = vector.load %arg8[%c0_13, %c0_14] : memref<8x128xf32, #tpu.memory_space<vmem>>, vector<8x128xf32>
    %c0_15 = arith.constant 0 : index
    %c0_16 = arith.constant 0 : index
    %c0_17 = arith.constant 0 : index
    %20 = vector.load %arg4[%c0_15, %c0_16, %c0_17] : memref<1x128x384xf32, #tpu.memory_space<vmem>>, vector<1x128x384xf32>
    %21 = vector.shape_cast %20 : vector<1x128x384xf32> to vector<128x384xf32>
    %cst_18 = arith.constant dense<0.000000e+00> : vector<8x384xf32>
    %22 = tpu.matmul %19, %21, %cst_18 {dimension_numbers = #tpu.dot_dimension_numbers<[1], [0], [0], [1], [0, 0, 1, 1], [], []>} : vector<8x128xf32>, vector<128x384xf32>, vector<8x384xf32> -> vector<8x384xf32>
    %23 = vector.extract_strided_slice %18 {offsets = [0, 0], sizes = [8, 128], strides = [1, 1]} : vector<8x384xf32> to vector<8x128xf32>
    %24 = vector.extract_strided_slice %22 {offsets = [0, 0], sizes = [8, 128], strides = [1, 1]} : vector<8x384xf32> to vector<8x128xf32>
    %25 = arith.addf %23, %24 : vector<8x128xf32>
    %26 = arith.negf %25 : vector<8x128xf32>
    %27 = math.exp %26 : vector<8x128xf32>
    %cst_19 = arith.constant 1.000000e+00 : f32
    %28 = vector.broadcast %cst_19 : f32 to vector<8x128xf32>
    %29 = arith.addf %28, %27 : vector<8x128xf32>
    %30 = arith.divf %28, %29 : vector<8x128xf32>
    %31 = vector.extract_strided_slice %18 {offsets = [0, 128], sizes = [8, 128], strides = [1, 1]} : vector<8x384xf32> to vector<8x128xf32>
    %32 = vector.extract_strided_slice %22 {offsets = [0, 128], sizes = [8, 128], strides = [1, 1]} : vector<8x384xf32> to vector<8x128xf32>
    %33 = arith.addf %31, %32 : vector<8x128xf32>
    %34 = arith.negf %33 : vector<8x128xf32>
    %35 = math.exp %34 : vector<8x128xf32>
    %cst_20 = arith.constant 1.000000e+00 : f32
    %36 = vector.broadcast %cst_20 : f32 to vector<8x128xf32>
    %37 = arith.addf %36, %35 : vector<8x128xf32>
    %38 = arith.divf %36, %37 : vector<8x128xf32>
    %39 = vector.extract_strided_slice %18 {offsets = [0, 256], sizes = [8, 128], strides = [1, 1]} : vector<8x384xf32> to vector<8x128xf32>
    %40 = vector.extract_strided_slice %22 {offsets = [0, 256], sizes = [8, 128], strides = [1, 1]} : vector<8x384xf32> to vector<8x128xf32>
    %c0_21 = arith.constant 0 : index
    %c0_22 = arith.constant 0 : index
    %c0_23 = arith.constant 0 : index
    %41 = vector.load %arg5[%c0_21, %c0_22, %c0_23] : memref<1x1x128xf32, #tpu.memory_space<vmem>>, vector<1x1x128xf32>
    %42 = vector.shape_cast %41 : vector<1x1x128xf32> to vector<1x128xf32>
    %43 = vector.broadcast %42 : vector<1x128xf32> to vector<8x128xf32>
    %44 = arith.addf %40, %43 : vector<8x128xf32>
    %45 = arith.mulf %30, %44 : vector<8x128xf32>
    %46 = arith.addf %39, %45 : vector<8x128xf32>
    %47 = math.tanh %46 : vector<8x128xf32>
    %cst_24 = arith.constant 1.000000e+00 : f32
    %48 = vector.broadcast %cst_24 : f32 to vector<8x128xf32>
    %49 = arith.subf %48, %38 : vector<8x128xf32>
    %50 = arith.mulf %49, %47 : vector<8x128xf32>
    %51 = arith.mulf %38, %19 : vector<8x128xf32>
    %52 = arith.addf %50, %51 : vector<8x128xf32>
    %c0_25 = arith.constant 0 : index
    %c0_26 = arith.constant 0 : index
    %53 = vector.load %arg8[%c0_25, %c0_26] : memref<8x128xf32, #tpu.memory_space<vmem>>, vector<8x128xf32>
    tpu.vector_store %arg8[%c0_25, %c0_26], %52 {strides = array<i32>} : memref<8x128xf32, #tpu.memory_space<vmem>>, vector<8x128xf32>,
    %54 = arith.index_cast %16 : i32 to index
    %c0_27 = arith.constant 0 : index
    %55 = vector.load %arg6[%54, %c0_27] : memref<64x128xf32, #tpu.memory_space<vmem>>, vector<8x128xf32>
    tpu.vector_store %arg6[%54, %c0_27], %52 {strides = array<i32>} : memref<64x128xf32, #tpu.memory_space<vmem>>, vector<8x128xf32>,
    %c1_i32 = arith.constant 1 : i32
    %c2_i32_28 = arith.constant 2 : i32
    %56 = arith.muli %c2_i32_28, %c1_i32 : i32
    %c7_i32_29 = arith.constant 7 : i32
    %57 = arith.subi %c7_i32_29, %56 : i32
    %58 = arith.muli %arg0, %57 : i32
    %59 = arith.addi %c1_i32, %58 : i32
    %c8_i32_30 = arith.constant 8 : i32
    %60 = arith.muli %59, %c8_i32_30 : i32
    %61 = tpu.assume_multiple %60, 8 : i32
    %62 = arith.index_cast %61 : i32 to index
    %c0_31 = arith.constant 0 : index
    %63 = vector.load %arg7[%62, %c0_31] : memref<64x384xf32, #tpu.memory_space<vmem>>, vector<8x384xf32>
    %c0_32 = arith.constant 0 : index
    %c0_33 = arith.constant 0 : index
    %64 = vector.load %arg8[%c0_32, %c0_33] : memref<8x128xf32, #tpu.memory_space<vmem>>, vector<8x128xf32>
    %c0_34 = arith.constant 0 : index
    %c0_35 = arith.constant 0 : index
    %c0_36 = arith.constant 0 : index
    %65 = vector.load %arg4[%c0_34, %c0_35, %c0_36] : memref<1x128x384xf32, #tpu.memory_space<vmem>>, vector<1x128x384xf32>
    %66 = vector.shape_cast %65 : vector<1x128x384xf32> to vector<128x384xf32>
    %cst_37 = arith.constant dense<0.000000e+00> : vector<8x384xf32>
    %67 = tpu.matmul %64, %66, %cst_37 {dimension_numbers = #tpu.dot_dimension_numbers<[1], [0], [0], [1], [0, 0, 1, 1], [], []>} : vector<8x128xf32>, vector<128x384xf32>, vector<8x384xf32> -> vector<8x384xf32>
    %68 = vector.extract_strided_slice %63 {offsets = [0, 0], sizes = [8, 128], strides = [1, 1]} : vector<8x384xf32> to vector<8x128xf32>
    %69 = vector.extract_strided_slice %67 {offsets = [0, 0], sizes = [8, 128], strides = [1, 1]} : vector<8x384xf32> to vector<8x128xf32>
    %70 = arith.addf %68, %69 : vector<8x128xf32>
    %71 = arith.negf %70 : vector<8x128xf32>
    %72 = math.exp %71 : vector<8x128xf32>
    %cst_38 = arith.constant 1.000000e+00 : f32
    %73 = vector.broadcast %cst_38 : f32 to vector<8x128xf32>
    %74 = arith.addf %73, %72 : vector<8x128xf32>
    %75 = arith.divf %73, %74 : vector<8x128xf32>
    %76 = vector.extract_strided_slice %63 {offsets = [0, 128], sizes = [8, 128], strides = [1, 1]} : vector<8x384xf32> to vector<8x128xf32>
    %77 = vector.extract_strided_slice %67 {offsets = [0, 128], sizes = [8, 128], strides = [1, 1]} : vector<8x384xf32> to vector<8x128xf32>
    %78 = arith.addf %76, %77 : vector<8x128xf32>
    %79 = arith.negf %78 : vector<8x128xf32>
    %80 = math.exp %79 : vector<8x128xf32>
    %cst_39 = arith.constant 1.000000e+00 : f32
    %81 = vector.broadcast %cst_39 : f32 to vector<8x128xf32>
    %82 = arith.addf %81, %80 : vector<8x128xf32>
    %83 = arith.divf %81, %82 : vector<8x128xf32>
    %84 = vector.extract_strided_slice %63 {offsets = [0, 256], sizes = [8, 128], strides = [1, 1]} : vector<8x384xf32> to vector<8x128xf32>
    %85 = vector.extract_strided_slice %67 {offsets = [0, 256], sizes = [8, 128], strides = [1, 1]} : vector<8x384xf32> to vector<8x128xf32>
    %c0_40 = arith.constant 0 : index
    %c0_41 = arith.constant 0 : index
    %c0_42 = arith.constant 0 : index
    %86 = vector.load %arg5[%c0_40, %c0_41, %c0_42] : memref<1x1x128xf32, #tpu.memory_space<vmem>>, vector<1x1x128xf32>
    %87 = vector.shape_cast %86 : vector<1x1x128xf32> to vector<1x128xf32>
    %88 = vector.broadcast %87 : vector<1x128xf32> to vector<8x128xf32>
    %89 = arith.addf %85, %88 : vector<8x128xf32>
    %90 = arith.mulf %75, %89 : vector<8x128xf32>
    %91 = arith.addf %84, %90 : vector<8x128xf32>
    %92 = math.tanh %91 : vector<8x128xf32>
    %cst_43 = arith.constant 1.000000e+00 : f32
    %93 = vector.broadcast %cst_43 : f32 to vector<8x128xf32>
    %94 = arith.subf %93, %83 : vector<8x128xf32>
    %95 = arith.mulf %94, %92 : vector<8x128xf32>
    %96 = arith.mulf %83, %64 : vector<8x128xf32>
    %97 = arith.addf %95, %96 : vector<8x128xf32>
    %c0_44 = arith.constant 0 : index
    %c0_45 = arith.constant 0 : index
    %98 = vector.load %arg8[%c0_44, %c0_45] : memref<8x128xf32, #tpu.memory_space<vmem>>, vector<8x128xf32>
    tpu.vector_store %arg8[%c0_44, %c0_45], %97 {strides = array<i32>} : memref<8x128xf32, #tpu.memory_space<vmem>>, vector<8x128xf32>,
    %99 = arith.index_cast %61 : i32 to index
    %c0_46 = arith.constant 0 : index
    %100 = vector.load %arg6[%99, %c0_46] : memref<64x128xf32, #tpu.memory_space<vmem>>, vector<8x128xf32>
    tpu.vector_store %arg6[%99, %c0_46], %97 {strides = array<i32>} : memref<64x128xf32, #tpu.memory_space<vmem>>, vector<8x128xf32>,
    %c2_i32_47 = arith.constant 2 : i32
    %c2_i32_48 = arith.constant 2 : i32
    %101 = arith.muli %c2_i32_48, %c2_i32_47 : i32
    %c7_i32_49 = arith.constant 7 : i32
    %102 = arith.subi %c7_i32_49, %101 : i32
    %103 = arith.muli %arg0, %102 : i32
    %104 = arith.addi %c2_i32_47, %103 : i32
    %c8_i32_50 = arith.constant 8 : i32
    %105 = arith.muli %104, %c8_i32_50 : i32
    %106 = tpu.assume_multiple %105, 8 : i32
    %107 = arith.index_cast %106 : i32 to index
    %c0_51 = arith.constant 0 : index
    %108 = vector.load %arg7[%107, %c0_51] : memref<64x384xf32, #tpu.memory_space<vmem>>, vector<8x384xf32>
    %c0_52 = arith.constant 0 : index
    %c0_53 = arith.constant 0 : index
    %109 = vector.load %arg8[%c0_52, %c0_53] : memref<8x128xf32, #tpu.memory_space<vmem>>, vector<8x128xf32>
    %c0_54 = arith.constant 0 : index
    %c0_55 = arith.constant 0 : index
    %c0_56 = arith.constant 0 : index
    %110 = vector.load %arg4[%c0_54, %c0_55, %c0_56] : memref<1x128x384xf32, #tpu.memory_space<vmem>>, vector<1x128x384xf32>
    %111 = vector.shape_cast %110 : vector<1x128x384xf32> to vector<128x384xf32>
    %cst_57 = arith.constant dense<0.000000e+00> : vector<8x384xf32>
    %112 = tpu.matmul %109, %111, %cst_57 {dimension_numbers = #tpu.dot_dimension_numbers<[1], [0], [0], [1], [0, 0, 1, 1], [], []>} : vector<8x128xf32>, vector<128x384xf32>, vector<8x384xf32> -> vector<8x384xf32>
    %113 = vector.extract_strided_slice %108 {offsets = [0, 0], sizes = [8, 128], strides = [1, 1]} : vector<8x384xf32> to vector<8x128xf32>
    %114 = vector.extract_strided_slice %112 {offsets = [0, 0], sizes = [8, 128], strides = [1, 1]} : vector<8x384xf32> to vector<8x128xf32>
    %115 = arith.addf %113, %114 : vector<8x128xf32>
    %116 = arith.negf %115 : vector<8x128xf32>
    %117 = math.exp %116 : vector<8x128xf32>
    %cst_58 = arith.constant 1.000000e+00 : f32
    %118 = vector.broadcast %cst_58 : f32 to vector<8x128xf32>
    %119 = arith.addf %118, %117 : vector<8x128xf32>
    %120 = arith.divf %118, %119 : vector<8x128xf32>
    %121 = vector.extract_strided_slice %108 {offsets = [0, 128], sizes = [8, 128], strides = [1, 1]} : vector<8x384xf32> to vector<8x128xf32>
    %122 = vector.extract_strided_slice %112 {offsets = [0, 128], sizes = [8, 128], strides = [1, 1]} : vector<8x384xf32> to vector<8x128xf32>
    %123 = arith.addf %121, %122 : vector<8x128xf32>
    %124 = arith.negf %123 : vector<8x128xf32>
    %125 = math.exp %124 : vector<8x128xf32>
    %cst_59 = arith.constant 1.000000e+00 : f32
    %126 = vector.broadcast %cst_59 : f32 to vector<8x128xf32>
    %127 = arith.addf %126, %125 : vector<8x128xf32>
    %128 = arith.divf %126, %127 : vector<8x128xf32>
    %129 = vector.extract_strided_slice %108 {offsets = [0, 256], sizes = [8, 128], strides = [1, 1]} : vector<8x384xf32> to vector<8x128xf32>
    %130 = vector.extract_strided_slice %112 {offsets = [0, 256], sizes = [8, 128], strides = [1, 1]} : vector<8x384xf32> to vector<8x128xf32>
    %c0_60 = arith.constant 0 : index
    %c0_61 = arith.constant 0 : index
    %c0_62 = arith.constant 0 : index
    %131 = vector.load %arg5[%c0_60, %c0_61, %c0_62] : memref<1x1x128xf32, #tpu.memory_space<vmem>>, vector<1x1x128xf32>
    %132 = vector.shape_cast %131 : vector<1x1x128xf32> to vector<1x128xf32>
    %133 = vector.broadcast %132 : vector<1x128xf32> to vector<8x128xf32>
    %134 = arith.addf %130, %133 : vector<8x128xf32>
    %135 = arith.mulf %120, %134 : vector<8x128xf32>
    %136 = arith.addf %129, %135 : vector<8x128xf32>
    %137 = math.tanh %136 : vector<8x128xf32>
    %cst_63 = arith.constant 1.000000e+00 : f32
    %138 = vector.broadcast %cst_63 : f32 to vector<8x128xf32>
    %139 = arith.subf %138, %128 : vector<8x128xf32>
    %140 = arith.mulf %139, %137 : vector<8x128xf32>
    %141 = arith.mulf %128, %109 : vector<8x128xf32>
    %142 = arith.addf %140, %141 : vector<8x128xf32>
    %c0_64 = arith.constant 0 : index
    %c0_65 = arith.constant 0 : index
    %143 = vector.load %arg8[%c0_64, %c0_65] : memref<8x128xf32, #tpu.memory_space<vmem>>, vector<8x128xf32>
    tpu.vector_store %arg8[%c0_64, %c0_65], %142 {strides = array<i32>} : memref<8x128xf32, #tpu.memory_space<vmem>>, vector<8x128xf32>,
    %144 = arith.index_cast %106 : i32 to index
    %c0_66 = arith.constant 0 : index
    %145 = vector.load %arg6[%144, %c0_66] : memref<64x128xf32, #tpu.memory_space<vmem>>, vector<8x128xf32>
    tpu.vector_store %arg6[%144, %c0_66], %142 {strides = array<i32>} : memref<64x128xf32, #tpu.memory_space<vmem>>, vector<8x128xf32>,
    %c3_i32 = arith.constant 3 : i32
    %c2_i32_67 = arith.constant 2 : i32
    %146 = arith.muli %c2_i32_67, %c3_i32 : i32
    %c7_i32_68 = arith.constant 7 : i32
    %147 = arith.subi %c7_i32_68, %146 : i32
    %148 = arith.muli %arg0, %147 : i32
    %149 = arith.addi %c3_i32, %148 : i32
    %c8_i32_69 = arith.constant 8 : i32
    %150 = arith.muli %149, %c8_i32_69 : i32
    %151 = tpu.assume_multiple %150, 8 : i32
    %152 = arith.index_cast %151 : i32 to index
    %c0_70 = arith.constant 0 : index
    %153 = vector.load %arg7[%152, %c0_70] : memref<64x384xf32, #tpu.memory_space<vmem>>, vector<8x384xf32>
    %c0_71 = arith.constant 0 : index
    %c0_72 = arith.constant 0 : index
    %154 = vector.load %arg8[%c0_71, %c0_72] : memref<8x128xf32, #tpu.memory_space<vmem>>, vector<8x128xf32>
    %c0_73 = arith.constant 0 : index
    %c0_74 = arith.constant 0 : index
    %c0_75 = arith.constant 0 : index
    %155 = vector.load %arg4[%c0_73, %c0_74, %c0_75] : memref<1x128x384xf32, #tpu.memory_space<vmem>>, vector<1x128x384xf32>
    %156 = vector.shape_cast %155 : vector<1x128x384xf32> to vector<128x384xf32>
    %cst_76 = arith.constant dense<0.000000e+00> : vector<8x384xf32>
    %157 = tpu.matmul %154, %156, %cst_76 {dimension_numbers = #tpu.dot_dimension_numbers<[1], [0], [0], [1], [0, 0, 1, 1], [], []>} : vector<8x128xf32>, vector<128x384xf32>, vector<8x384xf32> -> vector<8x384xf32>
    %158 = vector.extract_strided_slice %153 {offsets = [0, 0], sizes = [8, 128], strides = [1, 1]} : vector<8x384xf32> to vector<8x128xf32>
    %159 = vector.extract_strided_slice %157 {offsets = [0, 0], sizes = [8, 128], strides = [1, 1]} : vector<8x384xf32> to vector<8x128xf32>
    %160 = arith.addf %158, %159 : vector<8x128xf32>
    %161 = arith.negf %160 : vector<8x128xf32>
    %162 = math.exp %161 : vector<8x128xf32>
    %cst_77 = arith.constant 1.000000e+00 : f32
    %163 = vector.broadcast %cst_77 : f32 to vector<8x128xf32>
    %164 = arith.addf %163, %162 : vector<8x128xf32>
    %165 = arith.divf %163, %164 : vector<8x128xf32>
    %166 = vector.extract_strided_slice %153 {offsets = [0, 128], sizes = [8, 128], strides = [1, 1]} : vector<8x384xf32> to vector<8x128xf32>
    %167 = vector.extract_strided_slice %157 {offsets = [0, 128], sizes = [8, 128], strides = [1, 1]} : vector<8x384xf32> to vector<8x128xf32>
    %168 = arith.addf %166, %167 : vector<8x128xf32>
    %169 = arith.negf %168 : vector<8x128xf32>
    %170 = math.exp %169 : vector<8x128xf32>
    %cst_78 = arith.constant 1.000000e+00 : f32
    %171 = vector.broadcast %cst_78 : f32 to vector<8x128xf32>
    %172 = arith.addf %171, %170 : vector<8x128xf32>
    %173 = arith.divf %171, %172 : vector<8x128xf32>
    %174 = vector.extract_strided_slice %153 {offsets = [0, 256], sizes = [8, 128], strides = [1, 1]} : vector<8x384xf32> to vector<8x128xf32>
    %175 = vector.extract_strided_slice %157 {offsets = [0, 256], sizes = [8, 128], strides = [1, 1]} : vector<8x384xf32> to vector<8x128xf32>
    %c0_79 = arith.constant 0 : index
    %c0_80 = arith.constant 0 : index
    %c0_81 = arith.constant 0 : index
    %176 = vector.load %arg5[%c0_79, %c0_80, %c0_81] : memref<1x1x128xf32, #tpu.memory_space<vmem>>, vector<1x1x128xf32>
    %177 = vector.shape_cast %176 : vector<1x1x128xf32> to vector<1x128xf32>
    %178 = vector.broadcast %177 : vector<1x128xf32> to vector<8x128xf32>
    %179 = arith.addf %175, %178 : vector<8x128xf32>
    %180 = arith.mulf %165, %179 : vector<8x128xf32>
    %181 = arith.addf %174, %180 : vector<8x128xf32>
    %182 = math.tanh %181 : vector<8x128xf32>
    %cst_82 = arith.constant 1.000000e+00 : f32
    %183 = vector.broadcast %cst_82 : f32 to vector<8x128xf32>
    %184 = arith.subf %183, %173 : vector<8x128xf32>
    %185 = arith.mulf %184, %182 : vector<8x128xf32>
    %186 = arith.mulf %173, %154 : vector<8x128xf32>
    %187 = arith.addf %185, %186 : vector<8x128xf32>
    %c0_83 = arith.constant 0 : index
    %c0_84 = arith.constant 0 : index
    %188 = vector.load %arg8[%c0_83, %c0_84] : memref<8x128xf32, #tpu.memory_space<vmem>>, vector<8x128xf32>
    tpu.vector_store %arg8[%c0_83, %c0_84], %187 {strides = array<i32>} : memref<8x128xf32, #tpu.memory_space<vmem>>, vector<8x128xf32>,
    %189 = arith.index_cast %151 : i32 to index
    %c0_85 = arith.constant 0 : index
    %190 = vector.load %arg6[%189, %c0_85] : memref<64x128xf32, #tpu.memory_space<vmem>>, vector<8x128xf32>
    tpu.vector_store %arg6[%189, %c0_85], %187 {strides = array<i32>} : memref<64x128xf32, #tpu.memory_space<vmem>>, vector<8x128xf32>,
    %c4_i32 = arith.constant 4 : i32
    %c2_i32_86 = arith.constant 2 : i32
    %191 = arith.muli %c2_i32_86, %c4_i32 : i32
    %c7_i32_87 = arith.constant 7 : i32
    %192 = arith.subi %c7_i32_87, %191 : i32
    %193 = arith.muli %arg0, %192 : i32
    %194 = arith.addi %c4_i32, %193 : i32
    %c8_i32_88 = arith.constant 8 : i32
    %195 = arith.muli %194, %c8_i32_88 : i32
    %196 = tpu.assume_multiple %195, 8 : i32
    %197 = arith.index_cast %196 : i32 to index
    %c0_89 = arith.constant 0 : index
    %198 = vector.load %arg7[%197, %c0_89] : memref<64x384xf32, #tpu.memory_space<vmem>>, vector<8x384xf32>
    %c0_90 = arith.constant 0 : index
    %c0_91 = arith.constant 0 : index
    %199 = vector.load %arg8[%c0_90, %c0_91] : memref<8x128xf32, #tpu.memory_space<vmem>>, vector<8x128xf32>
    %c0_92 = arith.constant 0 : index
    %c0_93 = arith.constant 0 : index
    %c0_94 = arith.constant 0 : index
    %200 = vector.load %arg4[%c0_92, %c0_93, %c0_94] : memref<1x128x384xf32, #tpu.memory_space<vmem>>, vector<1x128x384xf32>
    %201 = vector.shape_cast %200 : vector<1x128x384xf32> to vector<128x384xf32>
    %cst_95 = arith.constant dense<0.000000e+00> : vector<8x384xf32>
    %202 = tpu.matmul %199, %201, %cst_95 {dimension_numbers = #tpu.dot_dimension_numbers<[1], [0], [0], [1], [0, 0, 1, 1], [], []>} : vector<8x128xf32>, vector<128x384xf32>, vector<8x384xf32> -> vector<8x384xf32>
    %203 = vector.extract_strided_slice %198 {offsets = [0, 0], sizes = [8, 128], strides = [1, 1]} : vector<8x384xf32> to vector<8x128xf32>
    %204 = vector.extract_strided_slice %202 {offsets = [0, 0], sizes = [8, 128], strides = [1, 1]} : vector<8x384xf32> to vector<8x128xf32>
    %205 = arith.addf %203, %204 : vector<8x128xf32>
    %206 = arith.negf %205 : vector<8x128xf32>
    %207 = math.exp %206 : vector<8x128xf32>
    %cst_96 = arith.constant 1.000000e+00 : f32
    %208 = vector.broadcast %cst_96 : f32 to vector<8x128xf32>
    %209 = arith.addf %208, %207 : vector<8x128xf32>
    %210 = arith.divf %208, %209 : vector<8x128xf32>
    %211 = vector.extract_strided_slice %198 {offsets = [0, 128], sizes = [8, 128], strides = [1, 1]} : vector<8x384xf32> to vector<8x128xf32>
    %212 = vector.extract_strided_slice %202 {offsets = [0, 128], sizes = [8, 128], strides = [1, 1]} : vector<8x384xf32> to vector<8x128xf32>
    %213 = arith.addf %211, %212 : vector<8x128xf32>
    %214 = arith.negf %213 : vector<8x128xf32>
    %215 = math.exp %214 : vector<8x128xf32>
    %cst_97 = arith.constant 1.000000e+00 : f32
    %216 = vector.broadcast %cst_97 : f32 to vector<8x128xf32>
    %217 = arith.addf %216, %215 : vector<8x128xf32>
    %218 = arith.divf %216, %217 : vector<8x128xf32>
    %219 = vector.extract_strided_slice %198 {offsets = [0, 256], sizes = [8, 128], strides = [1, 1]} : vector<8x384xf32> to vector<8x128xf32>
    %220 = vector.extract_strided_slice %202 {offsets = [0, 256], sizes = [8, 128], strides = [1, 1]} : vector<8x384xf32> to vector<8x128xf32>
    %c0_98 = arith.constant 0 : index
    %c0_99 = arith.constant 0 : index
    %c0_100 = arith.constant 0 : index
    %221 = vector.load %arg5[%c0_98, %c0_99, %c0_100] : memref<1x1x128xf32, #tpu.memory_space<vmem>>, vector<1x1x128xf32>
    %222 = vector.shape_cast %221 : vector<1x1x128xf32> to vector<1x128xf32>
    %223 = vector.broadcast %222 : vector<1x128xf32> to vector<8x128xf32>
    %224 = arith.addf %220, %223 : vector<8x128xf32>
    %225 = arith.mulf %210, %224 : vector<8x128xf32>
    %226 = arith.addf %219, %225 : vector<8x128xf32>
    %227 = math.tanh %226 : vector<8x128xf32>
    %cst_101 = arith.constant 1.000000e+00 : f32
    %228 = vector.broadcast %cst_101 : f32 to vector<8x128xf32>
    %229 = arith.subf %228, %218 : vector<8x128xf32>
    %230 = arith.mulf %229, %227 : vector<8x128xf32>
    %231 = arith.mulf %218, %199 : vector<8x128xf32>
    %232 = arith.addf %230, %231 : vector<8x128xf32>
    %c0_102 = arith.constant 0 : index
    %c0_103 = arith.constant 0 : index
    %233 = vector.load %arg8[%c0_102, %c0_103] : memref<8x128xf32, #tpu.memory_space<vmem>>, vector<8x128xf32>
    tpu.vector_store %arg8[%c0_102, %c0_103], %232 {strides = array<i32>} : memref<8x128xf32, #tpu.memory_space<vmem>>, vector<8x128xf32>,
    %234 = arith.index_cast %196 : i32 to index
    %c0_104 = arith.constant 0 : index
    %235 = vector.load %arg6[%234, %c0_104] : memref<64x128xf32, #tpu.memory_space<vmem>>, vector<8x128xf32>
    tpu.vector_store %arg6[%234, %c0_104], %232 {strides = array<i32>} : memref<64x128xf32, #tpu.memory_space<vmem>>, vector<8x128xf32>,
    %c5_i32 = arith.constant 5 : i32
    %c2_i32_105 = arith.constant 2 : i32
    %236 = arith.muli %c2_i32_105, %c5_i32 : i32
    %c7_i32_106 = arith.constant 7 : i32
    %237 = arith.subi %c7_i32_106, %236 : i32
    %238 = arith.muli %arg0, %237 : i32
    %239 = arith.addi %c5_i32, %238 : i32
    %c8_i32_107 = arith.constant 8 : i32
    %240 = arith.muli %239, %c8_i32_107 : i32
    %241 = tpu.assume_multiple %240, 8 : i32
    %242 = arith.index_cast %241 : i32 to index
    %c0_108 = arith.constant 0 : index
    %243 = vector.load %arg7[%242, %c0_108] : memref<64x384xf32, #tpu.memory_space<vmem>>, vector<8x384xf32>
    %c0_109 = arith.constant 0 : index
    %c0_110 = arith.constant 0 : index
    %244 = vector.load %arg8[%c0_109, %c0_110] : memref<8x128xf32, #tpu.memory_space<vmem>>, vector<8x128xf32>
    %c0_111 = arith.constant 0 : index
    %c0_112 = arith.constant 0 : index
    %c0_113 = arith.constant 0 : index
    %245 = vector.load %arg4[%c0_111, %c0_112, %c0_113] : memref<1x128x384xf32, #tpu.memory_space<vmem>>, vector<1x128x384xf32>
    %246 = vector.shape_cast %245 : vector<1x128x384xf32> to vector<128x384xf32>
    %cst_114 = arith.constant dense<0.000000e+00> : vector<8x384xf32>
    %247 = tpu.matmul %244, %246, %cst_114 {dimension_numbers = #tpu.dot_dimension_numbers<[1], [0], [0], [1], [0, 0, 1, 1], [], []>} : vector<8x128xf32>, vector<128x384xf32>, vector<8x384xf32> -> vector<8x384xf32>
    %248 = vector.extract_strided_slice %243 {offsets = [0, 0], sizes = [8, 128], strides = [1, 1]} : vector<8x384xf32> to vector<8x128xf32>
    %249 = vector.extract_strided_slice %247 {offsets = [0, 0], sizes = [8, 128], strides = [1, 1]} : vector<8x384xf32> to vector<8x128xf32>
    %250 = arith.addf %248, %249 : vector<8x128xf32>
    %251 = arith.negf %250 : vector<8x128xf32>
    %252 = math.exp %251 : vector<8x128xf32>
    %cst_115 = arith.constant 1.000000e+00 : f32
    %253 = vector.broadcast %cst_115 : f32 to vector<8x128xf32>
    %254 = arith.addf %253, %252 : vector<8x128xf32>
    %255 = arith.divf %253, %254 : vector<8x128xf32>
    %256 = vector.extract_strided_slice %243 {offsets = [0, 128], sizes = [8, 128], strides = [1, 1]} : vector<8x384xf32> to vector<8x128xf32>
    %257 = vector.extract_strided_slice %247 {offsets = [0, 128], sizes = [8, 128], strides = [1, 1]} : vector<8x384xf32> to vector<8x128xf32>
    %258 = arith.addf %256, %257 : vector<8x128xf32>
    %259 = arith.negf %258 : vector<8x128xf32>
    %260 = math.exp %259 : vector<8x128xf32>
    %cst_116 = arith.constant 1.000000e+00 : f32
    %261 = vector.broadcast %cst_116 : f32 to vector<8x128xf32>
    %262 = arith.addf %261, %260 : vector<8x128xf32>
    %263 = arith.divf %261, %262 : vector<8x128xf32>
    %264 = vector.extract_strided_slice %243 {offsets = [0, 256], sizes = [8, 128], strides = [1, 1]} : vector<8x384xf32> to vector<8x128xf32>
    %265 = vector.extract_strided_slice %247 {offsets = [0, 256], sizes = [8, 128], strides = [1, 1]} : vector<8x384xf32> to vector<8x128xf32>
    %c0_117 = arith.constant 0 : index
    %c0_118 = arith.constant 0 : index
    %c0_119 = arith.constant 0 : index
    %266 = vector.load %arg5[%c0_117, %c0_118, %c0_119] : memref<1x1x128xf32, #tpu.memory_space<vmem>>, vector<1x1x128xf32>
    %267 = vector.shape_cast %266 : vector<1x1x128xf32> to vector<1x128xf32>
    %268 = vector.broadcast %267 : vector<1x128xf32> to vector<8x128xf32>
    %269 = arith.addf %265, %268 : vector<8x128xf32>
    %270 = arith.mulf %255, %269 : vector<8x128xf32>
    %271 = arith.addf %264, %270 : vector<8x128xf32>
    %272 = math.tanh %271 : vector<8x128xf32>
    %cst_120 = arith.constant 1.000000e+00 : f32
    %273 = vector.broadcast %cst_120 : f32 to vector<8x128xf32>
    %274 = arith.subf %273, %263 : vector<8x128xf32>
    %275 = arith.mulf %274, %272 : vector<8x128xf32>
    %276 = arith.mulf %263, %244 : vector<8x128xf32>
    %277 = arith.addf %275, %276 : vector<8x128xf32>
    %c0_121 = arith.constant 0 : index
    %c0_122 = arith.constant 0 : index
    %278 = vector.load %arg8[%c0_121, %c0_122] : memref<8x128xf32, #tpu.memory_space<vmem>>, vector<8x128xf32>
    tpu.vector_store %arg8[%c0_121, %c0_122], %277 {strides = array<i32>} : memref<8x128xf32, #tpu.memory_space<vmem>>, vector<8x128xf32>,
    %279 = arith.index_cast %241 : i32 to index
    %c0_123 = arith.constant 0 : index
    %280 = vector.load %arg6[%279, %c0_123] : memref<64x128xf32, #tpu.memory_space<vmem>>, vector<8x128xf32>
    tpu.vector_store %arg6[%279, %c0_123], %277 {strides = array<i32>} : memref<64x128xf32, #tpu.memory_space<vmem>>, vector<8x128xf32>,
    %c6_i32 = arith.constant 6 : i32
    %c2_i32_124 = arith.constant 2 : i32
    %281 = arith.muli %c2_i32_124, %c6_i32 : i32
    %c7_i32_125 = arith.constant 7 : i32
    %282 = arith.subi %c7_i32_125, %281 : i32
    %283 = arith.muli %arg0, %282 : i32
    %284 = arith.addi %c6_i32, %283 : i32
    %c8_i32_126 = arith.constant 8 : i32
    %285 = arith.muli %284, %c8_i32_126 : i32
    %286 = tpu.assume_multiple %285, 8 : i32
    %287 = arith.index_cast %286 : i32 to index
    %c0_127 = arith.constant 0 : index
    %288 = vector.load %arg7[%287, %c0_127] : memref<64x384xf32, #tpu.memory_space<vmem>>, vector<8x384xf32>
    %c0_128 = arith.constant 0 : index
    %c0_129 = arith.constant 0 : index
    %289 = vector.load %arg8[%c0_128, %c0_129] : memref<8x128xf32, #tpu.memory_space<vmem>>, vector<8x128xf32>
    %c0_130 = arith.constant 0 : index
    %c0_131 = arith.constant 0 : index
    %c0_132 = arith.constant 0 : index
    %290 = vector.load %arg4[%c0_130, %c0_131, %c0_132] : memref<1x128x384xf32, #tpu.memory_space<vmem>>, vector<1x128x384xf32>
    %291 = vector.shape_cast %290 : vector<1x128x384xf32> to vector<128x384xf32>
    %cst_133 = arith.constant dense<0.000000e+00> : vector<8x384xf32>
    %292 = tpu.matmul %289, %291, %cst_133 {dimension_numbers = #tpu.dot_dimension_numbers<[1], [0], [0], [1], [0, 0, 1, 1], [], []>} : vector<8x128xf32>, vector<128x384xf32>, vector<8x384xf32> -> vector<8x384xf32>
    %293 = vector.extract_strided_slice %288 {offsets = [0, 0], sizes = [8, 128], strides = [1, 1]} : vector<8x384xf32> to vector<8x128xf32>
    %294 = vector.extract_strided_slice %292 {offsets = [0, 0], sizes = [8, 128], strides = [1, 1]} : vector<8x384xf32> to vector<8x128xf32>
    %295 = arith.addf %293, %294 : vector<8x128xf32>
    %296 = arith.negf %295 : vector<8x128xf32>
    %297 = math.exp %296 : vector<8x128xf32>
    %cst_134 = arith.constant 1.000000e+00 : f32
    %298 = vector.broadcast %cst_134 : f32 to vector<8x128xf32>
    %299 = arith.addf %298, %297 : vector<8x128xf32>
    %300 = arith.divf %298, %299 : vector<8x128xf32>
    %301 = vector.extract_strided_slice %288 {offsets = [0, 128], sizes = [8, 128], strides = [1, 1]} : vector<8x384xf32> to vector<8x128xf32>
    %302 = vector.extract_strided_slice %292 {offsets = [0, 128], sizes = [8, 128], strides = [1, 1]} : vector<8x384xf32> to vector<8x128xf32>
    %303 = arith.addf %301, %302 : vector<8x128xf32>
    %304 = arith.negf %303 : vector<8x128xf32>
    %305 = math.exp %304 : vector<8x128xf32>
    %cst_135 = arith.constant 1.000000e+00 : f32
    %306 = vector.broadcast %cst_135 : f32 to vector<8x128xf32>
    %307 = arith.addf %306, %305 : vector<8x128xf32>
    %308 = arith.divf %306, %307 : vector<8x128xf32>
    %309 = vector.extract_strided_slice %288 {offsets = [0, 256], sizes = [8, 128], strides = [1, 1]} : vector<8x384xf32> to vector<8x128xf32>
    %310 = vector.extract_strided_slice %292 {offsets = [0, 256], sizes = [8, 128], strides = [1, 1]} : vector<8x384xf32> to vector<8x128xf32>
    %c0_136 = arith.constant 0 : index
    %c0_137 = arith.constant 0 : index
    %c0_138 = arith.constant 0 : index
    %311 = vector.load %arg5[%c0_136, %c0_137, %c0_138] : memref<1x1x128xf32, #tpu.memory_space<vmem>>, vector<1x1x128xf32>
    %312 = vector.shape_cast %311 : vector<1x1x128xf32> to vector<1x128xf32>
    %313 = vector.broadcast %312 : vector<1x128xf32> to vector<8x128xf32>
    %314 = arith.addf %310, %313 : vector<8x128xf32>
    %315 = arith.mulf %300, %314 : vector<8x128xf32>
    %316 = arith.addf %309, %315 : vector<8x128xf32>
    %317 = math.tanh %316 : vector<8x128xf32>
    %cst_139 = arith.constant 1.000000e+00 : f32
    %318 = vector.broadcast %cst_139 : f32 to vector<8x128xf32>
    %319 = arith.subf %318, %308 : vector<8x128xf32>
    %320 = arith.mulf %319, %317 : vector<8x128xf32>
    %321 = arith.mulf %308, %289 : vector<8x128xf32>
    %322 = arith.addf %320, %321 : vector<8x128xf32>
    %c0_140 = arith.constant 0 : index
    %c0_141 = arith.constant 0 : index
    %323 = vector.load %arg8[%c0_140, %c0_141] : memref<8x128xf32, #tpu.memory_space<vmem>>, vector<8x128xf32>
    tpu.vector_store %arg8[%c0_140, %c0_141], %322 {strides = array<i32>} : memref<8x128xf32, #tpu.memory_space<vmem>>, vector<8x128xf32>,
    %324 = arith.index_cast %286 : i32 to index
    %c0_142 = arith.constant 0 : index
    %325 = vector.load %arg6[%324, %c0_142] : memref<64x128xf32, #tpu.memory_space<vmem>>, vector<8x128xf32>
    tpu.vector_store %arg6[%324, %c0_142], %322 {strides = array<i32>} : memref<64x128xf32, #tpu.memory_space<vmem>>, vector<8x128xf32>,
    %c7_i32_143 = arith.constant 7 : i32
    %c2_i32_144 = arith.constant 2 : i32
    %326 = arith.muli %c2_i32_144, %c7_i32_143 : i32
    %c7_i32_145 = arith.constant 7 : i32
    %327 = arith.subi %c7_i32_145, %326 : i32
    %328 = arith.muli %arg0, %327 : i32
    %329 = arith.addi %c7_i32_143, %328 : i32
    %c8_i32_146 = arith.constant 8 : i32
    %330 = arith.muli %329, %c8_i32_146 : i32
    %331 = tpu.assume_multiple %330, 8 : i32
    %332 = arith.index_cast %331 : i32 to index
    %c0_147 = arith.constant 0 : index
    %333 = vector.load %arg7[%332, %c0_147] : memref<64x384xf32, #tpu.memory_space<vmem>>, vector<8x384xf32>
    %c0_148 = arith.constant 0 : index
    %c0_149 = arith.constant 0 : index
    %334 = vector.load %arg8[%c0_148, %c0_149] : memref<8x128xf32, #tpu.memory_space<vmem>>, vector<8x128xf32>
    %c0_150 = arith.constant 0 : index
    %c0_151 = arith.constant 0 : index
    %c0_152 = arith.constant 0 : index
    %335 = vector.load %arg4[%c0_150, %c0_151, %c0_152] : memref<1x128x384xf32, #tpu.memory_space<vmem>>, vector<1x128x384xf32>
    %336 = vector.shape_cast %335 : vector<1x128x384xf32> to vector<128x384xf32>
    %cst_153 = arith.constant dense<0.000000e+00> : vector<8x384xf32>
    %337 = tpu.matmul %334, %336, %cst_153 {dimension_numbers = #tpu.dot_dimension_numbers<[1], [0], [0], [1], [0, 0, 1, 1], [], []>} : vector<8x128xf32>, vector<128x384xf32>, vector<8x384xf32> -> vector<8x384xf32>
    %338 = vector.extract_strided_slice %333 {offsets = [0, 0], sizes = [8, 128], strides = [1, 1]} : vector<8x384xf32> to vector<8x128xf32>
    %339 = vector.extract_strided_slice %337 {offsets = [0, 0], sizes = [8, 128], strides = [1, 1]} : vector<8x384xf32> to vector<8x128xf32>
    %340 = arith.addf %338, %339 : vector<8x128xf32>
    %341 = arith.negf %340 : vector<8x128xf32>
    %342 = math.exp %341 : vector<8x128xf32>
    %cst_154 = arith.constant 1.000000e+00 : f32
    %343 = vector.broadcast %cst_154 : f32 to vector<8x128xf32>
    %344 = arith.addf %343, %342 : vector<8x128xf32>
    %345 = arith.divf %343, %344 : vector<8x128xf32>
    %346 = vector.extract_strided_slice %333 {offsets = [0, 128], sizes = [8, 128], strides = [1, 1]} : vector<8x384xf32> to vector<8x128xf32>
    %347 = vector.extract_strided_slice %337 {offsets = [0, 128], sizes = [8, 128], strides = [1, 1]} : vector<8x384xf32> to vector<8x128xf32>
    %348 = arith.addf %346, %347 : vector<8x128xf32>
    %349 = arith.negf %348 : vector<8x128xf32>
    %350 = math.exp %349 : vector<8x128xf32>
    %cst_155 = arith.constant 1.000000e+00 : f32
    %351 = vector.broadcast %cst_155 : f32 to vector<8x128xf32>
    %352 = arith.addf %351, %350 : vector<8x128xf32>
    %353 = arith.divf %351, %352 : vector<8x128xf32>
    %354 = vector.extract_strided_slice %333 {offsets = [0, 256], sizes = [8, 128], strides = [1, 1]} : vector<8x384xf32> to vector<8x128xf32>
    %355 = vector.extract_strided_slice %337 {offsets = [0, 256], sizes = [8, 128], strides = [1, 1]} : vector<8x384xf32> to vector<8x128xf32>
    %c0_156 = arith.constant 0 : index
    %c0_157 = arith.constant 0 : index
    %c0_158 = arith.constant 0 : index
    %356 = vector.load %arg5[%c0_156, %c0_157, %c0_158] : memref<1x1x128xf32, #tpu.memory_space<vmem>>, vector<1x1x128xf32>
    %357 = vector.shape_cast %356 : vector<1x1x128xf32> to vector<1x128xf32>
    %358 = vector.broadcast %357 : vector<1x128xf32> to vector<8x128xf32>
    %359 = arith.addf %355, %358 : vector<8x128xf32>
    %360 = arith.mulf %345, %359 : vector<8x128xf32>
    %361 = arith.addf %354, %360 : vector<8x128xf32>
    %362 = math.tanh %361 : vector<8x128xf32>
    %cst_159 = arith.constant 1.000000e+00 : f32
    %363 = vector.broadcast %cst_159 : f32 to vector<8x128xf32>
    %364 = arith.subf %363, %353 : vector<8x128xf32>
    %365 = arith.mulf %364, %362 : vector<8x128xf32>
    %366 = arith.mulf %353, %334 : vector<8x128xf32>
    %367 = arith.addf %365, %366 : vector<8x128xf32>
    %c0_160 = arith.constant 0 : index
    %c0_161 = arith.constant 0 : index
    %368 = vector.load %arg8[%c0_160, %c0_161] : memref<8x128xf32, #tpu.memory_space<vmem>>, vector<8x128xf32>
    tpu.vector_store %arg8[%c0_160, %c0_161], %367 {strides = array<i32>} : memref<8x128xf32, #tpu.memory_space<vmem>>, vector<8x128xf32>,
    %369 = arith.index_cast %331 : i32 to index
    %c0_162 = arith.constant 0 : index
    %370 = vector.load %arg6[%369, %c0_162] : memref<64x128xf32, #tpu.memory_space<vmem>>, vector<8x128xf32>
    tpu.vector_store %arg6[%369, %c0_162], %367 {strides = array<i32>} : memref<64x128xf32, #tpu.memory_space<vmem>>, vector<8x128xf32>,
    %c8_i32_163 = arith.constant 8 : i32
    return
  }
  func.func @transform_0(%arg0: i32) -> (i32, i32) {
    %c0_i32 = arith.constant 0 : i32
    %c0_i32_0 = arith.constant 0 : i32
    %c0_i32_1 = arith.constant 0 : i32
    return %c0_i32, %c0_i32_0 : i32, i32
  }
  func.func @transform_1(%arg0: i32) -> (i32, i32, i32) {
    %c0_i32 = arith.constant 0 : i32
    %c0_i32_0 = arith.constant 0 : i32
    %c0_i32_1 = arith.constant 0 : i32
    return %arg0, %c0_i32, %c0_i32_0 : i32, i32, i32
  }
  func.func @transform_2(%arg0: i32) -> (i32, i32, i32) {
    %c0_i32 = arith.constant 0 : i32
    %c0_i32_0 = arith.constant 0 : i32
    %c0_i32_1 = arith.constant 0 : i32
    return %arg0, %c0_i32, %c0_i32_0 : i32, i32, i32
  }
  func.func @transform_3(%arg0: i32) -> (i32, i32, i32) {
    %c0_i32 = arith.constant 0 : i32
    %c0_i32_0 = arith.constant 0 : i32
    %c0_i32_1 = arith.constant 0 : i32
    return %arg0, %c0_i32, %c0_i32_0 : i32, i32, i32
  }
  func.func @transform_4(%arg0: i32) -> (i32, i32, i32) {
    %c0_i32 = arith.constant 0 : i32
    %c0_i32_0 = arith.constant 0 : i32
    %c0_i32_1 = arith.constant 0 : i32
    return %arg0, %c0_i32, %c0_i32_0 : i32, i32, i32
  }
  func.func @transform_5(%arg0: i32) -> (i32, i32) {
    %c0_i32 = arith.constant 0 : i32
    %c0_i32_0 = arith.constant 0 : i32
    return %c0_i32, %arg0 : i32, i32
  }
}

module attributes {stable_mosaic.version = 11 : i64} {
  func.func @_bigru_layer_kernel(%arg0: i32, %arg1: memref<64x256xf32, #tpu.memory_space<vmem>>, %arg2: memref<1x256x384xf32, #tpu.memory_space<vmem>>, %arg3: memref<1x1x384xf32, #tpu.memory_space<vmem>>, %arg4: memref<1x128x384xf32, #tpu.memory_space<vmem>>, %arg5: memref<1x1x128xf32, #tpu.memory_space<vmem>>, %arg6: memref<64x128xf32, #tpu.memory_space<vmem>>, %arg7: memref<64x384xf32, #tpu.memory_space<vmem>>, %arg8: memref<8x128xf32, #tpu.memory_space<vmem>>) attributes {dimension_semantics = [#tpu.dimension_semantics<parallel>], iteration_bounds = array<i64: 2>, scalar_prefetch = 0 : i64, scratch_operands = 2 : i64, tpu.core_type = #tpu.core_type<tc>, window_params = [{pipeline_mode = #tpu.pipeline_mode<synchronous>, transform_indices = @transform_0, window_bounds = array<i64: 64, 256>}, {transform_indices = @transform_1, window_bounds = array<i64: 1, 256, 384>}, {transform_indices = @transform_2, window_bounds = array<i64: 1, 1, 384>}, {transform_indices = @transform_3, window_bounds = array<i64: 1, 128, 384>}, {transform_indices = @transform_4, window_bounds = array<i64: 1, 1, 128>}, {transform_indices = @transform_5, window_bounds = array<i64: 64, 128>}]} {
    %c0 = arith.constant 0 : index
    %c0_0 = arith.constant 0 : index
    %0 = vector.load %arg1[%c0, %c0_0] : memref<64x256xf32, #tpu.memory_space<vmem>>, vector<64x256xf32>
    %c0_1 = arith.constant 0 : index
    %c0_2 = arith.constant 0 : index
    %c0_3 = arith.constant 0 : index
    %1 = vector.load %arg2[%c0_1, %c0_2, %c0_3] : memref<1x256x384xf32, #tpu.memory_space<vmem>>, vector<1x256x384xf32>
    %2 = vector.shape_cast %1 : vector<1x256x384xf32> to vector<256x384xf32>
    %cst = arith.constant dense<0.000000e+00> : vector<64x384xf32>
    %3 = tpu.matmul %0, %2, %cst {dimension_numbers = #tpu.dot_dimension_numbers<[1], [0], [0], [1], [0, 0, 1, 1], [], []>} : vector<64x256xf32>, vector<256x384xf32>, vector<64x384xf32> -> vector<64x384xf32>
    %c0_4 = arith.constant 0 : index
    %c0_5 = arith.constant 0 : index
    %c0_6 = arith.constant 0 : index
    %4 = vector.load %arg3[%c0_4, %c0_5, %c0_6] : memref<1x1x384xf32, #tpu.memory_space<vmem>>, vector<1x1x384xf32>
    %5 = vector.shape_cast %4 : vector<1x1x384xf32> to vector<1x384xf32>
    %6 = vector.broadcast %5 : vector<1x384xf32> to vector<64x384xf32>
    %7 = arith.addf %3, %6 : vector<64x384xf32>
    %c0_7 = arith.constant 0 : index
    %c0_8 = arith.constant 0 : index
    %8 = vector.load %arg7[%c0_7, %c0_8] : memref<64x384xf32, #tpu.memory_space<vmem>>, vector<64x384xf32>
    tpu.vector_store %arg7[%c0_7, %c0_8], %7 {strides = array<i32>} : memref<64x384xf32, #tpu.memory_space<vmem>>, vector<64x384xf32>,
    %cst_9 = arith.constant 0.000000e+00 : f32
    %9 = vector.broadcast %cst_9 : f32 to vector<8x128xf32>
    %c0_10 = arith.constant 0 : index
    %c0_11 = arith.constant 0 : index
    %10 = vector.load %arg8[%c0_10, %c0_11] : memref<8x128xf32, #tpu.memory_space<vmem>>, vector<8x128xf32>
    tpu.vector_store %arg8[%c0_10, %c0_11], %9 {strides = array<i32>} : memref<8x128xf32, #tpu.memory_space<vmem>>, vector<8x128xf32>,
    %c0_i32 = arith.constant 0 : i32
    %c2_i32 = arith.constant 2 : i32
    %11 = arith.muli %c2_i32, %c0_i32 : i32
    %c7_i32 = arith.constant 7 : i32
    %12 = arith.subi %c7_i32, %11 : i32
    %13 = arith.muli %arg0, %12 : i32
    %14 = arith.addi %c0_i32, %13 : i32
    %c8_i32 = arith.constant 8 : i32
    %15 = arith.muli %14, %c8_i32 : i32
    %16 = tpu.assume_multiple %15, 8 : i32
    %17 = arith.index_cast %16 : i32 to index
    %c0_12 = arith.constant 0 : index
    %18 = vector.load %arg7[%17, %c0_12] : memref<64x384xf32, #tpu.memory_space<vmem>>, vector<8x384xf32>
    %c0_13 = arith.constant 0 : index
    %c0_14 = arith.constant 0 : index
    %19 = vector.load %arg8[%c0_13, %c0_14] : memref<8x128xf32, #tpu.memory_space<vmem>>, vector<8x128xf32>
    %c0_15 = arith.constant 0 : index
    %c0_16 = arith.constant 0 : index
    %c0_17 = arith.constant 0 : index
    %20 = vector.load %arg4[%c0_15, %c0_16, %c0_17] : memref<1x128x384xf32, #tpu.memory_space<vmem>>, vector<1x128x384xf32>
    %21 = vector.shape_cast %20 : vector<1x128x384xf32> to vector<128x384xf32>
    %cst_18 = arith.constant dense<0.000000e+00> : vector<8x384xf32>
    %22 = tpu.matmul %19, %21, %cst_18 {dimension_numbers = #tpu.dot_dimension_numbers<[1], [0], [0], [1], [0, 0, 1, 1], [], []>} : vector<8x128xf32>, vector<128x384xf32>, vector<8x384xf32> -> vector<8x384xf32>
    %23 = vector.extract_strided_slice %18 {offsets = [0, 0], sizes = [8, 128], strides = [1, 1]} : vector<8x384xf32> to vector<8x128xf32>
    %24 = vector.extract_strided_slice %22 {offsets = [0, 0], sizes = [8, 128], strides = [1, 1]} : vector<8x384xf32> to vector<8x128xf32>
    %25 = arith.addf %23, %24 : vector<8x128xf32>
    %26 = arith.negf %25 : vector<8x128xf32>
    %27 = math.exp %26 : vector<8x128xf32>
    %cst_19 = arith.constant 1.000000e+00 : f32
    %28 = vector.broadcast %cst_19 : f32 to vector<8x128xf32>
    %29 = arith.addf %28, %27 : vector<8x128xf32>
    %30 = arith.divf %28, %29 : vector<8x128xf32>
    %31 = vector.extract_strided_slice %18 {offsets = [0, 128], sizes = [8, 128], strides = [1, 1]} : vector<8x384xf32> to vector<8x128xf32>
    %32 = vector.extract_strided_slice %22 {offsets = [0, 128], sizes = [8, 128], strides = [1, 1]} : vector<8x384xf32> to vector<8x128xf32>
    %33 = arith.addf %31, %32 : vector<8x128xf32>
    %34 = arith.negf %33 : vector<8x128xf32>
    %35 = math.exp %34 : vector<8x128xf32>
    %cst_20 = arith.constant 1.000000e+00 : f32
    %36 = vector.broadcast %cst_20 : f32 to vector<8x128xf32>
    %37 = arith.addf %36, %35 : vector<8x128xf32>
    %38 = arith.divf %36, %37 : vector<8x128xf32>
    %39 = vector.extract_strided_slice %18 {offsets = [0, 256], sizes = [8, 128], strides = [1, 1]} : vector<8x384xf32> to vector<8x128xf32>
    %40 = vector.extract_strided_slice %22 {offsets = [0, 256], sizes = [8, 128], strides = [1, 1]} : vector<8x384xf32> to vector<8x128xf32>
    %c0_21 = arith.constant 0 : index
    %c0_22 = arith.constant 0 : index
    %c0_23 = arith.constant 0 : index
    %41 = vector.load %arg5[%c0_21, %c0_22, %c0_23] : memref<1x1x128xf32, #tpu.memory_space<vmem>>, vector<1x1x128xf32>
    %42 = vector.shape_cast %41 : vector<1x1x128xf32> to vector<1x128xf32>
    %43 = vector.broadcast %42 : vector<1x128xf32> to vector<8x128xf32>
    %44 = arith.addf %40, %43 : vector<8x128xf32>
    %45 = arith.mulf %30, %44 : vector<8x128xf32>
    %46 = arith.addf %39, %45 : vector<8x128xf32>
    %47 = math.tanh %46 : vector<8x128xf32>
    %cst_24 = arith.constant 1.000000e+00 : f32
    %48 = vector.broadcast %cst_24 : f32 to vector<8x128xf32>
    %49 = arith.subf %48, %38 : vector<8x128xf32>
    %50 = arith.mulf %49, %47 : vector<8x128xf32>
    %51 = arith.mulf %38, %19 : vector<8x128xf32>
    %52 = arith.addf %50, %51 : vector<8x128xf32>
    %c0_25 = arith.constant 0 : index
    %c0_26 = arith.constant 0 : index
    %53 = vector.load %arg8[%c0_25, %c0_26] : memref<8x128xf32, #tpu.memory_space<vmem>>, vector<8x128xf32>
    tpu.vector_store %arg8[%c0_25, %c0_26], %52 {strides = array<i32>} : memref<8x128xf32, #tpu.memory_space<vmem>>, vector<8x128xf32>,
    %54 = arith.index_cast %16 : i32 to index
    %c0_27 = arith.constant 0 : index
    %55 = vector.load %arg6[%54, %c0_27] : memref<64x128xf32, #tpu.memory_space<vmem>>, vector<8x128xf32>
    tpu.vector_store %arg6[%54, %c0_27], %52 {strides = array<i32>} : memref<64x128xf32, #tpu.memory_space<vmem>>, vector<8x128xf32>,
    %c1_i32 = arith.constant 1 : i32
    %c2_i32_28 = arith.constant 2 : i32
    %56 = arith.muli %c2_i32_28, %c1_i32 : i32
    %c7_i32_29 = arith.constant 7 : i32
    %57 = arith.subi %c7_i32_29, %56 : i32
    %58 = arith.muli %arg0, %57 : i32
    %59 = arith.addi %c1_i32, %58 : i32
    %c8_i32_30 = arith.constant 8 : i32
    %60 = arith.muli %59, %c8_i32_30 : i32
    %61 = tpu.assume_multiple %60, 8 : i32
    %62 = arith.index_cast %61 : i32 to index
    %c0_31 = arith.constant 0 : index
    %63 = vector.load %arg7[%62, %c0_31] : memref<64x384xf32, #tpu.memory_space<vmem>>, vector<8x384xf32>
    %c0_32 = arith.constant 0 : index
    %c0_33 = arith.constant 0 : index
    %64 = vector.load %arg8[%c0_32, %c0_33] : memref<8x128xf32, #tpu.memory_space<vmem>>, vector<8x128xf32>
    %c0_34 = arith.constant 0 : index
    %c0_35 = arith.constant 0 : index
    %c0_36 = arith.constant 0 : index
    %65 = vector.load %arg4[%c0_34, %c0_35, %c0_36] : memref<1x128x384xf32, #tpu.memory_space<vmem>>, vector<1x128x384xf32>
    %66 = vector.shape_cast %65 : vector<1x128x384xf32> to vector<128x384xf32>
    %cst_37 = arith.constant dense<0.000000e+00> : vector<8x384xf32>
    %67 = tpu.matmul %64, %66, %cst_37 {dimension_numbers = #tpu.dot_dimension_numbers<[1], [0], [0], [1], [0, 0, 1, 1], [], []>} : vector<8x128xf32>, vector<128x384xf32>, vector<8x384xf32> -> vector<8x384xf32>
    %68 = vector.extract_strided_slice %63 {offsets = [0, 0], sizes = [8, 128], strides = [1, 1]} : vector<8x384xf32> to vector<8x128xf32>
    %69 = vector.extract_strided_slice %67 {offsets = [0, 0], sizes = [8, 128], strides = [1, 1]} : vector<8x384xf32> to vector<8x128xf32>
    %70 = arith.addf %68, %69 : vector<8x128xf32>
    %71 = arith.negf %70 : vector<8x128xf32>
    %72 = math.exp %71 : vector<8x128xf32>
    %cst_38 = arith.constant 1.000000e+00 : f32
    %73 = vector.broadcast %cst_38 : f32 to vector<8x128xf32>
    %74 = arith.addf %73, %72 : vector<8x128xf32>
    %75 = arith.divf %73, %74 : vector<8x128xf32>
    %76 = vector.extract_strided_slice %63 {offsets = [0, 128], sizes = [8, 128], strides = [1, 1]} : vector<8x384xf32> to vector<8x128xf32>
    %77 = vector.extract_strided_slice %67 {offsets = [0, 128], sizes = [8, 128], strides = [1, 1]} : vector<8x384xf32> to vector<8x128xf32>
    %78 = arith.addf %76, %77 : vector<8x128xf32>
    %79 = arith.negf %78 : vector<8x128xf32>
    %80 = math.exp %79 : vector<8x128xf32>
    %cst_39 = arith.constant 1.000000e+00 : f32
    %81 = vector.broadcast %cst_39 : f32 to vector<8x128xf32>
    %82 = arith.addf %81, %80 : vector<8x128xf32>
    %83 = arith.divf %81, %82 : vector<8x128xf32>
    %84 = vector.extract_strided_slice %63 {offsets = [0, 256], sizes = [8, 128], strides = [1, 1]} : vector<8x384xf32> to vector<8x128xf32>
    %85 = vector.extract_strided_slice %67 {offsets = [0, 256], sizes = [8, 128], strides = [1, 1]} : vector<8x384xf32> to vector<8x128xf32>
    %c0_40 = arith.constant 0 : index
    %c0_41 = arith.constant 0 : index
    %c0_42 = arith.constant 0 : index
    %86 = vector.load %arg5[%c0_40, %c0_41, %c0_42] : memref<1x1x128xf32, #tpu.memory_space<vmem>>, vector<1x1x128xf32>
    %87 = vector.shape_cast %86 : vector<1x1x128xf32> to vector<1x128xf32>
    %88 = vector.broadcast %87 : vector<1x128xf32> to vector<8x128xf32>
    %89 = arith.addf %85, %88 : vector<8x128xf32>
    %90 = arith.mulf %75, %89 : vector<8x128xf32>
    %91 = arith.addf %84, %90 : vector<8x128xf32>
    %92 = math.tanh %91 : vector<8x128xf32>
    %cst_43 = arith.constant 1.000000e+00 : f32
    %93 = vector.broadcast %cst_43 : f32 to vector<8x128xf32>
    %94 = arith.subf %93, %83 : vector<8x128xf32>
    %95 = arith.mulf %94, %92 : vector<8x128xf32>
    %96 = arith.mulf %83, %64 : vector<8x128xf32>
    %97 = arith.addf %95, %96 : vector<8x128xf32>
    %c0_44 = arith.constant 0 : index
    %c0_45 = arith.constant 0 : index
    %98 = vector.load %arg8[%c0_44, %c0_45] : memref<8x128xf32, #tpu.memory_space<vmem>>, vector<8x128xf32>
    tpu.vector_store %arg8[%c0_44, %c0_45], %97 {strides = array<i32>} : memref<8x128xf32, #tpu.memory_space<vmem>>, vector<8x128xf32>,
    %99 = arith.index_cast %61 : i32 to index
    %c0_46 = arith.constant 0 : index
    %100 = vector.load %arg6[%99, %c0_46] : memref<64x128xf32, #tpu.memory_space<vmem>>, vector<8x128xf32>
    tpu.vector_store %arg6[%99, %c0_46], %97 {strides = array<i32>} : memref<64x128xf32, #tpu.memory_space<vmem>>, vector<8x128xf32>,
    %c2_i32_47 = arith.constant 2 : i32
    %c2_i32_48 = arith.constant 2 : i32
    %101 = arith.muli %c2_i32_48, %c2_i32_47 : i32
    %c7_i32_49 = arith.constant 7 : i32
    %102 = arith.subi %c7_i32_49, %101 : i32
    %103 = arith.muli %arg0, %102 : i32
    %104 = arith.addi %c2_i32_47, %103 : i32
    %c8_i32_50 = arith.constant 8 : i32
    %105 = arith.muli %104, %c8_i32_50 : i32
    %106 = tpu.assume_multiple %105, 8 : i32
    %107 = arith.index_cast %106 : i32 to index
    %c0_51 = arith.constant 0 : index
    %108 = vector.load %arg7[%107, %c0_51] : memref<64x384xf32, #tpu.memory_space<vmem>>, vector<8x384xf32>
    %c0_52 = arith.constant 0 : index
    %c0_53 = arith.constant 0 : index
    %109 = vector.load %arg8[%c0_52, %c0_53] : memref<8x128xf32, #tpu.memory_space<vmem>>, vector<8x128xf32>
    %c0_54 = arith.constant 0 : index
    %c0_55 = arith.constant 0 : index
    %c0_56 = arith.constant 0 : index
    %110 = vector.load %arg4[%c0_54, %c0_55, %c0_56] : memref<1x128x384xf32, #tpu.memory_space<vmem>>, vector<1x128x384xf32>
    %111 = vector.shape_cast %110 : vector<1x128x384xf32> to vector<128x384xf32>
    %cst_57 = arith.constant dense<0.000000e+00> : vector<8x384xf32>
    %112 = tpu.matmul %109, %111, %cst_57 {dimension_numbers = #tpu.dot_dimension_numbers<[1], [0], [0], [1], [0, 0, 1, 1], [], []>} : vector<8x128xf32>, vector<128x384xf32>, vector<8x384xf32> -> vector<8x384xf32>
    %113 = vector.extract_strided_slice %108 {offsets = [0, 0], sizes = [8, 128], strides = [1, 1]} : vector<8x384xf32> to vector<8x128xf32>
    %114 = vector.extract_strided_slice %112 {offsets = [0, 0], sizes = [8, 128], strides = [1, 1]} : vector<8x384xf32> to vector<8x128xf32>
    %115 = arith.addf %113, %114 : vector<8x128xf32>
    %116 = arith.negf %115 : vector<8x128xf32>
    %117 = math.exp %116 : vector<8x128xf32>
    %cst_58 = arith.constant 1.000000e+00 : f32
    %118 = vector.broadcast %cst_58 : f32 to vector<8x128xf32>
    %119 = arith.addf %118, %117 : vector<8x128xf32>
    %120 = arith.divf %118, %119 : vector<8x128xf32>
    %121 = vector.extract_strided_slice %108 {offsets = [0, 128], sizes = [8, 128], strides = [1, 1]} : vector<8x384xf32> to vector<8x128xf32>
    %122 = vector.extract_strided_slice %112 {offsets = [0, 128], sizes = [8, 128], strides = [1, 1]} : vector<8x384xf32> to vector<8x128xf32>
    %123 = arith.addf %121, %122 : vector<8x128xf32>
    %124 = arith.negf %123 : vector<8x128xf32>
    %125 = math.exp %124 : vector<8x128xf32>
    %cst_59 = arith.constant 1.000000e+00 : f32
    %126 = vector.broadcast %cst_59 : f32 to vector<8x128xf32>
    %127 = arith.addf %126, %125 : vector<8x128xf32>
    %128 = arith.divf %126, %127 : vector<8x128xf32>
    %129 = vector.extract_strided_slice %108 {offsets = [0, 256], sizes = [8, 128], strides = [1, 1]} : vector<8x384xf32> to vector<8x128xf32>
    %130 = vector.extract_strided_slice %112 {offsets = [0, 256], sizes = [8, 128], strides = [1, 1]} : vector<8x384xf32> to vector<8x128xf32>
    %c0_60 = arith.constant 0 : index
    %c0_61 = arith.constant 0 : index
    %c0_62 = arith.constant 0 : index
    %131 = vector.load %arg5[%c0_60, %c0_61, %c0_62] : memref<1x1x128xf32, #tpu.memory_space<vmem>>, vector<1x1x128xf32>
    %132 = vector.shape_cast %131 : vector<1x1x128xf32> to vector<1x128xf32>
    %133 = vector.broadcast %132 : vector<1x128xf32> to vector<8x128xf32>
    %134 = arith.addf %130, %133 : vector<8x128xf32>
    %135 = arith.mulf %120, %134 : vector<8x128xf32>
    %136 = arith.addf %129, %135 : vector<8x128xf32>
    %137 = math.tanh %136 : vector<8x128xf32>
    %cst_63 = arith.constant 1.000000e+00 : f32
    %138 = vector.broadcast %cst_63 : f32 to vector<8x128xf32>
    %139 = arith.subf %138, %128 : vector<8x128xf32>
    %140 = arith.mulf %139, %137 : vector<8x128xf32>
    %141 = arith.mulf %128, %109 : vector<8x128xf32>
    %142 = arith.addf %140, %141 : vector<8x128xf32>
    %c0_64 = arith.constant 0 : index
    %c0_65 = arith.constant 0 : index
    %143 = vector.load %arg8[%c0_64, %c0_65] : memref<8x128xf32, #tpu.memory_space<vmem>>, vector<8x128xf32>
    tpu.vector_store %arg8[%c0_64, %c0_65], %142 {strides = array<i32>} : memref<8x128xf32, #tpu.memory_space<vmem>>, vector<8x128xf32>,
    %144 = arith.index_cast %106 : i32 to index
    %c0_66 = arith.constant 0 : index
    %145 = vector.load %arg6[%144, %c0_66] : memref<64x128xf32, #tpu.memory_space<vmem>>, vector<8x128xf32>
    tpu.vector_store %arg6[%144, %c0_66], %142 {strides = array<i32>} : memref<64x128xf32, #tpu.memory_space<vmem>>, vector<8x128xf32>,
    %c3_i32 = arith.constant 3 : i32
    %c2_i32_67 = arith.constant 2 : i32
    %146 = arith.muli %c2_i32_67, %c3_i32 : i32
    %c7_i32_68 = arith.constant 7 : i32
    %147 = arith.subi %c7_i32_68, %146 : i32
    %148 = arith.muli %arg0, %147 : i32
    %149 = arith.addi %c3_i32, %148 : i32
    %c8_i32_69 = arith.constant 8 : i32
    %150 = arith.muli %149, %c8_i32_69 : i32
    %151 = tpu.assume_multiple %150, 8 : i32
    %152 = arith.index_cast %151 : i32 to index
    %c0_70 = arith.constant 0 : index
    %153 = vector.load %arg7[%152, %c0_70] : memref<64x384xf32, #tpu.memory_space<vmem>>, vector<8x384xf32>
    %c0_71 = arith.constant 0 : index
    %c0_72 = arith.constant 0 : index
    %154 = vector.load %arg8[%c0_71, %c0_72] : memref<8x128xf32, #tpu.memory_space<vmem>>, vector<8x128xf32>
    %c0_73 = arith.constant 0 : index
    %c0_74 = arith.constant 0 : index
    %c0_75 = arith.constant 0 : index
    %155 = vector.load %arg4[%c0_73, %c0_74, %c0_75] : memref<1x128x384xf32, #tpu.memory_space<vmem>>, vector<1x128x384xf32>
    %156 = vector.shape_cast %155 : vector<1x128x384xf32> to vector<128x384xf32>
    %cst_76 = arith.constant dense<0.000000e+00> : vector<8x384xf32>
    %157 = tpu.matmul %154, %156, %cst_76 {dimension_numbers = #tpu.dot_dimension_numbers<[1], [0], [0], [1], [0, 0, 1, 1], [], []>} : vector<8x128xf32>, vector<128x384xf32>, vector<8x384xf32> -> vector<8x384xf32>
    %158 = vector.extract_strided_slice %153 {offsets = [0, 0], sizes = [8, 128], strides = [1, 1]} : vector<8x384xf32> to vector<8x128xf32>
    %159 = vector.extract_strided_slice %157 {offsets = [0, 0], sizes = [8, 128], strides = [1, 1]} : vector<8x384xf32> to vector<8x128xf32>
    %160 = arith.addf %158, %159 : vector<8x128xf32>
    %161 = arith.negf %160 : vector<8x128xf32>
    %162 = math.exp %161 : vector<8x128xf32>
    %cst_77 = arith.constant 1.000000e+00 : f32
    %163 = vector.broadcast %cst_77 : f32 to vector<8x128xf32>
    %164 = arith.addf %163, %162 : vector<8x128xf32>
    %165 = arith.divf %163, %164 : vector<8x128xf32>
    %166 = vector.extract_strided_slice %153 {offsets = [0, 128], sizes = [8, 128], strides = [1, 1]} : vector<8x384xf32> to vector<8x128xf32>
    %167 = vector.extract_strided_slice %157 {offsets = [0, 128], sizes = [8, 128], strides = [1, 1]} : vector<8x384xf32> to vector<8x128xf32>
    %168 = arith.addf %166, %167 : vector<8x128xf32>
    %169 = arith.negf %168 : vector<8x128xf32>
    %170 = math.exp %169 : vector<8x128xf32>
    %cst_78 = arith.constant 1.000000e+00 : f32
    %171 = vector.broadcast %cst_78 : f32 to vector<8x128xf32>
    %172 = arith.addf %171, %170 : vector<8x128xf32>
    %173 = arith.divf %171, %172 : vector<8x128xf32>
    %174 = vector.extract_strided_slice %153 {offsets = [0, 256], sizes = [8, 128], strides = [1, 1]} : vector<8x384xf32> to vector<8x128xf32>
    %175 = vector.extract_strided_slice %157 {offsets = [0, 256], sizes = [8, 128], strides = [1, 1]} : vector<8x384xf32> to vector<8x128xf32>
    %c0_79 = arith.constant 0 : index
    %c0_80 = arith.constant 0 : index
    %c0_81 = arith.constant 0 : index
    %176 = vector.load %arg5[%c0_79, %c0_80, %c0_81] : memref<1x1x128xf32, #tpu.memory_space<vmem>>, vector<1x1x128xf32>
    %177 = vector.shape_cast %176 : vector<1x1x128xf32> to vector<1x128xf32>
    %178 = vector.broadcast %177 : vector<1x128xf32> to vector<8x128xf32>
    %179 = arith.addf %175, %178 : vector<8x128xf32>
    %180 = arith.mulf %165, %179 : vector<8x128xf32>
    %181 = arith.addf %174, %180 : vector<8x128xf32>
    %182 = math.tanh %181 : vector<8x128xf32>
    %cst_82 = arith.constant 1.000000e+00 : f32
    %183 = vector.broadcast %cst_82 : f32 to vector<8x128xf32>
    %184 = arith.subf %183, %173 : vector<8x128xf32>
    %185 = arith.mulf %184, %182 : vector<8x128xf32>
    %186 = arith.mulf %173, %154 : vector<8x128xf32>
    %187 = arith.addf %185, %186 : vector<8x128xf32>
    %c0_83 = arith.constant 0 : index
    %c0_84 = arith.constant 0 : index
    %188 = vector.load %arg8[%c0_83, %c0_84] : memref<8x128xf32, #tpu.memory_space<vmem>>, vector<8x128xf32>
    tpu.vector_store %arg8[%c0_83, %c0_84], %187 {strides = array<i32>} : memref<8x128xf32, #tpu.memory_space<vmem>>, vector<8x128xf32>,
    %189 = arith.index_cast %151 : i32 to index
    %c0_85 = arith.constant 0 : index
    %190 = vector.load %arg6[%189, %c0_85] : memref<64x128xf32, #tpu.memory_space<vmem>>, vector<8x128xf32>
    tpu.vector_store %arg6[%189, %c0_85], %187 {strides = array<i32>} : memref<64x128xf32, #tpu.memory_space<vmem>>, vector<8x128xf32>,
    %c4_i32 = arith.constant 4 : i32
    %c2_i32_86 = arith.constant 2 : i32
    %191 = arith.muli %c2_i32_86, %c4_i32 : i32
    %c7_i32_87 = arith.constant 7 : i32
    %192 = arith.subi %c7_i32_87, %191 : i32
    %193 = arith.muli %arg0, %192 : i32
    %194 = arith.addi %c4_i32, %193 : i32
    %c8_i32_88 = arith.constant 8 : i32
    %195 = arith.muli %194, %c8_i32_88 : i32
    %196 = tpu.assume_multiple %195, 8 : i32
    %197 = arith.index_cast %196 : i32 to index
    %c0_89 = arith.constant 0 : index
    %198 = vector.load %arg7[%197, %c0_89] : memref<64x384xf32, #tpu.memory_space<vmem>>, vector<8x384xf32>
    %c0_90 = arith.constant 0 : index
    %c0_91 = arith.constant 0 : index
    %199 = vector.load %arg8[%c0_90, %c0_91] : memref<8x128xf32, #tpu.memory_space<vmem>>, vector<8x128xf32>
    %c0_92 = arith.constant 0 : index
    %c0_93 = arith.constant 0 : index
    %c0_94 = arith.constant 0 : index
    %200 = vector.load %arg4[%c0_92, %c0_93, %c0_94] : memref<1x128x384xf32, #tpu.memory_space<vmem>>, vector<1x128x384xf32>
    %201 = vector.shape_cast %200 : vector<1x128x384xf32> to vector<128x384xf32>
    %cst_95 = arith.constant dense<0.000000e+00> : vector<8x384xf32>
    %202 = tpu.matmul %199, %201, %cst_95 {dimension_numbers = #tpu.dot_dimension_numbers<[1], [0], [0], [1], [0, 0, 1, 1], [], []>} : vector<8x128xf32>, vector<128x384xf32>, vector<8x384xf32> -> vector<8x384xf32>
    %203 = vector.extract_strided_slice %198 {offsets = [0, 0], sizes = [8, 128], strides = [1, 1]} : vector<8x384xf32> to vector<8x128xf32>
    %204 = vector.extract_strided_slice %202 {offsets = [0, 0], sizes = [8, 128], strides = [1, 1]} : vector<8x384xf32> to vector<8x128xf32>
    %205 = arith.addf %203, %204 : vector<8x128xf32>
    %206 = arith.negf %205 : vector<8x128xf32>
    %207 = math.exp %206 : vector<8x128xf32>
    %cst_96 = arith.constant 1.000000e+00 : f32
    %208 = vector.broadcast %cst_96 : f32 to vector<8x128xf32>
    %209 = arith.addf %208, %207 : vector<8x128xf32>
    %210 = arith.divf %208, %209 : vector<8x128xf32>
    %211 = vector.extract_strided_slice %198 {offsets = [0, 128], sizes = [8, 128], strides = [1, 1]} : vector<8x384xf32> to vector<8x128xf32>
    %212 = vector.extract_strided_slice %202 {offsets = [0, 128], sizes = [8, 128], strides = [1, 1]} : vector<8x384xf32> to vector<8x128xf32>
    %213 = arith.addf %211, %212 : vector<8x128xf32>
    %214 = arith.negf %213 : vector<8x128xf32>
    %215 = math.exp %214 : vector<8x128xf32>
    %cst_97 = arith.constant 1.000000e+00 : f32
    %216 = vector.broadcast %cst_97 : f32 to vector<8x128xf32>
    %217 = arith.addf %216, %215 : vector<8x128xf32>
    %218 = arith.divf %216, %217 : vector<8x128xf32>
    %219 = vector.extract_strided_slice %198 {offsets = [0, 256], sizes = [8, 128], strides = [1, 1]} : vector<8x384xf32> to vector<8x128xf32>
    %220 = vector.extract_strided_slice %202 {offsets = [0, 256], sizes = [8, 128], strides = [1, 1]} : vector<8x384xf32> to vector<8x128xf32>
    %c0_98 = arith.constant 0 : index
    %c0_99 = arith.constant 0 : index
    %c0_100 = arith.constant 0 : index
    %221 = vector.load %arg5[%c0_98, %c0_99, %c0_100] : memref<1x1x128xf32, #tpu.memory_space<vmem>>, vector<1x1x128xf32>
    %222 = vector.shape_cast %221 : vector<1x1x128xf32> to vector<1x128xf32>
    %223 = vector.broadcast %222 : vector<1x128xf32> to vector<8x128xf32>
    %224 = arith.addf %220, %223 : vector<8x128xf32>
    %225 = arith.mulf %210, %224 : vector<8x128xf32>
    %226 = arith.addf %219, %225 : vector<8x128xf32>
    %227 = math.tanh %226 : vector<8x128xf32>
    %cst_101 = arith.constant 1.000000e+00 : f32
    %228 = vector.broadcast %cst_101 : f32 to vector<8x128xf32>
    %229 = arith.subf %228, %218 : vector<8x128xf32>
    %230 = arith.mulf %229, %227 : vector<8x128xf32>
    %231 = arith.mulf %218, %199 : vector<8x128xf32>
    %232 = arith.addf %230, %231 : vector<8x128xf32>
    %c0_102 = arith.constant 0 : index
    %c0_103 = arith.constant 0 : index
    %233 = vector.load %arg8[%c0_102, %c0_103] : memref<8x128xf32, #tpu.memory_space<vmem>>, vector<8x128xf32>
    tpu.vector_store %arg8[%c0_102, %c0_103], %232 {strides = array<i32>} : memref<8x128xf32, #tpu.memory_space<vmem>>, vector<8x128xf32>,
    %234 = arith.index_cast %196 : i32 to index
    %c0_104 = arith.constant 0 : index
    %235 = vector.load %arg6[%234, %c0_104] : memref<64x128xf32, #tpu.memory_space<vmem>>, vector<8x128xf32>
    tpu.vector_store %arg6[%234, %c0_104], %232 {strides = array<i32>} : memref<64x128xf32, #tpu.memory_space<vmem>>, vector<8x128xf32>,
    %c5_i32 = arith.constant 5 : i32
    %c2_i32_105 = arith.constant 2 : i32
    %236 = arith.muli %c2_i32_105, %c5_i32 : i32
    %c7_i32_106 = arith.constant 7 : i32
    %237 = arith.subi %c7_i32_106, %236 : i32
    %238 = arith.muli %arg0, %237 : i32
    %239 = arith.addi %c5_i32, %238 : i32
    %c8_i32_107 = arith.constant 8 : i32
    %240 = arith.muli %239, %c8_i32_107 : i32
    %241 = tpu.assume_multiple %240, 8 : i32
    %242 = arith.index_cast %241 : i32 to index
    %c0_108 = arith.constant 0 : index
    %243 = vector.load %arg7[%242, %c0_108] : memref<64x384xf32, #tpu.memory_space<vmem>>, vector<8x384xf32>
    %c0_109 = arith.constant 0 : index
    %c0_110 = arith.constant 0 : index
    %244 = vector.load %arg8[%c0_109, %c0_110] : memref<8x128xf32, #tpu.memory_space<vmem>>, vector<8x128xf32>
    %c0_111 = arith.constant 0 : index
    %c0_112 = arith.constant 0 : index
    %c0_113 = arith.constant 0 : index
    %245 = vector.load %arg4[%c0_111, %c0_112, %c0_113] : memref<1x128x384xf32, #tpu.memory_space<vmem>>, vector<1x128x384xf32>
    %246 = vector.shape_cast %245 : vector<1x128x384xf32> to vector<128x384xf32>
    %cst_114 = arith.constant dense<0.000000e+00> : vector<8x384xf32>
    %247 = tpu.matmul %244, %246, %cst_114 {dimension_numbers = #tpu.dot_dimension_numbers<[1], [0], [0], [1], [0, 0, 1, 1], [], []>} : vector<8x128xf32>, vector<128x384xf32>, vector<8x384xf32> -> vector<8x384xf32>
    %248 = vector.extract_strided_slice %243 {offsets = [0, 0], sizes = [8, 128], strides = [1, 1]} : vector<8x384xf32> to vector<8x128xf32>
    %249 = vector.extract_strided_slice %247 {offsets = [0, 0], sizes = [8, 128], strides = [1, 1]} : vector<8x384xf32> to vector<8x128xf32>
    %250 = arith.addf %248, %249 : vector<8x128xf32>
    %251 = arith.negf %250 : vector<8x128xf32>
    %252 = math.exp %251 : vector<8x128xf32>
    %cst_115 = arith.constant 1.000000e+00 : f32
    %253 = vector.broadcast %cst_115 : f32 to vector<8x128xf32>
    %254 = arith.addf %253, %252 : vector<8x128xf32>
    %255 = arith.divf %253, %254 : vector<8x128xf32>
    %256 = vector.extract_strided_slice %243 {offsets = [0, 128], sizes = [8, 128], strides = [1, 1]} : vector<8x384xf32> to vector<8x128xf32>
    %257 = vector.extract_strided_slice %247 {offsets = [0, 128], sizes = [8, 128], strides = [1, 1]} : vector<8x384xf32> to vector<8x128xf32>
    %258 = arith.addf %256, %257 : vector<8x128xf32>
    %259 = arith.negf %258 : vector<8x128xf32>
    %260 = math.exp %259 : vector<8x128xf32>
    %cst_116 = arith.constant 1.000000e+00 : f32
    %261 = vector.broadcast %cst_116 : f32 to vector<8x128xf32>
    %262 = arith.addf %261, %260 : vector<8x128xf32>
    %263 = arith.divf %261, %262 : vector<8x128xf32>
    %264 = vector.extract_strided_slice %243 {offsets = [0, 256], sizes = [8, 128], strides = [1, 1]} : vector<8x384xf32> to vector<8x128xf32>
    %265 = vector.extract_strided_slice %247 {offsets = [0, 256], sizes = [8, 128], strides = [1, 1]} : vector<8x384xf32> to vector<8x128xf32>
    %c0_117 = arith.constant 0 : index
    %c0_118 = arith.constant 0 : index
    %c0_119 = arith.constant 0 : index
    %266 = vector.load %arg5[%c0_117, %c0_118, %c0_119] : memref<1x1x128xf32, #tpu.memory_space<vmem>>, vector<1x1x128xf32>
    %267 = vector.shape_cast %266 : vector<1x1x128xf32> to vector<1x128xf32>
    %268 = vector.broadcast %267 : vector<1x128xf32> to vector<8x128xf32>
    %269 = arith.addf %265, %268 : vector<8x128xf32>
    %270 = arith.mulf %255, %269 : vector<8x128xf32>
    %271 = arith.addf %264, %270 : vector<8x128xf32>
    %272 = math.tanh %271 : vector<8x128xf32>
    %cst_120 = arith.constant 1.000000e+00 : f32
    %273 = vector.broadcast %cst_120 : f32 to vector<8x128xf32>
    %274 = arith.subf %273, %263 : vector<8x128xf32>
    %275 = arith.mulf %274, %272 : vector<8x128xf32>
    %276 = arith.mulf %263, %244 : vector<8x128xf32>
    %277 = arith.addf %275, %276 : vector<8x128xf32>
    %c0_121 = arith.constant 0 : index
    %c0_122 = arith.constant 0 : index
    %278 = vector.load %arg8[%c0_121, %c0_122] : memref<8x128xf32, #tpu.memory_space<vmem>>, vector<8x128xf32>
    tpu.vector_store %arg8[%c0_121, %c0_122], %277 {strides = array<i32>} : memref<8x128xf32, #tpu.memory_space<vmem>>, vector<8x128xf32>,
    %279 = arith.index_cast %241 : i32 to index
    %c0_123 = arith.constant 0 : index
    %280 = vector.load %arg6[%279, %c0_123] : memref<64x128xf32, #tpu.memory_space<vmem>>, vector<8x128xf32>
    tpu.vector_store %arg6[%279, %c0_123], %277 {strides = array<i32>} : memref<64x128xf32, #tpu.memory_space<vmem>>, vector<8x128xf32>,
    %c6_i32 = arith.constant 6 : i32
    %c2_i32_124 = arith.constant 2 : i32
    %281 = arith.muli %c2_i32_124, %c6_i32 : i32
    %c7_i32_125 = arith.constant 7 : i32
    %282 = arith.subi %c7_i32_125, %281 : i32
    %283 = arith.muli %arg0, %282 : i32
    %284 = arith.addi %c6_i32, %283 : i32
    %c8_i32_126 = arith.constant 8 : i32
    %285 = arith.muli %284, %c8_i32_126 : i32
    %286 = tpu.assume_multiple %285, 8 : i32
    %287 = arith.index_cast %286 : i32 to index
    %c0_127 = arith.constant 0 : index
    %288 = vector.load %arg7[%287, %c0_127] : memref<64x384xf32, #tpu.memory_space<vmem>>, vector<8x384xf32>
    %c0_128 = arith.constant 0 : index
    %c0_129 = arith.constant 0 : index
    %289 = vector.load %arg8[%c0_128, %c0_129] : memref<8x128xf32, #tpu.memory_space<vmem>>, vector<8x128xf32>
    %c0_130 = arith.constant 0 : index
    %c0_131 = arith.constant 0 : index
    %c0_132 = arith.constant 0 : index
    %290 = vector.load %arg4[%c0_130, %c0_131, %c0_132] : memref<1x128x384xf32, #tpu.memory_space<vmem>>, vector<1x128x384xf32>
    %291 = vector.shape_cast %290 : vector<1x128x384xf32> to vector<128x384xf32>
    %cst_133 = arith.constant dense<0.000000e+00> : vector<8x384xf32>
    %292 = tpu.matmul %289, %291, %cst_133 {dimension_numbers = #tpu.dot_dimension_numbers<[1], [0], [0], [1], [0, 0, 1, 1], [], []>} : vector<8x128xf32>, vector<128x384xf32>, vector<8x384xf32> -> vector<8x384xf32>
    %293 = vector.extract_strided_slice %288 {offsets = [0, 0], sizes = [8, 128], strides = [1, 1]} : vector<8x384xf32> to vector<8x128xf32>
    %294 = vector.extract_strided_slice %292 {offsets = [0, 0], sizes = [8, 128], strides = [1, 1]} : vector<8x384xf32> to vector<8x128xf32>
    %295 = arith.addf %293, %294 : vector<8x128xf32>
    %296 = arith.negf %295 : vector<8x128xf32>
    %297 = math.exp %296 : vector<8x128xf32>
    %cst_134 = arith.constant 1.000000e+00 : f32
    %298 = vector.broadcast %cst_134 : f32 to vector<8x128xf32>
    %299 = arith.addf %298, %297 : vector<8x128xf32>
    %300 = arith.divf %298, %299 : vector<8x128xf32>
    %301 = vector.extract_strided_slice %288 {offsets = [0, 128], sizes = [8, 128], strides = [1, 1]} : vector<8x384xf32> to vector<8x128xf32>
    %302 = vector.extract_strided_slice %292 {offsets = [0, 128], sizes = [8, 128], strides = [1, 1]} : vector<8x384xf32> to vector<8x128xf32>
    %303 = arith.addf %301, %302 : vector<8x128xf32>
    %304 = arith.negf %303 : vector<8x128xf32>
    %305 = math.exp %304 : vector<8x128xf32>
    %cst_135 = arith.constant 1.000000e+00 : f32
    %306 = vector.broadcast %cst_135 : f32 to vector<8x128xf32>
    %307 = arith.addf %306, %305 : vector<8x128xf32>
    %308 = arith.divf %306, %307 : vector<8x128xf32>
    %309 = vector.extract_strided_slice %288 {offsets = [0, 256], sizes = [8, 128], strides = [1, 1]} : vector<8x384xf32> to vector<8x128xf32>
    %310 = vector.extract_strided_slice %292 {offsets = [0, 256], sizes = [8, 128], strides = [1, 1]} : vector<8x384xf32> to vector<8x128xf32>
    %c0_136 = arith.constant 0 : index
    %c0_137 = arith.constant 0 : index
    %c0_138 = arith.constant 0 : index
    %311 = vector.load %arg5[%c0_136, %c0_137, %c0_138] : memref<1x1x128xf32, #tpu.memory_space<vmem>>, vector<1x1x128xf32>
    %312 = vector.shape_cast %311 : vector<1x1x128xf32> to vector<1x128xf32>
    %313 = vector.broadcast %312 : vector<1x128xf32> to vector<8x128xf32>
    %314 = arith.addf %310, %313 : vector<8x128xf32>
    %315 = arith.mulf %300, %314 : vector<8x128xf32>
    %316 = arith.addf %309, %315 : vector<8x128xf32>
    %317 = math.tanh %316 : vector<8x128xf32>
    %cst_139 = arith.constant 1.000000e+00 : f32
    %318 = vector.broadcast %cst_139 : f32 to vector<8x128xf32>
    %319 = arith.subf %318, %308 : vector<8x128xf32>
    %320 = arith.mulf %319, %317 : vector<8x128xf32>
    %321 = arith.mulf %308, %289 : vector<8x128xf32>
    %322 = arith.addf %320, %321 : vector<8x128xf32>
    %c0_140 = arith.constant 0 : index
    %c0_141 = arith.constant 0 : index
    %323 = vector.load %arg8[%c0_140, %c0_141] : memref<8x128xf32, #tpu.memory_space<vmem>>, vector<8x128xf32>
    tpu.vector_store %arg8[%c0_140, %c0_141], %322 {strides = array<i32>} : memref<8x128xf32, #tpu.memory_space<vmem>>, vector<8x128xf32>,
    %324 = arith.index_cast %286 : i32 to index
    %c0_142 = arith.constant 0 : index
    %325 = vector.load %arg6[%324, %c0_142] : memref<64x128xf32, #tpu.memory_space<vmem>>, vector<8x128xf32>
    tpu.vector_store %arg6[%324, %c0_142], %322 {strides = array<i32>} : memref<64x128xf32, #tpu.memory_space<vmem>>, vector<8x128xf32>,
    %c7_i32_143 = arith.constant 7 : i32
    %c2_i32_144 = arith.constant 2 : i32
    %326 = arith.muli %c2_i32_144, %c7_i32_143 : i32
    %c7_i32_145 = arith.constant 7 : i32
    %327 = arith.subi %c7_i32_145, %326 : i32
    %328 = arith.muli %arg0, %327 : i32
    %329 = arith.addi %c7_i32_143, %328 : i32
    %c8_i32_146 = arith.constant 8 : i32
    %330 = arith.muli %329, %c8_i32_146 : i32
    %331 = tpu.assume_multiple %330, 8 : i32
    %332 = arith.index_cast %331 : i32 to index
    %c0_147 = arith.constant 0 : index
    %333 = vector.load %arg7[%332, %c0_147] : memref<64x384xf32, #tpu.memory_space<vmem>>, vector<8x384xf32>
    %c0_148 = arith.constant 0 : index
    %c0_149 = arith.constant 0 : index
    %334 = vector.load %arg8[%c0_148, %c0_149] : memref<8x128xf32, #tpu.memory_space<vmem>>, vector<8x128xf32>
    %c0_150 = arith.constant 0 : index
    %c0_151 = arith.constant 0 : index
    %c0_152 = arith.constant 0 : index
    %335 = vector.load %arg4[%c0_150, %c0_151, %c0_152] : memref<1x128x384xf32, #tpu.memory_space<vmem>>, vector<1x128x384xf32>
    %336 = vector.shape_cast %335 : vector<1x128x384xf32> to vector<128x384xf32>
    %cst_153 = arith.constant dense<0.000000e+00> : vector<8x384xf32>
    %337 = tpu.matmul %334, %336, %cst_153 {dimension_numbers = #tpu.dot_dimension_numbers<[1], [0], [0], [1], [0, 0, 1, 1], [], []>} : vector<8x128xf32>, vector<128x384xf32>, vector<8x384xf32> -> vector<8x384xf32>
    %338 = vector.extract_strided_slice %333 {offsets = [0, 0], sizes = [8, 128], strides = [1, 1]} : vector<8x384xf32> to vector<8x128xf32>
    %339 = vector.extract_strided_slice %337 {offsets = [0, 0], sizes = [8, 128], strides = [1, 1]} : vector<8x384xf32> to vector<8x128xf32>
    %340 = arith.addf %338, %339 : vector<8x128xf32>
    %341 = arith.negf %340 : vector<8x128xf32>
    %342 = math.exp %341 : vector<8x128xf32>
    %cst_154 = arith.constant 1.000000e+00 : f32
    %343 = vector.broadcast %cst_154 : f32 to vector<8x128xf32>
    %344 = arith.addf %343, %342 : vector<8x128xf32>
    %345 = arith.divf %343, %344 : vector<8x128xf32>
    %346 = vector.extract_strided_slice %333 {offsets = [0, 128], sizes = [8, 128], strides = [1, 1]} : vector<8x384xf32> to vector<8x128xf32>
    %347 = vector.extract_strided_slice %337 {offsets = [0, 128], sizes = [8, 128], strides = [1, 1]} : vector<8x384xf32> to vector<8x128xf32>
    %348 = arith.addf %346, %347 : vector<8x128xf32>
    %349 = arith.negf %348 : vector<8x128xf32>
    %350 = math.exp %349 : vector<8x128xf32>
    %cst_155 = arith.constant 1.000000e+00 : f32
    %351 = vector.broadcast %cst_155 : f32 to vector<8x128xf32>
    %352 = arith.addf %351, %350 : vector<8x128xf32>
    %353 = arith.divf %351, %352 : vector<8x128xf32>
    %354 = vector.extract_strided_slice %333 {offsets = [0, 256], sizes = [8, 128], strides = [1, 1]} : vector<8x384xf32> to vector<8x128xf32>
    %355 = vector.extract_strided_slice %337 {offsets = [0, 256], sizes = [8, 128], strides = [1, 1]} : vector<8x384xf32> to vector<8x128xf32>
    %c0_156 = arith.constant 0 : index
    %c0_157 = arith.constant 0 : index
    %c0_158 = arith.constant 0 : index
    %356 = vector.load %arg5[%c0_156, %c0_157, %c0_158] : memref<1x1x128xf32, #tpu.memory_space<vmem>>, vector<1x1x128xf32>
    %357 = vector.shape_cast %356 : vector<1x1x128xf32> to vector<1x128xf32>
    %358 = vector.broadcast %357 : vector<1x128xf32> to vector<8x128xf32>
    %359 = arith.addf %355, %358 : vector<8x128xf32>
    %360 = arith.mulf %345, %359 : vector<8x128xf32>
    %361 = arith.addf %354, %360 : vector<8x128xf32>
    %362 = math.tanh %361 : vector<8x128xf32>
    %cst_159 = arith.constant 1.000000e+00 : f32
    %363 = vector.broadcast %cst_159 : f32 to vector<8x128xf32>
    %364 = arith.subf %363, %353 : vector<8x128xf32>
    %365 = arith.mulf %364, %362 : vector<8x128xf32>
    %366 = arith.mulf %353, %334 : vector<8x128xf32>
    %367 = arith.addf %365, %366 : vector<8x128xf32>
    %c0_160 = arith.constant 0 : index
    %c0_161 = arith.constant 0 : index
    %368 = vector.load %arg8[%c0_160, %c0_161] : memref<8x128xf32, #tpu.memory_space<vmem>>, vector<8x128xf32>
    tpu.vector_store %arg8[%c0_160, %c0_161], %367 {strides = array<i32>} : memref<8x128xf32, #tpu.memory_space<vmem>>, vector<8x128xf32>,
    %369 = arith.index_cast %331 : i32 to index
    %c0_162 = arith.constant 0 : index
    %370 = vector.load %arg6[%369, %c0_162] : memref<64x128xf32, #tpu.memory_space<vmem>>, vector<8x128xf32>
    tpu.vector_store %arg6[%369, %c0_162], %367 {strides = array<i32>} : memref<64x128xf32, #tpu.memory_space<vmem>>, vector<8x128xf32>,
    %c8_i32_163 = arith.constant 8 : i32
    return
  }
  func.func @transform_0(%arg0: i32) -> (i32, i32) {
    %c0_i32 = arith.constant 0 : i32
    %c0_i32_0 = arith.constant 0 : i32
    %c0_i32_1 = arith.constant 0 : i32
    return %c0_i32, %c0_i32_0 : i32, i32
  }
  func.func @transform_1(%arg0: i32) -> (i32, i32, i32) {
    %c0_i32 = arith.constant 0 : i32
    %c0_i32_0 = arith.constant 0 : i32
    %c0_i32_1 = arith.constant 0 : i32
    return %arg0, %c0_i32, %c0_i32_0 : i32, i32, i32
  }
  func.func @transform_2(%arg0: i32) -> (i32, i32, i32) {
    %c0_i32 = arith.constant 0 : i32
    %c0_i32_0 = arith.constant 0 : i32
    %c0_i32_1 = arith.constant 0 : i32
    return %arg0, %c0_i32, %c0_i32_0 : i32, i32, i32
  }
  func.func @transform_3(%arg0: i32) -> (i32, i32, i32) {
    %c0_i32 = arith.constant 0 : i32
    %c0_i32_0 = arith.constant 0 : i32
    %c0_i32_1 = arith.constant 0 : i32
    return %arg0, %c0_i32, %c0_i32_0 : i32, i32, i32
  }
  func.func @transform_4(%arg0: i32) -> (i32, i32, i32) {
    %c0_i32 = arith.constant 0 : i32
    %c0_i32_0 = arith.constant 0 : i32
    %c0_i32_1 = arith.constant 0 : i32
    return %arg0, %c0_i32, %c0_i32_0 : i32, i32, i32
  }
  func.func @transform_5(%arg0: i32) -> (i32, i32) {
    %c0_i32 = arith.constant 0 : i32
    %c0_i32_0 = arith.constant 0 : i32
    return %c0_i32, %arg0 : i32, i32
  }
}

</mosaic_0001>

<llo_original>
// kernel: bigru_forward.2
$region0: #{bigru_forward.2}
  #allocation0 [shape = 'u32[]', space=smem, size = 0x4, offset = 0x4, fixed_abs, tag = 'smem constant byte address 0x4 - core index']
  #allocation1 [shape = 'u32[144,128]{1,0:T(1,128)}', space=vmem, size = 0x12000, scoped, tag = 'internal scratch']
  #allocation2 [shape = 'f32[64,384]{1,0:T(8,128)}', space=vmem, size = 0x18000, scoped, tag = 'scratch operand']
  #allocation3 [shape = 'f32[8,128]{1,0:T(8,128)}', space=vmem, size = 0x1000, scoped, tag = 'scratch operand']
  %s0 = inlined_call_operand.vmem [shape: f32[64,128], index: 0, kind: input, shape index: {}]
  %s1 = inlined_call_operand.hbm [shape: f32[2,128,384], index: 1, kind: input, shape index: {}]
  %s2 = inlined_call_operand.hbm [shape: f32[2,1,384], index: 2, kind: input, shape index: {}]
  %s3 = inlined_call_operand.hbm [shape: f32[2,128,384], index: 3, kind: input, shape index: {}]
  %s4 = inlined_call_operand.hbm [shape: f32[2,1,128], index: 4, kind: input, shape index: {}]
  %s5 = inlined_call_operand.vmem [shape: f32[64,256], index: 5, kind: output, shape index: {}]
  %s6 = sld [smem:[#allocation0]]
  $region103: #{bigru_forward.2} parent=0
    _
  %s8 = ssub.s32 1, %s6
  %s9 = scalar_select 0, %s8, %s6
  $region1: #{bigru_forward.2} parent=0
    #allocation4 [shape = 'u8[393216]{0}', space=vmem, size = 0x60000, scoped, tag = 'input window, operand 1']
    #allocation5 [shape = 's32[2]{0}', space=sflag, size = 0x8, scoped, tag = 'scoped memory for bigru_forward.2']
    #allocation6 [shape = 'u8[3072]{0}', space=vmem, size = 0xc00, scoped, tag = 'input window, operand 2']
    #allocation7 [shape = 's32[2]{0}', space=sflag, size = 0x8, scoped, tag = 'scoped memory for bigru_forward.2']
    #allocation8 [shape = 'u8[393216]{0}', space=vmem, size = 0x60000, scoped, tag = 'input window, operand 3']
    #allocation9 [shape = 'u8[1024]{0}', space=vmem, size = 0x400, scoped, tag = 'input window, operand 4']
    #allocation10 [shape = 's32[2]{0}', space=sflag, size = 0x8, scoped, tag = 'scoped memory for bigru_forward.2']
    #allocation11 [shape = 'u8[65536]{0}', space=vmem, size = 0x10000, scoped, tag = 'output window, operand 0']
    %10 = vsyncpa [#allocation5], 0
    %s11 = scalar_lea.sflag [#allocation5], 1
    %12 = vsyncpa %s11, 0
    %13 = vsyncpa [#allocation7], 0
    %s14 = scalar_lea.sflag [#allocation7], 1
    %15 = vsyncpa %s14, 0
    %16 = vsyncpa [#allocation10], 0
    %s17 = scalar_lea.sflag [#allocation10], 1
    %18 = vsyncpa %s17, 0
    loop: start=0, step=1, limit=4
    $region2: #{bigru_forward.2} parent=1 // loop_pre_header
      _
    $region3: #{bigru_forward.2} parent=1 // loop_header
      %s20 = sphi 0, %s24
      %p21 = scmp.ge.s32.totalorder %s20, 4
      %s28 = sphi 0, %s28
      %s30 = sphi 0, %s28
      %s31 = sphi 0, %s30
      %s45 = sphi 0, %s31
      %s51 = sphi 0, %s53
      %s54 = sphi 0, %s51
      %s55 = sphi 0, %s54
      %s71 = sphi 0, %s55
      %s77 = sphi 0, %s79
      %s80 = sphi 0, %s77
      %s81 = sphi 0, %s80
      %s97 = sphi 0, %s81
      %s103 = sphi 0, %s105
      %s106 = sphi 0, %s103
      %s107 = sphi 0, %s106
      %s123 = sphi 0, %s107
      %s129 = sphi 0, %s131
      %s132 = sphi 0, %s129
      %s133 = sphi 0, %s132
      %s149 = sphi 0, %s133
      %s155 = sphi 0, %s157
      %s158 = sphi 0, %s155
      %s159 = sphi 0, %s158
      %s175 = sphi 0, %s159
    $region4: #{bigru_forward.2} parent=1 // loop_header_branch
      %23 = sbr.rel (%p21) target = $region8
    $region5: #{bigru_forward.2} parent=1 // loop_body
      %s25 = ssub.s32 %s20, 1
      %s26 = ssub.s32 %s20, 2
      %s27 = sadd.s32 %s20, 1
      %s29 = sadd.s32 %s28, 1
      %p32 = scmp.eq.s32.totalorder %s20, 1
      %p33 = scmp.ne.s32.totalorder %s28, %s30
      %p34 = scmp.eq.s32.totalorder %s20, 0
      %p35 = por %p33, %p34
      %p36 = scmp.ne.s32.totalorder %s28, %s30
      %p37 = scmp.eq.s32.totalorder %s25, 1
      %p38 = por %p36, %p37
      %p39 = scmp.ne.s32.totalorder %s30, %s31
      %p40 = scmp.eq.s32.totalorder %s25, 0
      %p41 = por %p39, %p40
      %p42 = scmp.ne.s32.totalorder %s30, %s31
      %p43 = scmp.eq.s32.totalorder %s26, 1
      %p44 = por %p42, %p43
      %p46 = scmp.ne.s32.totalorder %s31, %s45
      %p47 = scmp.eq.s32.totalorder %s26, 0
      %p48 = por %p46, %p47
      %s49 = ssub.s32 %s20, %s27
      %p50 = scmp.eq.s32.totalorder %s49, 0
      %s52 = sadd.s32 %s51, 1
      %s53 = scalar_select %p50, %s51, %s52
      %p56 = pneg %p50
      %p57 = scmp.eq.s32.totalorder %s20, 1
      %p58 = por %p56, %p57
      %p59 = scmp.ne.s32.totalorder %s51, %s54
      %p60 = scmp.eq.s32.totalorder %s20, 0
      %p61 = por %p59, %p60
      %p62 = scmp.ne.s32.totalorder %s51, %s54
      %p63 = scmp.eq.s32.totalorder %s25, 1
      %p64 = por %p62, %p63
      %p65 = scmp.ne.s32.totalorder %s54, %s55
      %p66 = scmp.eq.s32.totalorder %s25, 0
      %p67 = por %p65, %p66
      %p68 = scmp.ne.s32.totalorder %s54, %s55
      %p69 = scmp.eq.s32.totalorder %s26, 1
      %p70 = por %p68, %p69
      %p72 = scmp.ne.s32.totalorder %s55, %s71
      %p73 = scmp.eq.s32.totalorder %s26, 0
      %p74 = por %p72, %p73
      %s75 = ssub.s32 %s20, %s27
      %p76 = scmp.eq.s32.totalorder %s75, 0
      %s78 = sadd.s32 %s77, 1
      %s79 = scalar_select %p76, %s77, %s78
      %p82 = pneg %p76
      %p83 = scmp.eq.s32.totalorder %s20, 1
      %p84 = por %p82, %p83
      %p85 = scmp.ne.s32.totalorder %s77, %s80
      %p86 = scmp.eq.s32.totalorder %s20, 0
      %p87 = por %p85, %p86
      %p88 = scmp.ne.s32.totalorder %s77, %s80
      %p89 = scmp.eq.s32.totalorder %s25, 1
      %p90 = por %p88, %p89
      %p91 = scmp.ne.s32.totalorder %s80, %s81
      %p92 = scmp.eq.s32.totalorder %s25, 0
      %p93 = por %p91, %p92
      %p94 = scmp.ne.s32.totalorder %s80, %s81
      %p95 = scmp.eq.s32.totalorder %s26, 1
      %p96 = por %p94, %p95
      %p98 = scmp.ne.s32.totalorder %s81, %s97
      %p99 = scmp.eq.s32.totalorder %s26, 0
      %p100 = por %p98, %p99
      %s101 = ssub.s32 %s20, %s27
      %p102 = scmp.eq.s32.totalorder %s101, 0
      %s104 = sadd.s32 %s103, 1
      %s105 = scalar_select %p102, %s103, %s104
      %p108 = pneg %p102
      %p109 = scmp.eq.s32.totalorder %s20, 1
      %p110 = por %p108, %p109
      %p111 = scmp.ne.s32.totalorder %s103, %s106
      %p112 = scmp.eq.s32.totalorder %s20, 0
      %p113 = por %p111, %p112
      %p114 = scmp.ne.s32.totalorder %s103, %s106
      %p115 = scmp.eq.s32.totalorder %s25, 1
      %p116 = por %p114, %p115
      %p117 = scmp.ne.s32.totalorder %s106, %s107
      %p118 = scmp.eq.s32.totalorder %s25, 0
      %p119 = por %p117, %p118
      %p120 = scmp.ne.s32.totalorder %s106, %s107
      %p121 = scmp.eq.s32.totalorder %s26, 1
      %p122 = por %p120, %p121
      %p124 = scmp.ne.s32.totalorder %s107, %s123
      %p125 = scmp.eq.s32.totalorder %s26, 0
      %p126 = por %p124, %p125
      %s127 = ssub.s32 %s20, %s27
      %p128 = scmp.eq.s32.totalorder %s127, 0
      %s130 = sadd.s32 %s129, 1
      %s131 = scalar_select %p128, %s129, %s130
      %p134 = pneg %p128
      %p135 = scmp.eq.s32.totalorder %s20, 1
      %p136 = por %p134, %p135
      %p137 = scmp.ne.s32.totalorder %s129, %s132
      %p138 = scmp.eq.s32.totalorder %s20, 0
      %p139 = por %p137, %p138
      %p140 = scmp.ne.s32.totalorder %s129, %s132
      %p141 = scmp.eq.s32.totalorder %s25, 1
      %p142 = por %p140, %p141
      %p143 = scmp.ne.s32.totalorder %s132, %s133
      %p144 = scmp.eq.s32.totalorder %s25, 0
      %p145 = por %p143, %p144
      %p146 = scmp.ne.s32.totalorder %s132, %s133
      %p147 = scmp.eq.s32.totalorder %s26, 1
      %p148 = por %p146, %p147
      %p150 = scmp.ne.s32.totalorder %s133, %s149
      %p151 = scmp.eq.s32.totalorder %s26, 0
      %p152 = por %p150, %p151
      %s153 = ssub.s32 %s20, %s27
      %p154 = scmp.eq.s32.totalorder %s153, 0
      %s156 = sadd.s32 %s155, 1
      %s157 = scalar_select %p154, %s155, %s156
      %p160 = pneg %p154
      %p161 = scmp.eq.s32.totalorder %s20, 1
      %p162 = por %p160, %p161
      %p163 = scmp.ne.s32.totalorder %s155, %s158
      %p164 = scmp.eq.s32.totalorder %s20, 0
      %p165 = por %p163, %p164
      %p166 = scmp.ne.s32.totalorder %s155, %s158
      %p167 = scmp.eq.s32.totalorder %s25, 1
      %p168 = por %p166, %p167
      %p169 = scmp.ne.s32.totalorder %s158, %s159
      %p170 = scmp.eq.s32.totalorder %s25, 0
      %p171 = por %p169, %p170
      %p172 = scmp.ne.s32.totalorder %s158, %s159
      %p173 = scmp.eq.s32.totalorder %s26, 1
      %p174 = por %p172, %p173
      %p176 = scmp.ne.s32.totalorder %s159, %s175
      %p177 = scmp.eq.s32.totalorder %s26, 0
      %p178 = por %p176, %p177
      %p179 = scmp.le.s32.totalorder 1, %s20
      %p180 = scmp.lt.s32.totalorder %s20, 3
      %p181 = pnand %p179, %p180
      %p182 = pneg %p181
      // Predicated region
      $region9: #{bigru_forward.2} parent=5 // pred_check
        _
      $region10: #{bigru_forward.2} parent=5 // pred_check_branch
        %184 = sbr.rel (%p181) target = $region12
      $region11: #{bigru_forward.2} parent=5 // pred_region
        %s185 = ssub.s32 %s20, 1
        // Predicated region
        $region13: #{bigru_forward.2} parent=11 // pred_check
          %p186 = pneg %p41
        $region14: #{bigru_forward.2} parent=11 // pred_check_branch
          %188 = sbr.rel (%p186) target = $region16
        $region15: #{bigru_forward.2} parent=11 // pred_region
          _
        $region16: #{bigru_forward.2} parent=11 // pred_fallthru
          _
      $region12: #{bigru_forward.2} parent=5 // pred_fallthru
        _
      %p189 = scmp.lt.s32.totalorder %s20, 2
      // Predicated region
      $region17: #{bigru_forward.2} parent=5 // pred_check
        %p190 = pneg %p189
      $region18: #{bigru_forward.2} parent=5 // pred_check_branch
        %192 = sbr.rel (%p190) target = $region20
      $region19: #{bigru_forward.2} parent=5 // pred_region
        // Predicated region
        $region21: #{bigru_forward.2} parent=19 // pred_check
          %p193 = pneg %p61
        $region22: #{bigru_forward.2} parent=19 // pred_check_branch
          %195 = sbr.rel (%p193) target = $region24
        $region23: #{bigru_forward.2} parent=19 // pred_region
          %s196 = sand.u32 %s51, 1
          %s197 = scalar_lea.sflag [#allocation5], %s196
          %s198 = sand.u32 %s51, 1
          %s199 = smul.addr %s198, 384
          %s200 = scalar_lea.vmem [#allocation4], %s199
          %s202 = ssub.s32 6144, 6144
          %203 = vsyncadd %s197, %s202
          %s204 = smul.addr %s20, 48
          %s205 = smul.addr %s204, 128
          %s206 = scalar_lea.hbm %s1, %s205
          %s207 = sshll.u32 %s200, 4
          %s208 = int_to_ptr.vmem [resolvable:$true] %s207
          %213 = dma.hbm_to_vmem [thread:$0]  %s206, 6144, %s208, %s197, 384, 384, 24
        $region24: #{bigru_forward.2} parent=19 // pred_fallthru
          _
        // Predicated region
        $region25: #{bigru_forward.2} parent=19 // pred_check
          %p214 = pneg %p87
        $region26: #{bigru_forward.2} parent=19 // pred_check_branch
          %216 = sbr.rel (%p214) target = $region28
        $region27: #{bigru_forward.2} parent=19 // pred_region
          %s217 = sand.u32 %s20, 1
          %s218 = scalar_lea.sflag [#allocation7], %s217
          %s219 = sand.u32 %s77, 1
          %s220 = smul.addr %s219, 3
          %s221 = scalar_lea.vmem [#allocation6], %s220
          %s223 = ssub.s32 48, 48
          %224 = vsyncadd %s218, %s223
          %s225 = smul.addr %s20, 3
          %s226 = smul.addr %s225, 16
          %s227 = scalar_lea.hbm %s2, %s226
          %s229 = sshll.u32 %s221, 4
          %s230 = int_to_ptr.vmem [resolvable:$true] %s229
          %232 = dma.hbm_to_vmem [thread:$0]  %s227, 48, %s230, %s218
        $region28: #{bigru_forward.2} parent=19 // pred_fallthru
          _
        // Predicated region
        $region29: #{bigru_forward.2} parent=19 // pred_check
          %p233 = pneg %p113
        $region30: #{bigru_forward.2} parent=19 // pred_check_branch
          %235 = sbr.rel (%p233) target = $region32
        $region31: #{bigru_forward.2} parent=19 // pred_region
          %s236 = sand.u32 %s20, 1
          %s237 = scalar_lea.sflag [#allocation7], %s236
          %s238 = sand.u32 %s103, 1
          %s239 = smul.addr %s238, 384
          %s240 = scalar_lea.vmem [#allocation8], %s239
          %s242 = ssub.s32 6144, 6144
          %243 = vsyncadd %s237, %s242
          %s244 = smul.addr %s20, 48
          %s245 = smul.addr %s244, 128
          %s246 = scalar_lea.hbm %s3, %s245
          %s247 = sshll.u32 %s240, 4
          %s248 = int_to_ptr.vmem [resolvable:$true] %s247
          %253 = dma.hbm_to_vmem [thread:$0]  %s246, 6144, %s248, %s237, 384, 384, 24
        $region32: #{bigru_forward.2} parent=19 // pred_fallthru
          _
        // Predicated region
        $region33: #{bigru_forward.2} parent=19 // pred_check
          %p254 = pneg %p139
        $region34: #{bigru_forward.2} parent=19 // pred_check_branch
          %256 = sbr.rel (%p254) target = $region36
        $region35: #{bigru_forward.2} parent=19 // pred_region
          %s257 = sand.u32 %s129, 1
          %s258 = scalar_lea.sflag [#allocation10], %s257
          %s259 = sand.u32 %s129, 1
          %s260 = scalar_lea.vmem [#allocation9], %s259
          %s262 = ssub.s32 16, 16
          %263 = vsyncadd %s258, %s262
          %s264 = smul.addr %s20, 16
          %s265 = scalar_lea.hbm %s4, %s264
          %s267 = sshll.u32 %s260, 4
          %s268 = int_to_ptr.vmem [resolvable:$true] %s267
          %270 = dma.hbm_to_vmem [thread:$0]  %s265, 16, %s268, %s258
        $region36: #{bigru_forward.2} parent=19 // pred_fallthru
          _
      $region20: #{bigru_forward.2} parent=5 // pred_fallthru
        _
      %p271 = scmp.le.s32.totalorder 1, %s20
      %p272 = scmp.lt.s32.totalorder %s20, 3
      %p273 = pnand %p271, %p272
      %p274 = pneg %p273
      // Predicated region
      $region37: #{bigru_forward.2} parent=5 // pred_check
        _
      $region38: #{bigru_forward.2} parent=5 // pred_check_branch
        %276 = sbr.rel (%p273) target = $region40
      $region39: #{bigru_forward.2} parent=5 // pred_region
        %s277 = ssub.s32 %s20, 1
        %s278 = sand.u32 %s54, 1
        %s279 = scalar_lea.sflag [#allocation5], %s278
        %s280 = sand.u32 %s54, 1
        %s281 = smul.addr %s280, 384
        %s282 = scalar_lea.vmem [#allocation4], %s281
        // Predicated region
        $region41: #{bigru_forward.2} parent=39 // pred_check
          %p283 = pneg %p67
        $region42: #{bigru_forward.2} parent=39 // pred_check_branch
          %285 = sbr.rel (%p283) target = $region44
        $region43: #{bigru_forward.2} parent=39 // pred_region
          %286 = dma.done %s279, 6144
        $region44: #{bigru_forward.2} parent=39 // pred_fallthru
          _
        %s287 = sand.u32 %s25, 1
        %s288 = scalar_lea.sflag [#allocation7], %s287
        %s289 = sand.u32 %s80, 1
        %s290 = smul.addr %s289, 3
        %s291 = scalar_lea.vmem [#allocation6], %s290
        // Predicated region
        $region45: #{bigru_forward.2} parent=39 // pred_check
          %p292 = pneg %p93
        $region46: #{bigru_forward.2} parent=39 // pred_check_branch
          %294 = sbr.rel (%p292) target = $region48
        $region47: #{bigru_forward.2} parent=39 // pred_region
          %295 = dma.done %s288, 48
        $region48: #{bigru_forward.2} parent=39 // pred_fallthru
          _
        %s296 = sand.u32 %s25, 1
        %s297 = scalar_lea.sflag [#allocation7], %s296
        %s298 = sand.u32 %s106, 1
        %s299 = smul.addr %s298, 384
        %s300 = scalar_lea.vmem [#allocation8], %s299
        // Predicated region
        $region49: #{bigru_forward.2} parent=39 // pred_check
          %p301 = pneg %p119
        $region50: #{bigru_forward.2} parent=39 // pred_check_branch
          %303 = sbr.rel (%p301) target = $region52
        $region51: #{bigru_forward.2} parent=39 // pred_region
          %304 = dma.done %s297, 6144
        $region52: #{bigru_forward.2} parent=39 // pred_fallthru
          _
        %s305 = sand.u32 %s132, 1
        %s306 = scalar_lea.sflag [#allocation10], %s305
        %s307 = sand.u32 %s132, 1
        %s308 = scalar_lea.vmem [#allocation9], %s307
        // Predicated region
        $region53: #{bigru_forward.2} parent=39 // pred_check
          %p309 = pneg %p145
        $region54: #{bigru_forward.2} parent=39 // pred_check_branch
          %311 = sbr.rel (%p309) target = $region56
        $region55: #{bigru_forward.2} parent=39 // pred_region
          %312 = dma.done %s306, 16
        $region56: #{bigru_forward.2} parent=39 // pred_fallthru
          _
        %p313 = pneg %p41
        %p314 = pneg %p38
        %s315 = sand.u32 %s54, 1
        %s316 = scalar_lea.sflag [#allocation5], %s315
        %s317 = sand.u32 %s54, 1
        %s318 = smul.addr %s317, 384
        %s319 = scalar_lea.vmem [#allocation4], %s318
        %p320 = pneg %p67
        %p321 = pneg %p64
        %s322 = sand.u32 %s25, 1
        %s323 = scalar_lea.sflag [#allocation7], %s322
        %s324 = sand.u32 %s80, 1
        %s325 = smul.addr %s324, 3
        %s326 = scalar_lea.vmem [#allocation6], %s325
        %p327 = pneg %p93
        %p328 = pneg %p90
        %s329 = sand.u32 %s25, 1
        %s330 = scalar_lea.sflag [#allocation7], %s329
        %s331 = sand.u32 %s106, 1
        %s332 = smul.addr %s331, 384
        %s333 = scalar_lea.vmem [#allocation8], %s332
        %p334 = pneg %p119
        %p335 = pneg %p116
        %s336 = sand.u32 %s132, 1
        %s337 = scalar_lea.sflag [#allocation10], %s336
        %s338 = sand.u32 %s132, 1
        %s339 = scalar_lea.vmem [#allocation9], %s338
        %p340 = pneg %p145
        %p341 = pneg %p142
        %p342 = pneg %p171
        %p343 = pneg %p168
        %s344 = sand.u32 %s158, 1
        %s345 = sand.u32 %s158, 1
        %s346 = smul.addr %s345, 64
        %s347 = scalar_lea.vmem [#allocation11], %s346
        %v348 = vld [vmem:[%s0] sm:$0xff]
        %v349 = vld [vmem:[%s0 + $0x8] sm:$0xff]
        %v350 = vld [vmem:[%s0 + $0x10] sm:$0xff]
        %v351 = vld [vmem:[%s0 + $0x18] sm:$0xff]
        %v352 = vld [vmem:[%s0 + $0x20] sm:$0xff]
        %v353 = vld [vmem:[%s0 + $0x28] sm:$0xff]
        %v354 = vld [vmem:[%s0 + $0x30] sm:$0xff]
        %v355 = vld [vmem:[%s0 + $0x38] sm:$0xff]
        %v356 = vld [vmem:[%s282] sm:$0xff]
        %v357 = vld [vmem:[%s282 + $0x8] sm:$0xff]
        %v358 = vld [vmem:[%s282 + $0x10] sm:$0xff]
        %v359 = vld [vmem:[%s282 + $0x18] sm:$0xff]
        %v360 = vld [vmem:[%s282 + $0x20] sm:$0xff]
        %v361 = vld [vmem:[%s282 + $0x28] sm:$0xff]
        %v362 = vld [vmem:[%s282 + $0x30] sm:$0xff]
        %v363 = vld [vmem:[%s282 + $0x38] sm:$0xff]
        %v364 = vld [vmem:[%s282 + $0x40] sm:$0xff]
        %v365 = vld [vmem:[%s282 + $0x48] sm:$0xff]
        %v366 = vld [vmem:[%s282 + $0x50] sm:$0xff]
        %v367 = vld [vmem:[%s282 + $0x58] sm:$0xff]
        %v368 = vld [vmem:[%s282 + $0x60] sm:$0xff]
        %v369 = vld [vmem:[%s282 + $0x68] sm:$0xff]
        %v370 = vld [vmem:[%s282 + $0x70] sm:$0xff]
        %v371 = vld [vmem:[%s282 + $0x78] sm:$0xff]
        %v372 = vld [vmem:[%s282 + $0x80] sm:$0xff]
        %v373 = vld [vmem:[%s282 + $0x88] sm:$0xff]
        %v374 = vld [vmem:[%s282 + $0x90] sm:$0xff]
        %v375 = vld [vmem:[%s282 + $0x98] sm:$0xff]
        %v376 = vld [vmem:[%s282 + $0xa0] sm:$0xff]
        %v377 = vld [vmem:[%s282 + $0xa8] sm:$0xff]
        %v378 = vld [vmem:[%s282 + $0xb0] sm:$0xff]
        %v379 = vld [vmem:[%s282 + $0xb8] sm:$0xff]
        %v380 = vld [vmem:[%s282 + $0xc0] sm:$0xff]
        %v381 = vld [vmem:[%s282 + $0xc8] sm:$0xff]
        %v382 = vld [vmem:[%s282 + $0xd0] sm:$0xff]
        %v383 = vld [vmem:[%s282 + $0xd8] sm:$0xff]
        %v384 = vld [vmem:[%s282 + $0xe0] sm:$0xff]
        %v385 = vld [vmem:[%s282 + $0xe8] sm:$0xff]
        %v386 = vld [vmem:[%s282 + $0xf0] sm:$0xff]
        %v387 = vld [vmem:[%s282 + $0xf8] sm:$0xff]
        %v388 = vld [vmem:[%s282 + $0x100] sm:$0xff]
        %v389 = vld [vmem:[%s282 + $0x108] sm:$0xff]
        %v390 = vld [vmem:[%s282 + $0x110] sm:$0xff]
        %v391 = vld [vmem:[%s282 + $0x118] sm:$0xff]
        %v392 = vld [vmem:[%s282 + $0x120] sm:$0xff]
        %v393 = vld [vmem:[%s282 + $0x128] sm:$0xff]
        %v394 = vld [vmem:[%s282 + $0x130] sm:$0xff]
        %v395 = vld [vmem:[%s282 + $0x138] sm:$0xff]
        %v396 = vld [vmem:[%s282 + $0x140] sm:$0xff]
        %v397 = vld [vmem:[%s282 + $0x148] sm:$0xff]
        %v398 = vld [vmem:[%s282 + $0x150] sm:$0xff]
        %v399 = vld [vmem:[%s282 + $0x158] sm:$0xff]
        %v400 = vld [vmem:[%s282 + $0x160] sm:$0xff]
        %v401 = vld [vmem:[%s282 + $0x168] sm:$0xff]
        %v402 = vld [vmem:[%s282 + $0x170] sm:$0xff]
        %v403 = vld [vmem:[%s282 + $0x178] sm:$0xff]
        %v404 = vld [vmem:[%s291] sm:$0x7]
        %v406 = vlaneseq
        %v407 = vshrl.u32 %v406, 7
        %v408 = vsub.s32 0, %v407
        %v409 = vrot.slane %v404, %v408
        %v410 = vlaneseq
        %v411 = vshrl.u32 %v410, 7
        %v412 = vsub.s32 1, %v411
        %v413 = vrot.slane %v404, %v412
        %v414 = vlaneseq
        %v415 = vshrl.u32 %v414, 7
        %v416 = vsub.s32 2, %v415
        %v417 = vrot.slane %v404, %v416
        %421 = vmatprep.subr.mxu0 %v357
        %422 = vmatpush1.msra.mxu0 %v356
        %423 = vmatprep.subr.mxu0 %v360
        %424 = vmatpush1.msra.mxu0 %v359
        %425 = vmatprep.subr.mxu0 %v363
        %426 = vmatpush1.msra.mxu0 %v362
        %427 = vmatprep.subr.mxu0 %v366
        %428 = vmatpush1.msra.mxu0 %v365
        %429 = vmatprep.subr.mxu0 %v369
        %430 = vmatpush1.msra.mxu0 %v368
        %431 = vmatprep.subr.mxu0 %v372
        %432 = vmatpush1.msra.mxu0 %v371
        %433 = vmatprep.subr.mxu0 %v375
        %434 = vmatpush1.msra.mxu0 %v374
        %435 = vmatprep.subr.mxu0 %v378
        %436 = vmatpush1.msra.mxu0 %v377
        %437 = vmatprep.subr.mxu0 %v381
        %438 = vmatpush1.msra.mxu0 %v380
        %439 = vmatprep.subr.mxu0 %v384
        %440 = vmatpush1.msra.mxu0 %v383
        %441 = vmatprep.subr.mxu0 %v387
        %442 = vmatpush1.msra.mxu0 %v386
        %443 = vmatprep.subr.mxu0 %v390
        %444 = vmatpush1.msra.mxu0 %v389
        %445 = vmatprep.subr.mxu0 %v393
        %446 = vmatpush1.msra.mxu0 %v392
        %447 = vmatprep.subr.mxu0 %v396
        %448 = vmatpush1.msra.mxu0 %v395
        %449 = vmatprep.subr.mxu0 %v399
        %450 = vmatpush1.msra.mxu0 %v398
        %451 = vmatprep.subr.mxu0 %v402
        %452 = vmatpush1.msra.mxu0 %v401
        %453 = vmatprep.subr.mxu0 0.0
        %454 = vmatpush1.msra.mxu0 0.0
        %455 = vmatprep.subr.mxu0 0.0
        %456 = vmatpush1.msra.mxu0 0.0
        %457 = vmatprep.subr.mxu0 0.0
        %458 = vmatpush1.msra.mxu0 0.0
        %459 = vmatprep.subr.mxu0 0.0
        %460 = vmatpush1.msra.mxu0 0.0
        %461 = vmatprep.subr.mxu0 0.0
        %462 = vmatpush1.msra.mxu0 0.0
        %463 = vmatprep.subr.mxu0 0.0
        %464 = vmatpush1.msra.mxu0 0.0
        %465 = vmatprep.subr.mxu0 0.0
        %466 = vmatpush1.msra.mxu0 0.0
        %467 = vmatprep.subr.mxu0 0.0
        %468 = vmatpush1.msra.mxu0 0.0
        %469 = vmatprep.subr.mxu0 0.0
        %470 = vmatpush1.msra.mxu0 0.0
        %471 = vmatprep.subr.mxu0 0.0
        %472 = vmatpush1.msra.mxu0 0.0
        %473 = vmatprep.subr.mxu0 0.0
        %474 = vmatpush1.msra.mxu0 0.0
        %475 = vmatprep.subr.mxu0 0.0
        %476 = vmatpush1.msra.mxu0 0.0
        %477 = vmatprep.subr.mxu0 0.0
        %478 = vmatpush1.msra.mxu0 0.0
        %479 = vmatprep.subr.mxu0 0.0
        %480 = vmatpush1.msra.mxu0 0.0
        %481 = vmatprep.subr.mxu0 0.0
        %482 = vmatpush1.msra.mxu0 0.0
        %483 = vmatprep.subr.mxu0 0.0
        %484 = vmatpush1.msra.mxu0 0.0
        %485 = vmatprep.mubr.f32.mxu0 0.0
        %486 = vmatmul.mubr.f32.gmra.mrb[0].mxu0 %v348
        %v487 = vpop.f32.mrb[0].mxu0
        %v488 = vadd.f32 %v409, %v487
        %v489 = vpop.f32.mrb[0].mxu0
        %v490 = vadd.f32 %v413, %v489
        %491 = vmatprep.mubr.f32.mxu0 0.0
        %492 = vmatmul.mubr.f32.gmra.mrb[0].mxu0 %v349
        %v493 = vpop.f32.mrb[0].mxu0
        %v494 = vadd.f32 %v409, %v493
        %v495 = vpop.f32.mrb[0].mxu0
        %v496 = vadd.f32 %v413, %v495
        %497 = vmatprep.mubr.f32.mxu0 0.0
        %498 = vmatmul.mubr.f32.gmra.mrb[0].mxu0 %v350
        %v499 = vpop.f32.mrb[0].mxu0
        %v500 = vadd.f32 %v409, %v499
        %v501 = vpop.f32.mrb[0].mxu0
        %v502 = vadd.f32 %v413, %v501
        %503 = vmatprep.mubr.f32.mxu0 0.0
        %504 = vmatmul.mubr.f32.gmra.mrb[0].mxu0 %v351
        %v505 = vpop.f32.mrb[0].mxu0
        %v506 = vadd.f32 %v409, %v505
        %v507 = vpop.f32.mrb[0].mxu0
        %v508 = vadd.f32 %v413, %v507
        %509 = vmatprep.mubr.f32.mxu0 0.0
        %510 = vmatmul.mubr.f32.gmra.mrb[0].mxu0 %v352
        %v511 = vpop.f32.mrb[0].mxu0
        %v512 = vadd.f32 %v409, %v511
        %v513 = vpop.f32.mrb[0].mxu0
        %v514 = vadd.f32 %v413, %v513
        %515 = vmatprep.mubr.f32.mxu0 0.0
        %516 = vmatmul.mubr.f32.gmra.mrb[0].mxu0 %v353
        %v517 = vpop.f32.mrb[0].mxu0
        %v518 = vadd.f32 %v409, %v517
        %v519 = vpop.f32.mrb[0].mxu0
        %v520 = vadd.f32 %v413, %v519
        %521 = vmatprep.mubr.f32.mxu0 0.0
        %522 = vmatmul.mubr.f32.gmra.mrb[0].mxu0 %v354
        %v523 = vpop.f32.mrb[0].mxu0
        %v524 = vadd.f32 %v409, %v523
        %v525 = vpop.f32.mrb[0].mxu0
        %v526 = vadd.f32 %v413, %v525
        %527 = vmatprep.mubr.f32.mxu0 0.0
        %528 = vmatmul.mubr.f32.gmra.mrb[0].mxu0 %v355
        %v529 = vpop.f32.mrb[0].mxu0
        %v530 = vadd.f32 %v409, %v529
        %v531 = vpop.f32.mrb[0].mxu0
        %v532 = vadd.f32 %v413, %v531
        %533 = vdwg.mxu0
        %534 = vmatprep.subr.mxu0 0.0
        %535 = vmatpush1.msra.mxu0 %v358
        %536 = vmatprep.subr.mxu0 0.0
        %537 = vmatpush1.msra.mxu0 %v361
        %538 = vmatprep.subr.mxu0 0.0
        %539 = vmatpush1.msra.mxu0 %v364
        %540 = vmatprep.subr.mxu0 0.0
        %541 = vmatpush1.msra.mxu0 %v367
        %542 = vmatprep.subr.mxu0 0.0
        %543 = vmatpush1.msra.mxu0 %v370
        %544 = vmatprep.subr.mxu0 0.0
        %545 = vmatpush1.msra.mxu0 %v373
        %546 = vmatprep.subr.mxu0 0.0
        %547 = vmatpush1.msra.mxu0 %v376
        %548 = vmatprep.subr.mxu0 0.0
        %549 = vmatpush1.msra.mxu0 %v379
        %550 = vmatprep.subr.mxu0 0.0
        %551 = vmatpush1.msra.mxu0 %v382
        %552 = vmatprep.subr.mxu0 0.0
        %553 = vmatpush1.msra.mxu0 %v385
        %554 = vmatprep.subr.mxu0 0.0
        %555 = vmatpush1.msra.mxu0 %v388
        %556 = vmatprep.subr.mxu0 0.0
        %557 = vmatpush1.msra.mxu0 %v391
        %558 = vmatprep.subr.mxu0 0.0
        %559 = vmatpush1.msra.mxu0 %v394
        %560 = vmatprep.subr.mxu0 0.0
        %561 = vmatpush1.msra.mxu0 %v397
        %562 = vmatprep.subr.mxu0 0.0
        %563 = vmatpush1.msra.mxu0 %v400
        %564 = vmatprep.subr.mxu0 0.0
        %565 = vmatpush1.msra.mxu0 %v403
        %566 = vmatprep.subr.mxu0 0.0
        %567 = vmatpush1.msra.mxu0 0.0
        %568 = vmatprep.subr.mxu0 0.0
        %569 = vmatpush1.msra.mxu0 0.0
        %570 = vmatprep.subr.mxu0 0.0
        %571 = vmatpush1.msra.mxu0 0.0
        %572 = vmatprep.subr.mxu0 0.0
        %573 = vmatpush1.msra.mxu0 0.0
        %574 = vmatprep.subr.mxu0 0.0
        %575 = vmatpush1.msra.mxu0 0.0
        %576 = vmatprep.subr.mxu0 0.0
        %577 = vmatpush1.msra.mxu0 0.0
        %578 = vmatprep.subr.mxu0 0.0
        %579 = vmatpush1.msra.mxu0 0.0
        %580 = vmatprep.subr.mxu0 0.0
        %581 = vmatpush1.msra.mxu0 0.0
        %582 = vmatprep.subr.mxu0 0.0
        %583 = vmatpush1.msra.mxu0 0.0
        %584 = vmatprep.subr.mxu0 0.0
        %585 = vmatpush1.msra.mxu0 0.0
        %586 = vmatprep.subr.mxu0 0.0
        %587 = vmatpush1.msra.mxu0 0.0
        %588 = vmatprep.subr.mxu0 0.0
        %589 = vmatpush1.msra.mxu0 0.0
        %590 = vmatprep.subr.mxu0 0.0
        %591 = vmatpush1.msra.mxu0 0.0
        %592 = vmatprep.subr.mxu0 0.0
        %593 = vmatpush1.msra.mxu0 0.0
        %594 = vmatprep.subr.mxu0 0.0
        %595 = vmatpush1.msra.mxu0 0.0
        %596 = vmatprep.subr.mxu0 0.0
        %597 = vmatpush1.msra.mxu0 0.0
        %598 = vmatprep.mubr.f32.mxu0 0.0
        %599 = vmatmul.mubr.f32.gmra.mrb[0].mxu0 %v348
        %v600 = vpop.f32.mrb[0].mxu0
        %v601 = vadd.f32 %v417, %v600
        %v602 = vpop.f32.mrb[0].mxu0
        %603 = vmatprep.mubr.f32.mxu0 0.0
        %604 = vmatmul.mubr.f32.gmra.mrb[0].mxu0 %v349
        %v605 = vpop.f32.mrb[0].mxu0
        %v606 = vadd.f32 %v417, %v605
        %v607 = vpop.f32.mrb[0].mxu0
        %608 = vmatprep.mubr.f32.mxu0 0.0
        %609 = vmatmul.mubr.f32.gmra.mrb[0].mxu0 %v350
        %v610 = vpop.f32.mrb[0].mxu0
        %v611 = vadd.f32 %v417, %v610
        %v612 = vpop.f32.mrb[0].mxu0
        %613 = vmatprep.mubr.f32.mxu0 0.0
        %614 = vmatmul.mubr.f32.gmra.mrb[0].mxu0 %v351
        %v615 = vpop.f32.mrb[0].mxu0
        %v616 = vadd.f32 %v417, %v615
        %v617 = vpop.f32.mrb[0].mxu0
        %618 = vmatprep.mubr.f32.mxu0 0.0
        %619 = vmatmul.mubr.f32.gmra.mrb[0].mxu0 %v352
        %v620 = vpop.f32.mrb[0].mxu0
        %v621 = vadd.f32 %v417, %v620
        %v622 = vpop.f32.mrb[0].mxu0
        %623 = vmatprep.mubr.f32.mxu0 0.0
        %624 = vmatmul.mubr.f32.gmra.mrb[0].mxu0 %v353
        %v625 = vpop.f32.mrb[0].mxu0
        %v626 = vadd.f32 %v417, %v625
        %v627 = vpop.f32.mrb[0].mxu0
        %628 = vmatprep.mubr.f32.mxu0 0.0
        %629 = vmatmul.mubr.f32.gmra.mrb[0].mxu0 %v354
        %v630 = vpop.f32.mrb[0].mxu0
        %v631 = vadd.f32 %v417, %v630
        %v632 = vpop.f32.mrb[0].mxu0
        %633 = vmatprep.mubr.f32.mxu0 0.0
        %634 = vmatmul.mubr.f32.gmra.mrb[0].mxu0 %v355
        %v635 = vpop.f32.mrb[0].mxu0
        %v636 = vadd.f32 %v417, %v635
        %v637 = vpop.f32.mrb[0].mxu0
        %638 = vdwg.mxu0
        %639 = vst [vmem:[#allocation2] sm:$0xff] %v488
        %640 = vst [vmem:[#allocation2 + $0x8] sm:$0xff] %v490
        %641 = vst [vmem:[#allocation2 + $0x10] sm:$0xff] %v601
        %642 = vst [vmem:[#allocation2 + $0x18] sm:$0xff] %v494
        %643 = vst [vmem:[#allocation2 + $0x20] sm:$0xff] %v496
        %644 = vst [vmem:[#allocation2 + $0x28] sm:$0xff] %v606
        %645 = vst [vmem:[#allocation2 + $0x30] sm:$0xff] %v500
        %646 = vst [vmem:[#allocation2 + $0x38] sm:$0xff] %v502
        %647 = vst [vmem:[#allocation2 + $0x40] sm:$0xff] %v611
        %648 = vst [vmem:[#allocation2 + $0x48] sm:$0xff] %v506
        %649 = vst [vmem:[#allocation2 + $0x50] sm:$0xff] %v508
        %650 = vst [vmem:[#allocation2 + $0x58] sm:$0xff] %v616
        %651 = vst [vmem:[#allocation2 + $0x60] sm:$0xff] %v512
        %652 = vst [vmem:[#allocation2 + $0x68] sm:$0xff] %v514
        %653 = vst [vmem:[#allocation2 + $0x70] sm:$0xff] %v621
        %654 = vst [vmem:[#allocation2 + $0x78] sm:$0xff] %v518
        %655 = vst [vmem:[#allocation2 + $0x80] sm:$0xff] %v520
        %656 = vst [vmem:[#allocation2 + $0x88] sm:$0xff] %v626
        %657 = vst [vmem:[#allocation2 + $0x90] sm:$0xff] %v524
        %658 = vst [vmem:[#allocation2 + $0x98] sm:$0xff] %v526
        %659 = vst [vmem:[#allocation2 + $0xa0] sm:$0xff] %v631
        %660 = vst [vmem:[#allocation2 + $0xa8] sm:$0xff] %v530
        %661 = vst [vmem:[#allocation2 + $0xb0] sm:$0xff] %v532
        %662 = vst [vmem:[#allocation2 + $0xb8] sm:$0xff] %v636
        %663 = vst [vmem:[#allocation3] sm:$0xff] 0.0
        %s664 = smul.u32 %s25, 56
        %s665 = sshra.s32 %s664, 3
        %s666 = sand.u32 %s664, 7
        %s667 = smul.u32 %s665, 3
        %s668 = smul.addr %s667, 8
        %s669 = scalar_lea.vmem [#allocation2], %s668
        %v670 = vld [vmem:[%s669] sm:$0xff]
        %v671 = vld [vmem:[%s669 + $0x8] sm:$0xff]
        %v672 = vld [vmem:[%s669 + $0x10] sm:$0xff]
        %v673 = vld [vmem:[#allocation3] sm:$0xff]
        %v674 = vld [vmem:[%s300] sm:$0xff]
        %v675 = vld [vmem:[%s300 + $0x8] sm:$0xff]
        %v676 = vld [vmem:[%s300 + $0x10] sm:$0xff]
        %v677 = vld [vmem:[%s300 + $0x18] sm:$0xff]
        %v678 = vld [vmem:[%s300 + $0x20] sm:$0xff]
        %v679 = vld [vmem:[%s300 + $0x28] sm:$0xff]
        %v680 = vld [vmem:[%s300 + $0x30] sm:$0xff]
        %v681 = vld [vmem:[%s300 + $0x38] sm:$0xff]
        %v682 = vld [vmem:[%s300 + $0x40] sm:$0xff]
        %v683 = vld [vmem:[%s300 + $0x48] sm:$0xff]
        %v684 = vld [vmem:[%s300 + $0x50] sm:$0xff]
        %v685 = vld [vmem:[%s300 + $0x58] sm:$0xff]
        %v686 = vld [vmem:[%s300 + $0x60] sm:$0xff]
        %v687 = vld [vmem:[%s300 + $0x68] sm:$0xff]
        %v688 = vld [vmem:[%s300 + $0x70] sm:$0xff]
        %v689 = vld [vmem:[%s300 + $0x78] sm:$0xff]
        %v690 = vld [vmem:[%s300 + $0x80] sm:$0xff]
        %v691 = vld [vmem:[%s300 + $0x88] sm:$0xff]
        %v692 = vld [vmem:[%s300 + $0x90] sm:$0xff]
        %v693 = vld [vmem:[%s300 + $0x98] sm:$0xff]
        %v694 = vld [vmem:[%s300 + $0xa0] sm:$0xff]
        %v695 = vld [vmem:[%s300 + $0xa8] sm:$0xff]
        %v696 = vld [vmem:[%s300 + $0xb0] sm:$0xff]
        %v697 = vld [vmem:[%s300 + $0xb8] sm:$0xff]
        %v698 = vld [vmem:[%s300 + $0xc0] sm:$0xff]
        %v699 = vld [vmem:[%s300 + $0xc8] sm:$0xff]
        %v700 = vld [vmem:[%s300 + $0xd0] sm:$0xff]
        %v701 = vld [vmem:[%s300 + $0xd8] sm:$0xff]
        %v702 = vld [vmem:[%s300 + $0xe0] sm:$0xff]
        %v703 = vld [vmem:[%s300 + $0xe8] sm:$0xff]
        %v704 = vld [vmem:[%s300 + $0xf0] sm:$0xff]
        %v705 = vld [vmem:[%s300 + $0xf8] sm:$0xff]
        %v706 = vld [vmem:[%s300 + $0x100] sm:$0xff]
        %v707 = vld [vmem:[%s300 + $0x108] sm:$0xff]
        %v708 = vld [vmem:[%s300 + $0x110] sm:$0xff]
        %v709 = vld [vmem:[%s300 + $0x118] sm:$0xff]
        %v710 = vld [vmem:[%s300 + $0x120] sm:$0xff]
        %v711 = vld [vmem:[%s300 + $0x128] sm:$0xff]
        %v712 = vld [vmem:[%s300 + $0x130] sm:$0xff]
        %v713 = vld [vmem:[%s300 + $0x138] sm:$0xff]
        %v714 = vld [vmem:[%s300 + $0x140] sm:$0xff]
        %v715 = vld [vmem:[%s300 + $0x148] sm:$0xff]
        %v716 = vld [vmem:[%s300 + $0x150] sm:$0xff]
        %v717 = vld [vmem:[%s300 + $0x158] sm:$0xff]
        %v718 = vld [vmem:[%s300 + $0x160] sm:$0xff]
        %v719 = vld [vmem:[%s300 + $0x168] sm:$0xff]
        %v720 = vld [vmem:[%s300 + $0x170] sm:$0xff]
        %v721 = vld [vmem:[%s300 + $0x178] sm:$0xff]
        %722 = vmatprep.subr.mxu0 %v675
        %723 = vmatpush1.msra.mxu0 %v674
        %724 = vmatprep.subr.mxu0 %v678
        %725 = vmatpush1.msra.mxu0 %v677
        %726 = vmatprep.subr.mxu0 %v681
        %727 = vmatpush1.msra.mxu0 %v680
        %728 = vmatprep.subr.mxu0 %v684
        %729 = vmatpush1.msra.mxu0 %v683
        %730 = vmatprep.subr.mxu0 %v687
        %731 = vmatpush1.msra.mxu0 %v686
        %732 = vmatprep.subr.mxu0 %v690
        %733 = vmatpush1.msra.mxu0 %v689
        %734 = vmatprep.subr.mxu0 %v693
        %735 = vmatpush1.msra.mxu0 %v692
        %736 = vmatprep.subr.mxu0 %v696
        %737 = vmatpush1.msra.mxu0 %v695
        %738 = vmatprep.subr.mxu0 %v699
        %739 = vmatpush1.msra.mxu0 %v698
        %740 = vmatprep.subr.mxu0 %v702
        %741 = vmatpush1.msra.mxu0 %v701
        %742 = vmatprep.subr.mxu0 %v705
        %743 = vmatpush1.msra.mxu0 %v704
        %744 = vmatprep.subr.mxu0 %v708
        %745 = vmatpush1.msra.mxu0 %v707
        %746 = vmatprep.subr.mxu0 %v711
        %747 = vmatpush1.msra.mxu0 %v710
        %748 = vmatprep.subr.mxu0 %v714
        %749 = vmatpush1.msra.mxu0 %v713
        %750 = vmatprep.subr.mxu0 %v717
        %751 = vmatpush1.msra.mxu0 %v716
        %752 = vmatprep.subr.mxu0 %v720
        %753 = vmatpush1.msra.mxu0 %v719
        %754 = vmatprep.subr.mxu0 0.0
        %755 = vmatpush1.msra.mxu0 0.0
        %756 = vmatprep.subr.mxu0 0.0
        %757 = vmatpush1.msra.mxu0 0.0
        %758 = vmatprep.subr.mxu0 0.0
        %759 = vmatpush1.msra.mxu0 0.0
        %760 = vmatprep.subr.mxu0 0.0
        %761 = vmatpush1.msra.mxu0 0.0
        %762 = vmatprep.subr.mxu0 0.0
        %763 = vmatpush1.msra.mxu0 0.0
        %764 = vmatprep.subr.mxu0 0.0
        %765 = vmatpush1.msra.mxu0 0.0
        %766 = vmatprep.subr.mxu0 0.0
        %767 = vmatpush1.msra.mxu0 0.0
        %768 = vmatprep.subr.mxu0 0.0
        %769 = vmatpush1.msra.mxu0 0.0
        %770 = vmatprep.subr.mxu0 0.0
        %771 = vmatpush1.msra.mxu0 0.0
        %772 = vmatprep.subr.mxu0 0.0
        %773 = vmatpush1.msra.mxu0 0.0
        %774 = vmatprep.subr.mxu0 0.0
        %775 = vmatpush1.msra.mxu0 0.0
        %776 = vmatprep.subr.mxu0 0.0
        %777 = vmatpush1.msra.mxu0 0.0
        %778 = vmatprep.subr.mxu0 0.0
        %779 = vmatpush1.msra.mxu0 0.0
        %780 = vmatprep.subr.mxu0 0.0
        %781 = vmatpush1.msra.mxu0 0.0
        %782 = vmatprep.subr.mxu0 0.0
        %783 = vmatpush1.msra.mxu0 0.0
        %784 = vmatprep.subr.mxu0 0.0
        %785 = vmatpush1.msra.mxu0 0.0
        %786 = vmatprep.mubr.f32.mxu0 0.0
        %787 = vmatmul.mubr.f32.gmra.mrb[0].mxu0 %v673
        %v788 = vpop.f32.mrb[0].mxu0
        %v789 = vadd.f32 0.0, %v788
        %v790 = vpop.f32.mrb[0].mxu0
        %v791 = vadd.f32 0.0, %v790
        %792 = vdwg.mxu0
        %793 = vmatprep.subr.mxu0 0.0
        %794 = vmatpush1.msra.mxu0 %v676
        %795 = vmatprep.subr.mxu0 0.0
        %796 = vmatpush1.msra.mxu0 %v679
        %797 = vmatprep.subr.mxu0 0.0
        %798 = vmatpush1.msra.mxu0 %v682
        %799 = vmatprep.subr.mxu0 0.0
        %800 = vmatpush1.msra.mxu0 %v685
        %801 = vmatprep.subr.mxu0 0.0
        %802 = vmatpush1.msra.mxu0 %v688
        %803 = vmatprep.subr.mxu0 0.0
        %804 = vmatpush1.msra.mxu0 %v691
        %805 = vmatprep.subr.mxu0 0.0
        %806 = vmatpush1.msra.mxu0 %v694
        %807 = vmatprep.subr.mxu0 0.0
        %808 = vmatpush1.msra.mxu0 %v697
        %809 = vmatprep.subr.mxu0 0.0
        %810 = vmatpush1.msra.mxu0 %v700
        %811 = vmatprep.subr.mxu0 0.0
        %812 = vmatpush1.msra.mxu0 %v703
        %813 = vmatprep.subr.mxu0 0.0
        %814 = vmatpush1.msra.mxu0 %v706
        %815 = vmatprep.subr.mxu0 0.0
        %816 = vmatpush1.msra.mxu0 %v709
        %817 = vmatprep.subr.mxu0 0.0
        %818 = vmatpush1.msra.mxu0 %v712
        %819 = vmatprep.subr.mxu0 0.0
        %820 = vmatpush1.msra.mxu0 %v715
        %821 = vmatprep.subr.mxu0 0.0
        %822 = vmatpush1.msra.mxu0 %v718
        %823 = vmatprep.subr.mxu0 0.0
        %824 = vmatpush1.msra.mxu0 %v721
        %825 = vmatprep.subr.mxu0 0.0
        %826 = vmatpush1.msra.mxu0 0.0
        %827 = vmatprep.subr.mxu0 0.0
        %828 = vmatpush1.msra.mxu0 0.0
        %829 = vmatprep.subr.mxu0 0.0
        %830 = vmatpush1.msra.mxu0 0.0
        %831 = vmatprep.subr.mxu0 0.0
        %832 = vmatpush1.msra.mxu0 0.0
        %833 = vmatprep.subr.mxu0 0.0
        %834 = vmatpush1.msra.mxu0 0.0
        %835 = vmatprep.subr.mxu0 0.0
        %836 = vmatpush1.msra.mxu0 0.0
        %837 = vmatprep.subr.mxu0 0.0
        %838 = vmatpush1.msra.mxu0 0.0
        %839 = vmatprep.subr.mxu0 0.0
        %840 = vmatpush1.msra.mxu0 0.0
        %841 = vmatprep.subr.mxu0 0.0
        %842 = vmatpush1.msra.mxu0 0.0
        %843 = vmatprep.subr.mxu0 0.0
        %844 = vmatpush1.msra.mxu0 0.0
        %845 = vmatprep.subr.mxu0 0.0
        %846 = vmatpush1.msra.mxu0 0.0
        %847 = vmatprep.subr.mxu0 0.0
        %848 = vmatpush1.msra.mxu0 0.0
        %849 = vmatprep.subr.mxu0 0.0
        %850 = vmatpush1.msra.mxu0 0.0
        %851 = vmatprep.subr.mxu0 0.0
        %852 = vmatpush1.msra.mxu0 0.0
        %853 = vmatprep.subr.mxu0 0.0
        %854 = vmatpush1.msra.mxu0 0.0
        %855 = vmatprep.subr.mxu0 0.0
        %856 = vmatpush1.msra.mxu0 0.0
        %857 = vmatprep.mubr.f32.mxu0 0.0
        %858 = vmatmul.mubr.f32.gmra.mrb[0].mxu0 %v673
        %v859 = vpop.f32.mrb[0].mxu0
        %v860 = vadd.f32 0.0, %v859
        %v861 = vpop.f32.mrb[0].mxu0
        %862 = vdwg.mxu0
        %v863 = vadd.f32 %v670, %v789
        %v864 = vxor.u32 %v863, 2147483648
        %v865 = vmul.f32 %v864, 1.442695
        %v866 = vpow.pop %v865
        %v867 = vadd.f32 %v866, 1.0
        %v868 = vrcp.pop %v867
        %v869 = vmul.f32 1.0, %v868
        %v870 = vadd.f32 %v671, %v791
        %v871 = vxor.u32 %v870, 2147483648
        %v872 = vmul.f32 %v871, 1.442695
        %v873 = vpow.pop %v872
        %v874 = vadd.f32 %v873, 1.0
        %v875 = vrcp.pop %v874
        %v876 = vmul.f32 1.0, %v875
        %v877 = vld [vmem:[%s308] sm:$0x1]
        %v879 = vlaneseq
        %v880 = vshrl.u32 %v879, 7
        %v881 = vsub.s32 0, %v880
        %v882 = vrot.slane %v877, %v881
        %v884 = vadd.f32 %v860, %v882
        %v885 = vmul.f32 %v869, %v884
        %v886 = vadd.f32 %v672, %v885
        %v887 = vtanh.pop %v886
        %v888 = vsub.f32 1.0, %v876
        %v889 = vmul.f32 %v888, %v887
        %v890 = vmul.f32 %v876, %v673
        %v891 = vadd.f32 %v889, %v890
        %892 = vst [vmem:[#allocation3] sm:$0xff] %v891
        %s893 = scalar_lea.vmem %s347, %s664 [#allocation11]
        %894 = vst [vmem:[%s893] sm:$0xff] %v891
        %s895 = smul.u32 %s25, 5
        %s896 = sadd.s32 %s895, 1
        %s897 = smul.u32 %s896, 8
        %s898 = sshra.s32 %s897, 3
        %s899 = sand.u32 %s897, 7
        %s900 = smul.u32 %s898, 3
        %s901 = smul.addr %s900, 8
        %s902 = scalar_lea.vmem [#allocation2], %s901
        %v903 = vld [vmem:[%s902] sm:$0xff]
        %v904 = vld [vmem:[%s902 + $0x8] sm:$0xff]
        %v905 = vld [vmem:[%s902 + $0x10] sm:$0xff]
        %v906 = vld [vmem:[#allocation3] sm:$0xff]
        %v907 = vld [vmem:[%s300] sm:$0xff]
        %v908 = vld [vmem:[%s300 + $0x8] sm:$0xff]
        %v909 = vld [vmem:[%s300 + $0x10] sm:$0xff]
        %v910 = vld [vmem:[%s300 + $0x18] sm:$0xff]
        %v911 = vld [vmem:[%s300 + $0x20] sm:$0xff]
        %v912 = vld [vmem:[%s300 + $0x28] sm:$0xff]
        %v913 = vld [vmem:[%s300 + $0x30] sm:$0xff]
        %v914 = vld [vmem:[%s300 + $0x38] sm:$0xff]
        %v915 = vld [vmem:[%s300 + $0x40] sm:$0xff]
        %v916 = vld [vmem:[%s300 + $0x48] sm:$0xff]
        %v917 = vld [vmem:[%s300 + $0x50] sm:$0xff]
        %v918 = vld [vmem:[%s300 + $0x58] sm:$0xff]
        %v919 = vld [vmem:[%s300 + $0x60] sm:$0xff]
        %v920 = vld [vmem:[%s300 + $0x68] sm:$0xff]
        %v921 = vld [vmem:[%s300 + $0x70] sm:$0xff]
        %v922 = vld [vmem:[%s300 + $0x78] sm:$0xff]
        %v923 = vld [vmem:[%s300 + $0x80] sm:$0xff]
        %v924 = vld [vmem:[%s300 + $0x88] sm:$0xff]
        %v925 = vld [vmem:[%s300 + $0x90] sm:$0xff]
        %v926 = vld [vmem:[%s300 + $0x98] sm:$0xff]
        %v927 = vld [vmem:[%s300 + $0xa0] sm:$0xff]
        %v928 = vld [vmem:[%s300 + $0xa8] sm:$0xff]
        %v929 = vld [vmem:[%s300 + $0xb0] sm:$0xff]
        %v930 = vld [vmem:[%s300 + $0xb8] sm:$0xff]
        %v931 = vld [vmem:[%s300 + $0xc0] sm:$0xff]
        %v932 = vld [vmem:[%s300 + $0xc8] sm:$0xff]
        %v933 = vld [vmem:[%s300 + $0xd0] sm:$0xff]
        %v934 = vld [vmem:[%s300 + $0xd8] sm:$0xff]
        %v935 = vld [vmem:[%s300 + $0xe0] sm:$0xff]
        %v936 = vld [vmem:[%s300 + $0xe8] sm:$0xff]
        %v937 = vld [vmem:[%s300 + $0xf0] sm:$0xff]
        %v938 = vld [vmem:[%s300 + $0xf8] sm:$0xff]
        %v939 = vld [vmem:[%s300 + $0x100] sm:$0xff]
        %v940 = vld [vmem:[%s300 + $0x108] sm:$0xff]
        %v941 = vld [vmem:[%s300 + $0x110] sm:$0xff]
        %v942 = vld [vmem:[%s300 + $0x118] sm:$0xff]
        %v943 = vld [vmem:[%s300 + $0x120] sm:$0xff]
        %v944 = vld [vmem:[%s300 + $0x128] sm:$0xff]
        %v945 = vld [vmem:[%s300 + $0x130] sm:$0xff]
        %v946 = vld [vmem:[%s300 + $0x138] sm:$0xff]
        %v947 = vld [vmem:[%s300 + $0x140] sm:$0xff]
        %v948 = vld [vmem:[%s300 + $0x148] sm:$0xff]
        %v949 = vld [vmem:[%s300 + $0x150] sm:$0xff]
        %v950 = vld [vmem:[%s300 + $0x158] sm:$0xff]
        %v951 = vld [vmem:[%s300 + $0x160] sm:$0xff]
        %v952 = vld [vmem:[%s300 + $0x168] sm:$0xff]
        %v953 = vld [vmem:[%s300 + $0x170] sm:$0xff]
        %v954 = vld [vmem:[%s300 + $0x178] sm:$0xff]
        %955 = vmatprep.subr.mxu0 %v908
        %956 = vmatpush1.msra.mxu0 %v907
        %957 = vmatprep.subr.mxu0 %v911
        %958 = vmatpush1.msra.mxu0 %v910
        %959 = vmatprep.subr.mxu0 %v914
        %960 = vmatpush1.msra.mxu0 %v913
        %961 = vmatprep.subr.mxu0 %v917
        %962 = vmatpush1.msra.mxu0 %v916
        %963 = vmatprep.subr.mxu0 %v920
        %964 = vmatpush1.msra.mxu0 %v919
        %965 = vmatprep.subr.mxu0 %v923
        %966 = vmatpush1.msra.mxu0 %v922
        %967 = vmatprep.subr.mxu0 %v926
        %968 = vmatpush1.msra.mxu0 %v925
        %969 = vmatprep.subr.mxu0 %v929
        %970 = vmatpush1.msra.mxu0 %v928
        %971 = vmatprep.subr.mxu0 %v932
        %972 = vmatpush1.msra.mxu0 %v931
        %973 = vmatprep.subr.mxu0 %v935
        %974 = vmatpush1.msra.mxu0 %v934
        %975 = vmatprep.subr.mxu0 %v938
        %976 = vmatpush1.msra.mxu0 %v937
        %977 = vmatprep.subr.mxu0 %v941
        %978 = vmatpush1.msra.mxu0 %v940
        %979 = vmatprep.subr.mxu0 %v944
        %980 = vmatpush1.msra.mxu0 %v943
        %981 = vmatprep.subr.mxu0 %v947
        %982 = vmatpush1.msra.mxu0 %v946
        %983 = vmatprep.subr.mxu0 %v950
        %984 = vmatpush1.msra.mxu0 %v949
        %985 = vmatprep.subr.mxu0 %v953
        %986 = vmatpush1.msra.mxu0 %v952
        %987 = vmatprep.subr.mxu0 0.0
        %988 = vmatpush1.msra.mxu0 0.0
        %989 = vmatprep.subr.mxu0 0.0
        %990 = vmatpush1.msra.mxu0 0.0
        %991 = vmatprep.subr.mxu0 0.0
        %992 = vmatpush1.msra.mxu0 0.0
        %993 = vmatprep.subr.mxu0 0.0
        %994 = vmatpush1.msra.mxu0 0.0
        %995 = vmatprep.subr.mxu0 0.0
        %996 = vmatpush1.msra.mxu0 0.0
        %997 = vmatprep.subr.mxu0 0.0
        %998 = vmatpush1.msra.mxu0 0.0
        %999 = vmatprep.subr.mxu0 0.0
        %1000 = vmatpush1.msra.mxu0 0.0
        %1001 = vmatprep.subr.mxu0 0.0
        %1002 = vmatpush1.msra.mxu0 0.0
        %1003 = vmatprep.subr.mxu0 0.0
        %1004 = vmatpush1.msra.mxu0 0.0
        %1005 = vmatprep.subr.mxu0 0.0
        %1006 = vmatpush1.msra.mxu0 0.0
        %1007 = vmatprep.subr.mxu0 0.0
        %1008 = vmatpush1.msra.mxu0 0.0
        %1009 = vmatprep.subr.mxu0 0.0
        %1010 = vmatpush1.msra.mxu0 0.0
        %1011 = vmatprep.subr.mxu0 0.0
        %1012 = vmatpush1.msra.mxu0 0.0
        %1013 = vmatprep.subr.mxu0 0.0
        %1014 = vmatpush1.msra.mxu0 0.0
        %1015 = vmatprep.subr.mxu0 0.0
        %1016 = vmatpush1.msra.mxu0 0.0
        %1017 = vmatprep.subr.mxu0 0.0
        %1018 = vmatpush1.msra.mxu0 0.0
        %1019 = vmatprep.mubr.f32.mxu0 0.0
        %1020 = vmatmul.mubr.f32.gmra.mrb[0].mxu0 %v906
        %v1021 = vpop.f32.mrb[0].mxu0
        %v1022 = vadd.f32 0.0, %v1021
        %v1023 = vpop.f32.mrb[0].mxu0
        %v1024 = vadd.f32 0.0, %v1023
        %1025 = vdwg.mxu0
        %1026 = vmatprep.subr.mxu0 0.0
        %1027 = vmatpush1.msra.mxu0 %v909
        %1028 = vmatprep.subr.mxu0 0.0
        %1029 = vmatpush1.msra.mxu0 %v912
        %1030 = vmatprep.subr.mxu0 0.0
        %1031 = vmatpush1.msra.mxu0 %v915
        %1032 = vmatprep.subr.mxu0 0.0
        %1033 = vmatpush1.msra.mxu0 %v918
        %1034 = vmatprep.subr.mxu0 0.0
        %1035 = vmatpush1.msra.mxu0 %v921
        %1036 = vmatprep.subr.mxu0 0.0
        %1037 = vmatpush1.msra.mxu0 %v924
        %1038 = vmatprep.subr.mxu0 0.0
        %1039 = vmatpush1.msra.mxu0 %v927
        %1040 = vmatprep.subr.mxu0 0.0
        %1041 = vmatpush1.msra.mxu0 %v930
        %1042 = vmatprep.subr.mxu0 0.0
        %1043 = vmatpush1.msra.mxu0 %v933
        %1044 = vmatprep.subr.mxu0 0.0
        %1045 = vmatpush1.msra.mxu0 %v936
        %1046 = vmatprep.subr.mxu0 0.0
        %1047 = vmatpush1.msra.mxu0 %v939
        %1048 = vmatprep.subr.mxu0 0.0
        %1049 = vmatpush1.msra.mxu0 %v942
        %1050 = vmatprep.subr.mxu0 0.0
        %1051 = vmatpush1.msra.mxu0 %v945
        %1052 = vmatprep.subr.mxu0 0.0
        %1053 = vmatpush1.msra.mxu0 %v948
        %1054 = vmatprep.subr.mxu0 0.0
        %1055 = vmatpush1.msra.mxu0 %v951
        %1056 = vmatprep.subr.mxu0 0.0
        %1057 = vmatpush1.msra.mxu0 %v954
        %1058 = vmatprep.subr.mxu0 0.0
        %1059 = vmatpush1.msra.mxu0 0.0
        %1060 = vmatprep.subr.mxu0 0.0
        %1061 = vmatpush1.msra.mxu0 0.0
        %1062 = vmatprep.subr.mxu0 0.0
        %1063 = vmatpush1.msra.mxu0 0.0
        %1064 = vmatprep.subr.mxu0 0.0
        %1065 = vmatpush1.msra.mxu0 0.0
        %1066 = vmatprep.subr.mxu0 0.0
        %1067 = vmatpush1.msra.mxu0 0.0
        %1068 = vmatprep.subr.mxu0 0.0
        %1069 = vmatpush1.msra.mxu0 0.0
        %1070 = vmatprep.subr.mxu0 0.0
        %1071 = vmatpush1.msra.mxu0 0.0
        %1072 = vmatprep.subr.mxu0 0.0
        %1073 = vmatpush1.msra.mxu0 0.0
        %1074 = vmatprep.subr.mxu0 0.0
        %1075 = vmatpush1.msra.mxu0 0.0
        %1076 = vmatprep.subr.mxu0 0.0
        %1077 = vmatpush1.msra.mxu0 0.0
        %1078 = vmatprep.subr.mxu0 0.0
        %1079 = vmatpush1.msra.mxu0 0.0
        %1080 = vmatprep.subr.mxu0 0.0
        %1081 = vmatpush1.msra.mxu0 0.0
        %1082 = vmatprep.subr.mxu0 0.0
        %1083 = vmatpush1.msra.mxu0 0.0
        %1084 = vmatprep.subr.mxu0 0.0
        %1085 = vmatpush1.msra.mxu0 0.0
        %1086 = vmatprep.subr.mxu0 0.0
        %1087 = vmatpush1.msra.mxu0 0.0
        %1088 = vmatprep.subr.mxu0 0.0
        %1089 = vmatpush1.msra.mxu0 0.0
        %1090 = vmatprep.mubr.f32.mxu0 0.0
        %1091 = vmatmul.mubr.f32.gmra.mrb[0].mxu0 %v906
        %v1092 = vpop.f32.mrb[0].mxu0
        %v1093 = vadd.f32 0.0, %v1092
        %v1094 = vpop.f32.mrb[0].mxu0
        %1095 = vdwg.mxu0
        %v1096 = vadd.f32 %v903, %v1022
        %v1097 = vxor.u32 %v1096, 2147483648
        %v1098 = vmul.f32 %v1097, 1.442695
        %v1099 = vpow.pop %v1098
        %v1100 = vadd.f32 %v1099, 1.0
        %v1101 = vrcp.pop %v1100
        %v1102 = vmul.f32 1.0, %v1101
        %v1103 = vadd.f32 %v904, %v1024
        %v1104 = vxor.u32 %v1103, 2147483648
        %v1105 = vmul.f32 %v1104, 1.442695
        %v1106 = vpow.pop %v1105
        %v1107 = vadd.f32 %v1106, 1.0
        %v1108 = vrcp.pop %v1107
        %v1109 = vmul.f32 1.0, %v1108
        %v1110 = vld [vmem:[%s308] sm:$0x1]
        %v1112 = vlaneseq
        %v1113 = vshrl.u32 %v1112, 7
        %v1114 = vsub.s32 0, %v1113
        %v1115 = vrot.slane %v1110, %v1114
        %v1117 = vadd.f32 %v1093, %v1115
        %v1118 = vmul.f32 %v1102, %v1117
        %v1119 = vadd.f32 %v905, %v1118
        %v1120 = vtanh.pop %v1119
        %v1121 = vsub.f32 1.0, %v1109
        %v1122 = vmul.f32 %v1121, %v1120
        %v1123 = vmul.f32 %v1109, %v906
        %v1124 = vadd.f32 %v1122, %v1123
        %1125 = vst [vmem:[#allocation3] sm:$0xff] %v1124
        %s1126 = scalar_lea.vmem %s347, %s897 [#allocation11]
        %1127 = vst [vmem:[%s1126] sm:$0xff] %v1124
        %s1128 = smul.u32 %s25, 3
        %s1129 = sadd.s32 %s1128, 2
        %s1130 = smul.u32 %s1129, 8
        %s1131 = sshra.s32 %s1130, 3
        %s1132 = sand.u32 %s1130, 7
        %s1133 = smul.u32 %s1131, 3
        %s1134 = smul.addr %s1133, 8
        %s1135 = scalar_lea.vmem [#allocation2], %s1134
        %v1136 = vld [vmem:[%s1135] sm:$0xff]
        %v1137 = vld [vmem:[%s1135 + $0x8] sm:$0xff]
        %v1138 = vld [vmem:[%s1135 + $0x10] sm:$0xff]
        %v1139 = vld [vmem:[#allocation3] sm:$0xff]
        %v1140 = vld [vmem:[%s300] sm:$0xff]
        %v1141 = vld [vmem:[%s300 + $0x8] sm:$0xff]
        %v1142 = vld [vmem:[%s300 + $0x10] sm:$0xff]
        %v1143 = vld [vmem:[%s300 + $0x18] sm:$0xff]
        %v1144 = vld [vmem:[%s300 + $0x20] sm:$0xff]
        %v1145 = vld [vmem:[%s300 + $0x28] sm:$0xff]
        %v1146 = vld [vmem:[%s300 + $0x30] sm:$0xff]
        %v1147 = vld [vmem:[%s300 + $0x38] sm:$0xff]
        %v1148 = vld [vmem:[%s300 + $0x40] sm:$0xff]
        %v1149 = vld [vmem:[%s300 + $0x48] sm:$0xff]
        %v1150 = vld [vmem:[%s300 + $0x50] sm:$0xff]
        %v1151 = vld [vmem:[%s300 + $0x58] sm:$0xff]
        %v1152 = vld [vmem:[%s300 + $0x60] sm:$0xff]
        %v1153 = vld [vmem:[%s300 + $0x68] sm:$0xff]
        %v1154 = vld [vmem:[%s300 + $0x70] sm:$0xff]
        %v1155 = vld [vmem:[%s300 + $0x78] sm:$0xff]
        %v1156 = vld [vmem:[%s300 + $0x80] sm:$0xff]
        %v1157 = vld [vmem:[%s300 + $0x88] sm:$0xff]
        %v1158 = vld [vmem:[%s300 + $0x90] sm:$0xff]
        %v1159 = vld [vmem:[%s300 + $0x98] sm:$0xff]
        %v1160 = vld [vmem:[%s300 + $0xa0] sm:$0xff]
        %v1161 = vld [vmem:[%s300 + $0xa8] sm:$0xff]
        %v1162 = vld [vmem:[%s300 + $0xb0] sm:$0xff]
        %v1163 = vld [vmem:[%s300 + $0xb8] sm:$0xff]
        %v1164 = vld [vmem:[%s300 + $0xc0] sm:$0xff]
        %v1165 = vld [vmem:[%s300 + $0xc8] sm:$0xff]
        %v1166 = vld [vmem:[%s300 + $0xd0] sm:$0xff]
        %v1167 = vld [vmem:[%s300 + $0xd8] sm:$0xff]
        %v1168 = vld [vmem:[%s300 + $0xe0] sm:$0xff]
        %v1169 = vld [vmem:[%s300 + $0xe8] sm:$0xff]
        %v1170 = vld [vmem:[%s300 + $0xf0] sm:$0xff]
        %v1171 = vld [vmem:[%s300 + $0xf8] sm:$0xff]
        %v1172 = vld [vmem:[%s300 + $0x100] sm:$0xff]
        %v1173 = vld [vmem:[%s300 + $0x108] sm:$0xff]
        %v1174 = vld [vmem:[%s300 + $0x110] sm:$0xff]
        %v1175 = vld [vmem:[%s300 + $0x118] sm:$0xff]
        %v1176 = vld [vmem:[%s300 + $0x120] sm:$0xff]
        %v1177 = vld [vmem:[%s300 + $0x128] sm:$0xff]
        %v1178 = vld [vmem:[%s300 + $0x130] sm:$0xff]
        %v1179 = vld [vmem:[%s300 + $0x138] sm:$0xff]
        %v1180 = vld [vmem:[%s300 + $0x140] sm:$0xff]
        %v1181 = vld [vmem:[%s300 + $0x148] sm:$0xff]
        %v1182 = vld [vmem:[%s300 + $0x150] sm:$0xff]
        %v1183 = vld [vmem:[%s300 + $0x158] sm:$0xff]
        %v1184 = vld [vmem:[%s300 + $0x160] sm:$0xff]
        %v1185 = vld [vmem:[%s300 + $0x168] sm:$0xff]
        %v1186 = vld [vmem:[%s300 + $0x170] sm:$0xff]
        %v1187 = vld [vmem:[%s300 + $0x178] sm:$0xff]
        %1188 = vmatprep.subr.mxu0 %v1141
        %1189 = vmatpush1.msra.mxu0 %v1140
        %1190 = vmatprep.subr.mxu0 %v1144
        %1191 = vmatpush1.msra.mxu0 %v1143
        %1192 = vmatprep.subr.mxu0 %v1147
        %1193 = vmatpush1.msra.mxu0 %v1146
        %1194 = vmatprep.subr.mxu0 %v1150
        %1195 = vmatpush1.msra.mxu0 %v1149
        %1196 = vmatprep.subr.mxu0 %v1153
        %1197 = vmatpush1.msra.mxu0 %v1152
        %1198 = vmatprep.subr.mxu0 %v1156
        %1199 = vmatpush1.msra.mxu0 %v1155
        %1200 = vmatprep.subr.mxu0 %v1159
        %1201 = vmatpush1.msra.mxu0 %v1158
        %1202 = vmatprep.subr.mxu0 %v1162
        %1203 = vmatpush1.msra.mxu0 %v1161
        %1204 = vmatprep.subr.mxu0 %v1165
        %1205 = vmatpush1.msra.mxu0 %v1164
        %1206 = vmatprep.subr.mxu0 %v1168
        %1207 = vmatpush1.msra.mxu0 %v1167
        %1208 = vmatprep.subr.mxu0 %v1171
        %1209 = vmatpush1.msra.mxu0 %v1170
        %1210 = vmatprep.subr.mxu0 %v1174
        %1211 = vmatpush1.msra.mxu0 %v1173
        %1212 = vmatprep.subr.mxu0 %v1177
        %1213 = vmatpush1.msra.mxu0 %v1176
        %1214 = vmatprep.subr.mxu0 %v1180
        %1215 = vmatpush1.msra.mxu0 %v1179
        %1216 = vmatprep.subr.mxu0 %v1183
        %1217 = vmatpush1.msra.mxu0 %v1182
        %1218 = vmatprep.subr.mxu0 %v1186
        %1219 = vmatpush1.msra.mxu0 %v1185
        %1220 = vmatprep.subr.mxu0 0.0
        %1221 = vmatpush1.msra.mxu0 0.0
        %1222 = vmatprep.subr.mxu0 0.0
        %1223 = vmatpush1.msra.mxu0 0.0
        %1224 = vmatprep.subr.mxu0 0.0
        %1225 = vmatpush1.msra.mxu0 0.0
        %1226 = vmatprep.subr.mxu0 0.0
        %1227 = vmatpush1.msra.mxu0 0.0
        %1228 = vmatprep.subr.mxu0 0.0
        %1229 = vmatpush1.msra.mxu0 0.0
        %1230 = vmatprep.subr.mxu0 0.0
        %1231 = vmatpush1.msra.mxu0 0.0
        %1232 = vmatprep.subr.mxu0 0.0
        %1233 = vmatpush1.msra.mxu0 0.0
        %1234 = vmatprep.subr.mxu0 0.0
        %1235 = vmatpush1.msra.mxu0 0.0
        %1236 = vmatprep.subr.mxu0 0.0
        %1237 = vmatpush1.msra.mxu0 0.0
        %1238 = vmatprep.subr.mxu0 0.0
        %1239 = vmatpush1.msra.mxu0 0.0
        %1240 = vmatprep.subr.mxu0 0.0
        %1241 = vmatpush1.msra.mxu0 0.0
        %1242 = vmatprep.subr.mxu0 0.0
        %1243 = vmatpush1.msra.mxu0 0.0
        %1244 = vmatprep.subr.mxu0 0.0
        %1245 = vmatpush1.msra.mxu0 0.0
        %1246 = vmatprep.subr.mxu0 0.0
        %1247 = vmatpush1.msra.mxu0 0.0
        %1248 = vmatprep.subr.mxu0 0.0
        %1249 = vmatpush1.msra.mxu0 0.0
        %1250 = vmatprep.subr.mxu0 0.0
        %1251 = vmatpush1.msra.mxu0 0.0
        %1252 = vmatprep.mubr.f32.mxu0 0.0
        %1253 = vmatmul.mubr.f32.gmra.mrb[0].mxu0 %v1139
        %v1254 = vpop.f32.mrb[0].mxu0
        %v1255 = vadd.f32 0.0, %v1254
        %v1256 = vpop.f32.mrb[0].mxu0
        %v1257 = vadd.f32 0.0, %v1256
        %1258 = vdwg.mxu0
        %1259 = vmatprep.subr.mxu0 0.0
        %1260 = vmatpush1.msra.mxu0 %v1142
        %1261 = vmatprep.subr.mxu0 0.0
        %1262 = vmatpush1.msra.mxu0 %v1145
        %1263 = vmatprep.subr.mxu0 0.0
        %1264 = vmatpush1.msra.mxu0 %v1148
        %1265 = vmatprep.subr.mxu0 0.0
        %1266 = vmatpush1.msra.mxu0 %v1151
        %1267 = vmatprep.subr.mxu0 0.0
        %1268 = vmatpush1.msra.mxu0 %v1154
        %1269 = vmatprep.subr.mxu0 0.0
        %1270 = vmatpush1.msra.mxu0 %v1157
        %1271 = vmatprep.subr.mxu0 0.0
        %1272 = vmatpush1.msra.mxu0 %v1160
        %1273 = vmatprep.subr.mxu0 0.0
        %1274 = vmatpush1.msra.mxu0 %v1163
        %1275 = vmatprep.subr.mxu0 0.0
        %1276 = vmatpush1.msra.mxu0 %v1166
        %1277 = vmatprep.subr.mxu0 0.0
        %1278 = vmatpush1.msra.mxu0 %v1169
        %1279 = vmatprep.subr.mxu0 0.0
        %1280 = vmatpush1.msra.mxu0 %v1172
        %1281 = vmatprep.subr.mxu0 0.0
        %1282 = vmatpush1.msra.mxu0 %v1175
        %1283 = vmatprep.subr.mxu0 0.0
        %1284 = vmatpush1.msra.mxu0 %v1178
        %1285 = vmatprep.subr.mxu0 0.0
        %1286 = vmatpush1.msra.mxu0 %v1181
        %1287 = vmatprep.subr.mxu0 0.0
        %1288 = vmatpush1.msra.mxu0 %v1184
        %1289 = vmatprep.subr.mxu0 0.0
        %1290 = vmatpush1.msra.mxu0 %v1187
        %1291 = vmatprep.subr.mxu0 0.0
        %1292 = vmatpush1.msra.mxu0 0.0
        %1293 = vmatprep.subr.mxu0 0.0
        %1294 = vmatpush1.msra.mxu0 0.0
        %1295 = vmatprep.subr.mxu0 0.0
        %1296 = vmatpush1.msra.mxu0 0.0
        %1297 = vmatprep.subr.mxu0 0.0
        %1298 = vmatpush1.msra.mxu0 0.0
        %1299 = vmatprep.subr.mxu0 0.0
        %1300 = vmatpush1.msra.mxu0 0.0
        %1301 = vmatprep.subr.mxu0 0.0
        %1302 = vmatpush1.msra.mxu0 0.0
        %1303 = vmatprep.subr.mxu0 0.0
        %1304 = vmatpush1.msra.mxu0 0.0
        %1305 = vmatprep.subr.mxu0 0.0
        %1306 = vmatpush1.msra.mxu0 0.0
        %1307 = vmatprep.subr.mxu0 0.0
        %1308 = vmatpush1.msra.mxu0 0.0
        %1309 = vmatprep.subr.mxu0 0.0
        %1310 = vmatpush1.msra.mxu0 0.0
        %1311 = vmatprep.subr.mxu0 0.0
        %1312 = vmatpush1.msra.mxu0 0.0
        %1313 = vmatprep.subr.mxu0 0.0
        %1314 = vmatpush1.msra.mxu0 0.0
        %1315 = vmatprep.subr.mxu0 0.0
        %1316 = vmatpush1.msra.mxu0 0.0
        %1317 = vmatprep.subr.mxu0 0.0
        %1318 = vmatpush1.msra.mxu0 0.0
        %1319 = vmatprep.subr.mxu0 0.0
        %1320 = vmatpush1.msra.mxu0 0.0
        %1321 = vmatprep.subr.mxu0 0.0
        %1322 = vmatpush1.msra.mxu0 0.0
        %1323 = vmatprep.mubr.f32.mxu0 0.0
        %1324 = vmatmul.mubr.f32.gmra.mrb[0].mxu0 %v1139
        %v1325 = vpop.f32.mrb[0].mxu0
        %v1326 = vadd.f32 0.0, %v1325
        %v1327 = vpop.f32.mrb[0].mxu0
        %1328 = vdwg.mxu0
        %v1329 = vadd.f32 %v1136, %v1255
        %v1330 = vxor.u32 %v1329, 2147483648
        %v1331 = vmul.f32 %v1330, 1.442695
        %v1332 = vpow.pop %v1331
        %v1333 = vadd.f32 %v1332, 1.0
        %v1334 = vrcp.pop %v1333
        %v1335 = vmul.f32 1.0, %v1334
        %v1336 = vadd.f32 %v1137, %v1257
        %v1337 = vxor.u32 %v1336, 2147483648
        %v1338 = vmul.f32 %v1337, 1.442695
        %v1339 = vpow.pop %v1338
        %v1340 = vadd.f32 %v1339, 1.0
        %v1341 = vrcp.pop %v1340
        %v1342 = vmul.f32 1.0, %v1341
        %v1343 = vld [vmem:[%s308] sm:$0x1]
        %v1345 = vlaneseq
        %v1346 = vshrl.u32 %v1345, 7
        %v1347 = vsub.s32 0, %v1346
        %v1348 = vrot.slane %v1343, %v1347
        %v1350 = vadd.f32 %v1326, %v1348
        %v1351 = vmul.f32 %v1335, %v1350
        %v1352 = vadd.f32 %v1138, %v1351
        %v1353 = vtanh.pop %v1352
        %v1354 = vsub.f32 1.0, %v1342
        %v1355 = vmul.f32 %v1354, %v1353
        %v1356 = vmul.f32 %v1342, %v1139
        %v1357 = vadd.f32 %v1355, %v1356
        %1358 = vst [vmem:[#allocation3] sm:$0xff] %v1357
        %s1359 = scalar_lea.vmem %s347, %s1130 [#allocation11]
        %1360 = vst [vmem:[%s1359] sm:$0xff] %v1357
        %s1361 = sadd.s32 %s25, 3
        %s1362 = smul.u32 %s1361, 8
        %s1363 = sshra.s32 %s1362, 3
        %s1364 = sand.u32 %s1362, 7
        %s1365 = smul.u32 %s1363, 3
        %s1366 = smul.addr %s1365, 8
        %s1367 = scalar_lea.vmem [#allocation2], %s1366
        %v1368 = vld [vmem:[%s1367] sm:$0xff]
        %v1369 = vld [vmem:[%s1367 + $0x8] sm:$0xff]
        %v1370 = vld [vmem:[%s1367 + $0x10] sm:$0xff]
        %v1371 = vld [vmem:[#allocation3] sm:$0xff]
        %v1372 = vld [vmem:[%s300] sm:$0xff]
        %v1373 = vld [vmem:[%s300 + $0x8] sm:$0xff]
        %v1374 = vld [vmem:[%s300 + $0x10] sm:$0xff]
        %v1375 = vld [vmem:[%s300 + $0x18] sm:$0xff]
        %v1376 = vld [vmem:[%s300 + $0x20] sm:$0xff]
        %v1377 = vld [vmem:[%s300 + $0x28] sm:$0xff]
        %v1378 = vld [vmem:[%s300 + $0x30] sm:$0xff]
        %v1379 = vld [vmem:[%s300 + $0x38] sm:$0xff]
        %v1380 = vld [vmem:[%s300 + $0x40] sm:$0xff]
        %v1381 = vld [vmem:[%s300 + $0x48] sm:$0xff]
        %v1382 = vld [vmem:[%s300 + $0x50] sm:$0xff]
        %v1383 = vld [vmem:[%s300 + $0x58] sm:$0xff]
        %v1384 = vld [vmem:[%s300 + $0x60] sm:$0xff]
        %v1385 = vld [vmem:[%s300 + $0x68] sm:$0xff]
        %v1386 = vld [vmem:[%s300 + $0x70] sm:$0xff]
        %v1387 = vld [vmem:[%s300 + $0x78] sm:$0xff]
        %v1388 = vld [vmem:[%s300 + $0x80] sm:$0xff]
        %v1389 = vld [vmem:[%s300 + $0x88] sm:$0xff]
        %v1390 = vld [vmem:[%s300 + $0x90] sm:$0xff]
        %v1391 = vld [vmem:[%s300 + $0x98] sm:$0xff]
        %v1392 = vld [vmem:[%s300 + $0xa0] sm:$0xff]
        %v1393 = vld [vmem:[%s300 + $0xa8] sm:$0xff]
        %v1394 = vld [vmem:[%s300 + $0xb0] sm:$0xff]
        %v1395 = vld [vmem:[%s300 + $0xb8] sm:$0xff]
        %v1396 = vld [vmem:[%s300 + $0xc0] sm:$0xff]
        %v1397 = vld [vmem:[%s300 + $0xc8] sm:$0xff]
        %v1398 = vld [vmem:[%s300 + $0xd0] sm:$0xff]
        %v1399 = vld [vmem:[%s300 + $0xd8] sm:$0xff]
        %v1400 = vld [vmem:[%s300 + $0xe0] sm:$0xff]
        %v1401 = vld [vmem:[%s300 + $0xe8] sm:$0xff]
        %v1402 = vld [vmem:[%s300 + $0xf0] sm:$0xff]
        %v1403 = vld [vmem:[%s300 + $0xf8] sm:$0xff]
        %v1404 = vld [vmem:[%s300 + $0x100] sm:$0xff]
        %v1405 = vld [vmem:[%s300 + $0x108] sm:$0xff]
        %v1406 = vld [vmem:[%s300 + $0x110] sm:$0xff]
        %v1407 = vld [vmem:[%s300 + $0x118] sm:$0xff]
        %v1408 = vld [vmem:[%s300 + $0x120] sm:$0xff]
        %v1409 = vld [vmem:[%s300 + $0x128] sm:$0xff]
        %v1410 = vld [vmem:[%s300 + $0x130] sm:$0xff]
        %v1411 = vld [vmem:[%s300 + $0x138] sm:$0xff]
        %v1412 = vld [vmem:[%s300 + $0x140] sm:$0xff]
        %v1413 = vld [vmem:[%s300 + $0x148] sm:$0xff]
        %v1414 = vld [vmem:[%s300 + $0x150] sm:$0xff]
        %v1415 = vld [vmem:[%s300 + $0x158] sm:$0xff]
        %v1416 = vld [vmem:[%s300 + $0x160] sm:$0xff]
        %v1417 = vld [vmem:[%s300 + $0x168] sm:$0xff]
        %v1418 = vld [vmem:[%s300 + $0x170] sm:$0xff]
        %v1419 = vld [vmem:[%s300 + $0x178] sm:$0xff]
        %1420 = vmatprep.subr.mxu0 %v1373
        %1421 = vmatpush1.msra.mxu0 %v1372
        %1422 = vmatprep.subr.mxu0 %v1376
        %1423 = vmatpush1.msra.mxu0 %v1375
        %1424 = vmatprep.subr.mxu0 %v1379
        %1425 = vmatpush1.msra.mxu0 %v1378
        %1426 = vmatprep.subr.mxu0 %v1382
        %1427 = vmatpush1.msra.mxu0 %v1381
        %1428 = vmatprep.subr.mxu0 %v1385
        %1429 = vmatpush1.msra.mxu0 %v1384
        %1430 = vmatprep.subr.mxu0 %v1388
        %1431 = vmatpush1.msra.mxu0 %v1387
        %1432 = vmatprep.subr.mxu0 %v1391
        %1433 = vmatpush1.msra.mxu0 %v1390
        %1434 = vmatprep.subr.mxu0 %v1394
        %1435 = vmatpush1.msra.mxu0 %v1393
        %1436 = vmatprep.subr.mxu0 %v1397
        %1437 = vmatpush1.msra.mxu0 %v1396
        %1438 = vmatprep.subr.mxu0 %v1400
        %1439 = vmatpush1.msra.mxu0 %v1399
        %1440 = vmatprep.subr.mxu0 %v1403
        %1441 = vmatpush1.msra.mxu0 %v1402
        %1442 = vmatprep.subr.mxu0 %v1406
        %1443 = vmatpush1.msra.mxu0 %v1405
        %1444 = vmatprep.subr.mxu0 %v1409
        %1445 = vmatpush1.msra.mxu0 %v1408
        %1446 = vmatprep.subr.mxu0 %v1412
        %1447 = vmatpush1.msra.mxu0 %v1411
        %1448 = vmatprep.subr.mxu0 %v1415
        %1449 = vmatpush1.msra.mxu0 %v1414
        %1450 = vmatprep.subr.mxu0 %v1418
        %1451 = vmatpush1.msra.mxu0 %v1417
        %1452 = vmatprep.subr.mxu0 0.0
        %1453 = vmatpush1.msra.mxu0 0.0
        %1454 = vmatprep.subr.mxu0 0.0
        %1455 = vmatpush1.msra.mxu0 0.0
        %1456 = vmatprep.subr.mxu0 0.0
        %1457 = vmatpush1.msra.mxu0 0.0
        %1458 = vmatprep.subr.mxu0 0.0
        %1459 = vmatpush1.msra.mxu0 0.0
        %1460 = vmatprep.subr.mxu0 0.0
        %1461 = vmatpush1.msra.mxu0 0.0
        %1462 = vmatprep.subr.mxu0 0.0
        %1463 = vmatpush1.msra.mxu0 0.0
        %1464 = vmatprep.subr.mxu0 0.0
        %1465 = vmatpush1.msra.mxu0 0.0
        %1466 = vmatprep.subr.mxu0 0.0
        %1467 = vmatpush1.msra.mxu0 0.0
        %1468 = vmatprep.subr.mxu0 0.0
        %1469 = vmatpush1.msra.mxu0 0.0
        %1470 = vmatprep.subr.mxu0 0.0
        %1471 = vmatpush1.msra.mxu0 0.0
        %1472 = vmatprep.subr.mxu0 0.0
        %1473 = vmatpush1.msra.mxu0 0.0
        %1474 = vmatprep.subr.mxu0 0.0
        %1475 = vmatpush1.msra.mxu0 0.0
        %1476 = vmatprep.subr.mxu0 0.0
        %1477 = vmatpush1.msra.mxu0 0.0
        %1478 = vmatprep.subr.mxu0 0.0
        %1479 = vmatpush1.msra.mxu0 0.0
        %1480 = vmatprep.subr.mxu0 0.0
        %1481 = vmatpush1.msra.mxu0 0.0
        %1482 = vmatprep.subr.mxu0 0.0
        %1483 = vmatpush1.msra.mxu0 0.0
        %1484 = vmatprep.mubr.f32.mxu0 0.0
        %1485 = vmatmul.mubr.f32.gmra.mrb[0].mxu0 %v1371
        %v1486 = vpop.f32.mrb[0].mxu0
        %v1487 = vadd.f32 0.0, %v1486
        %v1488 = vpop.f32.mrb[0].mxu0
        %v1489 = vadd.f32 0.0, %v1488
        %1490 = vdwg.mxu0
        %1491 = vmatprep.subr.mxu0 0.0
        %1492 = vmatpush1.msra.mxu0 %v1374
        %1493 = vmatprep.subr.mxu0 0.0
        %1494 = vmatpush1.msra.mxu0 %v1377
        %1495 = vmatprep.subr.mxu0 0.0
        %1496 = vmatpush1.msra.mxu0 %v1380
        %1497 = vmatprep.subr.mxu0 0.0
        %1498 = vmatpush1.msra.mxu0 %v1383
        %1499 = vmatprep.subr.mxu0 0.0
        %1500 = vmatpush1.msra.mxu0 %v1386
        %1501 = vmatprep.subr.mxu0 0.0
        %1502 = vmatpush1.msra.mxu0 %v1389
        %1503 = vmatprep.subr.mxu0 0.0
        %1504 = vmatpush1.msra.mxu0 %v1392
        %1505 = vmatprep.subr.mxu0 0.0
        %1506 = vmatpush1.msra.mxu0 %v1395
        %1507 = vmatprep.subr.mxu0 0.0
        %1508 = vmatpush1.msra.mxu0 %v1398
        %1509 = vmatprep.subr.mxu0 0.0
        %1510 = vmatpush1.msra.mxu0 %v1401
        %1511 = vmatprep.subr.mxu0 0.0
        %1512 = vmatpush1.msra.mxu0 %v1404
        %1513 = vmatprep.subr.mxu0 0.0
        %1514 = vmatpush1.msra.mxu0 %v1407
        %1515 = vmatprep.subr.mxu0 0.0
        %1516 = vmatpush1.msra.mxu0 %v1410
        %1517 = vmatprep.subr.mxu0 0.0
        %1518 = vmatpush1.msra.mxu0 %v1413
        %1519 = vmatprep.subr.mxu0 0.0
        %1520 = vmatpush1.msra.mxu0 %v1416
        %1521 = vmatprep.subr.mxu0 0.0
        %1522 = vmatpush1.msra.mxu0 %v1419
        %1523 = vmatprep.subr.mxu0 0.0
        %1524 = vmatpush1.msra.mxu0 0.0
        %1525 = vmatprep.subr.mxu0 0.0
        %1526 = vmatpush1.msra.mxu0 0.0
        %1527 = vmatprep.subr.mxu0 0.0
        %1528 = vmatpush1.msra.mxu0 0.0
        %1529 = vmatprep.subr.mxu0 0.0
        %1530 = vmatpush1.msra.mxu0 0.0
        %1531 = vmatprep.subr.mxu0 0.0
        %1532 = vmatpush1.msra.mxu0 0.0
        %1533 = vmatprep.subr.mxu0 0.0
        %1534 = vmatpush1.msra.mxu0 0.0
        %1535 = vmatprep.subr.mxu0 0.0
        %1536 = vmatpush1.msra.mxu0 0.0
        %1537 = vmatprep.subr.mxu0 0.0
        %1538 = vmatpush1.msra.mxu0 0.0
        %1539 = vmatprep.subr.mxu0 0.0
        %1540 = vmatpush1.msra.mxu0 0.0
        %1541 = vmatprep.subr.mxu0 0.0
        %1542 = vmatpush1.msra.mxu0 0.0
        %1543 = vmatprep.subr.mxu0 0.0
        %1544 = vmatpush1.msra.mxu0 0.0
        %1545 = vmatprep.subr.mxu0 0.0
        %1546 = vmatpush1.msra.mxu0 0.0
        %1547 = vmatprep.subr.mxu0 0.0
        %1548 = vmatpush1.msra.mxu0 0.0
        %1549 = vmatprep.subr.mxu0 0.0
        %1550 = vmatpush1.msra.mxu0 0.0
        %1551 = vmatprep.subr.mxu0 0.0
        %1552 = vmatpush1.msra.mxu0 0.0
        %1553 = vmatprep.subr.mxu0 0.0
        %1554 = vmatpush1.msra.mxu0 0.0
        %1555 = vmatprep.mubr.f32.mxu0 0.0
        %1556 = vmatmul.mubr.f32.gmra.mrb[0].mxu0 %v1371
        %v1557 = vpop.f32.mrb[0].mxu0
        %v1558 = vadd.f32 0.0, %v1557
        %v1559 = vpop.f32.mrb[0].mxu0
        %1560 = vdwg.mxu0
        %v1561 = vadd.f32 %v1368, %v1487
        %v1562 = vxor.u32 %v1561, 2147483648
        %v1563 = vmul.f32 %v1562, 1.442695
        %v1564 = vpow.pop %v1563
        %v1565 = vadd.f32 %v1564, 1.0
        %v1566 = vrcp.pop %v1565
        %v1567 = vmul.f32 1.0, %v1566
        %v1568 = vadd.f32 %v1369, %v1489
        %v1569 = vxor.u32 %v1568, 2147483648
        %v1570 = vmul.f32 %v1569, 1.442695
        %v1571 = vpow.pop %v1570
        %v1572 = vadd.f32 %v1571, 1.0
        %v1573 = vrcp.pop %v1572
        %v1574 = vmul.f32 1.0, %v1573
        %v1575 = vld [vmem:[%s308] sm:$0x1]
        %v1577 = vlaneseq
        %v1578 = vshrl.u32 %v1577, 7
        %v1579 = vsub.s32 0, %v1578
        %v1580 = vrot.slane %v1575, %v1579
        %v1582 = vadd.f32 %v1558, %v1580
        %v1583 = vmul.f32 %v1567, %v1582
        %v1584 = vadd.f32 %v1370, %v1583
        %v1585 = vtanh.pop %v1584
        %v1586 = vsub.f32 1.0, %v1574
        %v1587 = vmul.f32 %v1586, %v1585
        %v1588 = vmul.f32 %v1574, %v1371
        %v1589 = vadd.f32 %v1587, %v1588
        %1590 = vst [vmem:[#allocation3] sm:$0xff] %v1589
        %s1591 = scalar_lea.vmem %s347, %s1362 [#allocation11]
        %1592 = vst [vmem:[%s1591] sm:$0xff] %v1589
        %s1593 = ssub.s32 4, %s25
        %s1594 = smul.u32 %s1593, 8
        %s1595 = sshra.s32 %s1594, 3
        %s1596 = sand.u32 %s1594, 7
        %s1597 = smul.u32 %s1595, 3
        %s1598 = smul.addr %s1597, 8
        %s1599 = scalar_lea.vmem [#allocation2], %s1598
        %v1600 = vld [vmem:[%s1599] sm:$0xff]
        %v1601 = vld [vmem:[%s1599 + $0x8] sm:$0xff]
        %v1602 = vld [vmem:[%s1599 + $0x10] sm:$0xff]
        %v1603 = vld [vmem:[#allocation3] sm:$0xff]
        %v1604 = vld [vmem:[%s300] sm:$0xff]
        %v1605 = vld [vmem:[%s300 + $0x8] sm:$0xff]
        %v1606 = vld [vmem:[%s300 + $0x10] sm:$0xff]
        %v1607 = vld [vmem:[%s300 + $0x18] sm:$0xff]
        %v1608 = vld [vmem:[%s300 + $0x20] sm:$0xff]
        %v1609 = vld [vmem:[%s300 + $0x28] sm:$0xff]
        %v1610 = vld [vmem:[%s300 + $0x30] sm:$0xff]
        %v1611 = vld [vmem:[%s300 + $0x38] sm:$0xff]
        %v1612 = vld [vmem:[%s300 + $0x40] sm:$0xff]
        %v1613 = vld [vmem:[%s300 + $0x48] sm:$0xff]
        %v1614 = vld [vmem:[%s300 + $0x50] sm:$0xff]
        %v1615 = vld [vmem:[%s300 + $0x58] sm:$0xff]
        %v1616 = vld [vmem:[%s300 + $0x60] sm:$0xff]
        %v1617 = vld [vmem:[%s300 + $0x68] sm:$0xff]
        %v1618 = vld [vmem:[%s300 + $0x70] sm:$0xff]
        %v1619 = vld [vmem:[%s300 + $0x78] sm:$0xff]
        %v1620 = vld [vmem:[%s300 + $0x80] sm:$0xff]
        %v1621 = vld [vmem:[%s300 + $0x88] sm:$0xff]
        %v1622 = vld [vmem:[%s300 + $0x90] sm:$0xff]
        %v1623 = vld [vmem:[%s300 + $0x98] sm:$0xff]
        %v1624 = vld [vmem:[%s300 + $0xa0] sm:$0xff]
        %v1625 = vld [vmem:[%s300 + $0xa8] sm:$0xff]
        %v1626 = vld [vmem:[%s300 + $0xb0] sm:$0xff]
        %v1627 = vld [vmem:[%s300 + $0xb8] sm:$0xff]
        %v1628 = vld [vmem:[%s300 + $0xc0] sm:$0xff]
        %v1629 = vld [vmem:[%s300 + $0xc8] sm:$0xff]
        %v1630 = vld [vmem:[%s300 + $0xd0] sm:$0xff]
        %v1631 = vld [vmem:[%s300 + $0xd8] sm:$0xff]
        %v1632 = vld [vmem:[%s300 + $0xe0] sm:$0xff]
        %v1633 = vld [vmem:[%s300 + $0xe8] sm:$0xff]
        %v1634 = vld [vmem:[%s300 + $0xf0] sm:$0xff]
        %v1635 = vld [vmem:[%s300 + $0xf8] sm:$0xff]
        %v1636 = vld [vmem:[%s300 + $0x100] sm:$0xff]
        %v1637 = vld [vmem:[%s300 + $0x108] sm:$0xff]
        %v1638 = vld [vmem:[%s300 + $0x110] sm:$0xff]
        %v1639 = vld [vmem:[%s300 + $0x118] sm:$0xff]
        %v1640 = vld [vmem:[%s300 + $0x120] sm:$0xff]
        %v1641 = vld [vmem:[%s300 + $0x128] sm:$0xff]
        %v1642 = vld [vmem:[%s300 + $0x130] sm:$0xff]
        %v1643 = vld [vmem:[%s300 + $0x138] sm:$0xff]
        %v1644 = vld [vmem:[%s300 + $0x140] sm:$0xff]
        %v1645 = vld [vmem:[%s300 + $0x148] sm:$0xff]
        %v1646 = vld [vmem:[%s300 + $0x150] sm:$0xff]
        %v1647 = vld [vmem:[%s300 + $0x158] sm:$0xff]
        %v1648 = vld [vmem:[%s300 + $0x160] sm:$0xff]
        %v1649 = vld [vmem:[%s300 + $0x168] sm:$0xff]
        %v1650 = vld [vmem:[%s300 + $0x170] sm:$0xff]
        %v1651 = vld [vmem:[%s300 + $0x178] sm:$0xff]
        %1652 = vmatprep.subr.mxu0 %v1605
        %1653 = vmatpush1.msra.mxu0 %v1604
        %1654 = vmatprep.subr.mxu0 %v1608
        %1655 = vmatpush1.msra.mxu0 %v1607
        %1656 = vmatprep.subr.mxu0 %v1611
        %1657 = vmatpush1.msra.mxu0 %v1610
        %1658 = vmatprep.subr.mxu0 %v1614
        %1659 = vmatpush1.msra.mxu0 %v1613
        %1660 = vmatprep.subr.mxu0 %v1617
        %1661 = vmatpush1.msra.mxu0 %v1616
        %1662 = vmatprep.subr.mxu0 %v1620
        %1663 = vmatpush1.msra.mxu0 %v1619
        %1664 = vmatprep.subr.mxu0 %v1623
        %1665 = vmatpush1.msra.mxu0 %v1622
        %1666 = vmatprep.subr.mxu0 %v1626
        %1667 = vmatpush1.msra.mxu0 %v1625
        %1668 = vmatprep.subr.mxu0 %v1629
        %1669 = vmatpush1.msra.mxu0 %v1628
        %1670 = vmatprep.subr.mxu0 %v1632
        %1671 = vmatpush1.msra.mxu0 %v1631
        %1672 = vmatprep.subr.mxu0 %v1635
        %1673 = vmatpush1.msra.mxu0 %v1634
        %1674 = vmatprep.subr.mxu0 %v1638
        %1675 = vmatpush1.msra.mxu0 %v1637
        %1676 = vmatprep.subr.mxu0 %v1641
        %1677 = vmatpush1.msra.mxu0 %v1640
        %1678 = vmatprep.subr.mxu0 %v1644
        %1679 = vmatpush1.msra.mxu0 %v1643
        %1680 = vmatprep.subr.mxu0 %v1647
        %1681 = vmatpush1.msra.mxu0 %v1646
        %1682 = vmatprep.subr.mxu0 %v1650
        %1683 = vmatpush1.msra.mxu0 %v1649
        %1684 = vmatprep.subr.mxu0 0.0
        %1685 = vmatpush1.msra.mxu0 0.0
        %1686 = vmatprep.subr.mxu0 0.0
        %1687 = vmatpush1.msra.mxu0 0.0
        %1688 = vmatprep.subr.mxu0 0.0
        %1689 = vmatpush1.msra.mxu0 0.0
        %1690 = vmatprep.subr.mxu0 0.0
        %1691 = vmatpush1.msra.mxu0 0.0
        %1692 = vmatprep.subr.mxu0 0.0
        %1693 = vmatpush1.msra.mxu0 0.0
        %1694 = vmatprep.subr.mxu0 0.0
        %1695 = vmatpush1.msra.mxu0 0.0
        %1696 = vmatprep.subr.mxu0 0.0
        %1697 = vmatpush1.msra.mxu0 0.0
        %1698 = vmatprep.subr.mxu0 0.0
        %1699 = vmatpush1.msra.mxu0 0.0
        %1700 = vmatprep.subr.mxu0 0.0
        %1701 = vmatpush1.msra.mxu0 0.0
        %1702 = vmatprep.subr.mxu0 0.0
        %1703 = vmatpush1.msra.mxu0 0.0
        %1704 = vmatprep.subr.mxu0 0.0
        %1705 = vmatpush1.msra.mxu0 0.0
        %1706 = vmatprep.subr.mxu0 0.0
        %1707 = vmatpush1.msra.mxu0 0.0
        %1708 = vmatprep.subr.mxu0 0.0
        %1709 = vmatpush1.msra.mxu0 0.0
        %1710 = vmatprep.subr.mxu0 0.0
        %1711 = vmatpush1.msra.mxu0 0.0
        %1712 = vmatprep.subr.mxu0 0.0
        %1713 = vmatpush1.msra.mxu0 0.0
        %1714 = vmatprep.subr.mxu0 0.0
        %1715 = vmatpush1.msra.mxu0 0.0
        %1716 = vmatprep.mubr.f32.mxu0 0.0
        %1717 = vmatmul.mubr.f32.gmra.mrb[0].mxu0 %v1603
        %v1718 = vpop.f32.mrb[0].mxu0
        %v1719 = vadd.f32 0.0, %v1718
        %v1720 = vpop.f32.mrb[0].mxu0
        %v1721 = vadd.f32 0.0, %v1720
        %1722 = vdwg.mxu0
        %1723 = vmatprep.subr.mxu0 0.0
        %1724 = vmatpush1.msra.mxu0 %v1606
        %1725 = vmatprep.subr.mxu0 0.0
        %1726 = vmatpush1.msra.mxu0 %v1609
        %1727 = vmatprep.subr.mxu0 0.0
        %1728 = vmatpush1.msra.mxu0 %v1612
        %1729 = vmatprep.subr.mxu0 0.0
        %1730 = vmatpush1.msra.mxu0 %v1615
        %1731 = vmatprep.subr.mxu0 0.0
        %1732 = vmatpush1.msra.mxu0 %v1618
        %1733 = vmatprep.subr.mxu0 0.0
        %1734 = vmatpush1.msra.mxu0 %v1621
        %1735 = vmatprep.subr.mxu0 0.0
        %1736 = vmatpush1.msra.mxu0 %v1624
        %1737 = vmatprep.subr.mxu0 0.0
        %1738 = vmatpush1.msra.mxu0 %v1627
        %1739 = vmatprep.subr.mxu0 0.0
        %1740 = vmatpush1.msra.mxu0 %v1630
        %1741 = vmatprep.subr.mxu0 0.0
        %1742 = vmatpush1.msra.mxu0 %v1633
        %1743 = vmatprep.subr.mxu0 0.0
        %1744 = vmatpush1.msra.mxu0 %v1636
        %1745 = vmatprep.subr.mxu0 0.0
        %1746 = vmatpush1.msra.mxu0 %v1639
        %1747 = vmatprep.subr.mxu0 0.0
        %1748 = vmatpush1.msra.mxu0 %v1642
        %1749 = vmatprep.subr.mxu0 0.0
        %1750 = vmatpush1.msra.mxu0 %v1645
        %1751 = vmatprep.subr.mxu0 0.0
        %1752 = vmatpush1.msra.mxu0 %v1648
        %1753 = vmatprep.subr.mxu0 0.0
        %1754 = vmatpush1.msra.mxu0 %v1651
        %1755 = vmatprep.subr.mxu0 0.0
        %1756 = vmatpush1.msra.mxu0 0.0
        %1757 = vmatprep.subr.mxu0 0.0
        %1758 = vmatpush1.msra.mxu0 0.0
        %1759 = vmatprep.subr.mxu0 0.0
        %1760 = vmatpush1.msra.mxu0 0.0
        %1761 = vmatprep.subr.mxu0 0.0
        %1762 = vmatpush1.msra.mxu0 0.0
        %1763 = vmatprep.subr.mxu0 0.0
        %1764 = vmatpush1.msra.mxu0 0.0
        %1765 = vmatprep.subr.mxu0 0.0
        %1766 = vmatpush1.msra.mxu0 0.0
        %1767 = vmatprep.subr.mxu0 0.0
        %1768 = vmatpush1.msra.mxu0 0.0
        %1769 = vmatprep.subr.mxu0 0.0
        %1770 = vmatpush1.msra.mxu0 0.0
        %1771 = vmatprep.subr.mxu0 0.0
        %1772 = vmatpush1.msra.mxu0 0.0
        %1773 = vmatprep.subr.mxu0 0.0
        %1774 = vmatpush1.msra.mxu0 0.0
        %1775 = vmatprep.subr.mxu0 0.0
        %1776 = vmatpush1.msra.mxu0 0.0
        %1777 = vmatprep.subr.mxu0 0.0
        %1778 = vmatpush1.msra.mxu0 0.0
        %1779 = vmatprep.subr.mxu0 0.0
        %1780 = vmatpush1.msra.mxu0 0.0
        %1781 = vmatprep.subr.mxu0 0.0
        %1782 = vmatpush1.msra.mxu0 0.0
        %1783 = vmatprep.subr.mxu0 0.0
        %1784 = vmatpush1.msra.mxu0 0.0
        %1785 = vmatprep.subr.mxu0 0.0
        %1786 = vmatpush1.msra.mxu0 0.0
        %1787 = vmatprep.mubr.f32.mxu0 0.0
        %1788 = vmatmul.mubr.f32.gmra.mrb[0].mxu0 %v1603
        %v1789 = vpop.f32.mrb[0].mxu0
        %v1790 = vadd.f32 0.0, %v1789
        %v1791 = vpop.f32.mrb[0].mxu0
        %1792 = vdwg.mxu0
        %v1793 = vadd.f32 %v1600, %v1719
        %v1794 = vxor.u32 %v1793, 2147483648
        %v1795 = vmul.f32 %v1794, 1.442695
        %v1796 = vpow.pop %v1795
        %v1797 = vadd.f32 %v1796, 1.0
        %v1798 = vrcp.pop %v1797
        %v1799 = vmul.f32 1.0, %v1798
        %v1800 = vadd.f32 %v1601, %v1721
        %v1801 = vxor.u32 %v1800, 2147483648
        %v1802 = vmul.f32 %v1801, 1.442695
        %v1803 = vpow.pop %v1802
        %v1804 = vadd.f32 %v1803, 1.0
        %v1805 = vrcp.pop %v1804
        %v1806 = vmul.f32 1.0, %v1805
        %v1807 = vld [vmem:[%s308] sm:$0x1]
        %v1809 = vlaneseq
        %v1810 = vshrl.u32 %v1809, 7
        %v1811 = vsub.s32 0, %v1810
        %v1812 = vrot.slane %v1807, %v1811
        %v1814 = vadd.f32 %v1790, %v1812
        %v1815 = vmul.f32 %v1799, %v1814
        %v1816 = vadd.f32 %v1602, %v1815
        %v1817 = vtanh.pop %v1816
        %v1818 = vsub.f32 1.0, %v1806
        %v1819 = vmul.f32 %v1818, %v1817
        %v1820 = vmul.f32 %v1806, %v1603
        %v1821 = vadd.f32 %v1819, %v1820
        %1822 = vst [vmem:[#allocation3] sm:$0xff] %v1821
        %s1823 = scalar_lea.vmem %s347, %s1594 [#allocation11]
        %1824 = vst [vmem:[%s1823] sm:$0xff] %v1821
        %s1825 = smul.u32 %s25, 4294967293
        %s1826 = sadd.s32 %s1825, 5
        %s1827 = smul.u32 %s1826, 8
        %s1828 = sshra.s32 %s1827, 3
        %s1829 = sand.u32 %s1827, 7
        %s1830 = smul.u32 %s1828, 3
        %s1831 = smul.addr %s1830, 8
        %s1832 = scalar_lea.vmem [#allocation2], %s1831
        %v1833 = vld [vmem:[%s1832] sm:$0xff]
        %v1834 = vld [vmem:[%s1832 + $0x8] sm:$0xff]
        %v1835 = vld [vmem:[%s1832 + $0x10] sm:$0xff]
        %v1836 = vld [vmem:[#allocation3] sm:$0xff]
        %v1837 = vld [vmem:[%s300] sm:$0xff]
        %v1838 = vld [vmem:[%s300 + $0x8] sm:$0xff]
        %v1839 = vld [vmem:[%s300 + $0x10] sm:$0xff]
        %v1840 = vld [vmem:[%s300 + $0x18] sm:$0xff]
        %v1841 = vld [vmem:[%s300 + $0x20] sm:$0xff]
        %v1842 = vld [vmem:[%s300 + $0x28] sm:$0xff]
        %v1843 = vld [vmem:[%s300 + $0x30] sm:$0xff]
        %v1844 = vld [vmem:[%s300 + $0x38] sm:$0xff]
        %v1845 = vld [vmem:[%s300 + $0x40] sm:$0xff]
        %v1846 = vld [vmem:[%s300 + $0x48] sm:$0xff]
        %v1847 = vld [vmem:[%s300 + $0x50] sm:$0xff]
        %v1848 = vld [vmem:[%s300 + $0x58] sm:$0xff]
        %v1849 = vld [vmem:[%s300 + $0x60] sm:$0xff]
        %v1850 = vld [vmem:[%s300 + $0x68] sm:$0xff]
        %v1851 = vld [vmem:[%s300 + $0x70] sm:$0xff]
        %v1852 = vld [vmem:[%s300 + $0x78] sm:$0xff]
        %v1853 = vld [vmem:[%s300 + $0x80] sm:$0xff]
        %v1854 = vld [vmem:[%s300 + $0x88] sm:$0xff]
        %v1855 = vld [vmem:[%s300 + $0x90] sm:$0xff]
        %v1856 = vld [vmem:[%s300 + $0x98] sm:$0xff]
        %v1857 = vld [vmem:[%s300 + $0xa0] sm:$0xff]
        %v1858 = vld [vmem:[%s300 + $0xa8] sm:$0xff]
        %v1859 = vld [vmem:[%s300 + $0xb0] sm:$0xff]
        %v1860 = vld [vmem:[%s300 + $0xb8] sm:$0xff]
        %v1861 = vld [vmem:[%s300 + $0xc0] sm:$0xff]
        %v1862 = vld [vmem:[%s300 + $0xc8] sm:$0xff]
        %v1863 = vld [vmem:[%s300 + $0xd0] sm:$0xff]
        %v1864 = vld [vmem:[%s300 + $0xd8] sm:$0xff]
        %v1865 = vld [vmem:[%s300 + $0xe0] sm:$0xff]
        %v1866 = vld [vmem:[%s300 + $0xe8] sm:$0xff]
        %v1867 = vld [vmem:[%s300 + $0xf0] sm:$0xff]
        %v1868 = vld [vmem:[%s300 + $0xf8] sm:$0xff]
        %v1869 = vld [vmem:[%s300 + $0x100] sm:$0xff]
        %v1870 = vld [vmem:[%s300 + $0x108] sm:$0xff]
        %v1871 = vld [vmem:[%s300 + $0x110] sm:$0xff]
        %v1872 = vld [vmem:[%s300 + $0x118] sm:$0xff]
        %v1873 = vld [vmem:[%s300 + $0x120] sm:$0xff]
        %v1874 = vld [vmem:[%s300 + $0x128] sm:$0xff]
        %v1875 = vld [vmem:[%s300 + $0x130] sm:$0xff]
        %v1876 = vld [vmem:[%s300 + $0x138] sm:$0xff]
        %v1877 = vld [vmem:[%s300 + $0x140] sm:$0xff]
        %v1878 = vld [vmem:[%s300 + $0x148] sm:$0xff]
        %v1879 = vld [vmem:[%s300 + $0x150] sm:$0xff]
        %v1880 = vld [vmem:[%s300 + $0x158] sm:$0xff]
        %v1881 = vld [vmem:[%s300 + $0x160] sm:$0xff]
        %v1882 = vld [vmem:[%s300 + $0x168] sm:$0xff]
        %v1883 = vld [vmem:[%s300 + $0x170] sm:$0xff]
        %v1884 = vld [vmem:[%s300 + $0x178] sm:$0xff]
        %1885 = vmatprep.subr.mxu0 %v1838
        %1886 = vmatpush1.msra.mxu0 %v1837
        %1887 = vmatprep.subr.mxu0 %v1841
        %1888 = vmatpush1.msra.mxu0 %v1840
        %1889 = vmatprep.subr.mxu0 %v1844
        %1890 = vmatpush1.msra.mxu0 %v1843
        %1891 = vmatprep.subr.mxu0 %v1847
        %1892 = vmatpush1.msra.mxu0 %v1846
        %1893 = vmatprep.subr.mxu0 %v1850
        %1894 = vmatpush1.msra.mxu0 %v1849
        %1895 = vmatprep.subr.mxu0 %v1853
        %1896 = vmatpush1.msra.mxu0 %v1852
        %1897 = vmatprep.subr.mxu0 %v1856
        %1898 = vmatpush1.msra.mxu0 %v1855
        %1899 = vmatprep.subr.mxu0 %v1859
        %1900 = vmatpush1.msra.mxu0 %v1858
        %1901 = vmatprep.subr.mxu0 %v1862
        %1902 = vmatpush1.msra.mxu0 %v1861
        %1903 = vmatprep.subr.mxu0 %v1865
        %1904 = vmatpush1.msra.mxu0 %v1864
        %1905 = vmatprep.subr.mxu0 %v1868
        %1906 = vmatpush1.msra.mxu0 %v1867
        %1907 = vmatprep.subr.mxu0 %v1871
        %1908 = vmatpush1.msra.mxu0 %v1870
        %1909 = vmatprep.subr.mxu0 %v1874
        %1910 = vmatpush1.msra.mxu0 %v1873
        %1911 = vmatprep.subr.mxu0 %v1877
        %1912 = vmatpush1.msra.mxu0 %v1876
        %1913 = vmatprep.subr.mxu0 %v1880
        %1914 = vmatpush1.msra.mxu0 %v1879
        %1915 = vmatprep.subr.mxu0 %v1883
        %1916 = vmatpush1.msra.mxu0 %v1882
        %1917 = vmatprep.subr.mxu0 0.0
        %1918 = vmatpush1.msra.mxu0 0.0
        %1919 = vmatprep.subr.mxu0 0.0
        %1920 = vmatpush1.msra.mxu0 0.0
        %1921 = vmatprep.subr.mxu0 0.0
        %1922 = vmatpush1.msra.mxu0 0.0
        %1923 = vmatprep.subr.mxu0 0.0
        %1924 = vmatpush1.msra.mxu0 0.0
        %1925 = vmatprep.subr.mxu0 0.0
        %1926 = vmatpush1.msra.mxu0 0.0
        %1927 = vmatprep.subr.mxu0 0.0
        %1928 = vmatpush1.msra.mxu0 0.0
        %1929 = vmatprep.subr.mxu0 0.0
        %1930 = vmatpush1.msra.mxu0 0.0
        %1931 = vmatprep.subr.mxu0 0.0
        %1932 = vmatpush1.msra.mxu0 0.0
        %1933 = vmatprep.subr.mxu0 0.0
        %1934 = vmatpush1.msra.mxu0 0.0
        %1935 = vmatprep.subr.mxu0 0.0
        %1936 = vmatpush1.msra.mxu0 0.0
        %1937 = vmatprep.subr.mxu0 0.0
        %1938 = vmatpush1.msra.mxu0 0.0
        %1939 = vmatprep.subr.mxu0 0.0
        %1940 = vmatpush1.msra.mxu0 0.0
        %1941 = vmatprep.subr.mxu0 0.0
        %1942 = vmatpush1.msra.mxu0 0.0
        %1943 = vmatprep.subr.mxu0 0.0
        %1944 = vmatpush1.msra.mxu0 0.0
        %1945 = vmatprep.subr.mxu0 0.0
        %1946 = vmatpush1.msra.mxu0 0.0
        %1947 = vmatprep.subr.mxu0 0.0
        %1948 = vmatpush1.msra.mxu0 0.0
        %1949 = vmatprep.mubr.f32.mxu0 0.0
        %1950 = vmatmul.mubr.f32.gmra.mrb[0].mxu0 %v1836
        %v1951 = vpop.f32.mrb[0].mxu0
        %v1952 = vadd.f32 0.0, %v1951
        %v1953 = vpop.f32.mrb[0].mxu0
        %v1954 = vadd.f32 0.0, %v1953
        %1955 = vdwg.mxu0
        %1956 = vmatprep.subr.mxu0 0.0
        %1957 = vmatpush1.msra.mxu0 %v1839
        %1958 = vmatprep.subr.mxu0 0.0
        %1959 = vmatpush1.msra.mxu0 %v1842
        %1960 = vmatprep.subr.mxu0 0.0
        %1961 = vmatpush1.msra.mxu0 %v1845
        %1962 = vmatprep.subr.mxu0 0.0
        %1963 = vmatpush1.msra.mxu0 %v1848
        %1964 = vmatprep.subr.mxu0 0.0
        %1965 = vmatpush1.msra.mxu0 %v1851
        %1966 = vmatprep.subr.mxu0 0.0
        %1967 = vmatpush1.msra.mxu0 %v1854
        %1968 = vmatprep.subr.mxu0 0.0
        %1969 = vmatpush1.msra.mxu0 %v1857
        %1970 = vmatprep.subr.mxu0 0.0
        %1971 = vmatpush1.msra.mxu0 %v1860
        %1972 = vmatprep.subr.mxu0 0.0
        %1973 = vmatpush1.msra.mxu0 %v1863
        %1974 = vmatprep.subr.mxu0 0.0
        %1975 = vmatpush1.msra.mxu0 %v1866
        %1976 = vmatprep.subr.mxu0 0.0
        %1977 = vmatpush1.msra.mxu0 %v1869
        %1978 = vmatprep.subr.mxu0 0.0
        %1979 = vmatpush1.msra.mxu0 %v1872
        %1980 = vmatprep.subr.mxu0 0.0
        %1981 = vmatpush1.msra.mxu0 %v1875
        %1982 = vmatprep.subr.mxu0 0.0
        %1983 = vmatpush1.msra.mxu0 %v1878
        %1984 = vmatprep.subr.mxu0 0.0
        %1985 = vmatpush1.msra.mxu0 %v1881
        %1986 = vmatprep.subr.mxu0 0.0
        %1987 = vmatpush1.msra.mxu0 %v1884
        %1988 = vmatprep.subr.mxu0 0.0
        %1989 = vmatpush1.msra.mxu0 0.0
        %1990 = vmatprep.subr.mxu0 0.0
        %1991 = vmatpush1.msra.mxu0 0.0
        %1992 = vmatprep.subr.mxu0 0.0
        %1993 = vmatpush1.msra.mxu0 0.0
        %1994 = vmatprep.subr.mxu0 0.0
        %1995 = vmatpush1.msra.mxu0 0.0
        %1996 = vmatprep.subr.mxu0 0.0
        %1997 = vmatpush1.msra.mxu0 0.0
        %1998 = vmatprep.subr.mxu0 0.0
        %1999 = vmatpush1.msra.mxu0 0.0
        %2000 = vmatprep.subr.mxu0 0.0
        %2001 = vmatpush1.msra.mxu0 0.0
        %2002 = vmatprep.subr.mxu0 0.0
        %2003 = vmatpush1.msra.mxu0 0.0
        %2004 = vmatprep.subr.mxu0 0.0
        %2005 = vmatpush1.msra.mxu0 0.0
        %2006 = vmatprep.subr.mxu0 0.0
        %2007 = vmatpush1.msra.mxu0 0.0
        %2008 = vmatprep.subr.mxu0 0.0
        %2009 = vmatpush1.msra.mxu0 0.0
        %2010 = vmatprep.subr.mxu0 0.0
        %2011 = vmatpush1.msra.mxu0 0.0
        %2012 = vmatprep.subr.mxu0 0.0
        %2013 = vmatpush1.msra.mxu0 0.0
        %2014 = vmatprep.subr.mxu0 0.0
        %2015 = vmatpush1.msra.mxu0 0.0
        %2016 = vmatprep.subr.mxu0 0.0
        %2017 = vmatpush1.msra.mxu0 0.0
        %2018 = vmatprep.subr.mxu0 0.0
        %2019 = vmatpush1.msra.mxu0 0.0
        %2020 = vmatprep.mubr.f32.mxu0 0.0
        %2021 = vmatmul.mubr.f32.gmra.mrb[0].mxu0 %v1836
        %v2022 = vpop.f32.mrb[0].mxu0
        %v2023 = vadd.f32 0.0, %v2022
        %v2024 = vpop.f32.mrb[0].mxu0
        %2025 = vdwg.mxu0
        %v2026 = vadd.f32 %v1833, %v1952
        %v2027 = vxor.u32 %v2026, 2147483648
        %v2028 = vmul.f32 %v2027, 1.442695
        %v2029 = vpow.pop %v2028
        %v2030 = vadd.f32 %v2029, 1.0
        %v2031 = vrcp.pop %v2030
        %v2032 = vmul.f32 1.0, %v2031
        %v2033 = vadd.f32 %v1834, %v1954
        %v2034 = vxor.u32 %v2033, 2147483648
        %v2035 = vmul.f32 %v2034, 1.442695
        %v2036 = vpow.pop %v2035
        %v2037 = vadd.f32 %v2036, 1.0
        %v2038 = vrcp.pop %v2037
        %v2039 = vmul.f32 1.0, %v2038
        %v2040 = vld [vmem:[%s308] sm:$0x1]
        %v2042 = vlaneseq
        %v2043 = vshrl.u32 %v2042, 7
        %v2044 = vsub.s32 0, %v2043
        %v2045 = vrot.slane %v2040, %v2044
        %v2047 = vadd.f32 %v2023, %v2045
        %v2048 = vmul.f32 %v2032, %v2047
        %v2049 = vadd.f32 %v1835, %v2048
        %v2050 = vtanh.pop %v2049
        %v2051 = vsub.f32 1.0, %v2039
        %v2052 = vmul.f32 %v2051, %v2050
        %v2053 = vmul.f32 %v2039, %v1836
        %v2054 = vadd.f32 %v2052, %v2053
        %2055 = vst [vmem:[#allocation3] sm:$0xff] %v2054
        %s2056 = scalar_lea.vmem %s347, %s1827 [#allocation11]
        %2057 = vst [vmem:[%s2056] sm:$0xff] %v2054
        %s2058 = smul.u32 %s25, 4294967291
        %s2059 = sadd.s32 %s2058, 6
        %s2060 = smul.u32 %s2059, 8
        %s2061 = sshra.s32 %s2060, 3
        %s2062 = sand.u32 %s2060, 7
        %s2063 = smul.u32 %s2061, 3
        %s2064 = smul.addr %s2063, 8
        %s2065 = scalar_lea.vmem [#allocation2], %s2064
        %v2066 = vld [vmem:[%s2065] sm:$0xff]
        %v2067 = vld [vmem:[%s2065 + $0x8] sm:$0xff]
        %v2068 = vld [vmem:[%s2065 + $0x10] sm:$0xff]
        %v2069 = vld [vmem:[#allocation3] sm:$0xff]
        %v2070 = vld [vmem:[%s300] sm:$0xff]
        %v2071 = vld [vmem:[%s300 + $0x8] sm:$0xff]
        %v2072 = vld [vmem:[%s300 + $0x10] sm:$0xff]
        %v2073 = vld [vmem:[%s300 + $0x18] sm:$0xff]
        %v2074 = vld [vmem:[%s300 + $0x20] sm:$0xff]
        %v2075 = vld [vmem:[%s300 + $0x28] sm:$0xff]
        %v2076 = vld [vmem:[%s300 + $0x30] sm:$0xff]
        %v2077 = vld [vmem:[%s300 + $0x38] sm:$0xff]
        %v2078 = vld [vmem:[%s300 + $0x40] sm:$0xff]
        %v2079 = vld [vmem:[%s300 + $0x48] sm:$0xff]
        %v2080 = vld [vmem:[%s300 + $0x50] sm:$0xff]
        %v2081 = vld [vmem:[%s300 + $0x58] sm:$0xff]
        %v2082 = vld [vmem:[%s300 + $0x60] sm:$0xff]
        %v2083 = vld [vmem:[%s300 + $0x68] sm:$0xff]
        %v2084 = vld [vmem:[%s300 + $0x70] sm:$0xff]
        %v2085 = vld [vmem:[%s300 + $0x78] sm:$0xff]
        %v2086 = vld [vmem:[%s300 + $0x80] sm:$0xff]
        %v2087 = vld [vmem:[%s300 + $0x88] sm:$0xff]
        %v2088 = vld [vmem:[%s300 + $0x90] sm:$0xff]
        %v2089 = vld [vmem:[%s300 + $0x98] sm:$0xff]
        %v2090 = vld [vmem:[%s300 + $0xa0] sm:$0xff]
        %v2091 = vld [vmem:[%s300 + $0xa8] sm:$0xff]
        %v2092 = vld [vmem:[%s300 + $0xb0] sm:$0xff]
        %v2093 = vld [vmem:[%s300 + $0xb8] sm:$0xff]
        %v2094 = vld [vmem:[%s300 + $0xc0] sm:$0xff]
        %v2095 = vld [vmem:[%s300 + $0xc8] sm:$0xff]
        %v2096 = vld [vmem:[%s300 + $0xd0] sm:$0xff]
        %v2097 = vld [vmem:[%s300 + $0xd8] sm:$0xff]
        %v2098 = vld [vmem:[%s300 + $0xe0] sm:$0xff]
        %v2099 = vld [vmem:[%s300 + $0xe8] sm:$0xff]
        %v2100 = vld [vmem:[%s300 + $0xf0] sm:$0xff]
        %v2101 = vld [vmem:[%s300 + $0xf8] sm:$0xff]
        %v2102 = vld [vmem:[%s300 + $0x100] sm:$0xff]
        %v2103 = vld [vmem:[%s300 + $0x108] sm:$0xff]
        %v2104 = vld [vmem:[%s300 + $0x110] sm:$0xff]
        %v2105 = vld [vmem:[%s300 + $0x118] sm:$0xff]
        %v2106 = vld [vmem:[%s300 + $0x120] sm:$0xff]
        %v2107 = vld [vmem:[%s300 + $0x128] sm:$0xff]
        %v2108 = vld [vmem:[%s300 + $0x130] sm:$0xff]
        %v2109 = vld [vmem:[%s300 + $0x138] sm:$0xff]
        %v2110 = vld [vmem:[%s300 + $0x140] sm:$0xff]
        %v2111 = vld [vmem:[%s300 + $0x148] sm:$0xff]
        %v2112 = vld [vmem:[%s300 + $0x150] sm:$0xff]
        %v2113 = vld [vmem:[%s300 + $0x158] sm:$0xff]
        %v2114 = vld [vmem:[%s300 + $0x160] sm:$0xff]
        %v2115 = vld [vmem:[%s300 + $0x168] sm:$0xff]
        %v2116 = vld [vmem:[%s300 + $0x170] sm:$0xff]
        %v2117 = vld [vmem:[%s300 + $0x178] sm:$0xff]
        %2118 = vmatprep.subr.mxu0 %v2071
        %2119 = vmatpush1.msra.mxu0 %v2070
        %2120 = vmatprep.subr.mxu0 %v2074
        %2121 = vmatpush1.msra.mxu0 %v2073
        %2122 = vmatprep.subr.mxu0 %v2077
        %2123 = vmatpush1.msra.mxu0 %v2076
        %2124 = vmatprep.subr.mxu0 %v2080
        %2125 = vmatpush1.msra.mxu0 %v2079
        %2126 = vmatprep.subr.mxu0 %v2083
        %2127 = vmatpush1.msra.mxu0 %v2082
        %2128 = vmatprep.subr.mxu0 %v2086
        %2129 = vmatpush1.msra.mxu0 %v2085
        %2130 = vmatprep.subr.mxu0 %v2089
        %2131 = vmatpush1.msra.mxu0 %v2088
        %2132 = vmatprep.subr.mxu0 %v2092
        %2133 = vmatpush1.msra.mxu0 %v2091
        %2134 = vmatprep.subr.mxu0 %v2095
        %2135 = vmatpush1.msra.mxu0 %v2094
        %2136 = vmatprep.subr.mxu0 %v2098
        %2137 = vmatpush1.msra.mxu0 %v2097
        %2138 = vmatprep.subr.mxu0 %v2101
        %2139 = vmatpush1.msra.mxu0 %v2100
        %2140 = vmatprep.subr.mxu0 %v2104
        %2141 = vmatpush1.msra.mxu0 %v2103
        %2142 = vmatprep.subr.mxu0 %v2107
        %2143 = vmatpush1.msra.mxu0 %v2106
        %2144 = vmatprep.subr.mxu0 %v2110
        %2145 = vmatpush1.msra.mxu0 %v2109
        %2146 = vmatprep.subr.mxu0 %v2113
        %2147 = vmatpush1.msra.mxu0 %v2112
        %2148 = vmatprep.subr.mxu0 %v2116
        %2149 = vmatpush1.msra.mxu0 %v2115
        %2150 = vmatprep.subr.mxu0 0.0
        %2151 = vmatpush1.msra.mxu0 0.0
        %2152 = vmatprep.subr.mxu0 0.0
        %2153 = vmatpush1.msra.mxu0 0.0
        %2154 = vmatprep.subr.mxu0 0.0
        %2155 = vmatpush1.msra.mxu0 0.0
        %2156 = vmatprep.subr.mxu0 0.0
        %2157 = vmatpush1.msra.mxu0 0.0
        %2158 = vmatprep.subr.mxu0 0.0
        %2159 = vmatpush1.msra.mxu0 0.0
        %2160 = vmatprep.subr.mxu0 0.0
        %2161 = vmatpush1.msra.mxu0 0.0
        %2162 = vmatprep.subr.mxu0 0.0
        %2163 = vmatpush1.msra.mxu0 0.0
        %2164 = vmatprep.subr.mxu0 0.0
        %2165 = vmatpush1.msra.mxu0 0.0
        %2166 = vmatprep.subr.mxu0 0.0
        %2167 = vmatpush1.msra.mxu0 0.0
        %2168 = vmatprep.subr.mxu0 0.0
        %2169 = vmatpush1.msra.mxu0 0.0
        %2170 = vmatprep.subr.mxu0 0.0
        %2171 = vmatpush1.msra.mxu0 0.0
        %2172 = vmatprep.subr.mxu0 0.0
        %2173 = vmatpush1.msra.mxu0 0.0
        %2174 = vmatprep.subr.mxu0 0.0
        %2175 = vmatpush1.msra.mxu0 0.0
        %2176 = vmatprep.subr.mxu0 0.0
        %2177 = vmatpush1.msra.mxu0 0.0
        %2178 = vmatprep.subr.mxu0 0.0
        %2179 = vmatpush1.msra.mxu0 0.0
        %2180 = vmatprep.subr.mxu0 0.0
        %2181 = vmatpush1.msra.mxu0 0.0
        %2182 = vmatprep.mubr.f32.mxu0 0.0
        %2183 = vmatmul.mubr.f32.gmra.mrb[0].mxu0 %v2069
        %v2184 = vpop.f32.mrb[0].mxu0
        %v2185 = vadd.f32 0.0, %v2184
        %v2186 = vpop.f32.mrb[0].mxu0
        %v2187 = vadd.f32 0.0, %v2186
        %2188 = vdwg.mxu0
        %2189 = vmatprep.subr.mxu0 0.0
        %2190 = vmatpush1.msra.mxu0 %v2072
        %2191 = vmatprep.subr.mxu0 0.0
        %2192 = vmatpush1.msra.mxu0 %v2075
        %2193 = vmatprep.subr.mxu0 0.0
        %2194 = vmatpush1.msra.mxu0 %v2078
        %2195 = vmatprep.subr.mxu0 0.0
        %2196 = vmatpush1.msra.mxu0 %v2081
        %2197 = vmatprep.subr.mxu0 0.0
        %2198 = vmatpush1.msra.mxu0 %v2084
        %2199 = vmatprep.subr.mxu0 0.0
        %2200 = vmatpush1.msra.mxu0 %v2087
        %2201 = vmatprep.subr.mxu0 0.0
        %2202 = vmatpush1.msra.mxu0 %v2090
        %2203 = vmatprep.subr.mxu0 0.0
        %2204 = vmatpush1.msra.mxu0 %v2093
        %2205 = vmatprep.subr.mxu0 0.0
        %2206 = vmatpush1.msra.mxu0 %v2096
        %2207 = vmatprep.subr.mxu0 0.0
        %2208 = vmatpush1.msra.mxu0 %v2099
        %2209 = vmatprep.subr.mxu0 0.0
        %2210 = vmatpush1.msra.mxu0 %v2102
        %2211 = vmatprep.subr.mxu0 0.0
        %2212 = vmatpush1.msra.mxu0 %v2105
        %2213 = vmatprep.subr.mxu0 0.0
        %2214 = vmatpush1.msra.mxu0 %v2108
        %2215 = vmatprep.subr.mxu0 0.0
        %2216 = vmatpush1.msra.mxu0 %v2111
        %2217 = vmatprep.subr.mxu0 0.0
        %2218 = vmatpush1.msra.mxu0 %v2114
        %2219 = vmatprep.subr.mxu0 0.0
        %2220 = vmatpush1.msra.mxu0 %v2117
        %2221 = vmatprep.subr.mxu0 0.0
        %2222 = vmatpush1.msra.mxu0 0.0
        %2223 = vmatprep.subr.mxu0 0.0
        %2224 = vmatpush1.msra.mxu0 0.0
        %2225 = vmatprep.subr.mxu0 0.0
        %2226 = vmatpush1.msra.mxu0 0.0
        %2227 = vmatprep.subr.mxu0 0.0
        %2228 = vmatpush1.msra.mxu0 0.0
        %2229 = vmatprep.subr.mxu0 0.0
        %2230 = vmatpush1.msra.mxu0 0.0
        %2231 = vmatprep.subr.mxu0 0.0
        %2232 = vmatpush1.msra.mxu0 0.0
        %2233 = vmatprep.subr.mxu0 0.0
        %2234 = vmatpush1.msra.mxu0 0.0
        %2235 = vmatprep.subr.mxu0 0.0
        %2236 = vmatpush1.msra.mxu0 0.0
        %2237 = vmatprep.subr.mxu0 0.0
        %2238 = vmatpush1.msra.mxu0 0.0
        %2239 = vmatprep.subr.mxu0 0.0
        %2240 = vmatpush1.msra.mxu0 0.0
        %2241 = vmatprep.subr.mxu0 0.0
        %2242 = vmatpush1.msra.mxu0 0.0
        %2243 = vmatprep.subr.mxu0 0.0
        %2244 = vmatpush1.msra.mxu0 0.0
        %2245 = vmatprep.subr.mxu0 0.0
        %2246 = vmatpush1.msra.mxu0 0.0
        %2247 = vmatprep.subr.mxu0 0.0
        %2248 = vmatpush1.msra.mxu0 0.0
        %2249 = vmatprep.subr.mxu0 0.0
        %2250 = vmatpush1.msra.mxu0 0.0
        %2251 = vmatprep.subr.mxu0 0.0
        %2252 = vmatpush1.msra.mxu0 0.0
        %2253 = vmatprep.mubr.f32.mxu0 0.0
        %2254 = vmatmul.mubr.f32.gmra.mrb[0].mxu0 %v2069
        %v2255 = vpop.f32.mrb[0].mxu0
        %v2256 = vadd.f32 0.0, %v2255
        %v2257 = vpop.f32.mrb[0].mxu0
        %2258 = vdwg.mxu0
        %v2259 = vadd.f32 %v2066, %v2185
        %v2260 = vxor.u32 %v2259, 2147483648
        %v2261 = vmul.f32 %v2260, 1.442695
        %v2262 = vpow.pop %v2261
        %v2263 = vadd.f32 %v2262, 1.0
        %v2264 = vrcp.pop %v2263
        %v2265 = vmul.f32 1.0, %v2264
        %v2266 = vadd.f32 %v2067, %v2187
        %v2267 = vxor.u32 %v2266, 2147483648
        %v2268 = vmul.f32 %v2267, 1.442695
        %v2269 = vpow.pop %v2268
        %v2270 = vadd.f32 %v2269, 1.0
        %v2271 = vrcp.pop %v2270
        %v2272 = vmul.f32 1.0, %v2271
        %v2273 = vld [vmem:[%s308] sm:$0x1]
        %v2275 = vlaneseq
        %v2276 = vshrl.u32 %v2275, 7
        %v2277 = vsub.s32 0, %v2276
        %v2278 = vrot.slane %v2273, %v2277
        %v2280 = vadd.f32 %v2256, %v2278
        %v2281 = vmul.f32 %v2265, %v2280
        %v2282 = vadd.f32 %v2068, %v2281
        %v2283 = vtanh.pop %v2282
        %v2284 = vsub.f32 1.0, %v2272
        %v2285 = vmul.f32 %v2284, %v2283
        %v2286 = vmul.f32 %v2272, %v2069
        %v2287 = vadd.f32 %v2285, %v2286
        %2288 = vst [vmem:[#allocation3] sm:$0xff] %v2287
        %s2289 = scalar_lea.vmem %s347, %s2060 [#allocation11]
        %2290 = vst [vmem:[%s2289] sm:$0xff] %v2287
        %s2291 = smul.u32 %s25, 4294967289
        %s2292 = sadd.s32 %s2291, 7
        %s2293 = smul.u32 %s2292, 8
        %s2294 = sshra.s32 %s2293, 3
        %s2295 = sand.u32 %s2293, 7
        %s2296 = smul.u32 %s2294, 3
        %s2297 = smul.addr %s2296, 8
        %s2298 = scalar_lea.vmem [#allocation2], %s2297
        %v2299 = vld [vmem:[%s2298] sm:$0xff]
        %v2300 = vld [vmem:[%s2298 + $0x8] sm:$0xff]
        %v2301 = vld [vmem:[%s2298 + $0x10] sm:$0xff]
        %v2302 = vld [vmem:[#allocation3] sm:$0xff]
        %v2303 = vld [vmem:[%s300] sm:$0xff]
        %v2304 = vld [vmem:[%s300 + $0x8] sm:$0xff]
        %v2305 = vld [vmem:[%s300 + $0x10] sm:$0xff]
        %v2306 = vld [vmem:[%s300 + $0x18] sm:$0xff]
        %v2307 = vld [vmem:[%s300 + $0x20] sm:$0xff]
        %v2308 = vld [vmem:[%s300 + $0x28] sm:$0xff]
        %v2309 = vld [vmem:[%s300 + $0x30] sm:$0xff]
        %v2310 = vld [vmem:[%s300 + $0x38] sm:$0xff]
        %v2311 = vld [vmem:[%s300 + $0x40] sm:$0xff]
        %v2312 = vld [vmem:[%s300 + $0x48] sm:$0xff]
        %v2313 = vld [vmem:[%s300 + $0x50] sm:$0xff]
        %v2314 = vld [vmem:[%s300 + $0x58] sm:$0xff]
        %v2315 = vld [vmem:[%s300 + $0x60] sm:$0xff]
        %v2316 = vld [vmem:[%s300 + $0x68] sm:$0xff]
        %v2317 = vld [vmem:[%s300 + $0x70] sm:$0xff]
        %v2318 = vld [vmem:[%s300 + $0x78] sm:$0xff]
        %v2319 = vld [vmem:[%s300 + $0x80] sm:$0xff]
        %v2320 = vld [vmem:[%s300 + $0x88] sm:$0xff]
        %v2321 = vld [vmem:[%s300 + $0x90] sm:$0xff]
        %v2322 = vld [vmem:[%s300 + $0x98] sm:$0xff]
        %v2323 = vld [vmem:[%s300 + $0xa0] sm:$0xff]
        %v2324 = vld [vmem:[%s300 + $0xa8] sm:$0xff]
        %v2325 = vld [vmem:[%s300 + $0xb0] sm:$0xff]
        %v2326 = vld [vmem:[%s300 + $0xb8] sm:$0xff]
        %v2327 = vld [vmem:[%s300 + $0xc0] sm:$0xff]
        %v2328 = vld [vmem:[%s300 + $0xc8] sm:$0xff]
        %v2329 = vld [vmem:[%s300 + $0xd0] sm:$0xff]
        %v2330 = vld [vmem:[%s300 + $0xd8] sm:$0xff]
        %v2331 = vld [vmem:[%s300 + $0xe0] sm:$0xff]
        %v2332 = vld [vmem:[%s300 + $0xe8] sm:$0xff]
        %v2333 = vld [vmem:[%s300 + $0xf0] sm:$0xff]
        %v2334 = vld [vmem:[%s300 + $0xf8] sm:$0xff]
        %v2335 = vld [vmem:[%s300 + $0x100] sm:$0xff]
        %v2336 = vld [vmem:[%s300 + $0x108] sm:$0xff]
        %v2337 = vld [vmem:[%s300 + $0x110] sm:$0xff]
        %v2338 = vld [vmem:[%s300 + $0x118] sm:$0xff]
        %v2339 = vld [vmem:[%s300 + $0x120] sm:$0xff]
        %v2340 = vld [vmem:[%s300 + $0x128] sm:$0xff]
        %v2341 = vld [vmem:[%s300 + $0x130] sm:$0xff]
        %v2342 = vld [vmem:[%s300 + $0x138] sm:$0xff]
        %v2343 = vld [vmem:[%s300 + $0x140] sm:$0xff]
        %v2344 = vld [vmem:[%s300 + $0x148] sm:$0xff]
        %v2345 = vld [vmem:[%s300 + $0x150] sm:$0xff]
        %v2346 = vld [vmem:[%s300 + $0x158] sm:$0xff]
        %v2347 = vld [vmem:[%s300 + $0x160] sm:$0xff]
        %v2348 = vld [vmem:[%s300 + $0x168] sm:$0xff]
        %v2349 = vld [vmem:[%s300 + $0x170] sm:$0xff]
        %v2350 = vld [vmem:[%s300 + $0x178] sm:$0xff]
        %2351 = vmatprep.subr.mxu0 %v2304
        %2352 = vmatpush1.msra.mxu0 %v2303
        %2353 = vmatprep.subr.mxu0 %v2307
        %2354 = vmatpush1.msra.mxu0 %v2306
        %2355 = vmatprep.subr.mxu0 %v2310
        %2356 = vmatpush1.msra.mxu0 %v2309
        %2357 = vmatprep.subr.mxu0 %v2313
        %2358 = vmatpush1.msra.mxu0 %v2312
        %2359 = vmatprep.subr.mxu0 %v2316
        %2360 = vmatpush1.msra.mxu0 %v2315
        %2361 = vmatprep.subr.mxu0 %v2319
        %2362 = vmatpush1.msra.mxu0 %v2318
        %2363 = vmatprep.subr.mxu0 %v2322
        %2364 = vmatpush1.msra.mxu0 %v2321
        %2365 = vmatprep.subr.mxu0 %v2325
        %2366 = vmatpush1.msra.mxu0 %v2324
        %2367 = vmatprep.subr.mxu0 %v2328
        %2368 = vmatpush1.msra.mxu0 %v2327
        %2369 = vmatprep.subr.mxu0 %v2331
        %2370 = vmatpush1.msra.mxu0 %v2330
        %2371 = vmatprep.subr.mxu0 %v2334
        %2372 = vmatpush1.msra.mxu0 %v2333
        %2373 = vmatprep.subr.mxu0 %v2337
        %2374 = vmatpush1.msra.mxu0 %v2336
        %2375 = vmatprep.subr.mxu0 %v2340
        %2376 = vmatpush1.msra.mxu0 %v2339
        %2377 = vmatprep.subr.mxu0 %v2343
        %2378 = vmatpush1.msra.mxu0 %v2342
        %2379 = vmatprep.subr.mxu0 %v2346
        %2380 = vmatpush1.msra.mxu0 %v2345
        %2381 = vmatprep.subr.mxu0 %v2349
        %2382 = vmatpush1.msra.mxu0 %v2348
        %2383 = vmatprep.subr.mxu0 0.0
        %2384 = vmatpush1.msra.mxu0 0.0
        %2385 = vmatprep.subr.mxu0 0.0
        %2386 = vmatpush1.msra.mxu0 0.0
        %2387 = vmatprep.subr.mxu0 0.0
        %2388 = vmatpush1.msra.mxu0 0.0
        %2389 = vmatprep.subr.mxu0 0.0
        %2390 = vmatpush1.msra.mxu0 0.0
        %2391 = vmatprep.subr.mxu0 0.0
        %2392 = vmatpush1.msra.mxu0 0.0
        %2393 = vmatprep.subr.mxu0 0.0
        %2394 = vmatpush1.msra.mxu0 0.0
        %2395 = vmatprep.subr.mxu0 0.0
        %2396 = vmatpush1.msra.mxu0 0.0
        %2397 = vmatprep.subr.mxu0 0.0
        %2398 = vmatpush1.msra.mxu0 0.0
        %2399 = vmatprep.subr.mxu0 0.0
        %2400 = vmatpush1.msra.mxu0 0.0
        %2401 = vmatprep.subr.mxu0 0.0
        %2402 = vmatpush1.msra.mxu0 0.0
        %2403 = vmatprep.subr.mxu0 0.0
        %2404 = vmatpush1.msra.mxu0 0.0
        %2405 = vmatprep.subr.mxu0 0.0
        %2406 = vmatpush1.msra.mxu0 0.0
        %2407 = vmatprep.subr.mxu0 0.0
        %2408 = vmatpush1.msra.mxu0 0.0
        %2409 = vmatprep.subr.mxu0 0.0
        %2410 = vmatpush1.msra.mxu0 0.0
        %2411 = vmatprep.subr.mxu0 0.0
        %2412 = vmatpush1.msra.mxu0 0.0
        %2413 = vmatprep.subr.mxu0 0.0
        %2414 = vmatpush1.msra.mxu0 0.0
        %2415 = vmatprep.mubr.f32.mxu0 0.0
        %2416 = vmatmul.mubr.f32.gmra.mrb[0].mxu0 %v2302
        %v2417 = vpop.f32.mrb[0].mxu0
        %v2418 = vadd.f32 0.0, %v2417
        %v2419 = vpop.f32.mrb[0].mxu0
        %v2420 = vadd.f32 0.0, %v2419
        %2421 = vdwg.mxu0
        %2422 = vmatprep.subr.mxu0 0.0
        %2423 = vmatpush1.msra.mxu0 %v2305
        %2424 = vmatprep.subr.mxu0 0.0
        %2425 = vmatpush1.msra.mxu0 %v2308
        %2426 = vmatprep.subr.mxu0 0.0
        %2427 = vmatpush1.msra.mxu0 %v2311
        %2428 = vmatprep.subr.mxu0 0.0
        %2429 = vmatpush1.msra.mxu0 %v2314
        %2430 = vmatprep.subr.mxu0 0.0
        %2431 = vmatpush1.msra.mxu0 %v2317
        %2432 = vmatprep.subr.mxu0 0.0
        %2433 = vmatpush1.msra.mxu0 %v2320
        %2434 = vmatprep.subr.mxu0 0.0
        %2435 = vmatpush1.msra.mxu0 %v2323
        %2436 = vmatprep.subr.mxu0 0.0
        %2437 = vmatpush1.msra.mxu0 %v2326
        %2438 = vmatprep.subr.mxu0 0.0
        %2439 = vmatpush1.msra.mxu0 %v2329
        %2440 = vmatprep.subr.mxu0 0.0
        %2441 = vmatpush1.msra.mxu0 %v2332
        %2442 = vmatprep.subr.mxu0 0.0
        %2443 = vmatpush1.msra.mxu0 %v2335
        %2444 = vmatprep.subr.mxu0 0.0
        %2445 = vmatpush1.msra.mxu0 %v2338
        %2446 = vmatprep.subr.mxu0 0.0
        %2447 = vmatpush1.msra.mxu0 %v2341
        %2448 = vmatprep.subr.mxu0 0.0
        %2449 = vmatpush1.msra.mxu0 %v2344
        %2450 = vmatprep.subr.mxu0 0.0
        %2451 = vmatpush1.msra.mxu0 %v2347
        %2452 = vmatprep.subr.mxu0 0.0
        %2453 = vmatpush1.msra.mxu0 %v2350
        %2454 = vmatprep.subr.mxu0 0.0
        %2455 = vmatpush1.msra.mxu0 0.0
        %2456 = vmatprep.subr.mxu0 0.0
        %2457 = vmatpush1.msra.mxu0 0.0
        %2458 = vmatprep.subr.mxu0 0.0
        %2459 = vmatpush1.msra.mxu0 0.0
        %2460 = vmatprep.subr.mxu0 0.0
        %2461 = vmatpush1.msra.mxu0 0.0
        %2462 = vmatprep.subr.mxu0 0.0
        %2463 = vmatpush1.msra.mxu0 0.0
        %2464 = vmatprep.subr.mxu0 0.0
        %2465 = vmatpush1.msra.mxu0 0.0
        %2466 = vmatprep.subr.mxu0 0.0
        %2467 = vmatpush1.msra.mxu0 0.0
        %2468 = vmatprep.subr.mxu0 0.0
        %2469 = vmatpush1.msra.mxu0 0.0
        %2470 = vmatprep.subr.mxu0 0.0
        %2471 = vmatpush1.msra.mxu0 0.0
        %2472 = vmatprep.subr.mxu0 0.0
        %2473 = vmatpush1.msra.mxu0 0.0
        %2474 = vmatprep.subr.mxu0 0.0
        %2475 = vmatpush1.msra.mxu0 0.0
        %2476 = vmatprep.subr.mxu0 0.0
        %2477 = vmatpush1.msra.mxu0 0.0
        %2478 = vmatprep.subr.mxu0 0.0
        %2479 = vmatpush1.msra.mxu0 0.0
        %2480 = vmatprep.subr.mxu0 0.0
        %2481 = vmatpush1.msra.mxu0 0.0
        %2482 = vmatprep.subr.mxu0 0.0
        %2483 = vmatpush1.msra.mxu0 0.0
        %2484 = vmatprep.subr.mxu0 0.0
        %2485 = vmatpush1.msra.mxu0 0.0
        %2486 = vmatprep.mubr.f32.mxu0 0.0
        %2487 = vmatmul.mubr.f32.gmra.mrb[0].mxu0 %v2302
        %v2488 = vpop.f32.mrb[0].mxu0
        %v2489 = vadd.f32 0.0, %v2488
        %v2490 = vpop.f32.mrb[0].mxu0
        %2491 = vdwg.mxu0
        %v2492 = vadd.f32 %v2299, %v2418
        %v2493 = vxor.u32 %v2492, 2147483648
        %v2494 = vmul.f32 %v2493, 1.442695
        %v2495 = vpow.pop %v2494
        %v2496 = vadd.f32 %v2495, 1.0
        %v2497 = vrcp.pop %v2496
        %v2498 = vmul.f32 1.0, %v2497
        %v2499 = vadd.f32 %v2300, %v2420
        %v2500 = vxor.u32 %v2499, 2147483648
        %v2501 = vmul.f32 %v2500, 1.442695
        %v2502 = vpow.pop %v2501
        %v2503 = vadd.f32 %v2502, 1.0
        %v2504 = vrcp.pop %v2503
        %v2505 = vmul.f32 1.0, %v2504
        %v2506 = vld [vmem:[%s308] sm:$0x1]
        %v2508 = vlaneseq
        %v2509 = vshrl.u32 %v2508, 7
        %v2510 = vsub.s32 0, %v2509
        %v2511 = vrot.slane %v2506, %v2510
        %v2513 = vadd.f32 %v2489, %v2511
        %v2514 = vmul.f32 %v2498, %v2513
        %v2515 = vadd.f32 %v2301, %v2514
        %v2516 = vtanh.pop %v2515
        %v2517 = vsub.f32 1.0, %v2505
        %v2518 = vmul.f32 %v2517, %v2516
        %v2519 = vmul.f32 %v2505, %v2302
        %v2520 = vadd.f32 %v2518, %v2519
        %2521 = vst [vmem:[#allocation3] sm:$0xff] %v2520
        %s2522 = scalar_lea.vmem %s347, %s2293 [#allocation11]
        %2523 = vst [vmem:[%s2522] sm:$0xff] %v2520
        %s2524 = sand.u32 %s158, 1
        %s2525 = sand.u32 %s158, 1
        %s2526 = smul.addr %s2525, 64
        %s2527 = scalar_lea.vmem [#allocation11], %s2526
        // Predicated region
        $region57: #{bigru_forward.2} parent=39 // pred_check
          %p2528 = pneg %p168
        $region58: #{bigru_forward.2} parent=39 // pred_check_branch
          %2530 = sbr.rel (%p2528) target = $region60
        $region59: #{bigru_forward.2} parent=39 // pred_region
          %s2531 = smul.addr %s25, 8
          %s2532 = scalar_lea.vmem %s5, %s2531
          // Predicated region
          $region61: #{bigru_forward.2} parent=59 // pred_check
            _
          $region62: #{bigru_forward.2} parent=59 // pred_check_branch
            %2534 = sbr.rel (0) target = $region64
          $region63: #{bigru_forward.2} parent=59 // pred_region
            // Predicated region
            $region65: #{bigru_forward.2} parent=63 // pred_check
              _
            $region66: #{bigru_forward.2} parent=63 // pred_check_branch
              %2536 = sbr.rel (0) target = $region68
            $region67: #{bigru_forward.2} parent=63 // pred_region
              // Predicated region
              $region80: #{bigru_forward.2} parent=67 // pred_check
                _
              $region81: #{bigru_forward.2} parent=67 // pred_check_branch
                %2565 = sbr.rel (0) target = $region83
              $region82: #{bigru_forward.2} parent=67 // pred_region
                loop: start=0, step=1, limit=1
                $region84: #{bigru_forward.2} parent=82 // loop_pre_header
                  _
                $region85: #{bigru_forward.2} parent=82 // loop_header
                  %s2567 = sphi 0, %s2571
                  %p2568 = scmp.ge.s32.totalorder %s2567, 1
                  %s2572 = sphi %s2527, %s2527
                  %s2573 = sphi %s2532, %s2532
                $region86: #{bigru_forward.2} parent=82 // loop_header_branch
                  %2570 = sbr.rel (%p2568) target = $region90
                $region87: #{bigru_forward.2} parent=82 // loop_body
                  %v2574 = vld [vmem:[%s2572] sm:$0xff]
                  %2575 = vst [vmem:[%s2573] sm:$0xff] %v2574
                  %v2576 = vld [vmem:[%s2572 + $0x8] sm:$0xff]
                  %2577 = vst [vmem:[%s2573 + $0x10] sm:$0xff] %v2576
                  %v2578 = vld [vmem:[%s2572 + $0x10] sm:$0xff]
                  %2579 = vst [vmem:[%s2573 + $0x20] sm:$0xff] %v2578
                  %v2580 = vld [vmem:[%s2572 + $0x18] sm:$0xff]
                  %2581 = vst [vmem:[%s2573 + $0x30] sm:$0xff] %v2580
                  %v2582 = vld [vmem:[%s2572 + $0x20] sm:$0xff]
                  %2583 = vst [vmem:[%s2573 + $0x40] sm:$0xff] %v2582
                  %v2584 = vld [vmem:[%s2572 + $0x28] sm:$0xff]
                  %2585 = vst [vmem:[%s2573 + $0x50] sm:$0xff] %v2584
                  %v2586 = vld [vmem:[%s2572 + $0x30] sm:$0xff]
                  %2587 = vst [vmem:[%s2573 + $0x60] sm:$0xff] %v2586
                  %v2588 = vld [vmem:[%s2572 + $0x38] sm:$0xff]
                  %2589 = vst [vmem:[%s2573 + $0x70] sm:$0xff] %v2588
                $region88: #{bigru_forward.2} parent=82 // loop_footer
                  %s2571 = sadd.s32 1, %s2567
                $region89: #{bigru_forward.2} parent=82 // loop_footer_branch
                  %2566 = sbr.rel target = $region85
                $region90: #{bigru_forward.2} parent=82 // loop_exit
                  _
              $region83: #{bigru_forward.2} parent=67 // pred_fallthru
                _
              // Predicated region
              $region91: #{bigru_forward.2} parent=67 // pred_check
                _
              $region92: #{bigru_forward.2} parent=67 // pred_check_branch
                %2591 = sbr.rel target = $region94
              $region93: #{bigru_forward.2} parent=67 // pred_region
                _
              $region94: #{bigru_forward.2} parent=67 // pred_fallthru
                _
            $region68: #{bigru_forward.2} parent=63 // pred_fallthru
              _
            // Predicated region
            $region69: #{bigru_forward.2} parent=63 // pred_check
              _
            $region70: #{bigru_forward.2} parent=63 // pred_check_branch
              %2538 = sbr.rel target = $region72
            $region71: #{bigru_forward.2} parent=63 // pred_region
              loop: start=0, step=1, limit=1
              $region73: #{bigru_forward.2} parent=71 // loop_pre_header
                _
              $region74: #{bigru_forward.2} parent=71 // loop_header
                %s2541 = sphi 0, %s2545
                %p2542 = scmp.ge.s32.totalorder %s2541, 1
                %s2546 = sphi %s2527, %s2527
                %s2547 = sphi %s2532, %s2532
              $region75: #{bigru_forward.2} parent=71 // loop_header_branch
                %2544 = sbr.rel (%p2542) target = $region79
              $region76: #{bigru_forward.2} parent=71 // loop_body
                %v2548 = vld [vmem:[%s2546] sm:$0xff]
                %2549 = vst [vmem:[%s2547] sm:$0xff] %v2548
                %v2550 = vld [vmem:[%s2546 + $0x8] sm:$0xff]
                %2551 = vst [vmem:[%s2547 + $0x10] sm:$0xff] %v2550
                %v2552 = vld [vmem:[%s2546 + $0x10] sm:$0xff]
                %2553 = vst [vmem:[%s2547 + $0x20] sm:$0xff] %v2552
                %v2554 = vld [vmem:[%s2546 + $0x18] sm:$0xff]
                %2555 = vst [vmem:[%s2547 + $0x30] sm:$0xff] %v2554
                %v2556 = vld [vmem:[%s2546 + $0x20] sm:$0xff]
                %2557 = vst [vmem:[%s2547 + $0x40] sm:$0xff] %v2556
                %v2558 = vld [vmem:[%s2546 + $0x28] sm:$0xff]
                %2559 = vst [vmem:[%s2547 + $0x50] sm:$0xff] %v2558
                %v2560 = vld [vmem:[%s2546 + $0x30] sm:$0xff]
                %2561 = vst [vmem:[%s2547 + $0x60] sm:$0xff] %v2560
                %v2562 = vld [vmem:[%s2546 + $0x38] sm:$0xff]
                %2563 = vst [vmem:[%s2547 + $0x70] sm:$0xff] %v2562
              $region77: #{bigru_forward.2} parent=71 // loop_footer
                %s2545 = sadd.s32 1, %s2541
              $region78: #{bigru_forward.2} parent=71 // loop_footer_branch
                %2540 = sbr.rel target = $region74
              $region79: #{bigru_forward.2} parent=71 // loop_exit
                _
            $region72: #{bigru_forward.2} parent=63 // pred_fallthru
              _
          $region64: #{bigru_forward.2} parent=59 // pred_fallthru
            _
          %2592 = vnop
        $region60: #{bigru_forward.2} parent=39 // pred_fallthru
          _
      $region40: #{bigru_forward.2} parent=5 // pred_fallthru
        _
      %p2593 = scmp.le.s32.totalorder 2, %s20
      // Predicated region
      $region95: #{bigru_forward.2} parent=5 // pred_check
        %p2594 = pneg %p2593
      $region96: #{bigru_forward.2} parent=5 // pred_check_branch
        %2596 = sbr.rel (%p2594) target = $region98
      $region97: #{bigru_forward.2} parent=5 // pred_region
        %s2597 = ssub.s32 %s20, 2
        // Predicated region
        $region99: #{bigru_forward.2} parent=97 // pred_check
          %p2598 = pneg %p174
        $region100: #{bigru_forward.2} parent=97 // pred_check_branch
          %2600 = sbr.rel (%p2598) target = $region102
        $region101: #{bigru_forward.2} parent=97 // pred_region
          %s2601 = sand.u32 %s159, 1
          %s2602 = sand.u32 %s159, 1
          %s2603 = smul.addr %s2602, 64
          %s2604 = scalar_lea.vmem [#allocation11], %s2603
        $region102: #{bigru_forward.2} parent=97 // pred_fallthru
          _
      $region98: #{bigru_forward.2} parent=5 // pred_fallthru
        _
    $region6: #{bigru_forward.2} parent=1 // loop_footer
      %s24 = sadd.s32 1, %s20
    $region7: #{bigru_forward.2} parent=1 // loop_footer_branch
      %19 = sbr.rel target = $region3
    $region8: #{bigru_forward.2} parent=1 // loop_exit
      _
    %2605 = vsyncpa [#allocation5], 1
    %s2606 = scalar_lea.sflag [#allocation5], 1
    %2607 = vsyncpa %s2606, 1
    %2608 = vsyncpa [#allocation7], 1
    %s2609 = scalar_lea.sflag [#allocation7], 1
    %2610 = vsyncpa %s2609, 1
    %2611 = vsyncpa [#allocation10], 1
    %s2612 = scalar_lea.sflag [#allocation10], 1
    %2613 = vsyncpa %s2612, 1

// kernel: bigru_forward.3
$region0: #{bigru_forward.3}
  #allocation0 [shape = 'u32[]', space=smem, size = 0x4, offset = 0x4, fixed_abs, tag = 'smem constant byte address 0x4 - core index']
  #allocation1 [shape = 'u32[144,128]{1,0:T(1,128)}', space=vmem, size = 0x12000, scoped, tag = 'internal scratch']
  #allocation2 [shape = 'f32[64,384]{1,0:T(8,128)}', space=vmem, size = 0x18000, scoped, tag = 'scratch operand']
  #allocation3 [shape = 'f32[8,128]{1,0:T(8,128)}', space=vmem, size = 0x1000, scoped, tag = 'scratch operand']
  %s0 = inlined_call_operand.vmem [shape: f32[64,256], index: 0, kind: input, shape index: {}]
  %s1 = inlined_call_operand.vmem [shape: f32[2,256,384], index: 1, kind: input, shape index: {}]
  %s2 = inlined_call_operand.vmem [shape: f32[2,1,384], index: 2, kind: input, shape index: {}]
  %s3 = inlined_call_operand.hbm [shape: f32[2,128,384], index: 3, kind: input, shape index: {}]
  %s4 = inlined_call_operand.vmem [shape: f32[2,1,128], index: 4, kind: input, shape index: {}]
  %s5 = inlined_call_operand.vmem [shape: f32[64,256], index: 5, kind: output, shape index: {}]
  %s6 = sld [smem:[#allocation0]]
  $region91: #{bigru_forward.3} parent=0
    _
  %s8 = ssub.s32 1, %s6
  %s9 = scalar_select 0, %s8, %s6
  $region1: #{bigru_forward.3} parent=0
    #allocation4 [shape = 'u8[393216]{0}', space=vmem, size = 0x60000, scoped, tag = 'input window, operand 3']
    #allocation5 [shape = 's32[2]{0}', space=sflag, size = 0x8, scoped, tag = 'scoped memory for bigru_forward.3']
    #allocation6 [shape = 'u8[65536]{0}', space=vmem, size = 0x10000, scoped, tag = 'output window, operand 0']
    %10 = vsyncpa [#allocation5], 0
    %s11 = scalar_lea.sflag [#allocation5], 1
    %12 = vsyncpa %s11, 0
    loop: start=0, step=1, limit=4
    $region2: #{bigru_forward.3} parent=1 // loop_pre_header
      _
    $region3: #{bigru_forward.3} parent=1 // loop_header
      %s14 = sphi 0, %s18
      %p15 = scmp.ge.s32.totalorder %s14, 4
      %s22 = sphi 0, %s22
      %s24 = sphi 0, %s22
      %s25 = sphi 0, %s24
      %s39 = sphi 0, %s25
      %s45 = sphi 0, %s47
      %s48 = sphi 0, %s45
      %s49 = sphi 0, %s48
      %s65 = sphi 0, %s49
      %s71 = sphi 0, %s73
      %s74 = sphi 0, %s71
      %s75 = sphi 0, %s74
      %s91 = sphi 0, %s75
      %s97 = sphi 0, %s99
      %s100 = sphi 0, %s97
      %s101 = sphi 0, %s100
      %s117 = sphi 0, %s101
      %s123 = sphi 0, %s125
      %s126 = sphi 0, %s123
      %s127 = sphi 0, %s126
      %s143 = sphi 0, %s127
      %s149 = sphi 0, %s151
      %s152 = sphi 0, %s149
      %s153 = sphi 0, %s152
      %s169 = sphi 0, %s153
    $region4: #{bigru_forward.3} parent=1 // loop_header_branch
      %17 = sbr.rel (%p15) target = $region8
    $region5: #{bigru_forward.3} parent=1 // loop_body
      %s19 = ssub.s32 %s14, 1
      %s20 = ssub.s32 %s14, 2
      %s21 = sadd.s32 %s14, 1
      %s23 = sadd.s32 %s22, 1
      %p26 = scmp.eq.s32.totalorder %s14, 1
      %p27 = scmp.ne.s32.totalorder %s22, %s24
      %p28 = scmp.eq.s32.totalorder %s14, 0
      %p29 = por %p27, %p28
      %p30 = scmp.ne.s32.totalorder %s22, %s24
      %p31 = scmp.eq.s32.totalorder %s19, 1
      %p32 = por %p30, %p31
      %p33 = scmp.ne.s32.totalorder %s24, %s25
      %p34 = scmp.eq.s32.totalorder %s19, 0
      %p35 = por %p33, %p34
      %p36 = scmp.ne.s32.totalorder %s24, %s25
      %p37 = scmp.eq.s32.totalorder %s20, 1
      %p38 = por %p36, %p37
      %p40 = scmp.ne.s32.totalorder %s25, %s39
      %p41 = scmp.eq.s32.totalorder %s20, 0
      %p42 = por %p40, %p41
      %s43 = ssub.s32 %s14, %s21
      %p44 = scmp.eq.s32.totalorder %s43, 0
      %s46 = sadd.s32 %s45, 1
      %s47 = scalar_select %p44, %s45, %s46
      %p50 = pneg %p44
      %p51 = scmp.eq.s32.totalorder %s14, 1
      %p52 = por %p50, %p51
      %p53 = scmp.ne.s32.totalorder %s45, %s48
      %p54 = scmp.eq.s32.totalorder %s14, 0
      %p55 = por %p53, %p54
      %p56 = scmp.ne.s32.totalorder %s45, %s48
      %p57 = scmp.eq.s32.totalorder %s19, 1
      %p58 = por %p56, %p57
      %p59 = scmp.ne.s32.totalorder %s48, %s49
      %p60 = scmp.eq.s32.totalorder %s19, 0
      %p61 = por %p59, %p60
      %p62 = scmp.ne.s32.totalorder %s48, %s49
      %p63 = scmp.eq.s32.totalorder %s20, 1
      %p64 = por %p62, %p63
      %p66 = scmp.ne.s32.totalorder %s49, %s65
      %p67 = scmp.eq.s32.totalorder %s20, 0
      %p68 = por %p66, %p67
      %s69 = ssub.s32 %s14, %s21
      %p70 = scmp.eq.s32.totalorder %s69, 0
      %s72 = sadd.s32 %s71, 1
      %s73 = scalar_select %p70, %s71, %s72
      %p76 = pneg %p70
      %p77 = scmp.eq.s32.totalorder %s14, 1
      %p78 = por %p76, %p77
      %p79 = scmp.ne.s32.totalorder %s71, %s74
      %p80 = scmp.eq.s32.totalorder %s14, 0
      %p81 = por %p79, %p80
      %p82 = scmp.ne.s32.totalorder %s71, %s74
      %p83 = scmp.eq.s32.totalorder %s19, 1
      %p84 = por %p82, %p83
      %p85 = scmp.ne.s32.totalorder %s74, %s75
      %p86 = scmp.eq.s32.totalorder %s19, 0
      %p87 = por %p85, %p86
      %p88 = scmp.ne.s32.totalorder %s74, %s75
      %p89 = scmp.eq.s32.totalorder %s20, 1
      %p90 = por %p88, %p89
      %p92 = scmp.ne.s32.totalorder %s75, %s91
      %p93 = scmp.eq.s32.totalorder %s20, 0
      %p94 = por %p92, %p93
      %s95 = ssub.s32 %s14, %s21
      %p96 = scmp.eq.s32.totalorder %s95, 0
      %s98 = sadd.s32 %s97, 1
      %s99 = scalar_select %p96, %s97, %s98
      %p102 = pneg %p96
      %p103 = scmp.eq.s32.totalorder %s14, 1
      %p104 = por %p102, %p103
      %p105 = scmp.ne.s32.totalorder %s97, %s100
      %p106 = scmp.eq.s32.totalorder %s14, 0
      %p107 = por %p105, %p106
      %p108 = scmp.ne.s32.totalorder %s97, %s100
      %p109 = scmp.eq.s32.totalorder %s19, 1
      %p110 = por %p108, %p109
      %p111 = scmp.ne.s32.totalorder %s100, %s101
      %p112 = scmp.eq.s32.totalorder %s19, 0
      %p113 = por %p111, %p112
      %p114 = scmp.ne.s32.totalorder %s100, %s101
      %p115 = scmp.eq.s32.totalorder %s20, 1
      %p116 = por %p114, %p115
      %p118 = scmp.ne.s32.totalorder %s101, %s117
      %p119 = scmp.eq.s32.totalorder %s20, 0
      %p120 = por %p118, %p119
      %s121 = ssub.s32 %s14, %s21
      %p122 = scmp.eq.s32.totalorder %s121, 0
      %s124 = sadd.s32 %s123, 1
      %s125 = scalar_select %p122, %s123, %s124
      %p128 = pneg %p122
      %p129 = scmp.eq.s32.totalorder %s14, 1
      %p130 = por %p128, %p129
      %p131 = scmp.ne.s32.totalorder %s123, %s126
      %p132 = scmp.eq.s32.totalorder %s14, 0
      %p133 = por %p131, %p132
      %p134 = scmp.ne.s32.totalorder %s123, %s126
      %p135 = scmp.eq.s32.totalorder %s19, 1
      %p136 = por %p134, %p135
      %p137 = scmp.ne.s32.totalorder %s126, %s127
      %p138 = scmp.eq.s32.totalorder %s19, 0
      %p139 = por %p137, %p138
      %p140 = scmp.ne.s32.totalorder %s126, %s127
      %p141 = scmp.eq.s32.totalorder %s20, 1
      %p142 = por %p140, %p141
      %p144 = scmp.ne.s32.totalorder %s127, %s143
      %p145 = scmp.eq.s32.totalorder %s20, 0
      %p146 = por %p144, %p145
      %s147 = ssub.s32 %s14, %s21
      %p148 = scmp.eq.s32.totalorder %s147, 0
      %s150 = sadd.s32 %s149, 1
      %s151 = scalar_select %p148, %s149, %s150
      %p154 = pneg %p148
      %p155 = scmp.eq.s32.totalorder %s14, 1
      %p156 = por %p154, %p155
      %p157 = scmp.ne.s32.totalorder %s149, %s152
      %p158 = scmp.eq.s32.totalorder %s14, 0
      %p159 = por %p157, %p158
      %p160 = scmp.ne.s32.totalorder %s149, %s152
      %p161 = scmp.eq.s32.totalorder %s19, 1
      %p162 = por %p160, %p161
      %p163 = scmp.ne.s32.totalorder %s152, %s153
      %p164 = scmp.eq.s32.totalorder %s19, 0
      %p165 = por %p163, %p164
      %p166 = scmp.ne.s32.totalorder %s152, %s153
      %p167 = scmp.eq.s32.totalorder %s20, 1
      %p168 = por %p166, %p167
      %p170 = scmp.ne.s32.totalorder %s153, %s169
      %p171 = scmp.eq.s32.totalorder %s20, 0
      %p172 = por %p170, %p171
      %p173 = scmp.le.s32.totalorder 1, %s14
      %p174 = scmp.lt.s32.totalorder %s14, 3
      %p175 = pnand %p173, %p174
      %p176 = pneg %p175
      // Predicated region
      $region9: #{bigru_forward.3} parent=5 // pred_check
        _
      $region10: #{bigru_forward.3} parent=5 // pred_check_branch
        %178 = sbr.rel (%p175) target = $region12
      $region11: #{bigru_forward.3} parent=5 // pred_region
        %s179 = ssub.s32 %s14, 1
        // Predicated region
        $region13: #{bigru_forward.3} parent=11 // pred_check
          %p180 = pneg %p35
        $region14: #{bigru_forward.3} parent=11 // pred_check_branch
          %182 = sbr.rel (%p180) target = $region16
        $region15: #{bigru_forward.3} parent=11 // pred_region
          _
        $region16: #{bigru_forward.3} parent=11 // pred_fallthru
          _
      $region12: #{bigru_forward.3} parent=5 // pred_fallthru
        _
      %p183 = scmp.lt.s32.totalorder %s14, 2
      // Predicated region
      $region17: #{bigru_forward.3} parent=5 // pred_check
        %p184 = pneg %p183
      $region18: #{bigru_forward.3} parent=5 // pred_check_branch
        %186 = sbr.rel (%p184) target = $region20
      $region19: #{bigru_forward.3} parent=5 // pred_region
        // Predicated region
        $region21: #{bigru_forward.3} parent=19 // pred_check
          %p187 = pneg %p55
        $region22: #{bigru_forward.3} parent=19 // pred_check_branch
          %189 = sbr.rel (%p187) target = $region24
        $region23: #{bigru_forward.3} parent=19 // pred_region
          %p190 = scmp.lt.s32.totalorder %s14, 1
          %s191 = scalar_select %p190, %s14, 1
          %s192 = smul.addr %s191, 96
          %s193 = smul.addr %s192, 8
          %s194 = scalar_lea.vmem %s1, %s193
        $region24: #{bigru_forward.3} parent=19 // pred_fallthru
          _
        // Predicated region
        $region25: #{bigru_forward.3} parent=19 // pred_check
          %p195 = pneg %p81
        $region26: #{bigru_forward.3} parent=19 // pred_check_branch
          %197 = sbr.rel (%p195) target = $region28
        $region27: #{bigru_forward.3} parent=19 // pred_region
          %p198 = scmp.lt.s32.totalorder %s14, 1
          %s199 = scalar_select %p198, %s14, 1
          %s200 = smul.addr %s199, 3
          %s201 = scalar_lea.vmem %s2, %s200
        $region28: #{bigru_forward.3} parent=19 // pred_fallthru
          _
        // Predicated region
        $region29: #{bigru_forward.3} parent=19 // pred_check
          %p202 = pneg %p107
        $region30: #{bigru_forward.3} parent=19 // pred_check_branch
          %204 = sbr.rel (%p202) target = $region32
        $region31: #{bigru_forward.3} parent=19 // pred_region
          %s205 = sand.u32 %s97, 1
          %s206 = scalar_lea.sflag [#allocation5], %s205
          %s207 = sand.u32 %s97, 1
          %s208 = smul.addr %s207, 384
          %s209 = scalar_lea.vmem [#allocation4], %s208
          %s211 = ssub.s32 6144, 6144
          %212 = vsyncadd %s206, %s211
          %s213 = smul.addr %s14, 48
          %s214 = smul.addr %s213, 128
          %s215 = scalar_lea.hbm %s3, %s214
          %s216 = sshll.u32 %s209, 4
          %s217 = int_to_ptr.vmem [resolvable:$true] %s216
          %222 = dma.hbm_to_vmem [thread:$0]  %s215, 6144, %s217, %s206, 384, 384, 24
        $region32: #{bigru_forward.3} parent=19 // pred_fallthru
          _
        // Predicated region
        $region33: #{bigru_forward.3} parent=19 // pred_check
          %p223 = pneg %p133
        $region34: #{bigru_forward.3} parent=19 // pred_check_branch
          %225 = sbr.rel (%p223) target = $region36
        $region35: #{bigru_forward.3} parent=19 // pred_region
          %p226 = scmp.lt.s32.totalorder %s14, 1
          %s227 = scalar_select %p226, %s14, 1
          %s228 = scalar_lea.vmem %s4, %s227
        $region36: #{bigru_forward.3} parent=19 // pred_fallthru
          _
      $region20: #{bigru_forward.3} parent=5 // pred_fallthru
        _
      %p229 = scmp.le.s32.totalorder 1, %s14
      %p230 = scmp.lt.s32.totalorder %s14, 3
      %p231 = pnand %p229, %p230
      %p232 = pneg %p231
      // Predicated region
      $region37: #{bigru_forward.3} parent=5 // pred_check
        _
      $region38: #{bigru_forward.3} parent=5 // pred_check_branch
        %234 = sbr.rel (%p231) target = $region40
      $region39: #{bigru_forward.3} parent=5 // pred_region
        %s235 = ssub.s32 %s14, 1
        %s236 = sand.u32 %s100, 1
        %s237 = scalar_lea.sflag [#allocation5], %s236
        %s238 = sand.u32 %s100, 1
        %s239 = smul.addr %s238, 384
        %s240 = scalar_lea.vmem [#allocation4], %s239
        // Predicated region
        $region41: #{bigru_forward.3} parent=39 // pred_check
          %p241 = pneg %p113
        $region42: #{bigru_forward.3} parent=39 // pred_check_branch
          %243 = sbr.rel (%p241) target = $region44
        $region43: #{bigru_forward.3} parent=39 // pred_region
          %244 = dma.done %s237, 6144
        $region44: #{bigru_forward.3} parent=39 // pred_fallthru
          _
        %p245 = pneg %p35
        %p246 = pneg %p32
        %p247 = scmp.lt.s32.totalorder %s19, 1
        %s248 = scalar_select %p247, %s19, 1
        %s249 = smul.addr %s248, 96
        %s250 = smul.addr %s249, 8
        %s251 = scalar_lea.vmem %s1, %s250
        %p252 = pneg %p61
        %p253 = pneg %p58
        %p254 = scmp.lt.s32.totalorder %s19, 1
        %s255 = scalar_select %p254, %s19, 1
        %s256 = smul.addr %s255, 3
        %s257 = scalar_lea.vmem %s2, %s256
        %p258 = pneg %p87
        %p259 = pneg %p84
        %s260 = sand.u32 %s100, 1
        %s261 = scalar_lea.sflag [#allocation5], %s260
        %s262 = sand.u32 %s100, 1
        %s263 = smul.addr %s262, 384
        %s264 = scalar_lea.vmem [#allocation4], %s263
        %p265 = pneg %p113
        %p266 = pneg %p110
        %p267 = scmp.lt.s32.totalorder %s19, 1
        %s268 = scalar_select %p267, %s19, 1
        %s269 = scalar_lea.vmem %s4, %s268
        %p270 = pneg %p139
        %p271 = pneg %p136
        %p272 = pneg %p165
        %p273 = pneg %p162
        %s274 = sand.u32 %s152, 1
        %s275 = sand.u32 %s152, 1
        %s276 = smul.addr %s275, 64
        %s277 = scalar_lea.vmem [#allocation6], %s276
        %p278 = scmp.lt.s32.totalorder %s19, 1
        %s279 = scalar_select %p278, %s19, 1
        %s280 = smul.addr %s279, 96
        %s281 = smul.addr %s280, 8
        %s282 = scalar_lea.vmem %s1, %s281
        %p283 = scmp.lt.s32.totalorder %s19, 1
        %s284 = scalar_select %p283, %s19, 1
        %s285 = smul.addr %s284, 3
        %s286 = scalar_lea.vmem %s2, %s285
        %p287 = scmp.lt.s32.totalorder %s19, 1
        %s288 = scalar_select %p287, %s19, 1
        %s289 = scalar_lea.vmem %s4, %s288
        %v290 = vld [vmem:[%s0] sm:$0xff]
        %v291 = vld [vmem:[%s0 + $0x8] sm:$0xff]
        %v292 = vld [vmem:[%s0 + $0x10] sm:$0xff]
        %v293 = vld [vmem:[%s0 + $0x18] sm:$0xff]
        %v294 = vld [vmem:[%s0 + $0x20] sm:$0xff]
        %v295 = vld [vmem:[%s0 + $0x28] sm:$0xff]
        %v296 = vld [vmem:[%s0 + $0x30] sm:$0xff]
        %v297 = vld [vmem:[%s0 + $0x38] sm:$0xff]
        %v298 = vld [vmem:[%s0 + $0x40] sm:$0xff]
        %v299 = vld [vmem:[%s0 + $0x48] sm:$0xff]
        %v300 = vld [vmem:[%s0 + $0x50] sm:$0xff]
        %v301 = vld [vmem:[%s0 + $0x58] sm:$0xff]
        %v302 = vld [vmem:[%s0 + $0x60] sm:$0xff]
        %v303 = vld [vmem:[%s0 + $0x68] sm:$0xff]
        %v304 = vld [vmem:[%s0 + $0x70] sm:$0xff]
        %v305 = vld [vmem:[%s0 + $0x78] sm:$0xff]
        %v306 = vld [vmem:[%s282] sm:$0xff]
        %v307 = vld [vmem:[%s282 + $0x8] sm:$0xff]
        %v308 = vld [vmem:[%s282 + $0x10] sm:$0xff]
        %v309 = vld [vmem:[%s282 + $0x18] sm:$0xff]
        %v310 = vld [vmem:[%s282 + $0x20] sm:$0xff]
        %v311 = vld [vmem:[%s282 + $0x28] sm:$0xff]
        %v312 = vld [vmem:[%s282 + $0x30] sm:$0xff]
        %v313 = vld [vmem:[%s282 + $0x38] sm:$0xff]
        %v314 = vld [vmem:[%s282 + $0x40] sm:$0xff]
        %v315 = vld [vmem:[%s282 + $0x48] sm:$0xff]
        %v316 = vld [vmem:[%s282 + $0x50] sm:$0xff]
        %v317 = vld [vmem:[%s282 + $0x58] sm:$0xff]
        %v318 = vld [vmem:[%s282 + $0x60] sm:$0xff]
        %v319 = vld [vmem:[%s282 + $0x68] sm:$0xff]
        %v320 = vld [vmem:[%s282 + $0x70] sm:$0xff]
        %v321 = vld [vmem:[%s282 + $0x78] sm:$0xff]
        %v322 = vld [vmem:[%s282 + $0x80] sm:$0xff]
        %v323 = vld [vmem:[%s282 + $0x88] sm:$0xff]
        %v324 = vld [vmem:[%s282 + $0x90] sm:$0xff]
        %v325 = vld [vmem:[%s282 + $0x98] sm:$0xff]
        %v326 = vld [vmem:[%s282 + $0xa0] sm:$0xff]
        %v327 = vld [vmem:[%s282 + $0xa8] sm:$0xff]
        %v328 = vld [vmem:[%s282 + $0xb0] sm:$0xff]
        %v329 = vld [vmem:[%s282 + $0xb8] sm:$0xff]
        %v330 = vld [vmem:[%s282 + $0xc0] sm:$0xff]
        %v331 = vld [vmem:[%s282 + $0xc8] sm:$0xff]
        %v332 = vld [vmem:[%s282 + $0xd0] sm:$0xff]
        %v333 = vld [vmem:[%s282 + $0xd8] sm:$0xff]
        %v334 = vld [vmem:[%s282 + $0xe0] sm:$0xff]
        %v335 = vld [vmem:[%s282 + $0xe8] sm:$0xff]
        %v336 = vld [vmem:[%s282 + $0xf0] sm:$0xff]
        %v337 = vld [vmem:[%s282 + $0xf8] sm:$0xff]
        %v338 = vld [vmem:[%s282 + $0x100] sm:$0xff]
        %v339 = vld [vmem:[%s282 + $0x108] sm:$0xff]
        %v340 = vld [vmem:[%s282 + $0x110] sm:$0xff]
        %v341 = vld [vmem:[%s282 + $0x118] sm:$0xff]
        %v342 = vld [vmem:[%s282 + $0x120] sm:$0xff]
        %v343 = vld [vmem:[%s282 + $0x128] sm:$0xff]
        %v344 = vld [vmem:[%s282 + $0x130] sm:$0xff]
        %v345 = vld [vmem:[%s282 + $0x138] sm:$0xff]
        %v346 = vld [vmem:[%s282 + $0x140] sm:$0xff]
        %v347 = vld [vmem:[%s282 + $0x148] sm:$0xff]
        %v348 = vld [vmem:[%s282 + $0x150] sm:$0xff]
        %v349 = vld [vmem:[%s282 + $0x158] sm:$0xff]
        %v350 = vld [vmem:[%s282 + $0x160] sm:$0xff]
        %v351 = vld [vmem:[%s282 + $0x168] sm:$0xff]
        %v352 = vld [vmem:[%s282 + $0x170] sm:$0xff]
        %v353 = vld [vmem:[%s282 + $0x178] sm:$0xff]
        %v354 = vld [vmem:[%s282 + $0x180] sm:$0xff]
        %v355 = vld [vmem:[%s282 + $0x188] sm:$0xff]
        %v356 = vld [vmem:[%s282 + $0x190] sm:$0xff]
        %v357 = vld [vmem:[%s282 + $0x198] sm:$0xff]
        %v358 = vld [vmem:[%s282 + $0x1a0] sm:$0xff]
        %v359 = vld [vmem:[%s282 + $0x1a8] sm:$0xff]
        %v360 = vld [vmem:[%s282 + $0x1b0] sm:$0xff]
        %v361 = vld [vmem:[%s282 + $0x1b8] sm:$0xff]
        %v362 = vld [vmem:[%s282 + $0x1c0] sm:$0xff]
        %v363 = vld [vmem:[%s282 + $0x1c8] sm:$0xff]
        %v364 = vld [vmem:[%s282 + $0x1d0] sm:$0xff]
        %v365 = vld [vmem:[%s282 + $0x1d8] sm:$0xff]
        %v366 = vld [vmem:[%s282 + $0x1e0] sm:$0xff]
        %v367 = vld [vmem:[%s282 + $0x1e8] sm:$0xff]
        %v368 = vld [vmem:[%s282 + $0x1f0] sm:$0xff]
        %v369 = vld [vmem:[%s282 + $0x1f8] sm:$0xff]
        %v370 = vld [vmem:[%s282 + $0x200] sm:$0xff]
        %v371 = vld [vmem:[%s282 + $0x208] sm:$0xff]
        %v372 = vld [vmem:[%s282 + $0x210] sm:$0xff]
        %v373 = vld [vmem:[%s282 + $0x218] sm:$0xff]
        %v374 = vld [vmem:[%s282 + $0x220] sm:$0xff]
        %v375 = vld [vmem:[%s282 + $0x228] sm:$0xff]
        %v376 = vld [vmem:[%s282 + $0x230] sm:$0xff]
        %v377 = vld [vmem:[%s282 + $0x238] sm:$0xff]
        %v378 = vld [vmem:[%s282 + $0x240] sm:$0xff]
        %v379 = vld [vmem:[%s282 + $0x248] sm:$0xff]
        %v380 = vld [vmem:[%s282 + $0x250] sm:$0xff]
        %v381 = vld [vmem:[%s282 + $0x258] sm:$0xff]
        %v382 = vld [vmem:[%s282 + $0x260] sm:$0xff]
        %v383 = vld [vmem:[%s282 + $0x268] sm:$0xff]
        %v384 = vld [vmem:[%s282 + $0x270] sm:$0xff]
        %v385 = vld [vmem:[%s282 + $0x278] sm:$0xff]
        %v386 = vld [vmem:[%s282 + $0x280] sm:$0xff]
        %v387 = vld [vmem:[%s282 + $0x288] sm:$0xff]
        %v388 = vld [vmem:[%s282 + $0x290] sm:$0xff]
        %v389 = vld [vmem:[%s282 + $0x298] sm:$0xff]
        %v390 = vld [vmem:[%s282 + $0x2a0] sm:$0xff]
        %v391 = vld [vmem:[%s282 + $0x2a8] sm:$0xff]
        %v392 = vld [vmem:[%s282 + $0x2b0] sm:$0xff]
        %v393 = vld [vmem:[%s282 + $0x2b8] sm:$0xff]
        %v394 = vld [vmem:[%s282 + $0x2c0] sm:$0xff]
        %v395 = vld [vmem:[%s282 + $0x2c8] sm:$0xff]
        %v396 = vld [vmem:[%s282 + $0x2d0] sm:$0xff]
        %v397 = vld [vmem:[%s282 + $0x2d8] sm:$0xff]
        %v398 = vld [vmem:[%s282 + $0x2e0] sm:$0xff]
        %v399 = vld [vmem:[%s282 + $0x2e8] sm:$0xff]
        %v400 = vld [vmem:[%s282 + $0x2f0] sm:$0xff]
        %v401 = vld [vmem:[%s282 + $0x2f8] sm:$0xff]
        %v402 = vld [vmem:[%s286] sm:$0x7]
        %v404 = vlaneseq
        %v405 = vshrl.u32 %v404, 7
        %v406 = vsub.s32 0, %v405
        %v407 = vrot.slane %v402, %v406
        %v408 = vlaneseq
        %v409 = vshrl.u32 %v408, 7
        %v410 = vsub.s32 1, %v409
        %v411 = vrot.slane %v402, %v410
        %v412 = vlaneseq
        %v413 = vshrl.u32 %v412, 7
        %v414 = vsub.s32 2, %v413
        %v415 = vrot.slane %v402, %v414
        %419 = vmatprep.subr.mxu0 %v307
        %420 = vmatpush1.msra.mxu0 %v306
        %421 = vmatprep.subr.mxu0 %v310
        %422 = vmatpush1.msra.mxu0 %v309
        %423 = vmatprep.subr.mxu0 %v313
        %424 = vmatpush1.msra.mxu0 %v312
        %425 = vmatprep.subr.mxu0 %v316
        %426 = vmatpush1.msra.mxu0 %v315
        %427 = vmatprep.subr.mxu0 %v319
        %428 = vmatpush1.msra.mxu0 %v318
        %429 = vmatprep.subr.mxu0 %v322
        %430 = vmatpush1.msra.mxu0 %v321
        %431 = vmatprep.subr.mxu0 %v325
        %432 = vmatpush1.msra.mxu0 %v324
        %433 = vmatprep.subr.mxu0 %v328
        %434 = vmatpush1.msra.mxu0 %v327
        %435 = vmatprep.subr.mxu0 %v331
        %436 = vmatpush1.msra.mxu0 %v330
        %437 = vmatprep.subr.mxu0 %v334
        %438 = vmatpush1.msra.mxu0 %v333
        %439 = vmatprep.subr.mxu0 %v337
        %440 = vmatpush1.msra.mxu0 %v336
        %441 = vmatprep.subr.mxu0 %v340
        %442 = vmatpush1.msra.mxu0 %v339
        %443 = vmatprep.subr.mxu0 %v343
        %444 = vmatpush1.msra.mxu0 %v342
        %445 = vmatprep.subr.mxu0 %v346
        %446 = vmatpush1.msra.mxu0 %v345
        %447 = vmatprep.subr.mxu0 %v349
        %448 = vmatpush1.msra.mxu0 %v348
        %449 = vmatprep.subr.mxu0 %v352
        %450 = vmatpush1.msra.mxu0 %v351
        %451 = vmatprep.subr.mxu0 %v355
        %452 = vmatpush1.msra.mxu0 %v354
        %453 = vmatprep.subr.mxu0 %v358
        %454 = vmatpush1.msra.mxu0 %v357
        %455 = vmatprep.subr.mxu0 %v361
        %456 = vmatpush1.msra.mxu0 %v360
        %457 = vmatprep.subr.mxu0 %v364
        %458 = vmatpush1.msra.mxu0 %v363
        %459 = vmatprep.subr.mxu0 %v367
        %460 = vmatpush1.msra.mxu0 %v366
        %461 = vmatprep.subr.mxu0 %v370
        %462 = vmatpush1.msra.mxu0 %v369
        %463 = vmatprep.subr.mxu0 %v373
        %464 = vmatpush1.msra.mxu0 %v372
        %465 = vmatprep.subr.mxu0 %v376
        %466 = vmatpush1.msra.mxu0 %v375
        %467 = vmatprep.subr.mxu0 %v379
        %468 = vmatpush1.msra.mxu0 %v378
        %469 = vmatprep.subr.mxu0 %v382
        %470 = vmatpush1.msra.mxu0 %v381
        %471 = vmatprep.subr.mxu0 %v385
        %472 = vmatpush1.msra.mxu0 %v384
        %473 = vmatprep.subr.mxu0 %v388
        %474 = vmatpush1.msra.mxu0 %v387
        %475 = vmatprep.subr.mxu0 %v391
        %476 = vmatpush1.msra.mxu0 %v390
        %477 = vmatprep.subr.mxu0 %v394
        %478 = vmatpush1.msra.mxu0 %v393
        %479 = vmatprep.subr.mxu0 %v397
        %480 = vmatpush1.msra.mxu0 %v396
        %481 = vmatprep.subr.mxu0 %v400
        %482 = vmatpush1.msra.mxu0 %v399
        %483 = vmatprep.mubr.f32.mxu0 %v291
        %484 = vmatmul.mubr.f32.gmra.mrb[0].mxu0 %v290
        %v485 = vpop.f32.mrb[0].mxu0
        %v486 = vadd.f32 %v407, %v485
        %v487 = vpop.f32.mrb[0].mxu0
        %v488 = vadd.f32 %v411, %v487
        %489 = vmatprep.mubr.f32.mxu0 %v293
        %490 = vmatmul.mubr.f32.gmra.mrb[0].mxu0 %v292
        %v491 = vpop.f32.mrb[0].mxu0
        %v492 = vadd.f32 %v407, %v491
        %v493 = vpop.f32.mrb[0].mxu0
        %v494 = vadd.f32 %v411, %v493
        %495 = vmatprep.mubr.f32.mxu0 %v295
        %496 = vmatmul.mubr.f32.gmra.mrb[0].mxu0 %v294
        %v497 = vpop.f32.mrb[0].mxu0
        %v498 = vadd.f32 %v407, %v497
        %v499 = vpop.f32.mrb[0].mxu0
        %v500 = vadd.f32 %v411, %v499
        %501 = vmatprep.mubr.f32.mxu0 %v297
        %502 = vmatmul.mubr.f32.gmra.mrb[0].mxu0 %v296
        %v503 = vpop.f32.mrb[0].mxu0
        %v504 = vadd.f32 %v407, %v503
        %v505 = vpop.f32.mrb[0].mxu0
        %v506 = vadd.f32 %v411, %v505
        %507 = vmatprep.mubr.f32.mxu0 %v299
        %508 = vmatmul.mubr.f32.gmra.mrb[0].mxu0 %v298
        %v509 = vpop.f32.mrb[0].mxu0
        %v510 = vadd.f32 %v407, %v509
        %v511 = vpop.f32.mrb[0].mxu0
        %v512 = vadd.f32 %v411, %v511
        %513 = vmatprep.mubr.f32.mxu0 %v301
        %514 = vmatmul.mubr.f32.gmra.mrb[0].mxu0 %v300
        %v515 = vpop.f32.mrb[0].mxu0
        %v516 = vadd.f32 %v407, %v515
        %v517 = vpop.f32.mrb[0].mxu0
        %v518 = vadd.f32 %v411, %v517
        %519 = vmatprep.mubr.f32.mxu0 %v303
        %520 = vmatmul.mubr.f32.gmra.mrb[0].mxu0 %v302
        %v521 = vpop.f32.mrb[0].mxu0
        %v522 = vadd.f32 %v407, %v521
        %v523 = vpop.f32.mrb[0].mxu0
        %v524 = vadd.f32 %v411, %v523
        %525 = vmatprep.mubr.f32.mxu0 %v305
        %526 = vmatmul.mubr.f32.gmra.mrb[0].mxu0 %v304
        %v527 = vpop.f32.mrb[0].mxu0
        %v528 = vadd.f32 %v407, %v527
        %v529 = vpop.f32.mrb[0].mxu0
        %v530 = vadd.f32 %v411, %v529
        %531 = vdwg.mxu0
        %532 = vmatprep.subr.mxu0 0.0
        %533 = vmatpush1.msra.mxu0 %v308
        %534 = vmatprep.subr.mxu0 0.0
        %535 = vmatpush1.msra.mxu0 %v311
        %536 = vmatprep.subr.mxu0 0.0
        %537 = vmatpush1.msra.mxu0 %v314
        %538 = vmatprep.subr.mxu0 0.0
        %539 = vmatpush1.msra.mxu0 %v317
        %540 = vmatprep.subr.mxu0 0.0
        %541 = vmatpush1.msra.mxu0 %v320
        %542 = vmatprep.subr.mxu0 0.0
        %543 = vmatpush1.msra.mxu0 %v323
        %544 = vmatprep.subr.mxu0 0.0
        %545 = vmatpush1.msra.mxu0 %v326
        %546 = vmatprep.subr.mxu0 0.0
        %547 = vmatpush1.msra.mxu0 %v329
        %548 = vmatprep.subr.mxu0 0.0
        %549 = vmatpush1.msra.mxu0 %v332
        %550 = vmatprep.subr.mxu0 0.0
        %551 = vmatpush1.msra.mxu0 %v335
        %552 = vmatprep.subr.mxu0 0.0
        %553 = vmatpush1.msra.mxu0 %v338
        %554 = vmatprep.subr.mxu0 0.0
        %555 = vmatpush1.msra.mxu0 %v341
        %556 = vmatprep.subr.mxu0 0.0
        %557 = vmatpush1.msra.mxu0 %v344
        %558 = vmatprep.subr.mxu0 0.0
        %559 = vmatpush1.msra.mxu0 %v347
        %560 = vmatprep.subr.mxu0 0.0
        %561 = vmatpush1.msra.mxu0 %v350
        %562 = vmatprep.subr.mxu0 0.0
        %563 = vmatpush1.msra.mxu0 %v353
        %564 = vmatprep.subr.mxu0 0.0
        %565 = vmatpush1.msra.mxu0 %v356
        %566 = vmatprep.subr.mxu0 0.0
        %567 = vmatpush1.msra.mxu0 %v359
        %568 = vmatprep.subr.mxu0 0.0
        %569 = vmatpush1.msra.mxu0 %v362
        %570 = vmatprep.subr.mxu0 0.0
        %571 = vmatpush1.msra.mxu0 %v365
        %572 = vmatprep.subr.mxu0 0.0
        %573 = vmatpush1.msra.mxu0 %v368
        %574 = vmatprep.subr.mxu0 0.0
        %575 = vmatpush1.msra.mxu0 %v371
        %576 = vmatprep.subr.mxu0 0.0
        %577 = vmatpush1.msra.mxu0 %v374
        %578 = vmatprep.subr.mxu0 0.0
        %579 = vmatpush1.msra.mxu0 %v377
        %580 = vmatprep.subr.mxu0 0.0
        %581 = vmatpush1.msra.mxu0 %v380
        %582 = vmatprep.subr.mxu0 0.0
        %583 = vmatpush1.msra.mxu0 %v383
        %584 = vmatprep.subr.mxu0 0.0
        %585 = vmatpush1.msra.mxu0 %v386
        %586 = vmatprep.subr.mxu0 0.0
        %587 = vmatpush1.msra.mxu0 %v389
        %588 = vmatprep.subr.mxu0 0.0
        %589 = vmatpush1.msra.mxu0 %v392
        %590 = vmatprep.subr.mxu0 0.0
        %591 = vmatpush1.msra.mxu0 %v395
        %592 = vmatprep.subr.mxu0 0.0
        %593 = vmatpush1.msra.mxu0 %v398
        %594 = vmatprep.subr.mxu0 0.0
        %595 = vmatpush1.msra.mxu0 %v401
        %596 = vmatprep.mubr.f32.mxu0 %v291
        %597 = vmatmul.mubr.f32.gmra.mrb[0].mxu0 %v290
        %v598 = vpop.f32.mrb[0].mxu0
        %v599 = vadd.f32 %v415, %v598
        %v600 = vpop.f32.mrb[0].mxu0
        %601 = vmatprep.mubr.f32.mxu0 %v293
        %602 = vmatmul.mubr.f32.gmra.mrb[0].mxu0 %v292
        %v603 = vpop.f32.mrb[0].mxu0
        %v604 = vadd.f32 %v415, %v603
        %v605 = vpop.f32.mrb[0].mxu0
        %606 = vmatprep.mubr.f32.mxu0 %v295
        %607 = vmatmul.mubr.f32.gmra.mrb[0].mxu0 %v294
        %v608 = vpop.f32.mrb[0].mxu0
        %v609 = vadd.f32 %v415, %v608
        %v610 = vpop.f32.mrb[0].mxu0
        %611 = vmatprep.mubr.f32.mxu0 %v297
        %612 = vmatmul.mubr.f32.gmra.mrb[0].mxu0 %v296
        %v613 = vpop.f32.mrb[0].mxu0
        %v614 = vadd.f32 %v415, %v613
        %v615 = vpop.f32.mrb[0].mxu0
        %616 = vmatprep.mubr.f32.mxu0 %v299
        %617 = vmatmul.mubr.f32.gmra.mrb[0].mxu0 %v298
        %v618 = vpop.f32.mrb[0].mxu0
        %v619 = vadd.f32 %v415, %v618
        %v620 = vpop.f32.mrb[0].mxu0
        %621 = vmatprep.mubr.f32.mxu0 %v301
        %622 = vmatmul.mubr.f32.gmra.mrb[0].mxu0 %v300
        %v623 = vpop.f32.mrb[0].mxu0
        %v624 = vadd.f32 %v415, %v623
        %v625 = vpop.f32.mrb[0].mxu0
        %626 = vmatprep.mubr.f32.mxu0 %v303
        %627 = vmatmul.mubr.f32.gmra.mrb[0].mxu0 %v302
        %v628 = vpop.f32.mrb[0].mxu0
        %v629 = vadd.f32 %v415, %v628
        %v630 = vpop.f32.mrb[0].mxu0
        %631 = vmatprep.mubr.f32.mxu0 %v305
        %632 = vmatmul.mubr.f32.gmra.mrb[0].mxu0 %v304
        %v633 = vpop.f32.mrb[0].mxu0
        %v634 = vadd.f32 %v415, %v633
        %v635 = vpop.f32.mrb[0].mxu0
        %636 = vdwg.mxu0
        %637 = vst [vmem:[#allocation2] sm:$0xff] %v486
        %638 = vst [vmem:[#allocation2 + $0x8] sm:$0xff] %v488
        %639 = vst [vmem:[#allocation2 + $0x10] sm:$0xff] %v599
        %640 = vst [vmem:[#allocation2 + $0x18] sm:$0xff] %v492
        %641 = vst [vmem:[#allocation2 + $0x20] sm:$0xff] %v494
        %642 = vst [vmem:[#allocation2 + $0x28] sm:$0xff] %v604
        %643 = vst [vmem:[#allocation2 + $0x30] sm:$0xff] %v498
        %644 = vst [vmem:[#allocation2 + $0x38] sm:$0xff] %v500
        %645 = vst [vmem:[#allocation2 + $0x40] sm:$0xff] %v609
        %646 = vst [vmem:[#allocation2 + $0x48] sm:$0xff] %v504
        %647 = vst [vmem:[#allocation2 + $0x50] sm:$0xff] %v506
        %648 = vst [vmem:[#allocation2 + $0x58] sm:$0xff] %v614
        %649 = vst [vmem:[#allocation2 + $0x60] sm:$0xff] %v510
        %650 = vst [vmem:[#allocation2 + $0x68] sm:$0xff] %v512
        %651 = vst [vmem:[#allocation2 + $0x70] sm:$0xff] %v619
        %652 = vst [vmem:[#allocation2 + $0x78] sm:$0xff] %v516
        %653 = vst [vmem:[#allocation2 + $0x80] sm:$0xff] %v518
        %654 = vst [vmem:[#allocation2 + $0x88] sm:$0xff] %v624
        %655 = vst [vmem:[#allocation2 + $0x90] sm:$0xff] %v522
        %656 = vst [vmem:[#allocation2 + $0x98] sm:$0xff] %v524
        %657 = vst [vmem:[#allocation2 + $0xa0] sm:$0xff] %v629
        %658 = vst [vmem:[#allocation2 + $0xa8] sm:$0xff] %v528
        %659 = vst [vmem:[#allocation2 + $0xb0] sm:$0xff] %v530
        %660 = vst [vmem:[#allocation2 + $0xb8] sm:$0xff] %v634
        %661 = vst [vmem:[#allocation3] sm:$0xff] 0.0
        %s662 = smul.u32 %s19, 56
        %s663 = sshra.s32 %s662, 3
        %s664 = sand.u32 %s662, 7
        %s665 = smul.u32 %s663, 3
        %s666 = smul.addr %s665, 8
        %s667 = scalar_lea.vmem [#allocation2], %s666
        %v668 = vld [vmem:[%s667] sm:$0xff]
        %v669 = vld [vmem:[%s667 + $0x8] sm:$0xff]
        %v670 = vld [vmem:[%s667 + $0x10] sm:$0xff]
        %v671 = vld [vmem:[#allocation3] sm:$0xff]
        %v672 = vld [vmem:[%s240] sm:$0xff]
        %v673 = vld [vmem:[%s240 + $0x8] sm:$0xff]
        %v674 = vld [vmem:[%s240 + $0x10] sm:$0xff]
        %v675 = vld [vmem:[%s240 + $0x18] sm:$0xff]
        %v676 = vld [vmem:[%s240 + $0x20] sm:$0xff]
        %v677 = vld [vmem:[%s240 + $0x28] sm:$0xff]
        %v678 = vld [vmem:[%s240 + $0x30] sm:$0xff]
        %v679 = vld [vmem:[%s240 + $0x38] sm:$0xff]
        %v680 = vld [vmem:[%s240 + $0x40] sm:$0xff]
        %v681 = vld [vmem:[%s240 + $0x48] sm:$0xff]
        %v682 = vld [vmem:[%s240 + $0x50] sm:$0xff]
        %v683 = vld [vmem:[%s240 + $0x58] sm:$0xff]
        %v684 = vld [vmem:[%s240 + $0x60] sm:$0xff]
        %v685 = vld [vmem:[%s240 + $0x68] sm:$0xff]
        %v686 = vld [vmem:[%s240 + $0x70] sm:$0xff]
        %v687 = vld [vmem:[%s240 + $0x78] sm:$0xff]
        %v688 = vld [vmem:[%s240 + $0x80] sm:$0xff]
        %v689 = vld [vmem:[%s240 + $0x88] sm:$0xff]
        %v690 = vld [vmem:[%s240 + $0x90] sm:$0xff]
        %v691 = vld [vmem:[%s240 + $0x98] sm:$0xff]
        %v692 = vld [vmem:[%s240 + $0xa0] sm:$0xff]
        %v693 = vld [vmem:[%s240 + $0xa8] sm:$0xff]
        %v694 = vld [vmem:[%s240 + $0xb0] sm:$0xff]
        %v695 = vld [vmem:[%s240 + $0xb8] sm:$0xff]
        %v696 = vld [vmem:[%s240 + $0xc0] sm:$0xff]
        %v697 = vld [vmem:[%s240 + $0xc8] sm:$0xff]
        %v698 = vld [vmem:[%s240 + $0xd0] sm:$0xff]
        %v699 = vld [vmem:[%s240 + $0xd8] sm:$0xff]
        %v700 = vld [vmem:[%s240 + $0xe0] sm:$0xff]
        %v701 = vld [vmem:[%s240 + $0xe8] sm:$0xff]
        %v702 = vld [vmem:[%s240 + $0xf0] sm:$0xff]
        %v703 = vld [vmem:[%s240 + $0xf8] sm:$0xff]
        %v704 = vld [vmem:[%s240 + $0x100] sm:$0xff]
        %v705 = vld [vmem:[%s240 + $0x108] sm:$0xff]
        %v706 = vld [vmem:[%s240 + $0x110] sm:$0xff]
        %v707 = vld [vmem:[%s240 + $0x118] sm:$0xff]
        %v708 = vld [vmem:[%s240 + $0x120] sm:$0xff]
        %v709 = vld [vmem:[%s240 + $0x128] sm:$0xff]
        %v710 = vld [vmem:[%s240 + $0x130] sm:$0xff]
        %v711 = vld [vmem:[%s240 + $0x138] sm:$0xff]
        %v712 = vld [vmem:[%s240 + $0x140] sm:$0xff]
        %v713 = vld [vmem:[%s240 + $0x148] sm:$0xff]
        %v714 = vld [vmem:[%s240 + $0x150] sm:$0xff]
        %v715 = vld [vmem:[%s240 + $0x158] sm:$0xff]
        %v716 = vld [vmem:[%s240 + $0x160] sm:$0xff]
        %v717 = vld [vmem:[%s240 + $0x168] sm:$0xff]
        %v718 = vld [vmem:[%s240 + $0x170] sm:$0xff]
        %v719 = vld [vmem:[%s240 + $0x178] sm:$0xff]
        %720 = vmatprep.subr.mxu0 %v673
        %721 = vmatpush1.msra.mxu0 %v672
        %722 = vmatprep.subr.mxu0 %v676
        %723 = vmatpush1.msra.mxu0 %v675
        %724 = vmatprep.subr.mxu0 %v679
        %725 = vmatpush1.msra.mxu0 %v678
        %726 = vmatprep.subr.mxu0 %v682
        %727 = vmatpush1.msra.mxu0 %v681
        %728 = vmatprep.subr.mxu0 %v685
        %729 = vmatpush1.msra.mxu0 %v684
        %730 = vmatprep.subr.mxu0 %v688
        %731 = vmatpush1.msra.mxu0 %v687
        %732 = vmatprep.subr.mxu0 %v691
        %733 = vmatpush1.msra.mxu0 %v690
        %734 = vmatprep.subr.mxu0 %v694
        %735 = vmatpush1.msra.mxu0 %v693
        %736 = vmatprep.subr.mxu0 %v697
        %737 = vmatpush1.msra.mxu0 %v696
        %738 = vmatprep.subr.mxu0 %v700
        %739 = vmatpush1.msra.mxu0 %v699
        %740 = vmatprep.subr.mxu0 %v703
        %741 = vmatpush1.msra.mxu0 %v702
        %742 = vmatprep.subr.mxu0 %v706
        %743 = vmatpush1.msra.mxu0 %v705
        %744 = vmatprep.subr.mxu0 %v709
        %745 = vmatpush1.msra.mxu0 %v708
        %746 = vmatprep.subr.mxu0 %v712
        %747 = vmatpush1.msra.mxu0 %v711
        %748 = vmatprep.subr.mxu0 %v715
        %749 = vmatpush1.msra.mxu0 %v714
        %750 = vmatprep.subr.mxu0 %v718
        %751 = vmatpush1.msra.mxu0 %v717
        %752 = vmatprep.subr.mxu0 0.0
        %753 = vmatpush1.msra.mxu0 0.0
        %754 = vmatprep.subr.mxu0 0.0
        %755 = vmatpush1.msra.mxu0 0.0
        %756 = vmatprep.subr.mxu0 0.0
        %757 = vmatpush1.msra.mxu0 0.0
        %758 = vmatprep.subr.mxu0 0.0
        %759 = vmatpush1.msra.mxu0 0.0
        %760 = vmatprep.subr.mxu0 0.0
        %761 = vmatpush1.msra.mxu0 0.0
        %762 = vmatprep.subr.mxu0 0.0
        %763 = vmatpush1.msra.mxu0 0.0
        %764 = vmatprep.subr.mxu0 0.0
        %765 = vmatpush1.msra.mxu0 0.0
        %766 = vmatprep.subr.mxu0 0.0
        %767 = vmatpush1.msra.mxu0 0.0
        %768 = vmatprep.subr.mxu0 0.0
        %769 = vmatpush1.msra.mxu0 0.0
        %770 = vmatprep.subr.mxu0 0.0
        %771 = vmatpush1.msra.mxu0 0.0
        %772 = vmatprep.subr.mxu0 0.0
        %773 = vmatpush1.msra.mxu0 0.0
        %774 = vmatprep.subr.mxu0 0.0
        %775 = vmatpush1.msra.mxu0 0.0
        %776 = vmatprep.subr.mxu0 0.0
        %777 = vmatpush1.msra.mxu0 0.0
        %778 = vmatprep.subr.mxu0 0.0
        %779 = vmatpush1.msra.mxu0 0.0
        %780 = vmatprep.subr.mxu0 0.0
        %781 = vmatpush1.msra.mxu0 0.0
        %782 = vmatprep.subr.mxu0 0.0
        %783 = vmatpush1.msra.mxu0 0.0
        %784 = vmatprep.mubr.f32.mxu0 0.0
        %785 = vmatmul.mubr.f32.gmra.mrb[0].mxu0 %v671
        %v786 = vpop.f32.mrb[0].mxu0
        %v787 = vadd.f32 0.0, %v786
        %v788 = vpop.f32.mrb[0].mxu0
        %v789 = vadd.f32 0.0, %v788
        %790 = vdwg.mxu0
        %791 = vmatprep.subr.mxu0 0.0
        %792 = vmatpush1.msra.mxu0 %v674
        %793 = vmatprep.subr.mxu0 0.0
        %794 = vmatpush1.msra.mxu0 %v677
        %795 = vmatprep.subr.mxu0 0.0
        %796 = vmatpush1.msra.mxu0 %v680
        %797 = vmatprep.subr.mxu0 0.0
        %798 = vmatpush1.msra.mxu0 %v683
        %799 = vmatprep.subr.mxu0 0.0
        %800 = vmatpush1.msra.mxu0 %v686
        %801 = vmatprep.subr.mxu0 0.0
        %802 = vmatpush1.msra.mxu0 %v689
        %803 = vmatprep.subr.mxu0 0.0
        %804 = vmatpush1.msra.mxu0 %v692
        %805 = vmatprep.subr.mxu0 0.0
        %806 = vmatpush1.msra.mxu0 %v695
        %807 = vmatprep.subr.mxu0 0.0
        %808 = vmatpush1.msra.mxu0 %v698
        %809 = vmatprep.subr.mxu0 0.0
        %810 = vmatpush1.msra.mxu0 %v701
        %811 = vmatprep.subr.mxu0 0.0
        %812 = vmatpush1.msra.mxu0 %v704
        %813 = vmatprep.subr.mxu0 0.0
        %814 = vmatpush1.msra.mxu0 %v707
        %815 = vmatprep.subr.mxu0 0.0
        %816 = vmatpush1.msra.mxu0 %v710
        %817 = vmatprep.subr.mxu0 0.0
        %818 = vmatpush1.msra.mxu0 %v713
        %819 = vmatprep.subr.mxu0 0.0
        %820 = vmatpush1.msra.mxu0 %v716
        %821 = vmatprep.subr.mxu0 0.0
        %822 = vmatpush1.msra.mxu0 %v719
        %823 = vmatprep.subr.mxu0 0.0
        %824 = vmatpush1.msra.mxu0 0.0
        %825 = vmatprep.subr.mxu0 0.0
        %826 = vmatpush1.msra.mxu0 0.0
        %827 = vmatprep.subr.mxu0 0.0
        %828 = vmatpush1.msra.mxu0 0.0
        %829 = vmatprep.subr.mxu0 0.0
        %830 = vmatpush1.msra.mxu0 0.0
        %831 = vmatprep.subr.mxu0 0.0
        %832 = vmatpush1.msra.mxu0 0.0
        %833 = vmatprep.subr.mxu0 0.0
        %834 = vmatpush1.msra.mxu0 0.0
        %835 = vmatprep.subr.mxu0 0.0
        %836 = vmatpush1.msra.mxu0 0.0
        %837 = vmatprep.subr.mxu0 0.0
        %838 = vmatpush1.msra.mxu0 0.0
        %839 = vmatprep.subr.mxu0 0.0
        %840 = vmatpush1.msra.mxu0 0.0
        %841 = vmatprep.subr.mxu0 0.0
        %842 = vmatpush1.msra.mxu0 0.0
        %843 = vmatprep.subr.mxu0 0.0
        %844 = vmatpush1.msra.mxu0 0.0
        %845 = vmatprep.subr.mxu0 0.0
        %846 = vmatpush1.msra.mxu0 0.0
        %847 = vmatprep.subr.mxu0 0.0
        %848 = vmatpush1.msra.mxu0 0.0
        %849 = vmatprep.subr.mxu0 0.0
        %850 = vmatpush1.msra.mxu0 0.0
        %851 = vmatprep.subr.mxu0 0.0
        %852 = vmatpush1.msra.mxu0 0.0
        %853 = vmatprep.subr.mxu0 0.0
        %854 = vmatpush1.msra.mxu0 0.0
        %855 = vmatprep.mubr.f32.mxu0 0.0
        %856 = vmatmul.mubr.f32.gmra.mrb[0].mxu0 %v671
        %v857 = vpop.f32.mrb[0].mxu0
        %v858 = vadd.f32 0.0, %v857
        %v859 = vpop.f32.mrb[0].mxu0
        %860 = vdwg.mxu0
        %v861 = vadd.f32 %v668, %v787
        %v862 = vxor.u32 %v861, 2147483648
        %v863 = vmul.f32 %v862, 1.442695
        %v864 = vpow.pop %v863
        %v865 = vadd.f32 %v864, 1.0
        %v866 = vrcp.pop %v865
        %v867 = vmul.f32 1.0, %v866
        %v868 = vadd.f32 %v669, %v789
        %v869 = vxor.u32 %v868, 2147483648
        %v870 = vmul.f32 %v869, 1.442695
        %v871 = vpow.pop %v870
        %v872 = vadd.f32 %v871, 1.0
        %v873 = vrcp.pop %v872
        %v874 = vmul.f32 1.0, %v873
        %v875 = vld [vmem:[%s289] sm:$0x1]
        %v877 = vlaneseq
        %v878 = vshrl.u32 %v877, 7
        %v879 = vsub.s32 0, %v878
        %v880 = vrot.slane %v875, %v879
        %v882 = vadd.f32 %v858, %v880
        %v883 = vmul.f32 %v867, %v882
        %v884 = vadd.f32 %v670, %v883
        %v885 = vtanh.pop %v884
        %v886 = vsub.f32 1.0, %v874
        %v887 = vmul.f32 %v886, %v885
        %v888 = vmul.f32 %v874, %v671
        %v889 = vadd.f32 %v887, %v888
        %890 = vst [vmem:[#allocation3] sm:$0xff] %v889
        %s891 = scalar_lea.vmem %s277, %s662 [#allocation6]
        %892 = vst [vmem:[%s891] sm:$0xff] %v889
        %s893 = smul.u32 %s19, 5
        %s894 = sadd.s32 %s893, 1
        %s895 = smul.u32 %s894, 8
        %s896 = sshra.s32 %s895, 3
        %s897 = sand.u32 %s895, 7
        %s898 = smul.u32 %s896, 3
        %s899 = smul.addr %s898, 8
        %s900 = scalar_lea.vmem [#allocation2], %s899
        %v901 = vld [vmem:[%s900] sm:$0xff]
        %v902 = vld [vmem:[%s900 + $0x8] sm:$0xff]
        %v903 = vld [vmem:[%s900 + $0x10] sm:$0xff]
        %v904 = vld [vmem:[#allocation3] sm:$0xff]
        %v905 = vld [vmem:[%s240] sm:$0xff]
        %v906 = vld [vmem:[%s240 + $0x8] sm:$0xff]
        %v907 = vld [vmem:[%s240 + $0x10] sm:$0xff]
        %v908 = vld [vmem:[%s240 + $0x18] sm:$0xff]
        %v909 = vld [vmem:[%s240 + $0x20] sm:$0xff]
        %v910 = vld [vmem:[%s240 + $0x28] sm:$0xff]
        %v911 = vld [vmem:[%s240 + $0x30] sm:$0xff]
        %v912 = vld [vmem:[%s240 + $0x38] sm:$0xff]
        %v913 = vld [vmem:[%s240 + $0x40] sm:$0xff]
        %v914 = vld [vmem:[%s240 + $0x48] sm:$0xff]
        %v915 = vld [vmem:[%s240 + $0x50] sm:$0xff]
        %v916 = vld [vmem:[%s240 + $0x58] sm:$0xff]
        %v917 = vld [vmem:[%s240 + $0x60] sm:$0xff]
        %v918 = vld [vmem:[%s240 + $0x68] sm:$0xff]
        %v919 = vld [vmem:[%s240 + $0x70] sm:$0xff]
        %v920 = vld [vmem:[%s240 + $0x78] sm:$0xff]
        %v921 = vld [vmem:[%s240 + $0x80] sm:$0xff]
        %v922 = vld [vmem:[%s240 + $0x88] sm:$0xff]
        %v923 = vld [vmem:[%s240 + $0x90] sm:$0xff]
        %v924 = vld [vmem:[%s240 + $0x98] sm:$0xff]
        %v925 = vld [vmem:[%s240 + $0xa0] sm:$0xff]
        %v926 = vld [vmem:[%s240 + $0xa8] sm:$0xff]
        %v927 = vld [vmem:[%s240 + $0xb0] sm:$0xff]
        %v928 = vld [vmem:[%s240 + $0xb8] sm:$0xff]
        %v929 = vld [vmem:[%s240 + $0xc0] sm:$0xff]
        %v930 = vld [vmem:[%s240 + $0xc8] sm:$0xff]
        %v931 = vld [vmem:[%s240 + $0xd0] sm:$0xff]
        %v932 = vld [vmem:[%s240 + $0xd8] sm:$0xff]
        %v933 = vld [vmem:[%s240 + $0xe0] sm:$0xff]
        %v934 = vld [vmem:[%s240 + $0xe8] sm:$0xff]
        %v935 = vld [vmem:[%s240 + $0xf0] sm:$0xff]
        %v936 = vld [vmem:[%s240 + $0xf8] sm:$0xff]
        %v937 = vld [vmem:[%s240 + $0x100] sm:$0xff]
        %v938 = vld [vmem:[%s240 + $0x108] sm:$0xff]
        %v939 = vld [vmem:[%s240 + $0x110] sm:$0xff]
        %v940 = vld [vmem:[%s240 + $0x118] sm:$0xff]
        %v941 = vld [vmem:[%s240 + $0x120] sm:$0xff]
        %v942 = vld [vmem:[%s240 + $0x128] sm:$0xff]
        %v943 = vld [vmem:[%s240 + $0x130] sm:$0xff]
        %v944 = vld [vmem:[%s240 + $0x138] sm:$0xff]
        %v945 = vld [vmem:[%s240 + $0x140] sm:$0xff]
        %v946 = vld [vmem:[%s240 + $0x148] sm:$0xff]
        %v947 = vld [vmem:[%s240 + $0x150] sm:$0xff]
        %v948 = vld [vmem:[%s240 + $0x158] sm:$0xff]
        %v949 = vld [vmem:[%s240 + $0x160] sm:$0xff]
        %v950 = vld [vmem:[%s240 + $0x168] sm:$0xff]
        %v951 = vld [vmem:[%s240 + $0x170] sm:$0xff]
        %v952 = vld [vmem:[%s240 + $0x178] sm:$0xff]
        %953 = vmatprep.subr.mxu0 %v906
        %954 = vmatpush1.msra.mxu0 %v905
        %955 = vmatprep.subr.mxu0 %v909
        %956 = vmatpush1.msra.mxu0 %v908
        %957 = vmatprep.subr.mxu0 %v912
        %958 = vmatpush1.msra.mxu0 %v911
        %959 = vmatprep.subr.mxu0 %v915
        %960 = vmatpush1.msra.mxu0 %v914
        %961 = vmatprep.subr.mxu0 %v918
        %962 = vmatpush1.msra.mxu0 %v917
        %963 = vmatprep.subr.mxu0 %v921
        %964 = vmatpush1.msra.mxu0 %v920
        %965 = vmatprep.subr.mxu0 %v924
        %966 = vmatpush1.msra.mxu0 %v923
        %967 = vmatprep.subr.mxu0 %v927
        %968 = vmatpush1.msra.mxu0 %v926
        %969 = vmatprep.subr.mxu0 %v930
        %970 = vmatpush1.msra.mxu0 %v929
        %971 = vmatprep.subr.mxu0 %v933
        %972 = vmatpush1.msra.mxu0 %v932
        %973 = vmatprep.subr.mxu0 %v936
        %974 = vmatpush1.msra.mxu0 %v935
        %975 = vmatprep.subr.mxu0 %v939
        %976 = vmatpush1.msra.mxu0 %v938
        %977 = vmatprep.subr.mxu0 %v942
        %978 = vmatpush1.msra.mxu0 %v941
        %979 = vmatprep.subr.mxu0 %v945
        %980 = vmatpush1.msra.mxu0 %v944
        %981 = vmatprep.subr.mxu0 %v948
        %982 = vmatpush1.msra.mxu0 %v947
        %983 = vmatprep.subr.mxu0 %v951
        %984 = vmatpush1.msra.mxu0 %v950
        %985 = vmatprep.subr.mxu0 0.0
        %986 = vmatpush1.msra.mxu0 0.0
        %987 = vmatprep.subr.mxu0 0.0
        %988 = vmatpush1.msra.mxu0 0.0
        %989 = vmatprep.subr.mxu0 0.0
        %990 = vmatpush1.msra.mxu0 0.0
        %991 = vmatprep.subr.mxu0 0.0
        %992 = vmatpush1.msra.mxu0 0.0
        %993 = vmatprep.subr.mxu0 0.0
        %994 = vmatpush1.msra.mxu0 0.0
        %995 = vmatprep.subr.mxu0 0.0
        %996 = vmatpush1.msra.mxu0 0.0
        %997 = vmatprep.subr.mxu0 0.0
        %998 = vmatpush1.msra.mxu0 0.0
        %999 = vmatprep.subr.mxu0 0.0
        %1000 = vmatpush1.msra.mxu0 0.0
        %1001 = vmatprep.subr.mxu0 0.0
        %1002 = vmatpush1.msra.mxu0 0.0
        %1003 = vmatprep.subr.mxu0 0.0
        %1004 = vmatpush1.msra.mxu0 0.0
        %1005 = vmatprep.subr.mxu0 0.0
        %1006 = vmatpush1.msra.mxu0 0.0
        %1007 = vmatprep.subr.mxu0 0.0
        %1008 = vmatpush1.msra.mxu0 0.0
        %1009 = vmatprep.subr.mxu0 0.0
        %1010 = vmatpush1.msra.mxu0 0.0
        %1011 = vmatprep.subr.mxu0 0.0
        %1012 = vmatpush1.msra.mxu0 0.0
        %1013 = vmatprep.subr.mxu0 0.0
        %1014 = vmatpush1.msra.mxu0 0.0
        %1015 = vmatprep.subr.mxu0 0.0
        %1016 = vmatpush1.msra.mxu0 0.0
        %1017 = vmatprep.mubr.f32.mxu0 0.0
        %1018 = vmatmul.mubr.f32.gmra.mrb[0].mxu0 %v904
        %v1019 = vpop.f32.mrb[0].mxu0
        %v1020 = vadd.f32 0.0, %v1019
        %v1021 = vpop.f32.mrb[0].mxu0
        %v1022 = vadd.f32 0.0, %v1021
        %1023 = vdwg.mxu0
        %1024 = vmatprep.subr.mxu0 0.0
        %1025 = vmatpush1.msra.mxu0 %v907
        %1026 = vmatprep.subr.mxu0 0.0
        %1027 = vmatpush1.msra.mxu0 %v910
        %1028 = vmatprep.subr.mxu0 0.0
        %1029 = vmatpush1.msra.mxu0 %v913
        %1030 = vmatprep.subr.mxu0 0.0
        %1031 = vmatpush1.msra.mxu0 %v916
        %1032 = vmatprep.subr.mxu0 0.0
        %1033 = vmatpush1.msra.mxu0 %v919
        %1034 = vmatprep.subr.mxu0 0.0
        %1035 = vmatpush1.msra.mxu0 %v922
        %1036 = vmatprep.subr.mxu0 0.0
        %1037 = vmatpush1.msra.mxu0 %v925
        %1038 = vmatprep.subr.mxu0 0.0
        %1039 = vmatpush1.msra.mxu0 %v928
        %1040 = vmatprep.subr.mxu0 0.0
        %1041 = vmatpush1.msra.mxu0 %v931
        %1042 = vmatprep.subr.mxu0 0.0
        %1043 = vmatpush1.msra.mxu0 %v934
        %1044 = vmatprep.subr.mxu0 0.0
        %1045 = vmatpush1.msra.mxu0 %v937
        %1046 = vmatprep.subr.mxu0 0.0
        %1047 = vmatpush1.msra.mxu0 %v940
        %1048 = vmatprep.subr.mxu0 0.0
        %1049 = vmatpush1.msra.mxu0 %v943
        %1050 = vmatprep.subr.mxu0 0.0
        %1051 = vmatpush1.msra.mxu0 %v946
        %1052 = vmatprep.subr.mxu0 0.0
        %1053 = vmatpush1.msra.mxu0 %v949
        %1054 = vmatprep.subr.mxu0 0.0
        %1055 = vmatpush1.msra.mxu0 %v952
        %1056 = vmatprep.subr.mxu0 0.0
        %1057 = vmatpush1.msra.mxu0 0.0
        %1058 = vmatprep.subr.mxu0 0.0
        %1059 = vmatpush1.msra.mxu0 0.0
        %1060 = vmatprep.subr.mxu0 0.0
        %1061 = vmatpush1.msra.mxu0 0.0
        %1062 = vmatprep.subr.mxu0 0.0
        %1063 = vmatpush1.msra.mxu0 0.0
        %1064 = vmatprep.subr.mxu0 0.0
        %1065 = vmatpush1.msra.mxu0 0.0
        %1066 = vmatprep.subr.mxu0 0.0
        %1067 = vmatpush1.msra.mxu0 0.0
        %1068 = vmatprep.subr.mxu0 0.0
        %1069 = vmatpush1.msra.mxu0 0.0
        %1070 = vmatprep.subr.mxu0 0.0
        %1071 = vmatpush1.msra.mxu0 0.0
        %1072 = vmatprep.subr.mxu0 0.0
        %1073 = vmatpush1.msra.mxu0 0.0
        %1074 = vmatprep.subr.mxu0 0.0
        %1075 = vmatpush1.msra.mxu0 0.0
        %1076 = vmatprep.subr.mxu0 0.0
        %1077 = vmatpush1.msra.mxu0 0.0
        %1078 = vmatprep.subr.mxu0 0.0
        %1079 = vmatpush1.msra.mxu0 0.0
        %1080 = vmatprep.subr.mxu0 0.0
        %1081 = vmatpush1.msra.mxu0 0.0
        %1082 = vmatprep.subr.mxu0 0.0
        %1083 = vmatpush1.msra.mxu0 0.0
        %1084 = vmatprep.subr.mxu0 0.0
        %1085 = vmatpush1.msra.mxu0 0.0
        %1086 = vmatprep.subr.mxu0 0.0
        %1087 = vmatpush1.msra.mxu0 0.0
        %1088 = vmatprep.mubr.f32.mxu0 0.0
        %1089 = vmatmul.mubr.f32.gmra.mrb[0].mxu0 %v904
        %v1090 = vpop.f32.mrb[0].mxu0
        %v1091 = vadd.f32 0.0, %v1090
        %v1092 = vpop.f32.mrb[0].mxu0
        %1093 = vdwg.mxu0
        %v1094 = vadd.f32 %v901, %v1020
        %v1095 = vxor.u32 %v1094, 2147483648
        %v1096 = vmul.f32 %v1095, 1.442695
        %v1097 = vpow.pop %v1096
        %v1098 = vadd.f32 %v1097, 1.0
        %v1099 = vrcp.pop %v1098
        %v1100 = vmul.f32 1.0, %v1099
        %v1101 = vadd.f32 %v902, %v1022
        %v1102 = vxor.u32 %v1101, 2147483648
        %v1103 = vmul.f32 %v1102, 1.442695
        %v1104 = vpow.pop %v1103
        %v1105 = vadd.f32 %v1104, 1.0
        %v1106 = vrcp.pop %v1105
        %v1107 = vmul.f32 1.0, %v1106
        %v1108 = vld [vmem:[%s289] sm:$0x1]
        %v1110 = vlaneseq
        %v1111 = vshrl.u32 %v1110, 7
        %v1112 = vsub.s32 0, %v1111
        %v1113 = vrot.slane %v1108, %v1112
        %v1115 = vadd.f32 %v1091, %v1113
        %v1116 = vmul.f32 %v1100, %v1115
        %v1117 = vadd.f32 %v903, %v1116
        %v1118 = vtanh.pop %v1117
        %v1119 = vsub.f32 1.0, %v1107
        %v1120 = vmul.f32 %v1119, %v1118
        %v1121 = vmul.f32 %v1107, %v904
        %v1122 = vadd.f32 %v1120, %v1121
        %1123 = vst [vmem:[#allocation3] sm:$0xff] %v1122
        %s1124 = scalar_lea.vmem %s277, %s895 [#allocation6]
        %1125 = vst [vmem:[%s1124] sm:$0xff] %v1122
        %s1126 = smul.u32 %s19, 3
        %s1127 = sadd.s32 %s1126, 2
        %s1128 = smul.u32 %s1127, 8
        %s1129 = sshra.s32 %s1128, 3
        %s1130 = sand.u32 %s1128, 7
        %s1131 = smul.u32 %s1129, 3
        %s1132 = smul.addr %s1131, 8
        %s1133 = scalar_lea.vmem [#allocation2], %s1132
        %v1134 = vld [vmem:[%s1133] sm:$0xff]
        %v1135 = vld [vmem:[%s1133 + $0x8] sm:$0xff]
        %v1136 = vld [vmem:[%s1133 + $0x10] sm:$0xff]
        %v1137 = vld [vmem:[#allocation3] sm:$0xff]
        %v1138 = vld [vmem:[%s240] sm:$0xff]
        %v1139 = vld [vmem:[%s240 + $0x8] sm:$0xff]
        %v1140 = vld [vmem:[%s240 + $0x10] sm:$0xff]
        %v1141 = vld [vmem:[%s240 + $0x18] sm:$0xff]
        %v1142 = vld [vmem:[%s240 + $0x20] sm:$0xff]
        %v1143 = vld [vmem:[%s240 + $0x28] sm:$0xff]
        %v1144 = vld [vmem:[%s240 + $0x30] sm:$0xff]
        %v1145 = vld [vmem:[%s240 + $0x38] sm:$0xff]
        %v1146 = vld [vmem:[%s240 + $0x40] sm:$0xff]
        %v1147 = vld [vmem:[%s240 + $0x48] sm:$0xff]
        %v1148 = vld [vmem:[%s240 + $0x50] sm:$0xff]
        %v1149 = vld [vmem:[%s240 + $0x58] sm:$0xff]
        %v1150 = vld [vmem:[%s240 + $0x60] sm:$0xff]
        %v1151 = vld [vmem:[%s240 + $0x68] sm:$0xff]
        %v1152 = vld [vmem:[%s240 + $0x70] sm:$0xff]
        %v1153 = vld [vmem:[%s240 + $0x78] sm:$0xff]
        %v1154 = vld [vmem:[%s240 + $0x80] sm:$0xff]
        %v1155 = vld [vmem:[%s240 + $0x88] sm:$0xff]
        %v1156 = vld [vmem:[%s240 + $0x90] sm:$0xff]
        %v1157 = vld [vmem:[%s240 + $0x98] sm:$0xff]
        %v1158 = vld [vmem:[%s240 + $0xa0] sm:$0xff]
        %v1159 = vld [vmem:[%s240 + $0xa8] sm:$0xff]
        %v1160 = vld [vmem:[%s240 + $0xb0] sm:$0xff]
        %v1161 = vld [vmem:[%s240 + $0xb8] sm:$0xff]
        %v1162 = vld [vmem:[%s240 + $0xc0] sm:$0xff]
        %v1163 = vld [vmem:[%s240 + $0xc8] sm:$0xff]
        %v1164 = vld [vmem:[%s240 + $0xd0] sm:$0xff]
        %v1165 = vld [vmem:[%s240 + $0xd8] sm:$0xff]
        %v1166 = vld [vmem:[%s240 + $0xe0] sm:$0xff]
        %v1167 = vld [vmem:[%s240 + $0xe8] sm:$0xff]
        %v1168 = vld [vmem:[%s240 + $0xf0] sm:$0xff]
        %v1169 = vld [vmem:[%s240 + $0xf8] sm:$0xff]
        %v1170 = vld [vmem:[%s240 + $0x100] sm:$0xff]
        %v1171 = vld [vmem:[%s240 + $0x108] sm:$0xff]
        %v1172 = vld [vmem:[%s240 + $0x110] sm:$0xff]
        %v1173 = vld [vmem:[%s240 + $0x118] sm:$0xff]
        %v1174 = vld [vmem:[%s240 + $0x120] sm:$0xff]
        %v1175 = vld [vmem:[%s240 + $0x128] sm:$0xff]
        %v1176 = vld [vmem:[%s240 + $0x130] sm:$0xff]
        %v1177 = vld [vmem:[%s240 + $0x138] sm:$0xff]
        %v1178 = vld [vmem:[%s240 + $0x140] sm:$0xff]
        %v1179 = vld [vmem:[%s240 + $0x148] sm:$0xff]
        %v1180 = vld [vmem:[%s240 + $0x150] sm:$0xff]
        %v1181 = vld [vmem:[%s240 + $0x158] sm:$0xff]
        %v1182 = vld [vmem:[%s240 + $0x160] sm:$0xff]
        %v1183 = vld [vmem:[%s240 + $0x168] sm:$0xff]
        %v1184 = vld [vmem:[%s240 + $0x170] sm:$0xff]
        %v1185 = vld [vmem:[%s240 + $0x178] sm:$0xff]
        %1186 = vmatprep.subr.mxu0 %v1139
        %1187 = vmatpush1.msra.mxu0 %v1138
        %1188 = vmatprep.subr.mxu0 %v1142
        %1189 = vmatpush1.msra.mxu0 %v1141
        %1190 = vmatprep.subr.mxu0 %v1145
        %1191 = vmatpush1.msra.mxu0 %v1144
        %1192 = vmatprep.subr.mxu0 %v1148
        %1193 = vmatpush1.msra.mxu0 %v1147
        %1194 = vmatprep.subr.mxu0 %v1151
        %1195 = vmatpush1.msra.mxu0 %v1150
        %1196 = vmatprep.subr.mxu0 %v1154
        %1197 = vmatpush1.msra.mxu0 %v1153
        %1198 = vmatprep.subr.mxu0 %v1157
        %1199 = vmatpush1.msra.mxu0 %v1156
        %1200 = vmatprep.subr.mxu0 %v1160
        %1201 = vmatpush1.msra.mxu0 %v1159
        %1202 = vmatprep.subr.mxu0 %v1163
        %1203 = vmatpush1.msra.mxu0 %v1162
        %1204 = vmatprep.subr.mxu0 %v1166
        %1205 = vmatpush1.msra.mxu0 %v1165
        %1206 = vmatprep.subr.mxu0 %v1169
        %1207 = vmatpush1.msra.mxu0 %v1168
        %1208 = vmatprep.subr.mxu0 %v1172
        %1209 = vmatpush1.msra.mxu0 %v1171
        %1210 = vmatprep.subr.mxu0 %v1175
        %1211 = vmatpush1.msra.mxu0 %v1174
        %1212 = vmatprep.subr.mxu0 %v1178
        %1213 = vmatpush1.msra.mxu0 %v1177
        %1214 = vmatprep.subr.mxu0 %v1181
        %1215 = vmatpush1.msra.mxu0 %v1180
        %1216 = vmatprep.subr.mxu0 %v1184
        %1217 = vmatpush1.msra.mxu0 %v1183
        %1218 = vmatprep.subr.mxu0 0.0
        %1219 = vmatpush1.msra.mxu0 0.0
        %1220 = vmatprep.subr.mxu0 0.0
        %1221 = vmatpush1.msra.mxu0 0.0
        %1222 = vmatprep.subr.mxu0 0.0
        %1223 = vmatpush1.msra.mxu0 0.0
        %1224 = vmatprep.subr.mxu0 0.0
        %1225 = vmatpush1.msra.mxu0 0.0
        %1226 = vmatprep.subr.mxu0 0.0
        %1227 = vmatpush1.msra.mxu0 0.0
        %1228 = vmatprep.subr.mxu0 0.0
        %1229 = vmatpush1.msra.mxu0 0.0
        %1230 = vmatprep.subr.mxu0 0.0
        %1231 = vmatpush1.msra.mxu0 0.0
        %1232 = vmatprep.subr.mxu0 0.0
        %1233 = vmatpush1.msra.mxu0 0.0
        %1234 = vmatprep.subr.mxu0 0.0
        %1235 = vmatpush1.msra.mxu0 0.0
        %1236 = vmatprep.subr.mxu0 0.0
        %1237 = vmatpush1.msra.mxu0 0.0
        %1238 = vmatprep.subr.mxu0 0.0
        %1239 = vmatpush1.msra.mxu0 0.0
        %1240 = vmatprep.subr.mxu0 0.0
        %1241 = vmatpush1.msra.mxu0 0.0
        %1242 = vmatprep.subr.mxu0 0.0
        %1243 = vmatpush1.msra.mxu0 0.0
        %1244 = vmatprep.subr.mxu0 0.0
        %1245 = vmatpush1.msra.mxu0 0.0
        %1246 = vmatprep.subr.mxu0 0.0
        %1247 = vmatpush1.msra.mxu0 0.0
        %1248 = vmatprep.subr.mxu0 0.0
        %1249 = vmatpush1.msra.mxu0 0.0
        %1250 = vmatprep.mubr.f32.mxu0 0.0
        %1251 = vmatmul.mubr.f32.gmra.mrb[0].mxu0 %v1137
        %v1252 = vpop.f32.mrb[0].mxu0
        %v1253 = vadd.f32 0.0, %v1252
        %v1254 = vpop.f32.mrb[0].mxu0
        %v1255 = vadd.f32 0.0, %v1254
        %1256 = vdwg.mxu0
        %1257 = vmatprep.subr.mxu0 0.0
        %1258 = vmatpush1.msra.mxu0 %v1140
        %1259 = vmatprep.subr.mxu0 0.0
        %1260 = vmatpush1.msra.mxu0 %v1143
        %1261 = vmatprep.subr.mxu0 0.0
        %1262 = vmatpush1.msra.mxu0 %v1146
        %1263 = vmatprep.subr.mxu0 0.0
        %1264 = vmatpush1.msra.mxu0 %v1149
        %1265 = vmatprep.subr.mxu0 0.0
        %1266 = vmatpush1.msra.mxu0 %v1152
        %1267 = vmatprep.subr.mxu0 0.0
        %1268 = vmatpush1.msra.mxu0 %v1155
        %1269 = vmatprep.subr.mxu0 0.0
        %1270 = vmatpush1.msra.mxu0 %v1158
        %1271 = vmatprep.subr.mxu0 0.0
        %1272 = vmatpush1.msra.mxu0 %v1161
        %1273 = vmatprep.subr.mxu0 0.0
        %1274 = vmatpush1.msra.mxu0 %v1164
        %1275 = vmatprep.subr.mxu0 0.0
        %1276 = vmatpush1.msra.mxu0 %v1167
        %1277 = vmatprep.subr.mxu0 0.0
        %1278 = vmatpush1.msra.mxu0 %v1170
        %1279 = vmatprep.subr.mxu0 0.0
        %1280 = vmatpush1.msra.mxu0 %v1173
        %1281 = vmatprep.subr.mxu0 0.0
        %1282 = vmatpush1.msra.mxu0 %v1176
        %1283 = vmatprep.subr.mxu0 0.0
        %1284 = vmatpush1.msra.mxu0 %v1179
        %1285 = vmatprep.subr.mxu0 0.0
        %1286 = vmatpush1.msra.mxu0 %v1182
        %1287 = vmatprep.subr.mxu0 0.0
        %1288 = vmatpush1.msra.mxu0 %v1185
        %1289 = vmatprep.subr.mxu0 0.0
        %1290 = vmatpush1.msra.mxu0 0.0
        %1291 = vmatprep.subr.mxu0 0.0
        %1292 = vmatpush1.msra.mxu0 0.0
        %1293 = vmatprep.subr.mxu0 0.0
        %1294 = vmatpush1.msra.mxu0 0.0
        %1295 = vmatprep.subr.mxu0 0.0
        %1296 = vmatpush1.msra.mxu0 0.0
        %1297 = vmatprep.subr.mxu0 0.0
        %1298 = vmatpush1.msra.mxu0 0.0
        %1299 = vmatprep.subr.mxu0 0.0
        %1300 = vmatpush1.msra.mxu0 0.0
        %1301 = vmatprep.subr.mxu0 0.0
        %1302 = vmatpush1.msra.mxu0 0.0
        %1303 = vmatprep.subr.mxu0 0.0
        %1304 = vmatpush1.msra.mxu0 0.0
        %1305 = vmatprep.subr.mxu0 0.0
        %1306 = vmatpush1.msra.mxu0 0.0
        %1307 = vmatprep.subr.mxu0 0.0
        %1308 = vmatpush1.msra.mxu0 0.0
        %1309 = vmatprep.subr.mxu0 0.0
        %1310 = vmatpush1.msra.mxu0 0.0
        %1311 = vmatprep.subr.mxu0 0.0
        %1312 = vmatpush1.msra.mxu0 0.0
        %1313 = vmatprep.subr.mxu0 0.0
        %1314 = vmatpush1.msra.mxu0 0.0
        %1315 = vmatprep.subr.mxu0 0.0
        %1316 = vmatpush1.msra.mxu0 0.0
        %1317 = vmatprep.subr.mxu0 0.0
        %1318 = vmatpush1.msra.mxu0 0.0
        %1319 = vmatprep.subr.mxu0 0.0
        %1320 = vmatpush1.msra.mxu0 0.0
        %1321 = vmatprep.mubr.f32.mxu0 0.0
        %1322 = vmatmul.mubr.f32.gmra.mrb[0].mxu0 %v1137
        %v1323 = vpop.f32.mrb[0].mxu0
        %v1324 = vadd.f32 0.0, %v1323
        %v1325 = vpop.f32.mrb[0].mxu0
        %1326 = vdwg.mxu0
        %v1327 = vadd.f32 %v1134, %v1253
        %v1328 = vxor.u32 %v1327, 2147483648
        %v1329 = vmul.f32 %v1328, 1.442695
        %v1330 = vpow.pop %v1329
        %v1331 = vadd.f32 %v1330, 1.0
        %v1332 = vrcp.pop %v1331
        %v1333 = vmul.f32 1.0, %v1332
        %v1334 = vadd.f32 %v1135, %v1255
        %v1335 = vxor.u32 %v1334, 2147483648
        %v1336 = vmul.f32 %v1335, 1.442695
        %v1337 = vpow.pop %v1336
        %v1338 = vadd.f32 %v1337, 1.0
        %v1339 = vrcp.pop %v1338
        %v1340 = vmul.f32 1.0, %v1339
        %v1341 = vld [vmem:[%s289] sm:$0x1]
        %v1343 = vlaneseq
        %v1344 = vshrl.u32 %v1343, 7
        %v1345 = vsub.s32 0, %v1344
        %v1346 = vrot.slane %v1341, %v1345
        %v1348 = vadd.f32 %v1324, %v1346
        %v1349 = vmul.f32 %v1333, %v1348
        %v1350 = vadd.f32 %v1136, %v1349
        %v1351 = vtanh.pop %v1350
        %v1352 = vsub.f32 1.0, %v1340
        %v1353 = vmul.f32 %v1352, %v1351
        %v1354 = vmul.f32 %v1340, %v1137
        %v1355 = vadd.f32 %v1353, %v1354
        %1356 = vst [vmem:[#allocation3] sm:$0xff] %v1355
        %s1357 = scalar_lea.vmem %s277, %s1128 [#allocation6]
        %1358 = vst [vmem:[%s1357] sm:$0xff] %v1355
        %s1359 = sadd.s32 %s19, 3
        %s1360 = smul.u32 %s1359, 8
        %s1361 = sshra.s32 %s1360, 3
        %s1362 = sand.u32 %s1360, 7
        %s1363 = smul.u32 %s1361, 3
        %s1364 = smul.addr %s1363, 8
        %s1365 = scalar_lea.vmem [#allocation2], %s1364
        %v1366 = vld [vmem:[%s1365] sm:$0xff]
        %v1367 = vld [vmem:[%s1365 + $0x8] sm:$0xff]
        %v1368 = vld [vmem:[%s1365 + $0x10] sm:$0xff]
        %v1369 = vld [vmem:[#allocation3] sm:$0xff]
        %v1370 = vld [vmem:[%s240] sm:$0xff]
        %v1371 = vld [vmem:[%s240 + $0x8] sm:$0xff]
        %v1372 = vld [vmem:[%s240 + $0x10] sm:$0xff]
        %v1373 = vld [vmem:[%s240 + $0x18] sm:$0xff]
        %v1374 = vld [vmem:[%s240 + $0x20] sm:$0xff]
        %v1375 = vld [vmem:[%s240 + $0x28] sm:$0xff]
        %v1376 = vld [vmem:[%s240 + $0x30] sm:$0xff]
        %v1377 = vld [vmem:[%s240 + $0x38] sm:$0xff]
        %v1378 = vld [vmem:[%s240 + $0x40] sm:$0xff]
        %v1379 = vld [vmem:[%s240 + $0x48] sm:$0xff]
        %v1380 = vld [vmem:[%s240 + $0x50] sm:$0xff]
        %v1381 = vld [vmem:[%s240 + $0x58] sm:$0xff]
        %v1382 = vld [vmem:[%s240 + $0x60] sm:$0xff]
        %v1383 = vld [vmem:[%s240 + $0x68] sm:$0xff]
        %v1384 = vld [vmem:[%s240 + $0x70] sm:$0xff]
        %v1385 = vld [vmem:[%s240 + $0x78] sm:$0xff]
        %v1386 = vld [vmem:[%s240 + $0x80] sm:$0xff]
        %v1387 = vld [vmem:[%s240 + $0x88] sm:$0xff]
        %v1388 = vld [vmem:[%s240 + $0x90] sm:$0xff]
        %v1389 = vld [vmem:[%s240 + $0x98] sm:$0xff]
        %v1390 = vld [vmem:[%s240 + $0xa0] sm:$0xff]
        %v1391 = vld [vmem:[%s240 + $0xa8] sm:$0xff]
        %v1392 = vld [vmem:[%s240 + $0xb0] sm:$0xff]
        %v1393 = vld [vmem:[%s240 + $0xb8] sm:$0xff]
        %v1394 = vld [vmem:[%s240 + $0xc0] sm:$0xff]
        %v1395 = vld [vmem:[%s240 + $0xc8] sm:$0xff]
        %v1396 = vld [vmem:[%s240 + $0xd0] sm:$0xff]
        %v1397 = vld [vmem:[%s240 + $0xd8] sm:$0xff]
        %v1398 = vld [vmem:[%s240 + $0xe0] sm:$0xff]
        %v1399 = vld [vmem:[%s240 + $0xe8] sm:$0xff]
        %v1400 = vld [vmem:[%s240 + $0xf0] sm:$0xff]
        %v1401 = vld [vmem:[%s240 + $0xf8] sm:$0xff]
        %v1402 = vld [vmem:[%s240 + $0x100] sm:$0xff]
        %v1403 = vld [vmem:[%s240 + $0x108] sm:$0xff]
        %v1404 = vld [vmem:[%s240 + $0x110] sm:$0xff]
        %v1405 = vld [vmem:[%s240 + $0x118] sm:$0xff]
        %v1406 = vld [vmem:[%s240 + $0x120] sm:$0xff]
        %v1407 = vld [vmem:[%s240 + $0x128] sm:$0xff]
        %v1408 = vld [vmem:[%s240 + $0x130] sm:$0xff]
        %v1409 = vld [vmem:[%s240 + $0x138] sm:$0xff]
        %v1410 = vld [vmem:[%s240 + $0x140] sm:$0xff]
        %v1411 = vld [vmem:[%s240 + $0x148] sm:$0xff]
        %v1412 = vld [vmem:[%s240 + $0x150] sm:$0xff]
        %v1413 = vld [vmem:[%s240 + $0x158] sm:$0xff]
        %v1414 = vld [vmem:[%s240 + $0x160] sm:$0xff]
        %v1415 = vld [vmem:[%s240 + $0x168] sm:$0xff]
        %v1416 = vld [vmem:[%s240 + $0x170] sm:$0xff]
        %v1417 = vld [vmem:[%s240 + $0x178] sm:$0xff]
        %1418 = vmatprep.subr.mxu0 %v1371
        %1419 = vmatpush1.msra.mxu0 %v1370
        %1420 = vmatprep.subr.mxu0 %v1374
        %1421 = vmatpush1.msra.mxu0 %v1373
        %1422 = vmatprep.subr.mxu0 %v1377
        %1423 = vmatpush1.msra.mxu0 %v1376
        %1424 = vmatprep.subr.mxu0 %v1380
        %1425 = vmatpush1.msra.mxu0 %v1379
        %1426 = vmatprep.subr.mxu0 %v1383
        %1427 = vmatpush1.msra.mxu0 %v1382
        %1428 = vmatprep.subr.mxu0 %v1386
        %1429 = vmatpush1.msra.mxu0 %v1385
        %1430 = vmatprep.subr.mxu0 %v1389
        %1431 = vmatpush1.msra.mxu0 %v1388
        %1432 = vmatprep.subr.mxu0 %v1392
        %1433 = vmatpush1.msra.mxu0 %v1391
        %1434 = vmatprep.subr.mxu0 %v1395
        %1435 = vmatpush1.msra.mxu0 %v1394
        %1436 = vmatprep.subr.mxu0 %v1398
        %1437 = vmatpush1.msra.mxu0 %v1397
        %1438 = vmatprep.subr.mxu0 %v1401
        %1439 = vmatpush1.msra.mxu0 %v1400
        %1440 = vmatprep.subr.mxu0 %v1404
        %1441 = vmatpush1.msra.mxu0 %v1403
        %1442 = vmatprep.subr.mxu0 %v1407
        %1443 = vmatpush1.msra.mxu0 %v1406
        %1444 = vmatprep.subr.mxu0 %v1410
        %1445 = vmatpush1.msra.mxu0 %v1409
        %1446 = vmatprep.subr.mxu0 %v1413
        %1447 = vmatpush1.msra.mxu0 %v1412
        %1448 = vmatprep.subr.mxu0 %v1416
        %1449 = vmatpush1.msra.mxu0 %v1415
        %1450 = vmatprep.subr.mxu0 0.0
        %1451 = vmatpush1.msra.mxu0 0.0
        %1452 = vmatprep.subr.mxu0 0.0
        %1453 = vmatpush1.msra.mxu0 0.0
        %1454 = vmatprep.subr.mxu0 0.0
        %1455 = vmatpush1.msra.mxu0 0.0
        %1456 = vmatprep.subr.mxu0 0.0
        %1457 = vmatpush1.msra.mxu0 0.0
        %1458 = vmatprep.subr.mxu0 0.0
        %1459 = vmatpush1.msra.mxu0 0.0
        %1460 = vmatprep.subr.mxu0 0.0
        %1461 = vmatpush1.msra.mxu0 0.0
        %1462 = vmatprep.subr.mxu0 0.0
        %1463 = vmatpush1.msra.mxu0 0.0
        %1464 = vmatprep.subr.mxu0 0.0
        %1465 = vmatpush1.msra.mxu0 0.0
        %1466 = vmatprep.subr.mxu0 0.0
        %1467 = vmatpush1.msra.mxu0 0.0
        %1468 = vmatprep.subr.mxu0 0.0
        %1469 = vmatpush1.msra.mxu0 0.0
        %1470 = vmatprep.subr.mxu0 0.0
        %1471 = vmatpush1.msra.mxu0 0.0
        %1472 = vmatprep.subr.mxu0 0.0
        %1473 = vmatpush1.msra.mxu0 0.0
        %1474 = vmatprep.subr.mxu0 0.0
        %1475 = vmatpush1.msra.mxu0 0.0
        %1476 = vmatprep.subr.mxu0 0.0
        %1477 = vmatpush1.msra.mxu0 0.0
        %1478 = vmatprep.subr.mxu0 0.0
        %1479 = vmatpush1.msra.mxu0 0.0
        %1480 = vmatprep.subr.mxu0 0.0
        %1481 = vmatpush1.msra.mxu0 0.0
        %1482 = vmatprep.mubr.f32.mxu0 0.0
        %1483 = vmatmul.mubr.f32.gmra.mrb[0].mxu0 %v1369
        %v1484 = vpop.f32.mrb[0].mxu0
        %v1485 = vadd.f32 0.0, %v1484
        %v1486 = vpop.f32.mrb[0].mxu0
        %v1487 = vadd.f32 0.0, %v1486
        %1488 = vdwg.mxu0
        %1489 = vmatprep.subr.mxu0 0.0
        %1490 = vmatpush1.msra.mxu0 %v1372
        %1491 = vmatprep.subr.mxu0 0.0
        %1492 = vmatpush1.msra.mxu0 %v1375
        %1493 = vmatprep.subr.mxu0 0.0
        %1494 = vmatpush1.msra.mxu0 %v1378
        %1495 = vmatprep.subr.mxu0 0.0
        %1496 = vmatpush1.msra.mxu0 %v1381
        %1497 = vmatprep.subr.mxu0 0.0
        %1498 = vmatpush1.msra.mxu0 %v1384
        %1499 = vmatprep.subr.mxu0 0.0
        %1500 = vmatpush1.msra.mxu0 %v1387
        %1501 = vmatprep.subr.mxu0 0.0
        %1502 = vmatpush1.msra.mxu0 %v1390
        %1503 = vmatprep.subr.mxu0 0.0
        %1504 = vmatpush1.msra.mxu0 %v1393
        %1505 = vmatprep.subr.mxu0 0.0
        %1506 = vmatpush1.msra.mxu0 %v1396
        %1507 = vmatprep.subr.mxu0 0.0
        %1508 = vmatpush1.msra.mxu0 %v1399
        %1509 = vmatprep.subr.mxu0 0.0
        %1510 = vmatpush1.msra.mxu0 %v1402
        %1511 = vmatprep.subr.mxu0 0.0
        %1512 = vmatpush1.msra.mxu0 %v1405
        %1513 = vmatprep.subr.mxu0 0.0
        %1514 = vmatpush1.msra.mxu0 %v1408
        %1515 = vmatprep.subr.mxu0 0.0
        %1516 = vmatpush1.msra.mxu0 %v1411
        %1517 = vmatprep.subr.mxu0 0.0
        %1518 = vmatpush1.msra.mxu0 %v1414
        %1519 = vmatprep.subr.mxu0 0.0
        %1520 = vmatpush1.msra.mxu0 %v1417
        %1521 = vmatprep.subr.mxu0 0.0
        %1522 = vmatpush1.msra.mxu0 0.0
        %1523 = vmatprep.subr.mxu0 0.0
        %1524 = vmatpush1.msra.mxu0 0.0
        %1525 = vmatprep.subr.mxu0 0.0
        %1526 = vmatpush1.msra.mxu0 0.0
        %1527 = vmatprep.subr.mxu0 0.0
        %1528 = vmatpush1.msra.mxu0 0.0
        %1529 = vmatprep.subr.mxu0 0.0
        %1530 = vmatpush1.msra.mxu0 0.0
        %1531 = vmatprep.subr.mxu0 0.0
        %1532 = vmatpush1.msra.mxu0 0.0
        %1533 = vmatprep.subr.mxu0 0.0
        %1534 = vmatpush1.msra.mxu0 0.0
        %1535 = vmatprep.subr.mxu0 0.0
        %1536 = vmatpush1.msra.mxu0 0.0
        %1537 = vmatprep.subr.mxu0 0.0
        %1538 = vmatpush1.msra.mxu0 0.0
        %1539 = vmatprep.subr.mxu0 0.0
        %1540 = vmatpush1.msra.mxu0 0.0
        %1541 = vmatprep.subr.mxu0 0.0
        %1542 = vmatpush1.msra.mxu0 0.0
        %1543 = vmatprep.subr.mxu0 0.0
        %1544 = vmatpush1.msra.mxu0 0.0
        %1545 = vmatprep.subr.mxu0 0.0
        %1546 = vmatpush1.msra.mxu0 0.0
        %1547 = vmatprep.subr.mxu0 0.0
        %1548 = vmatpush1.msra.mxu0 0.0
        %1549 = vmatprep.subr.mxu0 0.0
        %1550 = vmatpush1.msra.mxu0 0.0
        %1551 = vmatprep.subr.mxu0 0.0
        %1552 = vmatpush1.msra.mxu0 0.0
        %1553 = vmatprep.mubr.f32.mxu0 0.0
        %1554 = vmatmul.mubr.f32.gmra.mrb[0].mxu0 %v1369
        %v1555 = vpop.f32.mrb[0].mxu0
        %v1556 = vadd.f32 0.0, %v1555
        %v1557 = vpop.f32.mrb[0].mxu0
        %1558 = vdwg.mxu0
        %v1559 = vadd.f32 %v1366, %v1485
        %v1560 = vxor.u32 %v1559, 2147483648
        %v1561 = vmul.f32 %v1560, 1.442695
        %v1562 = vpow.pop %v1561
        %v1563 = vadd.f32 %v1562, 1.0
        %v1564 = vrcp.pop %v1563
        %v1565 = vmul.f32 1.0, %v1564
        %v1566 = vadd.f32 %v1367, %v1487
        %v1567 = vxor.u32 %v1566, 2147483648
        %v1568 = vmul.f32 %v1567, 1.442695
        %v1569 = vpow.pop %v1568
        %v1570 = vadd.f32 %v1569, 1.0
        %v1571 = vrcp.pop %v1570
        %v1572 = vmul.f32 1.0, %v1571
        %v1573 = vld [vmem:[%s289] sm:$0x1]
        %v1575 = vlaneseq
        %v1576 = vshrl.u32 %v1575, 7
        %v1577 = vsub.s32 0, %v1576
        %v1578 = vrot.slane %v1573, %v1577
        %v1580 = vadd.f32 %v1556, %v1578
        %v1581 = vmul.f32 %v1565, %v1580
        %v1582 = vadd.f32 %v1368, %v1581
        %v1583 = vtanh.pop %v1582
        %v1584 = vsub.f32 1.0, %v1572
        %v1585 = vmul.f32 %v1584, %v1583
        %v1586 = vmul.f32 %v1572, %v1369
        %v1587 = vadd.f32 %v1585, %v1586
        %1588 = vst [vmem:[#allocation3] sm:$0xff] %v1587
        %s1589 = scalar_lea.vmem %s277, %s1360 [#allocation6]
        %1590 = vst [vmem:[%s1589] sm:$0xff] %v1587
        %s1591 = ssub.s32 4, %s19
        %s1592 = smul.u32 %s1591, 8
        %s1593 = sshra.s32 %s1592, 3
        %s1594 = sand.u32 %s1592, 7
        %s1595 = smul.u32 %s1593, 3
        %s1596 = smul.addr %s1595, 8
        %s1597 = scalar_lea.vmem [#allocation2], %s1596
        %v1598 = vld [vmem:[%s1597] sm:$0xff]
        %v1599 = vld [vmem:[%s1597 + $0x8] sm:$0xff]
        %v1600 = vld [vmem:[%s1597 + $0x10] sm:$0xff]
        %v1601 = vld [vmem:[#allocation3] sm:$0xff]
        %v1602 = vld [vmem:[%s240] sm:$0xff]
        %v1603 = vld [vmem:[%s240 + $0x8] sm:$0xff]
        %v1604 = vld [vmem:[%s240 + $0x10] sm:$0xff]
        %v1605 = vld [vmem:[%s240 + $0x18] sm:$0xff]
        %v1606 = vld [vmem:[%s240 + $0x20] sm:$0xff]
        %v1607 = vld [vmem:[%s240 + $0x28] sm:$0xff]
        %v1608 = vld [vmem:[%s240 + $0x30] sm:$0xff]
        %v1609 = vld [vmem:[%s240 + $0x38] sm:$0xff]
        %v1610 = vld [vmem:[%s240 + $0x40] sm:$0xff]
        %v1611 = vld [vmem:[%s240 + $0x48] sm:$0xff]
        %v1612 = vld [vmem:[%s240 + $0x50] sm:$0xff]
        %v1613 = vld [vmem:[%s240 + $0x58] sm:$0xff]
        %v1614 = vld [vmem:[%s240 + $0x60] sm:$0xff]
        %v1615 = vld [vmem:[%s240 + $0x68] sm:$0xff]
        %v1616 = vld [vmem:[%s240 + $0x70] sm:$0xff]
        %v1617 = vld [vmem:[%s240 + $0x78] sm:$0xff]
        %v1618 = vld [vmem:[%s240 + $0x80] sm:$0xff]
        %v1619 = vld [vmem:[%s240 + $0x88] sm:$0xff]
        %v1620 = vld [vmem:[%s240 + $0x90] sm:$0xff]
        %v1621 = vld [vmem:[%s240 + $0x98] sm:$0xff]
        %v1622 = vld [vmem:[%s240 + $0xa0] sm:$0xff]
        %v1623 = vld [vmem:[%s240 + $0xa8] sm:$0xff]
        %v1624 = vld [vmem:[%s240 + $0xb0] sm:$0xff]
        %v1625 = vld [vmem:[%s240 + $0xb8] sm:$0xff]
        %v1626 = vld [vmem:[%s240 + $0xc0] sm:$0xff]
        %v1627 = vld [vmem:[%s240 + $0xc8] sm:$0xff]
        %v1628 = vld [vmem:[%s240 + $0xd0] sm:$0xff]
        %v1629 = vld [vmem:[%s240 + $0xd8] sm:$0xff]
        %v1630 = vld [vmem:[%s240 + $0xe0] sm:$0xff]
        %v1631 = vld [vmem:[%s240 + $0xe8] sm:$0xff]
        %v1632 = vld [vmem:[%s240 + $0xf0] sm:$0xff]
        %v1633 = vld [vmem:[%s240 + $0xf8] sm:$0xff]
        %v1634 = vld [vmem:[%s240 + $0x100] sm:$0xff]
        %v1635 = vld [vmem:[%s240 + $0x108] sm:$0xff]
        %v1636 = vld [vmem:[%s240 + $0x110] sm:$0xff]
        %v1637 = vld [vmem:[%s240 + $0x118] sm:$0xff]
        %v1638 = vld [vmem:[%s240 + $0x120] sm:$0xff]
        %v1639 = vld [vmem:[%s240 + $0x128] sm:$0xff]
        %v1640 = vld [vmem:[%s240 + $0x130] sm:$0xff]
        %v1641 = vld [vmem:[%s240 + $0x138] sm:$0xff]
        %v1642 = vld [vmem:[%s240 + $0x140] sm:$0xff]
        %v1643 = vld [vmem:[%s240 + $0x148] sm:$0xff]
        %v1644 = vld [vmem:[%s240 + $0x150] sm:$0xff]
        %v1645 = vld [vmem:[%s240 + $0x158] sm:$0xff]
        %v1646 = vld [vmem:[%s240 + $0x160] sm:$0xff]
        %v1647 = vld [vmem:[%s240 + $0x168] sm:$0xff]
        %v1648 = vld [vmem:[%s240 + $0x170] sm:$0xff]
        %v1649 = vld [vmem:[%s240 + $0x178] sm:$0xff]
        %1650 = vmatprep.subr.mxu0 %v1603
        %1651 = vmatpush1.msra.mxu0 %v1602
        %1652 = vmatprep.subr.mxu0 %v1606
        %1653 = vmatpush1.msra.mxu0 %v1605
        %1654 = vmatprep.subr.mxu0 %v1609
        %1655 = vmatpush1.msra.mxu0 %v1608
        %1656 = vmatprep.subr.mxu0 %v1612
        %1657 = vmatpush1.msra.mxu0 %v1611
        %1658 = vmatprep.subr.mxu0 %v1615
        %1659 = vmatpush1.msra.mxu0 %v1614
        %1660 = vmatprep.subr.mxu0 %v1618
        %1661 = vmatpush1.msra.mxu0 %v1617
        %1662 = vmatprep.subr.mxu0 %v1621
        %1663 = vmatpush1.msra.mxu0 %v1620
        %1664 = vmatprep.subr.mxu0 %v1624
        %1665 = vmatpush1.msra.mxu0 %v1623
        %1666 = vmatprep.subr.mxu0 %v1627
        %1667 = vmatpush1.msra.mxu0 %v1626
        %1668 = vmatprep.subr.mxu0 %v1630
        %1669 = vmatpush1.msra.mxu0 %v1629
        %1670 = vmatprep.subr.mxu0 %v1633
        %1671 = vmatpush1.msra.mxu0 %v1632
        %1672 = vmatprep.subr.mxu0 %v1636
        %1673 = vmatpush1.msra.mxu0 %v1635
        %1674 = vmatprep.subr.mxu0 %v1639
        %1675 = vmatpush1.msra.mxu0 %v1638
        %1676 = vmatprep.subr.mxu0 %v1642
        %1677 = vmatpush1.msra.mxu0 %v1641
        %1678 = vmatprep.subr.mxu0 %v1645
        %1679 = vmatpush1.msra.mxu0 %v1644
        %1680 = vmatprep.subr.mxu0 %v1648
        %1681 = vmatpush1.msra.mxu0 %v1647
        %1682 = vmatprep.subr.mxu0 0.0
        %1683 = vmatpush1.msra.mxu0 0.0
        %1684 = vmatprep.subr.mxu0 0.0
        %1685 = vmatpush1.msra.mxu0 0.0
        %1686 = vmatprep.subr.mxu0 0.0
        %1687 = vmatpush1.msra.mxu0 0.0
        %1688 = vmatprep.subr.mxu0 0.0
        %1689 = vmatpush1.msra.mxu0 0.0
        %1690 = vmatprep.subr.mxu0 0.0
        %1691 = vmatpush1.msra.mxu0 0.0
        %1692 = vmatprep.subr.mxu0 0.0
        %1693 = vmatpush1.msra.mxu0 0.0
        %1694 = vmatprep.subr.mxu0 0.0
        %1695 = vmatpush1.msra.mxu0 0.0
        %1696 = vmatprep.subr.mxu0 0.0
        %1697 = vmatpush1.msra.mxu0 0.0
        %1698 = vmatprep.subr.mxu0 0.0
        %1699 = vmatpush1.msra.mxu0 0.0
        %1700 = vmatprep.subr.mxu0 0.0
        %1701 = vmatpush1.msra.mxu0 0.0
        %1702 = vmatprep.subr.mxu0 0.0
        %1703 = vmatpush1.msra.mxu0 0.0
        %1704 = vmatprep.subr.mxu0 0.0
        %1705 = vmatpush1.msra.mxu0 0.0
        %1706 = vmatprep.subr.mxu0 0.0
        %1707 = vmatpush1.msra.mxu0 0.0
        %1708 = vmatprep.subr.mxu0 0.0
        %1709 = vmatpush1.msra.mxu0 0.0
        %1710 = vmatprep.subr.mxu0 0.0
        %1711 = vmatpush1.msra.mxu0 0.0
        %1712 = vmatprep.subr.mxu0 0.0
        %1713 = vmatpush1.msra.mxu0 0.0
        %1714 = vmatprep.mubr.f32.mxu0 0.0
        %1715 = vmatmul.mubr.f32.gmra.mrb[0].mxu0 %v1601
        %v1716 = vpop.f32.mrb[0].mxu0
        %v1717 = vadd.f32 0.0, %v1716
        %v1718 = vpop.f32.mrb[0].mxu0
        %v1719 = vadd.f32 0.0, %v1718
        %1720 = vdwg.mxu0
        %1721 = vmatprep.subr.mxu0 0.0
        %1722 = vmatpush1.msra.mxu0 %v1604
        %1723 = vmatprep.subr.mxu0 0.0
        %1724 = vmatpush1.msra.mxu0 %v1607
        %1725 = vmatprep.subr.mxu0 0.0
        %1726 = vmatpush1.msra.mxu0 %v1610
        %1727 = vmatprep.subr.mxu0 0.0
        %1728 = vmatpush1.msra.mxu0 %v1613
        %1729 = vmatprep.subr.mxu0 0.0
        %1730 = vmatpush1.msra.mxu0 %v1616
        %1731 = vmatprep.subr.mxu0 0.0
        %1732 = vmatpush1.msra.mxu0 %v1619
        %1733 = vmatprep.subr.mxu0 0.0
        %1734 = vmatpush1.msra.mxu0 %v1622
        %1735 = vmatprep.subr.mxu0 0.0
        %1736 = vmatpush1.msra.mxu0 %v1625
        %1737 = vmatprep.subr.mxu0 0.0
        %1738 = vmatpush1.msra.mxu0 %v1628
        %1739 = vmatprep.subr.mxu0 0.0
        %1740 = vmatpush1.msra.mxu0 %v1631
        %1741 = vmatprep.subr.mxu0 0.0
        %1742 = vmatpush1.msra.mxu0 %v1634
        %1743 = vmatprep.subr.mxu0 0.0
        %1744 = vmatpush1.msra.mxu0 %v1637
        %1745 = vmatprep.subr.mxu0 0.0
        %1746 = vmatpush1.msra.mxu0 %v1640
        %1747 = vmatprep.subr.mxu0 0.0
        %1748 = vmatpush1.msra.mxu0 %v1643
        %1749 = vmatprep.subr.mxu0 0.0
        %1750 = vmatpush1.msra.mxu0 %v1646
        %1751 = vmatprep.subr.mxu0 0.0
        %1752 = vmatpush1.msra.mxu0 %v1649
        %1753 = vmatprep.subr.mxu0 0.0
        %1754 = vmatpush1.msra.mxu0 0.0
        %1755 = vmatprep.subr.mxu0 0.0
        %1756 = vmatpush1.msra.mxu0 0.0
        %1757 = vmatprep.subr.mxu0 0.0
        %1758 = vmatpush1.msra.mxu0 0.0
        %1759 = vmatprep.subr.mxu0 0.0
        %1760 = vmatpush1.msra.mxu0 0.0
        %1761 = vmatprep.subr.mxu0 0.0
        %1762 = vmatpush1.msra.mxu0 0.0
        %1763 = vmatprep.subr.mxu0 0.0
        %1764 = vmatpush1.msra.mxu0 0.0
        %1765 = vmatprep.subr.mxu0 0.0
        %1766 = vmatpush1.msra.mxu0 0.0
        %1767 = vmatprep.subr.mxu0 0.0
        %1768 = vmatpush1.msra.mxu0 0.0
        %1769 = vmatprep.subr.mxu0 0.0
        %1770 = vmatpush1.msra.mxu0 0.0
        %1771 = vmatprep.subr.mxu0 0.0
        %1772 = vmatpush1.msra.mxu0 0.0
        %1773 = vmatprep.subr.mxu0 0.0
        %1774 = vmatpush1.msra.mxu0 0.0
        %1775 = vmatprep.subr.mxu0 0.0
        %1776 = vmatpush1.msra.mxu0 0.0
        %1777 = vmatprep.subr.mxu0 0.0
        %1778 = vmatpush1.msra.mxu0 0.0
        %1779 = vmatprep.subr.mxu0 0.0
        %1780 = vmatpush1.msra.mxu0 0.0
        %1781 = vmatprep.subr.mxu0 0.0
        %1782 = vmatpush1.msra.mxu0 0.0
        %1783 = vmatprep.subr.mxu0 0.0
        %1784 = vmatpush1.msra.mxu0 0.0
        %1785 = vmatprep.mubr.f32.mxu0 0.0
        %1786 = vmatmul.mubr.f32.gmra.mrb[0].mxu0 %v1601
        %v1787 = vpop.f32.mrb[0].mxu0
        %v1788 = vadd.f32 0.0, %v1787
        %v1789 = vpop.f32.mrb[0].mxu0
        %1790 = vdwg.mxu0
        %v1791 = vadd.f32 %v1598, %v1717
        %v1792 = vxor.u32 %v1791, 2147483648
        %v1793 = vmul.f32 %v1792, 1.442695
        %v1794 = vpow.pop %v1793
        %v1795 = vadd.f32 %v1794, 1.0
        %v1796 = vrcp.pop %v1795
        %v1797 = vmul.f32 1.0, %v1796
        %v1798 = vadd.f32 %v1599, %v1719
        %v1799 = vxor.u32 %v1798, 2147483648
        %v1800 = vmul.f32 %v1799, 1.442695
        %v1801 = vpow.pop %v1800
        %v1802 = vadd.f32 %v1801, 1.0
        %v1803 = vrcp.pop %v1802
        %v1804 = vmul.f32 1.0, %v1803
        %v1805 = vld [vmem:[%s289] sm:$0x1]
        %v1807 = vlaneseq
        %v1808 = vshrl.u32 %v1807, 7
        %v1809 = vsub.s32 0, %v1808
        %v1810 = vrot.slane %v1805, %v1809
        %v1812 = vadd.f32 %v1788, %v1810
        %v1813 = vmul.f32 %v1797, %v1812
        %v1814 = vadd.f32 %v1600, %v1813
        %v1815 = vtanh.pop %v1814
        %v1816 = vsub.f32 1.0, %v1804
        %v1817 = vmul.f32 %v1816, %v1815
        %v1818 = vmul.f32 %v1804, %v1601
        %v1819 = vadd.f32 %v1817, %v1818
        %1820 = vst [vmem:[#allocation3] sm:$0xff] %v1819
        %s1821 = scalar_lea.vmem %s277, %s1592 [#allocation6]
        %1822 = vst [vmem:[%s1821] sm:$0xff] %v1819
        %s1823 = smul.u32 %s19, 4294967293
        %s1824 = sadd.s32 %s1823, 5
        %s1825 = smul.u32 %s1824, 8
        %s1826 = sshra.s32 %s1825, 3
        %s1827 = sand.u32 %s1825, 7
        %s1828 = smul.u32 %s1826, 3
        %s1829 = smul.addr %s1828, 8
        %s1830 = scalar_lea.vmem [#allocation2], %s1829
        %v1831 = vld [vmem:[%s1830] sm:$0xff]
        %v1832 = vld [vmem:[%s1830 + $0x8] sm:$0xff]
        %v1833 = vld [vmem:[%s1830 + $0x10] sm:$0xff]
        %v1834 = vld [vmem:[#allocation3] sm:$0xff]
        %v1835 = vld [vmem:[%s240] sm:$0xff]
        %v1836 = vld [vmem:[%s240 + $0x8] sm:$0xff]
        %v1837 = vld [vmem:[%s240 + $0x10] sm:$0xff]
        %v1838 = vld [vmem:[%s240 + $0x18] sm:$0xff]
        %v1839 = vld [vmem:[%s240 + $0x20] sm:$0xff]
        %v1840 = vld [vmem:[%s240 + $0x28] sm:$0xff]
        %v1841 = vld [vmem:[%s240 + $0x30] sm:$0xff]
        %v1842 = vld [vmem:[%s240 + $0x38] sm:$0xff]
        %v1843 = vld [vmem:[%s240 + $0x40] sm:$0xff]
        %v1844 = vld [vmem:[%s240 + $0x48] sm:$0xff]
        %v1845 = vld [vmem:[%s240 + $0x50] sm:$0xff]
        %v1846 = vld [vmem:[%s240 + $0x58] sm:$0xff]
        %v1847 = vld [vmem:[%s240 + $0x60] sm:$0xff]
        %v1848 = vld [vmem:[%s240 + $0x68] sm:$0xff]
        %v1849 = vld [vmem:[%s240 + $0x70] sm:$0xff]
        %v1850 = vld [vmem:[%s240 + $0x78] sm:$0xff]
        %v1851 = vld [vmem:[%s240 + $0x80] sm:$0xff]
        %v1852 = vld [vmem:[%s240 + $0x88] sm:$0xff]
        %v1853 = vld [vmem:[%s240 + $0x90] sm:$0xff]
        %v1854 = vld [vmem:[%s240 + $0x98] sm:$0xff]
        %v1855 = vld [vmem:[%s240 + $0xa0] sm:$0xff]
        %v1856 = vld [vmem:[%s240 + $0xa8] sm:$0xff]
        %v1857 = vld [vmem:[%s240 + $0xb0] sm:$0xff]
        %v1858 = vld [vmem:[%s240 + $0xb8] sm:$0xff]
        %v1859 = vld [vmem:[%s240 + $0xc0] sm:$0xff]
        %v1860 = vld [vmem:[%s240 + $0xc8] sm:$0xff]
        %v1861 = vld [vmem:[%s240 + $0xd0] sm:$0xff]
        %v1862 = vld [vmem:[%s240 + $0xd8] sm:$0xff]
        %v1863 = vld [vmem:[%s240 + $0xe0] sm:$0xff]
        %v1864 = vld [vmem:[%s240 + $0xe8] sm:$0xff]
        %v1865 = vld [vmem:[%s240 + $0xf0] sm:$0xff]
        %v1866 = vld [vmem:[%s240 + $0xf8] sm:$0xff]
        %v1867 = vld [vmem:[%s240 + $0x100] sm:$0xff]
        %v1868 = vld [vmem:[%s240 + $0x108] sm:$0xff]
        %v1869 = vld [vmem:[%s240 + $0x110] sm:$0xff]
        %v1870 = vld [vmem:[%s240 + $0x118] sm:$0xff]
        %v1871 = vld [vmem:[%s240 + $0x120] sm:$0xff]
        %v1872 = vld [vmem:[%s240 + $0x128] sm:$0xff]
        %v1873 = vld [vmem:[%s240 + $0x130] sm:$0xff]
        %v1874 = vld [vmem:[%s240 + $0x138] sm:$0xff]
        %v1875 = vld [vmem:[%s240 + $0x140] sm:$0xff]
        %v1876 = vld [vmem:[%s240 + $0x148] sm:$0xff]
        %v1877 = vld [vmem:[%s240 + $0x150] sm:$0xff]
        %v1878 = vld [vmem:[%s240 + $0x158] sm:$0xff]
        %v1879 = vld [vmem:[%s240 + $0x160] sm:$0xff]
        %v1880 = vld [vmem:[%s240 + $0x168] sm:$0xff]
        %v1881 = vld [vmem:[%s240 + $0x170] sm:$0xff]
        %v1882 = vld [vmem:[%s240 + $0x178] sm:$0xff]
        %1883 = vmatprep.subr.mxu0 %v1836
        %1884 = vmatpush1.msra.mxu0 %v1835
        %1885 = vmatprep.subr.mxu0 %v1839
        %1886 = vmatpush1.msra.mxu0 %v1838
        %1887 = vmatprep.subr.mxu0 %v1842
        %1888 = vmatpush1.msra.mxu0 %v1841
        %1889 = vmatprep.subr.mxu0 %v1845
        %1890 = vmatpush1.msra.mxu0 %v1844
        %1891 = vmatprep.subr.mxu0 %v1848
        %1892 = vmatpush1.msra.mxu0 %v1847
        %1893 = vmatprep.subr.mxu0 %v1851
        %1894 = vmatpush1.msra.mxu0 %v1850
        %1895 = vmatprep.subr.mxu0 %v1854
        %1896 = vmatpush1.msra.mxu0 %v1853
        %1897 = vmatprep.subr.mxu0 %v1857
        %1898 = vmatpush1.msra.mxu0 %v1856
        %1899 = vmatprep.subr.mxu0 %v1860
        %1900 = vmatpush1.msra.mxu0 %v1859
        %1901 = vmatprep.subr.mxu0 %v1863
        %1902 = vmatpush1.msra.mxu0 %v1862
        %1903 = vmatprep.subr.mxu0 %v1866
        %1904 = vmatpush1.msra.mxu0 %v1865
        %1905 = vmatprep.subr.mxu0 %v1869
        %1906 = vmatpush1.msra.mxu0 %v1868
        %1907 = vmatprep.subr.mxu0 %v1872
        %1908 = vmatpush1.msra.mxu0 %v1871
        %1909 = vmatprep.subr.mxu0 %v1875
        %1910 = vmatpush1.msra.mxu0 %v1874
        %1911 = vmatprep.subr.mxu0 %v1878
        %1912 = vmatpush1.msra.mxu0 %v1877
        %1913 = vmatprep.subr.mxu0 %v1881
        %1914 = vmatpush1.msra.mxu0 %v1880
        %1915 = vmatprep.subr.mxu0 0.0
        %1916 = vmatpush1.msra.mxu0 0.0
        %1917 = vmatprep.subr.mxu0 0.0
        %1918 = vmatpush1.msra.mxu0 0.0
        %1919 = vmatprep.subr.mxu0 0.0
        %1920 = vmatpush1.msra.mxu0 0.0
        %1921 = vmatprep.subr.mxu0 0.0
        %1922 = vmatpush1.msra.mxu0 0.0
        %1923 = vmatprep.subr.mxu0 0.0
        %1924 = vmatpush1.msra.mxu0 0.0
        %1925 = vmatprep.subr.mxu0 0.0
        %1926 = vmatpush1.msra.mxu0 0.0
        %1927 = vmatprep.subr.mxu0 0.0
        %1928 = vmatpush1.msra.mxu0 0.0
        %1929 = vmatprep.subr.mxu0 0.0
        %1930 = vmatpush1.msra.mxu0 0.0
        %1931 = vmatprep.subr.mxu0 0.0
        %1932 = vmatpush1.msra.mxu0 0.0
        %1933 = vmatprep.subr.mxu0 0.0
        %1934 = vmatpush1.msra.mxu0 0.0
        %1935 = vmatprep.subr.mxu0 0.0
        %1936 = vmatpush1.msra.mxu0 0.0
        %1937 = vmatprep.subr.mxu0 0.0
        %1938 = vmatpush1.msra.mxu0 0.0
        %1939 = vmatprep.subr.mxu0 0.0
        %1940 = vmatpush1.msra.mxu0 0.0
        %1941 = vmatprep.subr.mxu0 0.0
        %1942 = vmatpush1.msra.mxu0 0.0
        %1943 = vmatprep.subr.mxu0 0.0
        %1944 = vmatpush1.msra.mxu0 0.0
        %1945 = vmatprep.subr.mxu0 0.0
        %1946 = vmatpush1.msra.mxu0 0.0
        %1947 = vmatprep.mubr.f32.mxu0 0.0
        %1948 = vmatmul.mubr.f32.gmra.mrb[0].mxu0 %v1834
        %v1949 = vpop.f32.mrb[0].mxu0
        %v1950 = vadd.f32 0.0, %v1949
        %v1951 = vpop.f32.mrb[0].mxu0
        %v1952 = vadd.f32 0.0, %v1951
        %1953 = vdwg.mxu0
        %1954 = vmatprep.subr.mxu0 0.0
        %1955 = vmatpush1.msra.mxu0 %v1837
        %1956 = vmatprep.subr.mxu0 0.0
        %1957 = vmatpush1.msra.mxu0 %v1840
        %1958 = vmatprep.subr.mxu0 0.0
        %1959 = vmatpush1.msra.mxu0 %v1843
        %1960 = vmatprep.subr.mxu0 0.0
        %1961 = vmatpush1.msra.mxu0 %v1846
        %1962 = vmatprep.subr.mxu0 0.0
        %1963 = vmatpush1.msra.mxu0 %v1849
        %1964 = vmatprep.subr.mxu0 0.0
        %1965 = vmatpush1.msra.mxu0 %v1852
        %1966 = vmatprep.subr.mxu0 0.0
        %1967 = vmatpush1.msra.mxu0 %v1855
        %1968 = vmatprep.subr.mxu0 0.0
        %1969 = vmatpush1.msra.mxu0 %v1858
        %1970 = vmatprep.subr.mxu0 0.0
        %1971 = vmatpush1.msra.mxu0 %v1861
        %1972 = vmatprep.subr.mxu0 0.0
        %1973 = vmatpush1.msra.mxu0 %v1864
        %1974 = vmatprep.subr.mxu0 0.0
        %1975 = vmatpush1.msra.mxu0 %v1867
        %1976 = vmatprep.subr.mxu0 0.0
        %1977 = vmatpush1.msra.mxu0 %v1870
        %1978 = vmatprep.subr.mxu0 0.0
        %1979 = vmatpush1.msra.mxu0 %v1873
        %1980 = vmatprep.subr.mxu0 0.0
        %1981 = vmatpush1.msra.mxu0 %v1876
        %1982 = vmatprep.subr.mxu0 0.0
        %1983 = vmatpush1.msra.mxu0 %v1879
        %1984 = vmatprep.subr.mxu0 0.0
        %1985 = vmatpush1.msra.mxu0 %v1882
        %1986 = vmatprep.subr.mxu0 0.0
        %1987 = vmatpush1.msra.mxu0 0.0
        %1988 = vmatprep.subr.mxu0 0.0
        %1989 = vmatpush1.msra.mxu0 0.0
        %1990 = vmatprep.subr.mxu0 0.0
        %1991 = vmatpush1.msra.mxu0 0.0
        %1992 = vmatprep.subr.mxu0 0.0
        %1993 = vmatpush1.msra.mxu0 0.0
        %1994 = vmatprep.subr.mxu0 0.0
        %1995 = vmatpush1.msra.mxu0 0.0
        %1996 = vmatprep.subr.mxu0 0.0
        %1997 = vmatpush1.msra.mxu0 0.0
        %1998 = vmatprep.subr.mxu0 0.0
        %1999 = vmatpush1.msra.mxu0 0.0
        %2000 = vmatprep.subr.mxu0 0.0
        %2001 = vmatpush1.msra.mxu0 0.0
        %2002 = vmatprep.subr.mxu0 0.0
        %2003 = vmatpush1.msra.mxu0 0.0
        %2004 = vmatprep.subr.mxu0 0.0
        %2005 = vmatpush1.msra.mxu0 0.0
        %2006 = vmatprep.subr.mxu0 0.0
        %2007 = vmatpush1.msra.mxu0 0.0
        %2008 = vmatprep.subr.mxu0 0.0
        %2009 = vmatpush1.msra.mxu0 0.0
        %2010 = vmatprep.subr.mxu0 0.0
        %2011 = vmatpush1.msra.mxu0 0.0
        %2012 = vmatprep.subr.mxu0 0.0
        %2013 = vmatpush1.msra.mxu0 0.0
        %2014 = vmatprep.subr.mxu0 0.0
        %2015 = vmatpush1.msra.mxu0 0.0
        %2016 = vmatprep.subr.mxu0 0.0
        %2017 = vmatpush1.msra.mxu0 0.0
        %2018 = vmatprep.mubr.f32.mxu0 0.0
        %2019 = vmatmul.mubr.f32.gmra.mrb[0].mxu0 %v1834
        %v2020 = vpop.f32.mrb[0].mxu0
        %v2021 = vadd.f32 0.0, %v2020
        %v2022 = vpop.f32.mrb[0].mxu0
        %2023 = vdwg.mxu0
        %v2024 = vadd.f32 %v1831, %v1950
        %v2025 = vxor.u32 %v2024, 2147483648
        %v2026 = vmul.f32 %v2025, 1.442695
        %v2027 = vpow.pop %v2026
        %v2028 = vadd.f32 %v2027, 1.0
        %v2029 = vrcp.pop %v2028
        %v2030 = vmul.f32 1.0, %v2029
        %v2031 = vadd.f32 %v1832, %v1952
        %v2032 = vxor.u32 %v2031, 2147483648
        %v2033 = vmul.f32 %v2032, 1.442695
        %v2034 = vpow.pop %v2033
        %v2035 = vadd.f32 %v2034, 1.0
        %v2036 = vrcp.pop %v2035
        %v2037 = vmul.f32 1.0, %v2036
        %v2038 = vld [vmem:[%s289] sm:$0x1]
        %v2040 = vlaneseq
        %v2041 = vshrl.u32 %v2040, 7
        %v2042 = vsub.s32 0, %v2041
        %v2043 = vrot.slane %v2038, %v2042
        %v2045 = vadd.f32 %v2021, %v2043
        %v2046 = vmul.f32 %v2030, %v2045
        %v2047 = vadd.f32 %v1833, %v2046
        %v2048 = vtanh.pop %v2047
        %v2049 = vsub.f32 1.0, %v2037
        %v2050 = vmul.f32 %v2049, %v2048
        %v2051 = vmul.f32 %v2037, %v1834
        %v2052 = vadd.f32 %v2050, %v2051
        %2053 = vst [vmem:[#allocation3] sm:$0xff] %v2052
        %s2054 = scalar_lea.vmem %s277, %s1825 [#allocation6]
        %2055 = vst [vmem:[%s2054] sm:$0xff] %v2052
        %s2056 = smul.u32 %s19, 4294967291
        %s2057 = sadd.s32 %s2056, 6
        %s2058 = smul.u32 %s2057, 8
        %s2059 = sshra.s32 %s2058, 3
        %s2060 = sand.u32 %s2058, 7
        %s2061 = smul.u32 %s2059, 3
        %s2062 = smul.addr %s2061, 8
        %s2063 = scalar_lea.vmem [#allocation2], %s2062
        %v2064 = vld [vmem:[%s2063] sm:$0xff]
        %v2065 = vld [vmem:[%s2063 + $0x8] sm:$0xff]
        %v2066 = vld [vmem:[%s2063 + $0x10] sm:$0xff]
        %v2067 = vld [vmem:[#allocation3] sm:$0xff]
        %v2068 = vld [vmem:[%s240] sm:$0xff]
        %v2069 = vld [vmem:[%s240 + $0x8] sm:$0xff]
        %v2070 = vld [vmem:[%s240 + $0x10] sm:$0xff]
        %v2071 = vld [vmem:[%s240 + $0x18] sm:$0xff]
        %v2072 = vld [vmem:[%s240 + $0x20] sm:$0xff]
        %v2073 = vld [vmem:[%s240 + $0x28] sm:$0xff]
        %v2074 = vld [vmem:[%s240 + $0x30] sm:$0xff]
        %v2075 = vld [vmem:[%s240 + $0x38] sm:$0xff]
        %v2076 = vld [vmem:[%s240 + $0x40] sm:$0xff]
        %v2077 = vld [vmem:[%s240 + $0x48] sm:$0xff]
        %v2078 = vld [vmem:[%s240 + $0x50] sm:$0xff]
        %v2079 = vld [vmem:[%s240 + $0x58] sm:$0xff]
        %v2080 = vld [vmem:[%s240 + $0x60] sm:$0xff]
        %v2081 = vld [vmem:[%s240 + $0x68] sm:$0xff]
        %v2082 = vld [vmem:[%s240 + $0x70] sm:$0xff]
        %v2083 = vld [vmem:[%s240 + $0x78] sm:$0xff]
        %v2084 = vld [vmem:[%s240 + $0x80] sm:$0xff]
        %v2085 = vld [vmem:[%s240 + $0x88] sm:$0xff]
        %v2086 = vld [vmem:[%s240 + $0x90] sm:$0xff]
        %v2087 = vld [vmem:[%s240 + $0x98] sm:$0xff]
        %v2088 = vld [vmem:[%s240 + $0xa0] sm:$0xff]
        %v2089 = vld [vmem:[%s240 + $0xa8] sm:$0xff]
        %v2090 = vld [vmem:[%s240 + $0xb0] sm:$0xff]
        %v2091 = vld [vmem:[%s240 + $0xb8] sm:$0xff]
        %v2092 = vld [vmem:[%s240 + $0xc0] sm:$0xff]
        %v2093 = vld [vmem:[%s240 + $0xc8] sm:$0xff]
        %v2094 = vld [vmem:[%s240 + $0xd0] sm:$0xff]
        %v2095 = vld [vmem:[%s240 + $0xd8] sm:$0xff]
        %v2096 = vld [vmem:[%s240 + $0xe0] sm:$0xff]
        %v2097 = vld [vmem:[%s240 + $0xe8] sm:$0xff]
        %v2098 = vld [vmem:[%s240 + $0xf0] sm:$0xff]
        %v2099 = vld [vmem:[%s240 + $0xf8] sm:$0xff]
        %v2100 = vld [vmem:[%s240 + $0x100] sm:$0xff]
        %v2101 = vld [vmem:[%s240 + $0x108] sm:$0xff]
        %v2102 = vld [vmem:[%s240 + $0x110] sm:$0xff]
        %v2103 = vld [vmem:[%s240 + $0x118] sm:$0xff]
        %v2104 = vld [vmem:[%s240 + $0x120] sm:$0xff]
        %v2105 = vld [vmem:[%s240 + $0x128] sm:$0xff]
        %v2106 = vld [vmem:[%s240 + $0x130] sm:$0xff]
        %v2107 = vld [vmem:[%s240 + $0x138] sm:$0xff]
        %v2108 = vld [vmem:[%s240 + $0x140] sm:$0xff]
        %v2109 = vld [vmem:[%s240 + $0x148] sm:$0xff]
        %v2110 = vld [vmem:[%s240 + $0x150] sm:$0xff]
        %v2111 = vld [vmem:[%s240 + $0x158] sm:$0xff]
        %v2112 = vld [vmem:[%s240 + $0x160] sm:$0xff]
        %v2113 = vld [vmem:[%s240 + $0x168] sm:$0xff]
        %v2114 = vld [vmem:[%s240 + $0x170] sm:$0xff]
        %v2115 = vld [vmem:[%s240 + $0x178] sm:$0xff]
        %2116 = vmatprep.subr.mxu0 %v2069
        %2117 = vmatpush1.msra.mxu0 %v2068
        %2118 = vmatprep.subr.mxu0 %v2072
        %2119 = vmatpush1.msra.mxu0 %v2071
        %2120 = vmatprep.subr.mxu0 %v2075
        %2121 = vmatpush1.msra.mxu0 %v2074
        %2122 = vmatprep.subr.mxu0 %v2078
        %2123 = vmatpush1.msra.mxu0 %v2077
        %2124 = vmatprep.subr.mxu0 %v2081
        %2125 = vmatpush1.msra.mxu0 %v2080
        %2126 = vmatprep.subr.mxu0 %v2084
        %2127 = vmatpush1.msra.mxu0 %v2083
        %2128 = vmatprep.subr.mxu0 %v2087
        %2129 = vmatpush1.msra.mxu0 %v2086
        %2130 = vmatprep.subr.mxu0 %v2090
        %2131 = vmatpush1.msra.mxu0 %v2089
        %2132 = vmatprep.subr.mxu0 %v2093
        %2133 = vmatpush1.msra.mxu0 %v2092
        %2134 = vmatprep.subr.mxu0 %v2096
        %2135 = vmatpush1.msra.mxu0 %v2095
        %2136 = vmatprep.subr.mxu0 %v2099
        %2137 = vmatpush1.msra.mxu0 %v2098
        %2138 = vmatprep.subr.mxu0 %v2102
        %2139 = vmatpush1.msra.mxu0 %v2101
        %2140 = vmatprep.subr.mxu0 %v2105
        %2141 = vmatpush1.msra.mxu0 %v2104
        %2142 = vmatprep.subr.mxu0 %v2108
        %2143 = vmatpush1.msra.mxu0 %v2107
        %2144 = vmatprep.subr.mxu0 %v2111
        %2145 = vmatpush1.msra.mxu0 %v2110
        %2146 = vmatprep.subr.mxu0 %v2114
        %2147 = vmatpush1.msra.mxu0 %v2113
        %2148 = vmatprep.subr.mxu0 0.0
        %2149 = vmatpush1.msra.mxu0 0.0
        %2150 = vmatprep.subr.mxu0 0.0
        %2151 = vmatpush1.msra.mxu0 0.0
        %2152 = vmatprep.subr.mxu0 0.0
        %2153 = vmatpush1.msra.mxu0 0.0
        %2154 = vmatprep.subr.mxu0 0.0
        %2155 = vmatpush1.msra.mxu0 0.0
        %2156 = vmatprep.subr.mxu0 0.0
        %2157 = vmatpush1.msra.mxu0 0.0
        %2158 = vmatprep.subr.mxu0 0.0
        %2159 = vmatpush1.msra.mxu0 0.0
        %2160 = vmatprep.subr.mxu0 0.0
        %2161 = vmatpush1.msra.mxu0 0.0
        %2162 = vmatprep.subr.mxu0 0.0
        %2163 = vmatpush1.msra.mxu0 0.0
        %2164 = vmatprep.subr.mxu0 0.0
        %2165 = vmatpush1.msra.mxu0 0.0
        %2166 = vmatprep.subr.mxu0 0.0
        %2167 = vmatpush1.msra.mxu0 0.0
        %2168 = vmatprep.subr.mxu0 0.0
        %2169 = vmatpush1.msra.mxu0 0.0
        %2170 = vmatprep.subr.mxu0 0.0
        %2171 = vmatpush1.msra.mxu0 0.0
        %2172 = vmatprep.subr.mxu0 0.0
        %2173 = vmatpush1.msra.mxu0 0.0
        %2174 = vmatprep.subr.mxu0 0.0
        %2175 = vmatpush1.msra.mxu0 0.0
        %2176 = vmatprep.subr.mxu0 0.0
        %2177 = vmatpush1.msra.mxu0 0.0
        %2178 = vmatprep.subr.mxu0 0.0
        %2179 = vmatpush1.msra.mxu0 0.0
        %2180 = vmatprep.mubr.f32.mxu0 0.0
        %2181 = vmatmul.mubr.f32.gmra.mrb[0].mxu0 %v2067
        %v2182 = vpop.f32.mrb[0].mxu0
        %v2183 = vadd.f32 0.0, %v2182
        %v2184 = vpop.f32.mrb[0].mxu0
        %v2185 = vadd.f32 0.0, %v2184
        %2186 = vdwg.mxu0
        %2187 = vmatprep.subr.mxu0 0.0
        %2188 = vmatpush1.msra.mxu0 %v2070
        %2189 = vmatprep.subr.mxu0 0.0
        %2190 = vmatpush1.msra.mxu0 %v2073
        %2191 = vmatprep.subr.mxu0 0.0
        %2192 = vmatpush1.msra.mxu0 %v2076
        %2193 = vmatprep.subr.mxu0 0.0
        %2194 = vmatpush1.msra.mxu0 %v2079
        %2195 = vmatprep.subr.mxu0 0.0
        %2196 = vmatpush1.msra.mxu0 %v2082
        %2197 = vmatprep.subr.mxu0 0.0
        %2198 = vmatpush1.msra.mxu0 %v2085
        %2199 = vmatprep.subr.mxu0 0.0
        %2200 = vmatpush1.msra.mxu0 %v2088
        %2201 = vmatprep.subr.mxu0 0.0
        %2202 = vmatpush1.msra.mxu0 %v2091
        %2203 = vmatprep.subr.mxu0 0.0
        %2204 = vmatpush1.msra.mxu0 %v2094
        %2205 = vmatprep.subr.mxu0 0.0
        %2206 = vmatpush1.msra.mxu0 %v2097
        %2207 = vmatprep.subr.mxu0 0.0
        %2208 = vmatpush1.msra.mxu0 %v2100
        %2209 = vmatprep.subr.mxu0 0.0
        %2210 = vmatpush1.msra.mxu0 %v2103
        %2211 = vmatprep.subr.mxu0 0.0
        %2212 = vmatpush1.msra.mxu0 %v2106
        %2213 = vmatprep.subr.mxu0 0.0
        %2214 = vmatpush1.msra.mxu0 %v2109
        %2215 = vmatprep.subr.mxu0 0.0
        %2216 = vmatpush1.msra.mxu0 %v2112
        %2217 = vmatprep.subr.mxu0 0.0
        %2218 = vmatpush1.msra.mxu0 %v2115
        %2219 = vmatprep.subr.mxu0 0.0
        %2220 = vmatpush1.msra.mxu0 0.0
        %2221 = vmatprep.subr.mxu0 0.0
        %2222 = vmatpush1.msra.mxu0 0.0
        %2223 = vmatprep.subr.mxu0 0.0
        %2224 = vmatpush1.msra.mxu0 0.0
        %2225 = vmatprep.subr.mxu0 0.0
        %2226 = vmatpush1.msra.mxu0 0.0
        %2227 = vmatprep.subr.mxu0 0.0
        %2228 = vmatpush1.msra.mxu0 0.0
        %2229 = vmatprep.subr.mxu0 0.0
        %2230 = vmatpush1.msra.mxu0 0.0
        %2231 = vmatprep.subr.mxu0 0.0
        %2232 = vmatpush1.msra.mxu0 0.0
        %2233 = vmatprep.subr.mxu0 0.0
        %2234 = vmatpush1.msra.mxu0 0.0
        %2235 = vmatprep.subr.mxu0 0.0
        %2236 = vmatpush1.msra.mxu0 0.0
        %2237 = vmatprep.subr.mxu0 0.0
        %2238 = vmatpush1.msra.mxu0 0.0
        %2239 = vmatprep.subr.mxu0 0.0
        %2240 = vmatpush1.msra.mxu0 0.0
        %2241 = vmatprep.subr.mxu0 0.0
        %2242 = vmatpush1.msra.mxu0 0.0
        %2243 = vmatprep.subr.mxu0 0.0
        %2244 = vmatpush1.msra.mxu0 0.0
        %2245 = vmatprep.subr.mxu0 0.0
        %2246 = vmatpush1.msra.mxu0 0.0
        %2247 = vmatprep.subr.mxu0 0.0
        %2248 = vmatpush1.msra.mxu0 0.0
        %2249 = vmatprep.subr.mxu0 0.0
        %2250 = vmatpush1.msra.mxu0 0.0
        %2251 = vmatprep.mubr.f32.mxu0 0.0
        %2252 = vmatmul.mubr.f32.gmra.mrb[0].mxu0 %v2067
        %v2253 = vpop.f32.mrb[0].mxu0
        %v2254 = vadd.f32 0.0, %v2253
        %v2255 = vpop.f32.mrb[0].mxu0
        %2256 = vdwg.mxu0
        %v2257 = vadd.f32 %v2064, %v2183
        %v2258 = vxor.u32 %v2257, 2147483648
        %v2259 = vmul.f32 %v2258, 1.442695
        %v2260 = vpow.pop %v2259
        %v2261 = vadd.f32 %v2260, 1.0
        %v2262 = vrcp.pop %v2261
        %v2263 = vmul.f32 1.0, %v2262
        %v2264 = vadd.f32 %v2065, %v2185
        %v2265 = vxor.u32 %v2264, 2147483648
        %v2266 = vmul.f32 %v2265, 1.442695
        %v2267 = vpow.pop %v2266
        %v2268 = vadd.f32 %v2267, 1.0
        %v2269 = vrcp.pop %v2268
        %v2270 = vmul.f32 1.0, %v2269
        %v2271 = vld [vmem:[%s289] sm:$0x1]
        %v2273 = vlaneseq
        %v2274 = vshrl.u32 %v2273, 7
        %v2275 = vsub.s32 0, %v2274
        %v2276 = vrot.slane %v2271, %v2275
        %v2278 = vadd.f32 %v2254, %v2276
        %v2279 = vmul.f32 %v2263, %v2278
        %v2280 = vadd.f32 %v2066, %v2279
        %v2281 = vtanh.pop %v2280
        %v2282 = vsub.f32 1.0, %v2270
        %v2283 = vmul.f32 %v2282, %v2281
        %v2284 = vmul.f32 %v2270, %v2067
        %v2285 = vadd.f32 %v2283, %v2284
        %2286 = vst [vmem:[#allocation3] sm:$0xff] %v2285
        %s2287 = scalar_lea.vmem %s277, %s2058 [#allocation6]
        %2288 = vst [vmem:[%s2287] sm:$0xff] %v2285
        %s2289 = smul.u32 %s19, 4294967289
        %s2290 = sadd.s32 %s2289, 7
        %s2291 = smul.u32 %s2290, 8
        %s2292 = sshra.s32 %s2291, 3
        %s2293 = sand.u32 %s2291, 7
        %s2294 = smul.u32 %s2292, 3
        %s2295 = smul.addr %s2294, 8
        %s2296 = scalar_lea.vmem [#allocation2], %s2295
        %v2297 = vld [vmem:[%s2296] sm:$0xff]
        %v2298 = vld [vmem:[%s2296 + $0x8] sm:$0xff]
        %v2299 = vld [vmem:[%s2296 + $0x10] sm:$0xff]
        %v2300 = vld [vmem:[#allocation3] sm:$0xff]
        %v2301 = vld [vmem:[%s240] sm:$0xff]
        %v2302 = vld [vmem:[%s240 + $0x8] sm:$0xff]
        %v2303 = vld [vmem:[%s240 + $0x10] sm:$0xff]
        %v2304 = vld [vmem:[%s240 + $0x18] sm:$0xff]
        %v2305 = vld [vmem:[%s240 + $0x20] sm:$0xff]
        %v2306 = vld [vmem:[%s240 + $0x28] sm:$0xff]
        %v2307 = vld [vmem:[%s240 + $0x30] sm:$0xff]
        %v2308 = vld [vmem:[%s240 + $0x38] sm:$0xff]
        %v2309 = vld [vmem:[%s240 + $0x40] sm:$0xff]
        %v2310 = vld [vmem:[%s240 + $0x48] sm:$0xff]
        %v2311 = vld [vmem:[%s240 + $0x50] sm:$0xff]
        %v2312 = vld [vmem:[%s240 + $0x58] sm:$0xff]
        %v2313 = vld [vmem:[%s240 + $0x60] sm:$0xff]
        %v2314 = vld [vmem:[%s240 + $0x68] sm:$0xff]
        %v2315 = vld [vmem:[%s240 + $0x70] sm:$0xff]
        %v2316 = vld [vmem:[%s240 + $0x78] sm:$0xff]
        %v2317 = vld [vmem:[%s240 + $0x80] sm:$0xff]
        %v2318 = vld [vmem:[%s240 + $0x88] sm:$0xff]
        %v2319 = vld [vmem:[%s240 + $0x90] sm:$0xff]
        %v2320 = vld [vmem:[%s240 + $0x98] sm:$0xff]
        %v2321 = vld [vmem:[%s240 + $0xa0] sm:$0xff]
        %v2322 = vld [vmem:[%s240 + $0xa8] sm:$0xff]
        %v2323 = vld [vmem:[%s240 + $0xb0] sm:$0xff]
        %v2324 = vld [vmem:[%s240 + $0xb8] sm:$0xff]
        %v2325 = vld [vmem:[%s240 + $0xc0] sm:$0xff]
        %v2326 = vld [vmem:[%s240 + $0xc8] sm:$0xff]
        %v2327 = vld [vmem:[%s240 + $0xd0] sm:$0xff]
        %v2328 = vld [vmem:[%s240 + $0xd8] sm:$0xff]
        %v2329 = vld [vmem:[%s240 + $0xe0] sm:$0xff]
        %v2330 = vld [vmem:[%s240 + $0xe8] sm:$0xff]
        %v2331 = vld [vmem:[%s240 + $0xf0] sm:$0xff]
        %v2332 = vld [vmem:[%s240 + $0xf8] sm:$0xff]
        %v2333 = vld [vmem:[%s240 + $0x100] sm:$0xff]
        %v2334 = vld [vmem:[%s240 + $0x108] sm:$0xff]
        %v2335 = vld [vmem:[%s240 + $0x110] sm:$0xff]
        %v2336 = vld [vmem:[%s240 + $0x118] sm:$0xff]
        %v2337 = vld [vmem:[%s240 + $0x120] sm:$0xff]
        %v2338 = vld [vmem:[%s240 + $0x128] sm:$0xff]
        %v2339 = vld [vmem:[%s240 + $0x130] sm:$0xff]
        %v2340 = vld [vmem:[%s240 + $0x138] sm:$0xff]
        %v2341 = vld [vmem:[%s240 + $0x140] sm:$0xff]
        %v2342 = vld [vmem:[%s240 + $0x148] sm:$0xff]
        %v2343 = vld [vmem:[%s240 + $0x150] sm:$0xff]
        %v2344 = vld [vmem:[%s240 + $0x158] sm:$0xff]
        %v2345 = vld [vmem:[%s240 + $0x160] sm:$0xff]
        %v2346 = vld [vmem:[%s240 + $0x168] sm:$0xff]
        %v2347 = vld [vmem:[%s240 + $0x170] sm:$0xff]
        %v2348 = vld [vmem:[%s240 + $0x178] sm:$0xff]
        %2349 = vmatprep.subr.mxu0 %v2302
        %2350 = vmatpush1.msra.mxu0 %v2301
        %2351 = vmatprep.subr.mxu0 %v2305
        %2352 = vmatpush1.msra.mxu0 %v2304
        %2353 = vmatprep.subr.mxu0 %v2308
        %2354 = vmatpush1.msra.mxu0 %v2307
        %2355 = vmatprep.subr.mxu0 %v2311
        %2356 = vmatpush1.msra.mxu0 %v2310
        %2357 = vmatprep.subr.mxu0 %v2314
        %2358 = vmatpush1.msra.mxu0 %v2313
        %2359 = vmatprep.subr.mxu0 %v2317
        %2360 = vmatpush1.msra.mxu0 %v2316
        %2361 = vmatprep.subr.mxu0 %v2320
        %2362 = vmatpush1.msra.mxu0 %v2319
        %2363 = vmatprep.subr.mxu0 %v2323
        %2364 = vmatpush1.msra.mxu0 %v2322
        %2365 = vmatprep.subr.mxu0 %v2326
        %2366 = vmatpush1.msra.mxu0 %v2325
        %2367 = vmatprep.subr.mxu0 %v2329
        %2368 = vmatpush1.msra.mxu0 %v2328
        %2369 = vmatprep.subr.mxu0 %v2332
        %2370 = vmatpush1.msra.mxu0 %v2331
        %2371 = vmatprep.subr.mxu0 %v2335
        %2372 = vmatpush1.msra.mxu0 %v2334
        %2373 = vmatprep.subr.mxu0 %v2338
        %2374 = vmatpush1.msra.mxu0 %v2337
        %2375 = vmatprep.subr.mxu0 %v2341
        %2376 = vmatpush1.msra.mxu0 %v2340
        %2377 = vmatprep.subr.mxu0 %v2344
        %2378 = vmatpush1.msra.mxu0 %v2343
        %2379 = vmatprep.subr.mxu0 %v2347
        %2380 = vmatpush1.msra.mxu0 %v2346
        %2381 = vmatprep.subr.mxu0 0.0
        %2382 = vmatpush1.msra.mxu0 0.0
        %2383 = vmatprep.subr.mxu0 0.0
        %2384 = vmatpush1.msra.mxu0 0.0
        %2385 = vmatprep.subr.mxu0 0.0
        %2386 = vmatpush1.msra.mxu0 0.0
        %2387 = vmatprep.subr.mxu0 0.0
        %2388 = vmatpush1.msra.mxu0 0.0
        %2389 = vmatprep.subr.mxu0 0.0
        %2390 = vmatpush1.msra.mxu0 0.0
        %2391 = vmatprep.subr.mxu0 0.0
        %2392 = vmatpush1.msra.mxu0 0.0
        %2393 = vmatprep.subr.mxu0 0.0
        %2394 = vmatpush1.msra.mxu0 0.0
        %2395 = vmatprep.subr.mxu0 0.0
        %2396 = vmatpush1.msra.mxu0 0.0
        %2397 = vmatprep.subr.mxu0 0.0
        %2398 = vmatpush1.msra.mxu0 0.0
        %2399 = vmatprep.subr.mxu0 0.0
        %2400 = vmatpush1.msra.mxu0 0.0
        %2401 = vmatprep.subr.mxu0 0.0
        %2402 = vmatpush1.msra.mxu0 0.0
        %2403 = vmatprep.subr.mxu0 0.0
        %2404 = vmatpush1.msra.mxu0 0.0
        %2405 = vmatprep.subr.mxu0 0.0
        %2406 = vmatpush1.msra.mxu0 0.0
        %2407 = vmatprep.subr.mxu0 0.0
        %2408 = vmatpush1.msra.mxu0 0.0
        %2409 = vmatprep.subr.mxu0 0.0
        %2410 = vmatpush1.msra.mxu0 0.0
        %2411 = vmatprep.subr.mxu0 0.0
        %2412 = vmatpush1.msra.mxu0 0.0
        %2413 = vmatprep.mubr.f32.mxu0 0.0
        %2414 = vmatmul.mubr.f32.gmra.mrb[0].mxu0 %v2300
        %v2415 = vpop.f32.mrb[0].mxu0
        %v2416 = vadd.f32 0.0, %v2415
        %v2417 = vpop.f32.mrb[0].mxu0
        %v2418 = vadd.f32 0.0, %v2417
        %2419 = vdwg.mxu0
        %2420 = vmatprep.subr.mxu0 0.0
        %2421 = vmatpush1.msra.mxu0 %v2303
        %2422 = vmatprep.subr.mxu0 0.0
        %2423 = vmatpush1.msra.mxu0 %v2306
        %2424 = vmatprep.subr.mxu0 0.0
        %2425 = vmatpush1.msra.mxu0 %v2309
        %2426 = vmatprep.subr.mxu0 0.0
        %2427 = vmatpush1.msra.mxu0 %v2312
        %2428 = vmatprep.subr.mxu0 0.0
        %2429 = vmatpush1.msra.mxu0 %v2315
        %2430 = vmatprep.subr.mxu0 0.0
        %2431 = vmatpush1.msra.mxu0 %v2318
        %2432 = vmatprep.subr.mxu0 0.0
        %2433 = vmatpush1.msra.mxu0 %v2321
        %2434 = vmatprep.subr.mxu0 0.0
        %2435 = vmatpush1.msra.mxu0 %v2324
        %2436 = vmatprep.subr.mxu0 0.0
        %2437 = vmatpush1.msra.mxu0 %v2327
        %2438 = vmatprep.subr.mxu0 0.0
        %2439 = vmatpush1.msra.mxu0 %v2330
        %2440 = vmatprep.subr.mxu0 0.0
        %2441 = vmatpush1.msra.mxu0 %v2333
        %2442 = vmatprep.subr.mxu0 0.0
        %2443 = vmatpush1.msra.mxu0 %v2336
        %2444 = vmatprep.subr.mxu0 0.0
        %2445 = vmatpush1.msra.mxu0 %v2339
        %2446 = vmatprep.subr.mxu0 0.0
        %2447 = vmatpush1.msra.mxu0 %v2342
        %2448 = vmatprep.subr.mxu0 0.0
        %2449 = vmatpush1.msra.mxu0 %v2345
        %2450 = vmatprep.subr.mxu0 0.0
        %2451 = vmatpush1.msra.mxu0 %v2348
        %2452 = vmatprep.subr.mxu0 0.0
        %2453 = vmatpush1.msra.mxu0 0.0
        %2454 = vmatprep.subr.mxu0 0.0
        %2455 = vmatpush1.msra.mxu0 0.0
        %2456 = vmatprep.subr.mxu0 0.0
        %2457 = vmatpush1.msra.mxu0 0.0
        %2458 = vmatprep.subr.mxu0 0.0
        %2459 = vmatpush1.msra.mxu0 0.0
        %2460 = vmatprep.subr.mxu0 0.0
        %2461 = vmatpush1.msra.mxu0 0.0
        %2462 = vmatprep.subr.mxu0 0.0
        %2463 = vmatpush1.msra.mxu0 0.0
        %2464 = vmatprep.subr.mxu0 0.0
        %2465 = vmatpush1.msra.mxu0 0.0
        %2466 = vmatprep.subr.mxu0 0.0
        %2467 = vmatpush1.msra.mxu0 0.0
        %2468 = vmatprep.subr.mxu0 0.0
        %2469 = vmatpush1.msra.mxu0 0.0
        %2470 = vmatprep.subr.mxu0 0.0
        %2471 = vmatpush1.msra.mxu0 0.0
        %2472 = vmatprep.subr.mxu0 0.0
        %2473 = vmatpush1.msra.mxu0 0.0
        %2474 = vmatprep.subr.mxu0 0.0
        %2475 = vmatpush1.msra.mxu0 0.0
        %2476 = vmatprep.subr.mxu0 0.0
        %2477 = vmatpush1.msra.mxu0 0.0
        %2478 = vmatprep.subr.mxu0 0.0
        %2479 = vmatpush1.msra.mxu0 0.0
        %2480 = vmatprep.subr.mxu0 0.0
        %2481 = vmatpush1.msra.mxu0 0.0
        %2482 = vmatprep.subr.mxu0 0.0
        %2483 = vmatpush1.msra.mxu0 0.0
        %2484 = vmatprep.mubr.f32.mxu0 0.0
        %2485 = vmatmul.mubr.f32.gmra.mrb[0].mxu0 %v2300
        %v2486 = vpop.f32.mrb[0].mxu0
        %v2487 = vadd.f32 0.0, %v2486
        %v2488 = vpop.f32.mrb[0].mxu0
        %2489 = vdwg.mxu0
        %v2490 = vadd.f32 %v2297, %v2416
        %v2491 = vxor.u32 %v2490, 2147483648
        %v2492 = vmul.f32 %v2491, 1.442695
        %v2493 = vpow.pop %v2492
        %v2494 = vadd.f32 %v2493, 1.0
        %v2495 = vrcp.pop %v2494
        %v2496 = vmul.f32 1.0, %v2495
        %v2497 = vadd.f32 %v2298, %v2418
        %v2498 = vxor.u32 %v2497, 2147483648
        %v2499 = vmul.f32 %v2498, 1.442695
        %v2500 = vpow.pop %v2499
        %v2501 = vadd.f32 %v2500, 1.0
        %v2502 = vrcp.pop %v2501
        %v2503 = vmul.f32 1.0, %v2502
        %v2504 = vld [vmem:[%s289] sm:$0x1]
        %v2506 = vlaneseq
        %v2507 = vshrl.u32 %v2506, 7
        %v2508 = vsub.s32 0, %v2507
        %v2509 = vrot.slane %v2504, %v2508
        %v2511 = vadd.f32 %v2487, %v2509
        %v2512 = vmul.f32 %v2496, %v2511
        %v2513 = vadd.f32 %v2299, %v2512
        %v2514 = vtanh.pop %v2513
        %v2515 = vsub.f32 1.0, %v2503
        %v2516 = vmul.f32 %v2515, %v2514
        %v2517 = vmul.f32 %v2503, %v2300
        %v2518 = vadd.f32 %v2516, %v2517
        %2519 = vst [vmem:[#allocation3] sm:$0xff] %v2518
        %s2520 = scalar_lea.vmem %s277, %s2291 [#allocation6]
        %2521 = vst [vmem:[%s2520] sm:$0xff] %v2518
        %s2522 = sand.u32 %s152, 1
        %s2523 = sand.u32 %s152, 1
        %s2524 = smul.addr %s2523, 64
        %s2525 = scalar_lea.vmem [#allocation6], %s2524
        // Predicated region
        $region45: #{bigru_forward.3} parent=39 // pred_check
          %p2526 = pneg %p162
        $region46: #{bigru_forward.3} parent=39 // pred_check_branch
          %2528 = sbr.rel (%p2526) target = $region48
        $region47: #{bigru_forward.3} parent=39 // pred_region
          %s2529 = smul.addr %s19, 8
          %s2530 = scalar_lea.vmem %s5, %s2529
          // Predicated region
          $region49: #{bigru_forward.3} parent=47 // pred_check
            _
          $region50: #{bigru_forward.3} parent=47 // pred_check_branch
            %2532 = sbr.rel (0) target = $region52
          $region51: #{bigru_forward.3} parent=47 // pred_region
            // Predicated region
            $region53: #{bigru_forward.3} parent=51 // pred_check
              _
            $region54: #{bigru_forward.3} parent=51 // pred_check_branch
              %2534 = sbr.rel (0) target = $region56
            $region55: #{bigru_forward.3} parent=51 // pred_region
              // Predicated region
              $region68: #{bigru_forward.3} parent=55 // pred_check
                _
              $region69: #{bigru_forward.3} parent=55 // pred_check_branch
                %2563 = sbr.rel (0) target = $region71
              $region70: #{bigru_forward.3} parent=55 // pred_region
                loop: start=0, step=1, limit=1
                $region72: #{bigru_forward.3} parent=70 // loop_pre_header
                  _
                $region73: #{bigru_forward.3} parent=70 // loop_header
                  %s2565 = sphi 0, %s2569
                  %p2566 = scmp.ge.s32.totalorder %s2565, 1
                  %s2570 = sphi %s2525, %s2525
                  %s2571 = sphi %s2530, %s2530
                $region74: #{bigru_forward.3} parent=70 // loop_header_branch
                  %2568 = sbr.rel (%p2566) target = $region78
                $region75: #{bigru_forward.3} parent=70 // loop_body
                  %v2572 = vld [vmem:[%s2570] sm:$0xff]
                  %2573 = vst [vmem:[%s2571] sm:$0xff] %v2572
                  %v2574 = vld [vmem:[%s2570 + $0x8] sm:$0xff]
                  %2575 = vst [vmem:[%s2571 + $0x10] sm:$0xff] %v2574
                  %v2576 = vld [vmem:[%s2570 + $0x10] sm:$0xff]
                  %2577 = vst [vmem:[%s2571 + $0x20] sm:$0xff] %v2576
                  %v2578 = vld [vmem:[%s2570 + $0x18] sm:$0xff]
                  %2579 = vst [vmem:[%s2571 + $0x30] sm:$0xff] %v2578
                  %v2580 = vld [vmem:[%s2570 + $0x20] sm:$0xff]
                  %2581 = vst [vmem:[%s2571 + $0x40] sm:$0xff] %v2580
                  %v2582 = vld [vmem:[%s2570 + $0x28] sm:$0xff]
                  %2583 = vst [vmem:[%s2571 + $0x50] sm:$0xff] %v2582
                  %v2584 = vld [vmem:[%s2570 + $0x30] sm:$0xff]
                  %2585 = vst [vmem:[%s2571 + $0x60] sm:$0xff] %v2584
                  %v2586 = vld [vmem:[%s2570 + $0x38] sm:$0xff]
                  %2587 = vst [vmem:[%s2571 + $0x70] sm:$0xff] %v2586
                $region76: #{bigru_forward.3} parent=70 // loop_footer
                  %s2569 = sadd.s32 1, %s2565
                $region77: #{bigru_forward.3} parent=70 // loop_footer_branch
                  %2564 = sbr.rel target = $region73
                $region78: #{bigru_forward.3} parent=70 // loop_exit
                  _
              $region71: #{bigru_forward.3} parent=55 // pred_fallthru
                _
              // Predicated region
              $region79: #{bigru_forward.3} parent=55 // pred_check
                _
              $region80: #{bigru_forward.3} parent=55 // pred_check_branch
                %2589 = sbr.rel target = $region82
              $region81: #{bigru_forward.3} parent=55 // pred_region
                _
              $region82: #{bigru_forward.3} parent=55 // pred_fallthru
                _
            $region56: #{bigru_forward.3} parent=51 // pred_fallthru
              _
            // Predicated region
            $region57: #{bigru_forward.3} parent=51 // pred_check
              _
            $region58: #{bigru_forward.3} parent=51 // pred_check_branch
              %2536 = sbr.rel target = $region60
            $region59: #{bigru_forward.3} parent=51 // pred_region
              loop: start=0, step=1, limit=1
              $region61: #{bigru_forward.3} parent=59 // loop_pre_header
                _
              $region62: #{bigru_forward.3} parent=59 // loop_header
                %s2539 = sphi 0, %s2543
                %p2540 = scmp.ge.s32.totalorder %s2539, 1
                %s2544 = sphi %s2525, %s2525
                %s2545 = sphi %s2530, %s2530
              $region63: #{bigru_forward.3} parent=59 // loop_header_branch
                %2542 = sbr.rel (%p2540) target = $region67
              $region64: #{bigru_forward.3} parent=59 // loop_body
                %v2546 = vld [vmem:[%s2544] sm:$0xff]
                %2547 = vst [vmem:[%s2545] sm:$0xff] %v2546
                %v2548 = vld [vmem:[%s2544 + $0x8] sm:$0xff]
                %2549 = vst [vmem:[%s2545 + $0x10] sm:$0xff] %v2548
                %v2550 = vld [vmem:[%s2544 + $0x10] sm:$0xff]
                %2551 = vst [vmem:[%s2545 + $0x20] sm:$0xff] %v2550
                %v2552 = vld [vmem:[%s2544 + $0x18] sm:$0xff]
                %2553 = vst [vmem:[%s2545 + $0x30] sm:$0xff] %v2552
                %v2554 = vld [vmem:[%s2544 + $0x20] sm:$0xff]
                %2555 = vst [vmem:[%s2545 + $0x40] sm:$0xff] %v2554
                %v2556 = vld [vmem:[%s2544 + $0x28] sm:$0xff]
                %2557 = vst [vmem:[%s2545 + $0x50] sm:$0xff] %v2556
                %v2558 = vld [vmem:[%s2544 + $0x30] sm:$0xff]
                %2559 = vst [vmem:[%s2545 + $0x60] sm:$0xff] %v2558
                %v2560 = vld [vmem:[%s2544 + $0x38] sm:$0xff]
                %2561 = vst [vmem:[%s2545 + $0x70] sm:$0xff] %v2560
              $region65: #{bigru_forward.3} parent=59 // loop_footer
                %s2543 = sadd.s32 1, %s2539
              $region66: #{bigru_forward.3} parent=59 // loop_footer_branch
                %2538 = sbr.rel target = $region62
              $region67: #{bigru_forward.3} parent=59 // loop_exit
                _
            $region60: #{bigru_forward.3} parent=51 // pred_fallthru
              _
          $region52: #{bigru_forward.3} parent=47 // pred_fallthru
            _
          %2590 = vnop
        $region48: #{bigru_forward.3} parent=39 // pred_fallthru
          _
      $region40: #{bigru_forward.3} parent=5 // pred_fallthru
        _
      %p2591 = scmp.le.s32.totalorder 2, %s14
      // Predicated region
      $region83: #{bigru_forward.3} parent=5 // pred_check
        %p2592 = pneg %p2591
      $region84: #{bigru_forward.3} parent=5 // pred_check_branch
        %2594 = sbr.rel (%p2592) target = $region86
      $region85: #{bigru_forward.3} parent=5 // pred_region
        %s2595 = ssub.s32 %s14, 2
        // Predicated region
        $region87: #{bigru_forward.3} parent=85 // pred_check
          %p2596 = pneg %p168
        $region88: #{bigru_forward.3} parent=85 // pred_check_branch
          %2598 = sbr.rel (%p2596) target = $region90
        $region89: #{bigru_forward.3} parent=85 // pred_region
          %s2599 = sand.u32 %s153, 1
          %s2600 = sand.u32 %s153, 1
          %s2601 = smul.addr %s2600, 64
          %s2602 = scalar_lea.vmem [#allocation6], %s2601
        $region90: #{bigru_forward.3} parent=85 // pred_fallthru
          _
      $region86: #{bigru_forward.3} parent=5 // pred_fallthru
        _
    $region6: #{bigru_forward.3} parent=1 // loop_footer
      %s18 = sadd.s32 1, %s14
    $region7: #{bigru_forward.3} parent=1 // loop_footer_branch
      %13 = sbr.rel target = $region3
    $region8: #{bigru_forward.3} parent=1 // loop_exit
      _
    %2603 = vsyncpa [#allocation5], 1
    %s2604 = scalar_lea.sflag [#allocation5], 1
    %2605 = vsyncpa %s2604, 1

</llo_original>
